<compile_context>
chip_gen: v6e
topology: v6e:2x2x1
jax: 0.10.0
libtpu: 0.0.40
codegen_flags: <defaults>
</compile_context>

<pallas_src>
import jax
import jax.numpy as jnp
import numpy as np
from jax.experimental import pallas as pl
from jax.experimental.pallas import tpu as pltpu

# ------------------------------- configuration -------------------------------
SPEED_OF_SOUND = 343.0
SAMPLING_FREQUENCY = 12000.0
RECORDING_LENGTH = 128          # T, power of 2
CROP_LENGTH = 32                # L, power of 2
NUM_RECEIVERS = 4               # R
HIDDEN_FEATURES = 32            # H
BN_EPS = 1e-5
LEAKY_SLOPE = 0.1

B1, B2 = 2, 64                  # sample_locations batch dims
N = B1 * B2
F = NUM_RECEIVERS * CROP_LENGTH
H = HIDDEN_FEATURES
MAX_START = RECORDING_LENGTH - CROP_LENGTH - 1   # window always fully in-bounds


# --------------------------- time-of-flight crop (reference) -----------------
# TODO(synk): the original `time_of_flight_crop` source was not provided; this
# is a standard formulation (emitter->sample->receiver delay, linearly
# interpolated length-L window clamped inside the recording, amplitude
# correction = d_emitter * d_receiver).  The Pallas kernel implements exactly
# this definition.
def time_of_flight_crop(recordings, sample_locations, emitter_location,
                        receiver_locations, speed_of_sound, sampling_frequency,
                        crop_length_samples, apply_amplitude_correction):
    b1, r, t = recordings.shape
    b2 = sample_locations.shape[1]
    d_e = jnp.linalg.norm(sample_locations - emitter_location[None, None, :],
                          axis=-1)                                     # (B1,B2)
    d_r = jnp.linalg.norm(sample_locations[:, :, None, :]
                          - receiver_locations[None, None, :, :],
                          axis=-1)                                     # (B1,B2,R)
    delay = (d_e[:, :, None] + d_r) / speed_of_sound * sampling_frequency
    start = jnp.clip(jnp.floor(delay), 0.0, float(t - crop_length_samples - 1))
    frac = jnp.clip(delay - start, 0.0, 1.0)[..., None]                # (B1,B2,R,1)
    idx = start.astype(jnp.int32)[..., None] \
        + jnp.arange(crop_length_samples, dtype=jnp.int32)            # (B1,B2,R,L)
    rec = jnp.broadcast_to(recordings[:, None, :, :], (b1, b2, r, t))
    g0 = jnp.take_along_axis(rec, idx, axis=-1)
    g1 = jnp.take_along_axis(rec, idx + 1, axis=-1)
    cropped = g0 * (1.0 - frac) + g1 * frac
    if apply_amplitude_correction:
        cropped = cropped * (d_e[:, :, None] * d_r)[..., None]
    return cropped                                                     # (B1,B2,R,L)


# ------------------------------- Pallas kernel --------------------------------
def _leaky(x):
    return jnp.where(x >= 0, x, LEAKY_SLOPE * x)


def tof_kernel(rec_ref, loc_ref, w1f_ref, w2_ref, hvec_ref, scal_ref, out_ref):
    """Fused crop (interp-weight matmul) + BN-folded MLP, all f32.

    rec_ref : (B1, R, T)  recordings
    loc_ref : (B1, B2, 3) sample locations
    w1f_ref : (F, H)      BN-folded first linear
    w2_ref  : (H, H)
    hvec_ref: (H, 3)      columns = [b1_folded, b2, w3]
    scal_ref: (3+3R+1,)   SMEM: emitter xyz, receiver xyz * R, b3
    out_ref : (B1, B2)
    """
    T, L, R = RECORDING_LENGTH, CROP_LENGTH, NUM_RECEIVERS

    # ---- hoisted loads / constants ------------------------------------------
    rec = rec_ref[...]                                   # (B1, R, T)
    w2 = w2_ref[...]                                     # (H, H)
    b1c = hvec_ref[:, 0:1]                               # (H, 1)
    b2c = hvec_ref[:, 1:2]                               # (H, 1)
    w3c = hvec_ref[:, 2:3]                               # (H, 1)
    w1_slices = [w1f_ref[r * L:(r + 1) * L, :] for r in range(R)]   # (L, H) each
    ex, ey, ez = scal_ref[0], scal_ref[1], scal_ref[2]
    rxyz = [(scal_ref[3 + 3 * r], scal_ref[4 + 3 * r], scal_ref[5 + 3 * r])
            for r in range(R)]
    b3 = scal_ref[3 + 3 * R]
    t_iota = jax.lax.broadcasted_iota(jnp.int32, (B2, T), 1)
    zpad = jnp.zeros((1, L), jnp.float32)
    delay_scale = SAMPLING_FREQUENCY / SPEED_OF_SOUND
    max_start = float(MAX_START)

    for b1 in range(B1):
        # sample -> emitter distance; (B2, 1) columns (b2 on sublanes).
        locb = loc_ref[b1]                               # (B2, 3)
        lx, ly, lz = locb[:, 0:1], locb[:, 1:2], locb[:, 2:3]
        d_e = jnp.sqrt((lx - ex) ** 2 + (ly - ey) ** 2 + (lz - ez) ** 2)

        acc = jnp.zeros((H, B2), jnp.float32)            # layer-1 pre-activations
        for r in range(R):
            rx, ry, rz = rxyz[r]
            d_r = jnp.sqrt((lx - rx) ** 2 + (ly - ry) ** 2 + (lz - rz) ** 2)
            delay = (d_e + d_r) * delay_scale            # fractional sample index
            amp = d_e * d_r                              # amplitude correction
            i0f = jnp.clip(jnp.floor(delay), 0.0, max_start)
            frac = jnp.clip(delay - i0f, 0.0, 1.0)
            i0 = i0f.astype(jnp.int32)                   # (B2, 1)

            # Interp-weight selection matrix, amplitude folded in (linear op).
            sel = (jnp.where(t_iota == i0, (1.0 - frac) * amp, 0.0)
                   + jnp.where(t_iota == i0 + 1, frac * amp, 0.0))   # (B2, T)

            # Sliding-window (Hankel) view of this receiver's recording; the
            # zero-padded tail is never selected (i0 <= T-L-1).
            row = jnp.concatenate([rec[b1, r:r + 1, :], zpad], axis=1)  # (1, T+L)
            hank = jnp.concatenate([row[:, l:l + T] for l in range(L)],
                                   axis=0)                              # (L, T)

            # Crop block, transposed so b2 stays lane-dense: (L, B2) via MXU.
            block_t = jax.lax.dot_general(
                hank, sel, (((1,), (1,)), ((), ())),
                preferred_element_type=jnp.float32)

            # Layer 1 (BN folded into w1f): accumulate over receivers.
            acc = acc + jax.lax.dot_general(
                w1_slices[r], block_t, (((0,), (0,)), ((), ())),
                preferred_element_type=jnp.float32)                     # (H, B2)

        h = _leaky(acc + b1c)
        h = jax.lax.dot_general(w2, h, (((0,), (0,)), ((), ())),
                                preferred_element_type=jnp.float32)     # (H, B2)
        h = _leaky(h + b2c)
        # Layer 3 (H -> 1): elementwise mul + sublane reduce; +b3 in-kernel.
        y = jnp.sum(w3c * h, axis=0) + b3                               # (B2,)
        out_ref[b1, :] = y


def _whole(shape):
    zeros = (0,) * len(shape)
    return pl.BlockSpec(shape, lambda i, z=zeros: z)


def tof_net_forward(recordings, sample_locations, w1f, w2c, hvec, scal):
    """Jitted forward = exactly one pallas_call (no wrapper activation ops)."""
    return pl.pallas_call(
        tof_kernel,
        out_shape=jax.ShapeDtypeStruct((B1, B2), jnp.float32),
        grid=(1,),
        in_specs=[
            _whole((B1, NUM_RECEIVERS, RECORDING_LENGTH)),   # recordings
            _whole((B1, B2, 3)),                             # sample locations
            _whole((F, H)),                                  # BN-folded W1
            _whole((H, H)),                                  # W2
            _whole((H, 3)),                                  # [b1', b2, w3]
            pl.BlockSpec(memory_space=pltpu.MemorySpace.SMEM),  # geometry + b3
        ],
        out_specs=_whole((B1, B2)),
        compiler_params=pltpu.CompilerParams(
            dimension_semantics=("arbitrary",)),
    )(recordings, sample_locations, w1f, w2c, hvec, scal)


# --------------------------- one-time parameter prep --------------------------
def prepare_params(params):
    # Fold eval-mode BatchNorm1d(R) into the first Linear (exact algebra):
    #   (scale*x + shift) @ W1 + b1 = x @ (scale[:,None]*W1) + (shift @ W1 + b1)
    inv_std = 1.0 / jnp.sqrt(params["bn_var"] + BN_EPS)
    scale_c = params["bn_gamma"] * inv_std                      # (R,)
    shift_c = params["bn_beta"] - params["bn_mean"] * scale_c   # (R,)
    scale_f = jnp.repeat(scale_c, CROP_LENGTH)                  # (F,)
    shift_f = jnp.repeat(shift_c, CROP_LENGTH)                  # (F,)
    w1f = (scale_f[:, None] * params["w1"]).astype(jnp.float32)            # (F,H)
    b1f = shift_f @ params["w1"] + params["b1"][0]                          # (H,)
    hvec = jnp.stack([b1f, params["b2"][0], params["w3"][:, 0]],
                     axis=1).astype(jnp.float32)                            # (H,3)
    scal = jnp.concatenate([params["emitter_location"],
                            params["receiver_locations"].reshape(-1),
                            params["b3"].reshape(-1)]).astype(jnp.float32)  # (16,)
    return w1f, params["w2"].astype(jnp.float32), hvec, scal


# --------------------------- pure-JAX reference -------------------------------
def tof_net_reference(recordings, sample_locations, params):
    cropped = time_of_flight_crop(
        recordings, sample_locations, params["emitter_location"],
        params["receiver_locations"], SPEED_OF_SOUND, SAMPLING_FREQUENCY,
        CROP_LENGTH, True)
    x = cropped.reshape(N, NUM_RECEIVERS, CROP_LENGTH)
    xn = ((x - params["bn_mean"][None, :, None])
          / jnp.sqrt(params["bn_var"][None, :, None] + BN_EPS)
          * params["bn_gamma"][None, :, None] + params["bn_beta"][None, :, None])
    xf = xn.reshape(N, F)
    h1 = xf @ params["w1"] + params["b1"]
    h1 = jnp.where(h1 >= 0, h1, LEAKY_SLOPE * h1)
    h2 = h1 @ params["w2"] + params["b2"]
    h2 = jnp.where(h2 >= 0, h2, LEAKY_SLOPE * h2)
    y = h2 @ params["w3"] + params["b3"]
    return y.reshape(B1, B2)


# ------------------------------ parameter init --------------------------------
def init_params(key):
    ks = jax.random.split(key, 4)

    def linear(k, fan_in, fan_out):
        bound = 1.0 / np.sqrt(fan_in)
        kw, kb = jax.random.split(k)
        w = jax.random.uniform(kw, (fan_in, fan_out), jnp.float32, -bound, bound)
        b = jax.random.uniform(kb, (1, fan_out), jnp.float32, -bound, bound)
        return w, b

    w1, b1 = linear(ks[0], F, H)
    w2, b2 = linear(ks[1], H, H)
    w3, b3 = linear(ks[2], H, 1)

    r = NUM_RECEIVERS
    return dict(
        emitter_location=jnp.zeros((3,), jnp.float32),
        receiver_locations=jnp.array(
            [[0.10, 0.00, 0.00],
             [0.00, 0.10, 0.00],
             [-0.10, 0.00, 0.00],
             [0.00, -0.10, 0.00]], jnp.float32),
        bn_gamma=1.0 + 0.05 * jnp.arange(r, dtype=jnp.float32),
        bn_beta=0.02 * jnp.arange(r, dtype=jnp.float32),
        bn_mean=0.01 * jnp.arange(r, dtype=jnp.float32),
        bn_var=1.0 + 0.1 * jnp.arange(r, dtype=jnp.float32),
        w1=w1, b1=b1, w2=w2, b2=b2, w3=w3, b3=b3,
    )


# ----------------------------------- main -------------------------------------
if __name__ == "__main__":
    key = jax.random.PRNGKey(0)
    k_rec, k_loc, k_par = jax.random.split(key, 3)

    recordings = jax.random.normal(
        k_rec, (B1, NUM_RECEIVERS, RECORDING_LENGTH), jnp.float32)
    sample_locations = jax.random.uniform(
        k_loc, (B1, B2, 3), jnp.float32, minval=0.2, maxval=0.7)
    params = init_params(k_par)

    # One-time parameter packing (outside the per-call hot path).
    w1f, w2c, hvec, scal = prepare_params(params)

    fwd = jax.jit(tof_net_forward)
    out = fwd(recordings, sample_locations, w1f, w2c, hvec, scal)
    out = jax.block_until_ready(out)
    assert out.shape == (B1, B2) and out.dtype == jnp.float32

    ref = tof_net_reference(recordings, sample_locations, params)
    np.testing.assert_allclose(np.asarray(out), np.asarray(ref),
                               rtol=1e-3, atol=1e-3)

    print("KERNEL_OK")
</pallas_src>

<mosaic_0001>
module attributes {stable_mosaic.version = 11 : i64} {
  func.func @tof_kernel(%arg0: i32, %arg1: memref<2x4x128xf32, #tpu.memory_space<vmem>>, %arg2: memref<2x64x3xf32, #tpu.memory_space<vmem>>, %arg3: memref<128x32xf32, #tpu.memory_space<vmem>>, %arg4: memref<32x32xf32, #tpu.memory_space<vmem>>, %arg5: memref<32x3xf32, #tpu.memory_space<vmem>>, %arg6: memref<16xf32, #tpu.memory_space<smem>>, %arg7: memref<2x64xf32, #tpu.memory_space<vmem>>) attributes {dimension_semantics = [#tpu.dimension_semantics<arbitrary>], iteration_bounds = array<i64: 1>, scalar_prefetch = 0 : i64, scratch_operands = 0 : i64, tpu.core_type = #tpu.core_type<tc>, window_params = [{pipeline_mode = #tpu.pipeline_mode<synchronous>, transform_indices = @transform_0, window_bounds = array<i64: 2, 4, 128>}, {pipeline_mode = #tpu.pipeline_mode<synchronous>, transform_indices = @transform_1, window_bounds = array<i64: 2, 64, 3>}, {pipeline_mode = #tpu.pipeline_mode<synchronous>, transform_indices = @transform_2, window_bounds = array<i64: 128, 32>}, {pipeline_mode = #tpu.pipeline_mode<synchronous>, transform_indices = @transform_3, window_bounds = array<i64: 32, 32>}, {pipeline_mode = #tpu.pipeline_mode<synchronous>, transform_indices = @transform_4, window_bounds = array<i64: 32, 3>}, {transform_indices = @transform_5, window_bounds = array<i64: 16>}, {pipeline_mode = #tpu.pipeline_mode<synchronous>, transform_indices = @transform_6, window_bounds = array<i64: 2, 64>}]} {
    %c0 = arith.constant 0 : index
    %c0_0 = arith.constant 0 : index
    %c0_1 = arith.constant 0 : index
    %0 = vector.load %arg1[%c0, %c0_0, %c0_1] : memref<2x4x128xf32, #tpu.memory_space<vmem>>, vector<2x4x128xf32>
    %c0_2 = arith.constant 0 : index
    %c0_3 = arith.constant 0 : index
    %1 = vector.load %arg4[%c0_2, %c0_3] : memref<32x32xf32, #tpu.memory_space<vmem>>, vector<32x32xf32>
    %c0_4 = arith.constant 0 : index
    %c0_5 = arith.constant 0 : index
    %2 = vector.load %arg5[%c0_4, %c0_5] : memref<32x3xf32, #tpu.memory_space<vmem>>, vector<32x1xf32>
    %c0_6 = arith.constant 0 : index
    %c1 = arith.constant 1 : index
    %3 = vector.load %arg5[%c0_6, %c1] : memref<32x3xf32, #tpu.memory_space<vmem>>, vector<32x1xf32>
    %c0_7 = arith.constant 0 : index
    %c2 = arith.constant 2 : index
    %4 = vector.load %arg5[%c0_7, %c2] : memref<32x3xf32, #tpu.memory_space<vmem>>, vector<32x1xf32>
    %c0_8 = arith.constant 0 : index
    %c0_9 = arith.constant 0 : index
    %5 = vector.load %arg3[%c0_8, %c0_9] : memref<128x32xf32, #tpu.memory_space<vmem>>, vector<32x32xf32>
    %c32 = arith.constant 32 : index
    %c0_10 = arith.constant 0 : index
    %6 = vector.load %arg3[%c32, %c0_10] : memref<128x32xf32, #tpu.memory_space<vmem>>, vector<32x32xf32>
    %c64 = arith.constant 64 : index
    %c0_11 = arith.constant 0 : index
    %7 = vector.load %arg3[%c64, %c0_11] : memref<128x32xf32, #tpu.memory_space<vmem>>, vector<32x32xf32>
    %c96 = arith.constant 96 : index
    %c0_12 = arith.constant 0 : index
    %8 = vector.load %arg3[%c96, %c0_12] : memref<128x32xf32, #tpu.memory_space<vmem>>, vector<32x32xf32>
    %c0_13 = arith.constant 0 : index
    %9 = memref.load %arg6[%c0_13] : memref<16xf32, #tpu.memory_space<smem>>
    %c1_14 = arith.constant 1 : index
    %10 = memref.load %arg6[%c1_14] : memref<16xf32, #tpu.memory_space<smem>>
    %c2_15 = arith.constant 2 : index
    %11 = memref.load %arg6[%c2_15] : memref<16xf32, #tpu.memory_space<smem>>
    %c3 = arith.constant 3 : index
    %12 = memref.load %arg6[%c3] : memref<16xf32, #tpu.memory_space<smem>>
    %c4 = arith.constant 4 : index
    %13 = memref.load %arg6[%c4] : memref<16xf32, #tpu.memory_space<smem>>
    %c5 = arith.constant 5 : index
    %14 = memref.load %arg6[%c5] : memref<16xf32, #tpu.memory_space<smem>>
    %c6 = arith.constant 6 : index
    %15 = memref.load %arg6[%c6] : memref<16xf32, #tpu.memory_space<smem>>
    %c7 = arith.constant 7 : index
    %16 = memref.load %arg6[%c7] : memref<16xf32, #tpu.memory_space<smem>>
    %c8 = arith.constant 8 : index
    %17 = memref.load %arg6[%c8] : memref<16xf32, #tpu.memory_space<smem>>
    %c9 = arith.constant 9 : index
    %18 = memref.load %arg6[%c9] : memref<16xf32, #tpu.memory_space<smem>>
    %c10 = arith.constant 10 : index
    %19 = memref.load %arg6[%c10] : memref<16xf32, #tpu.memory_space<smem>>
    %c11 = arith.constant 11 : index
    %20 = memref.load %arg6[%c11] : memref<16xf32, #tpu.memory_space<smem>>
    %c12 = arith.constant 12 : index
    %21 = memref.load %arg6[%c12] : memref<16xf32, #tpu.memory_space<smem>>
    %c13 = arith.constant 13 : index
    %22 = memref.load %arg6[%c13] : memref<16xf32, #tpu.memory_space<smem>>
    %c14 = arith.constant 14 : index
    %23 = memref.load %arg6[%c14] : memref<16xf32, #tpu.memory_space<smem>>
    %c15 = arith.constant 15 : index
    %24 = memref.load %arg6[%c15] : memref<16xf32, #tpu.memory_space<smem>>
    %25 = tpu.iota {dimensions = array<i32: 1>} : vector<64x128xi32>
    %cst = arith.constant 0.000000e+00 : f32
    %26 = vector.broadcast %cst : f32 to vector<1x32xf32>
    %c0_16 = arith.constant 0 : index
    %c0_17 = arith.constant 0 : index
    %c0_18 = arith.constant 0 : index
    %27 = vector.load %arg2[%c0_16, %c0_17, %c0_18] : memref<2x64x3xf32, #tpu.memory_space<vmem>>, vector<1x64x3xf32>
    %28 = vector.shape_cast %27 : vector<1x64x3xf32> to vector<64x3xf32>
    %29 = vector.extract_strided_slice %28 {offsets = [0, 0], sizes = [64, 1], strides = [1, 1]} : vector<64x3xf32> to vector<64x1xf32>
    %30 = vector.extract_strided_slice %28 {offsets = [0, 1], sizes = [64, 1], strides = [1, 1]} : vector<64x3xf32> to vector<64x1xf32>
    %31 = vector.extract_strided_slice %28 {offsets = [0, 2], sizes = [64, 1], strides = [1, 1]} : vector<64x3xf32> to vector<64x1xf32>
    %32 = vector.broadcast %9 : f32 to vector<64x1xf32>
    %33 = arith.subf %29, %32 : vector<64x1xf32>
    %34 = arith.mulf %33, %33 : vector<64x1xf32>
    %35 = vector.broadcast %10 : f32 to vector<64x1xf32>
    %36 = arith.subf %30, %35 : vector<64x1xf32>
    %37 = arith.mulf %36, %36 : vector<64x1xf32>
    %38 = arith.addf %34, %37 : vector<64x1xf32>
    %39 = vector.broadcast %11 : f32 to vector<64x1xf32>
    %40 = arith.subf %31, %39 : vector<64x1xf32>
    %41 = arith.mulf %40, %40 : vector<64x1xf32>
    %42 = arith.addf %38, %41 : vector<64x1xf32>
    %43 = math.sqrt %42 : vector<64x1xf32>
    %cst_19 = arith.constant 0.000000e+00 : f32
    %44 = vector.broadcast %cst_19 : f32 to vector<32x64xf32>
    %45 = vector.broadcast %12 : f32 to vector<64x1xf32>
    %46 = arith.subf %29, %45 : vector<64x1xf32>
    %47 = arith.mulf %46, %46 : vector<64x1xf32>
    %48 = vector.broadcast %13 : f32 to vector<64x1xf32>
    %49 = arith.subf %30, %48 : vector<64x1xf32>
    %50 = arith.mulf %49, %49 : vector<64x1xf32>
    %51 = arith.addf %47, %50 : vector<64x1xf32>
    %52 = vector.broadcast %14 : f32 to vector<64x1xf32>
    %53 = arith.subf %31, %52 : vector<64x1xf32>
    %54 = arith.mulf %53, %53 : vector<64x1xf32>
    %55 = arith.addf %51, %54 : vector<64x1xf32>
    %56 = math.sqrt %55 : vector<64x1xf32>
    %57 = arith.addf %43, %56 : vector<64x1xf32>
    %cst_20 = arith.constant 34.985424 : f32
    %58 = vector.broadcast %cst_20 : f32 to vector<64x1xf32>
    %59 = arith.mulf %57, %58 : vector<64x1xf32>
    %60 = arith.mulf %43, %56 : vector<64x1xf32>
    %61 = math.floor %59 : vector<64x1xf32>
    %cst_21 = arith.constant 0.000000e+00 : f32
    %cst_22 = arith.constant 9.500000e+01 : f32
    %62 = vector.broadcast %cst_21 : f32 to vector<64x1xf32>
    %63 = arith.maximumf %62, %61 : vector<64x1xf32>
    %64 = vector.broadcast %cst_22 : f32 to vector<64x1xf32>
    %65 = arith.minimumf %64, %63 : vector<64x1xf32>
    %66 = arith.subf %59, %65 : vector<64x1xf32>
    %cst_23 = arith.constant 0.000000e+00 : f32
    %cst_24 = arith.constant 1.000000e+00 : f32
    %67 = vector.broadcast %cst_23 : f32 to vector<64x1xf32>
    %68 = arith.maximumf %67, %66 : vector<64x1xf32>
    %69 = vector.broadcast %cst_24 : f32 to vector<64x1xf32>
    %70 = arith.minimumf %69, %68 : vector<64x1xf32>
    %71 = arith.fptosi %65 : vector<64x1xf32> to vector<64x1xi32>
    %72 = vector.broadcast %71 : vector<64x1xi32> to vector<64x128xi32>
    %73 = arith.cmpi eq, %25, %72 : vector<64x128xi32>
    %cst_25 = arith.constant 1.000000e+00 : f32
    %74 = vector.broadcast %cst_25 : f32 to vector<64x1xf32>
    %75 = arith.subf %74, %70 : vector<64x1xf32>
    %76 = arith.mulf %75, %60 : vector<64x1xf32>
    %cst_26 = arith.constant 0.000000e+00 : f32
    %77 = vector.shape_cast %76 : vector<64x1xf32> to vector<64x1xf32>
    %78 = vector.broadcast %77 : vector<64x1xf32> to vector<64x128xf32>
    %79 = vector.broadcast %cst_26 : f32 to vector<64x128xf32>
    %80 = arith.select %73, %78, %79 : vector<64x128xi1>, vector<64x128xf32>
    %c1_i32 = arith.constant 1 : i32
    %81 = vector.broadcast %c1_i32 : i32 to vector<64x1xi32>
    %82 = arith.addi %71, %81 : vector<64x1xi32>
    %83 = vector.broadcast %82 : vector<64x1xi32> to vector<64x128xi32>
    %84 = arith.cmpi eq, %25, %83 : vector<64x128xi32>
    %85 = arith.mulf %70, %60 : vector<64x1xf32>
    %cst_27 = arith.constant 0.000000e+00 : f32
    %86 = vector.shape_cast %85 : vector<64x1xf32> to vector<64x1xf32>
    %87 = vector.broadcast %86 : vector<64x1xf32> to vector<64x128xf32>
    %88 = vector.broadcast %cst_27 : f32 to vector<64x128xf32>
    %89 = arith.select %84, %87, %88 : vector<64x128xi1>, vector<64x128xf32>
    %90 = arith.addf %80, %89 : vector<64x128xf32>
    %91 = vector.extract_strided_slice %0 {offsets = [0, 0, 0], sizes = [1, 1, 128], strides = [1, 1, 1]} : vector<2x4x128xf32> to vector<1x1x128xf32>
    %92 = vector.shape_cast %91 : vector<1x1x128xf32> to vector<1x128xf32>
    %93 = tpu.concatenate %92, %26 in 1 : vector<1x128xf32>, vector<1x32xf32> -> vector<1x160xf32>
    %94 = vector.extract_strided_slice %93 {offsets = [0, 0], sizes = [1, 128], strides = [1, 1]} : vector<1x160xf32> to vector<1x128xf32>
    %95 = vector.extract_strided_slice %93 {offsets = [0, 1], sizes = [1, 128], strides = [1, 1]} : vector<1x160xf32> to vector<1x128xf32>
    %96 = vector.extract_strided_slice %93 {offsets = [0, 2], sizes = [1, 128], strides = [1, 1]} : vector<1x160xf32> to vector<1x128xf32>
    %97 = vector.extract_strided_slice %93 {offsets = [0, 3], sizes = [1, 128], strides = [1, 1]} : vector<1x160xf32> to vector<1x128xf32>
    %98 = vector.extract_strided_slice %93 {offsets = [0, 4], sizes = [1, 128], strides = [1, 1]} : vector<1x160xf32> to vector<1x128xf32>
    %99 = vector.extract_strided_slice %93 {offsets = [0, 5], sizes = [1, 128], strides = [1, 1]} : vector<1x160xf32> to vector<1x128xf32>
    %100 = vector.extract_strided_slice %93 {offsets = [0, 6], sizes = [1, 128], strides = [1, 1]} : vector<1x160xf32> to vector<1x128xf32>
    %101 = vector.extract_strided_slice %93 {offsets = [0, 7], sizes = [1, 128], strides = [1, 1]} : vector<1x160xf32> to vector<1x128xf32>
    %102 = vector.extract_strided_slice %93 {offsets = [0, 8], sizes = [1, 128], strides = [1, 1]} : vector<1x160xf32> to vector<1x128xf32>
    %103 = vector.extract_strided_slice %93 {offsets = [0, 9], sizes = [1, 128], strides = [1, 1]} : vector<1x160xf32> to vector<1x128xf32>
    %104 = vector.extract_strided_slice %93 {offsets = [0, 10], sizes = [1, 128], strides = [1, 1]} : vector<1x160xf32> to vector<1x128xf32>
    %105 = vector.extract_strided_slice %93 {offsets = [0, 11], sizes = [1, 128], strides = [1, 1]} : vector<1x160xf32> to vector<1x128xf32>
    %106 = vector.extract_strided_slice %93 {offsets = [0, 12], sizes = [1, 128], strides = [1, 1]} : vector<1x160xf32> to vector<1x128xf32>
    %107 = vector.extract_strided_slice %93 {offsets = [0, 13], sizes = [1, 128], strides = [1, 1]} : vector<1x160xf32> to vector<1x128xf32>
    %108 = vector.extract_strided_slice %93 {offsets = [0, 14], sizes = [1, 128], strides = [1, 1]} : vector<1x160xf32> to vector<1x128xf32>
    %109 = vector.extract_strided_slice %93 {offsets = [0, 15], sizes = [1, 128], strides = [1, 1]} : vector<1x160xf32> to vector<1x128xf32>
    %110 = vector.extract_strided_slice %93 {offsets = [0, 16], sizes = [1, 128], strides = [1, 1]} : vector<1x160xf32> to vector<1x128xf32>
    %111 = vector.extract_strided_slice %93 {offsets = [0, 17], sizes = [1, 128], strides = [1, 1]} : vector<1x160xf32> to vector<1x128xf32>
    %112 = vector.extract_strided_slice %93 {offsets = [0, 18], sizes = [1, 128], strides = [1, 1]} : vector<1x160xf32> to vector<1x128xf32>
    %113 = vector.extract_strided_slice %93 {offsets = [0, 19], sizes = [1, 128], strides = [1, 1]} : vector<1x160xf32> to vector<1x128xf32>
    %114 = vector.extract_strided_slice %93 {offsets = [0, 20], sizes = [1, 128], strides = [1, 1]} : vector<1x160xf32> to vector<1x128xf32>
    %115 = vector.extract_strided_slice %93 {offsets = [0, 21], sizes = [1, 128], strides = [1, 1]} : vector<1x160xf32> to vector<1x128xf32>
    %116 = vector.extract_strided_slice %93 {offsets = [0, 22], sizes = [1, 128], strides = [1, 1]} : vector<1x160xf32> to vector<1x128xf32>
    %117 = vector.extract_strided_slice %93 {offsets = [0, 23], sizes = [1, 128], strides = [1, 1]} : vector<1x160xf32> to vector<1x128xf32>
    %118 = vector.extract_strided_slice %93 {offsets = [0, 24], sizes = [1, 128], strides = [1, 1]} : vector<1x160xf32> to vector<1x128xf32>
    %119 = vector.extract_strided_slice %93 {offsets = [0, 25], sizes = [1, 128], strides = [1, 1]} : vector<1x160xf32> to vector<1x128xf32>
    %120 = vector.extract_strided_slice %93 {offsets = [0, 26], sizes = [1, 128], strides = [1, 1]} : vector<1x160xf32> to vector<1x128xf32>
    %121 = vector.extract_strided_slice %93 {offsets = [0, 27], sizes = [1, 128], strides = [1, 1]} : vector<1x160xf32> to vector<1x128xf32>
    %122 = vector.extract_strided_slice %93 {offsets = [0, 28], sizes = [1, 128], strides = [1, 1]} : vector<1x160xf32> to vector<1x128xf32>
    %123 = vector.extract_strided_slice %93 {offsets = [0, 29], sizes = [1, 128], strides = [1, 1]} : vector<1x160xf32> to vector<1x128xf32>
    %124 = vector.extract_strided_slice %93 {offsets = [0, 30], sizes = [1, 128], strides = [1, 1]} : vector<1x160xf32> to vector<1x128xf32>
    %125 = vector.extract_strided_slice %93 {offsets = [0, 31], sizes = [1, 128], strides = [1, 1]} : vector<1x160xf32> to vector<1x128xf32>
    %126 = tpu.concatenate %94, %95, %96, %97, %98, %99, %100, %101, %102, %103, %104, %105, %106, %107, %108, %109 in 0 : vector<1x128xf32>, vector<1x128xf32>, vector<1x128xf32>, vector<1x128xf32>, vector<1x128xf32>, vector<1x128xf32>, vector<1x128xf32>, vector<1x128xf32>, vector<1x128xf32>, vector<1x128xf32>, vector<1x128xf32>, vector<1x128xf32>, vector<1x128xf32>, vector<1x128xf32>, vector<1x128xf32>, vector<1x128xf32> -> vector<16x128xf32>
    %127 = tpu.concatenate %110, %111, %112, %113, %114, %115, %116, %117, %118, %119, %120, %121, %122, %123, %124, %125 in 0 : vector<1x128xf32>, vector<1x128xf32>, vector<1x128xf32>, vector<1x128xf32>, vector<1x128xf32>, vector<1x128xf32>, vector<1x128xf32>, vector<1x128xf32>, vector<1x128xf32>, vector<1x128xf32>, vector<1x128xf32>, vector<1x128xf32>, vector<1x128xf32>, vector<1x128xf32>, vector<1x128xf32>, vector<1x128xf32> -> vector<16x128xf32>
    %128 = tpu.concatenate %126, %127 in 0 : vector<16x128xf32>, vector<16x128xf32> -> vector<32x128xf32>
    %cst_28 = arith.constant dense<0.000000e+00> : vector<32x64xf32>
    %129 = tpu.matmul %128, %90, %cst_28 {dimension_numbers = #tpu.dot_dimension_numbers<[1], [1], [0], [0], [0, 0, 1, 0], [], []>} : vector<32x128xf32>, vector<64x128xf32>, vector<32x64xf32> -> vector<32x64xf32>
    %cst_29 = arith.constant dense<0.000000e+00> : vector<32x64xf32>
    %130 = tpu.matmul %5, %129, %cst_29 {dimension_numbers = #tpu.dot_dimension_numbers<[0], [0], [1], [1], [0, 1, 1, 1], [], []>} : vector<32x32xf32>, vector<32x64xf32>, vector<32x64xf32> -> vector<32x64xf32>
    %131 = arith.addf %44, %130 : vector<32x64xf32>
    %132 = vector.broadcast %15 : f32 to vector<64x1xf32>
    %133 = arith.subf %29, %132 : vector<64x1xf32>
    %134 = arith.mulf %133, %133 : vector<64x1xf32>
    %135 = vector.broadcast %16 : f32 to vector<64x1xf32>
    %136 = arith.subf %30, %135 : vector<64x1xf32>
    %137 = arith.mulf %136, %136 : vector<64x1xf32>
    %138 = arith.addf %134, %137 : vector<64x1xf32>
    %139 = vector.broadcast %17 : f32 to vector<64x1xf32>
    %140 = arith.subf %31, %139 : vector<64x1xf32>
    %141 = arith.mulf %140, %140 : vector<64x1xf32>
    %142 = arith.addf %138, %141 : vector<64x1xf32>
    %143 = math.sqrt %142 : vector<64x1xf32>
    %144 = arith.addf %43, %143 : vector<64x1xf32>
    %cst_30 = arith.constant 34.985424 : f32
    %145 = vector.broadcast %cst_30 : f32 to vector<64x1xf32>
    %146 = arith.mulf %144, %145 : vector<64x1xf32>
    %147 = arith.mulf %43, %143 : vector<64x1xf32>
    %148 = math.floor %146 : vector<64x1xf32>
    %cst_31 = arith.constant 0.000000e+00 : f32
    %cst_32 = arith.constant 9.500000e+01 : f32
    %149 = vector.broadcast %cst_31 : f32 to vector<64x1xf32>
    %150 = arith.maximumf %149, %148 : vector<64x1xf32>
    %151 = vector.broadcast %cst_32 : f32 to vector<64x1xf32>
    %152 = arith.minimumf %151, %150 : vector<64x1xf32>
    %153 = arith.subf %146, %152 : vector<64x1xf32>
    %cst_33 = arith.constant 0.000000e+00 : f32
    %cst_34 = arith.constant 1.000000e+00 : f32
    %154 = vector.broadcast %cst_33 : f32 to vector<64x1xf32>
    %155 = arith.maximumf %154, %153 : vector<64x1xf32>
    %156 = vector.broadcast %cst_34 : f32 to vector<64x1xf32>
    %157 = arith.minimumf %156, %155 : vector<64x1xf32>
    %158 = arith.fptosi %152 : vector<64x1xf32> to vector<64x1xi32>
    %159 = vector.broadcast %158 : vector<64x1xi32> to vector<64x128xi32>
    %160 = arith.cmpi eq, %25, %159 : vector<64x128xi32>
    %cst_35 = arith.constant 1.000000e+00 : f32
    %161 = vector.broadcast %cst_35 : f32 to vector<64x1xf32>
    %162 = arith.subf %161, %157 : vector<64x1xf32>
    %163 = arith.mulf %162, %147 : vector<64x1xf32>
    %cst_36 = arith.constant 0.000000e+00 : f32
    %164 = vector.shape_cast %163 : vector<64x1xf32> to vector<64x1xf32>
    %165 = vector.broadcast %164 : vector<64x1xf32> to vector<64x128xf32>
    %166 = vector.broadcast %cst_36 : f32 to vector<64x128xf32>
    %167 = arith.select %160, %165, %166 : vector<64x128xi1>, vector<64x128xf32>
    %c1_i32_37 = arith.constant 1 : i32
    %168 = vector.broadcast %c1_i32_37 : i32 to vector<64x1xi32>
    %169 = arith.addi %158, %168 : vector<64x1xi32>
    %170 = vector.broadcast %169 : vector<64x1xi32> to vector<64x128xi32>
    %171 = arith.cmpi eq, %25, %170 : vector<64x128xi32>
    %172 = arith.mulf %157, %147 : vector<64x1xf32>
    %cst_38 = arith.constant 0.000000e+00 : f32
    %173 = vector.shape_cast %172 : vector<64x1xf32> to vector<64x1xf32>
    %174 = vector.broadcast %173 : vector<64x1xf32> to vector<64x128xf32>
    %175 = vector.broadcast %cst_38 : f32 to vector<64x128xf32>
    %176 = arith.select %171, %174, %175 : vector<64x128xi1>, vector<64x128xf32>
    %177 = arith.addf %167, %176 : vector<64x128xf32>
    %178 = vector.extract_strided_slice %0 {offsets = [0, 1, 0], sizes = [1, 1, 128], strides = [1, 1, 1]} : vector<2x4x128xf32> to vector<1x1x128xf32>
    %179 = vector.shape_cast %178 : vector<1x1x128xf32> to vector<1x128xf32>
    %180 = tpu.concatenate %179, %26 in 1 : vector<1x128xf32>, vector<1x32xf32> -> vector<1x160xf32>
    %181 = vector.extract_strided_slice %180 {offsets = [0, 0], sizes = [1, 128], strides = [1, 1]} : vector<1x160xf32> to vector<1x128xf32>
    %182 = vector.extract_strided_slice %180 {offsets = [0, 1], sizes = [1, 128], strides = [1, 1]} : vector<1x160xf32> to vector<1x128xf32>
    %183 = vector.extract_strided_slice %180 {offsets = [0, 2], sizes = [1, 128], strides = [1, 1]} : vector<1x160xf32> to vector<1x128xf32>
    %184 = vector.extract_strided_slice %180 {offsets = [0, 3], sizes = [1, 128], strides = [1, 1]} : vector<1x160xf32> to vector<1x128xf32>
    %185 = vector.extract_strided_slice %180 {offsets = [0, 4], sizes = [1, 128], strides = [1, 1]} : vector<1x160xf32> to vector<1x128xf32>
    %186 = vector.extract_strided_slice %180 {offsets = [0, 5], sizes = [1, 128], strides = [1, 1]} : vector<1x160xf32> to vector<1x128xf32>
    %187 = vector.extract_strided_slice %180 {offsets = [0, 6], sizes = [1, 128], strides = [1, 1]} : vector<1x160xf32> to vector<1x128xf32>
    %188 = vector.extract_strided_slice %180 {offsets = [0, 7], sizes = [1, 128], strides = [1, 1]} : vector<1x160xf32> to vector<1x128xf32>
    %189 = vector.extract_strided_slice %180 {offsets = [0, 8], sizes = [1, 128], strides = [1, 1]} : vector<1x160xf32> to vector<1x128xf32>
    %190 = vector.extract_strided_slice %180 {offsets = [0, 9], sizes = [1, 128], strides = [1, 1]} : vector<1x160xf32> to vector<1x128xf32>
    %191 = vector.extract_strided_slice %180 {offsets = [0, 10], sizes = [1, 128], strides = [1, 1]} : vector<1x160xf32> to vector<1x128xf32>
    %192 = vector.extract_strided_slice %180 {offsets = [0, 11], sizes = [1, 128], strides = [1, 1]} : vector<1x160xf32> to vector<1x128xf32>
    %193 = vector.extract_strided_slice %180 {offsets = [0, 12], sizes = [1, 128], strides = [1, 1]} : vector<1x160xf32> to vector<1x128xf32>
    %194 = vector.extract_strided_slice %180 {offsets = [0, 13], sizes = [1, 128], strides = [1, 1]} : vector<1x160xf32> to vector<1x128xf32>
    %195 = vector.extract_strided_slice %180 {offsets = [0, 14], sizes = [1, 128], strides = [1, 1]} : vector<1x160xf32> to vector<1x128xf32>
    %196 = vector.extract_strided_slice %180 {offsets = [0, 15], sizes = [1, 128], strides = [1, 1]} : vector<1x160xf32> to vector<1x128xf32>
    %197 = vector.extract_strided_slice %180 {offsets = [0, 16], sizes = [1, 128], strides = [1, 1]} : vector<1x160xf32> to vector<1x128xf32>
    %198 = vector.extract_strided_slice %180 {offsets = [0, 17], sizes = [1, 128], strides = [1, 1]} : vector<1x160xf32> to vector<1x128xf32>
    %199 = vector.extract_strided_slice %180 {offsets = [0, 18], sizes = [1, 128], strides = [1, 1]} : vector<1x160xf32> to vector<1x128xf32>
    %200 = vector.extract_strided_slice %180 {offsets = [0, 19], sizes = [1, 128], strides = [1, 1]} : vector<1x160xf32> to vector<1x128xf32>
    %201 = vector.extract_strided_slice %180 {offsets = [0, 20], sizes = [1, 128], strides = [1, 1]} : vector<1x160xf32> to vector<1x128xf32>
    %202 = vector.extract_strided_slice %180 {offsets = [0, 21], sizes = [1, 128], strides = [1, 1]} : vector<1x160xf32> to vector<1x128xf32>
    %203 = vector.extract_strided_slice %180 {offsets = [0, 22], sizes = [1, 128], strides = [1, 1]} : vector<1x160xf32> to vector<1x128xf32>
    %204 = vector.extract_strided_slice %180 {offsets = [0, 23], sizes = [1, 128], strides = [1, 1]} : vector<1x160xf32> to vector<1x128xf32>
    %205 = vector.extract_strided_slice %180 {offsets = [0, 24], sizes = [1, 128], strides = [1, 1]} : vector<1x160xf32> to vector<1x128xf32>
    %206 = vector.extract_strided_slice %180 {offsets = [0, 25], sizes = [1, 128], strides = [1, 1]} : vector<1x160xf32> to vector<1x128xf32>
    %207 = vector.extract_strided_slice %180 {offsets = [0, 26], sizes = [1, 128], strides = [1, 1]} : vector<1x160xf32> to vector<1x128xf32>
    %208 = vector.extract_strided_slice %180 {offsets = [0, 27], sizes = [1, 128], strides = [1, 1]} : vector<1x160xf32> to vector<1x128xf32>
    %209 = vector.extract_strided_slice %180 {offsets = [0, 28], sizes = [1, 128], strides = [1, 1]} : vector<1x160xf32> to vector<1x128xf32>
    %210 = vector.extract_strided_slice %180 {offsets = [0, 29], sizes = [1, 128], strides = [1, 1]} : vector<1x160xf32> to vector<1x128xf32>
    %211 = vector.extract_strided_slice %180 {offsets = [0, 30], sizes = [1, 128], strides = [1, 1]} : vector<1x160xf32> to vector<1x128xf32>
    %212 = vector.extract_strided_slice %180 {offsets = [0, 31], sizes = [1, 128], strides = [1, 1]} : vector<1x160xf32> to vector<1x128xf32>
    %213 = tpu.concatenate %181, %182, %183, %184, %185, %186, %187, %188, %189, %190, %191, %192, %193, %194, %195, %196 in 0 : vector<1x128xf32>, vector<1x128xf32>, vector<1x128xf32>, vector<1x128xf32>, vector<1x128xf32>, vector<1x128xf32>, vector<1x128xf32>, vector<1x128xf32>, vector<1x128xf32>, vector<1x128xf32>, vector<1x128xf32>, vector<1x128xf32>, vector<1x128xf32>, vector<1x128xf32>, vector<1x128xf32>, vector<1x128xf32> -> vector<16x128xf32>
    %214 = tpu.concatenate %197, %198, %199, %200, %201, %202, %203, %204, %205, %206, %207, %208, %209, %210, %211, %212 in 0 : vector<1x128xf32>, vector<1x128xf32>, vector<1x128xf32>, vector<1x128xf32>, vector<1x128xf32>, vector<1x128xf32>, vector<1x128xf32>, vector<1x128xf32>, vector<1x128xf32>, vector<1x128xf32>, vector<1x128xf32>, vector<1x128xf32>, vector<1x128xf32>, vector<1x128xf32>, vector<1x128xf32>, vector<1x128xf32> -> vector<16x128xf32>
    %215 = tpu.concatenate %213, %214 in 0 : vector<16x128xf32>, vector<16x128xf32> -> vector<32x128xf32>
    %cst_39 = arith.constant dense<0.000000e+00> : vector<32x64xf32>
    %216 = tpu.matmul %215, %177, %cst_39 {dimension_numbers = #tpu.dot_dimension_numbers<[1], [1], [0], [0], [0, 0, 1, 0], [], []>} : vector<32x128xf32>, vector<64x128xf32>, vector<32x64xf32> -> vector<32x64xf32>
    %cst_40 = arith.constant dense<0.000000e+00> : vector<32x64xf32>
    %217 = tpu.matmul %6, %216, %cst_40 {dimension_numbers = #tpu.dot_dimension_numbers<[0], [0], [1], [1], [0, 1, 1, 1], [], []>} : vector<32x32xf32>, vector<32x64xf32>, vector<32x64xf32> -> vector<32x64xf32>
    %218 = arith.addf %131, %217 : vector<32x64xf32>
    %219 = vector.broadcast %18 : f32 to vector<64x1xf32>
    %220 = arith.subf %29, %219 : vector<64x1xf32>
    %221 = arith.mulf %220, %220 : vector<64x1xf32>
    %222 = vector.broadcast %19 : f32 to vector<64x1xf32>
    %223 = arith.subf %30, %222 : vector<64x1xf32>
    %224 = arith.mulf %223, %223 : vector<64x1xf32>
    %225 = arith.addf %221, %224 : vector<64x1xf32>
    %226 = vector.broadcast %20 : f32 to vector<64x1xf32>
    %227 = arith.subf %31, %226 : vector<64x1xf32>
    %228 = arith.mulf %227, %227 : vector<64x1xf32>
    %229 = arith.addf %225, %228 : vector<64x1xf32>
    %230 = math.sqrt %229 : vector<64x1xf32>
    %231 = arith.addf %43, %230 : vector<64x1xf32>
    %cst_41 = arith.constant 34.985424 : f32
    %232 = vector.broadcast %cst_41 : f32 to vector<64x1xf32>
    %233 = arith.mulf %231, %232 : vector<64x1xf32>
    %234 = arith.mulf %43, %230 : vector<64x1xf32>
    %235 = math.floor %233 : vector<64x1xf32>
    %cst_42 = arith.constant 0.000000e+00 : f32
    %cst_43 = arith.constant 9.500000e+01 : f32
    %236 = vector.broadcast %cst_42 : f32 to vector<64x1xf32>
    %237 = arith.maximumf %236, %235 : vector<64x1xf32>
    %238 = vector.broadcast %cst_43 : f32 to vector<64x1xf32>
    %239 = arith.minimumf %238, %237 : vector<64x1xf32>
    %240 = arith.subf %233, %239 : vector<64x1xf32>
    %cst_44 = arith.constant 0.000000e+00 : f32
    %cst_45 = arith.constant 1.000000e+00 : f32
    %241 = vector.broadcast %cst_44 : f32 to vector<64x1xf32>
    %242 = arith.maximumf %241, %240 : vector<64x1xf32>
    %243 = vector.broadcast %cst_45 : f32 to vector<64x1xf32>
    %244 = arith.minimumf %243, %242 : vector<64x1xf32>
    %245 = arith.fptosi %239 : vector<64x1xf32> to vector<64x1xi32>
    %246 = vector.broadcast %245 : vector<64x1xi32> to vector<64x128xi32>
    %247 = arith.cmpi eq, %25, %246 : vector<64x128xi32>
    %cst_46 = arith.constant 1.000000e+00 : f32
    %248 = vector.broadcast %cst_46 : f32 to vector<64x1xf32>
    %249 = arith.subf %248, %244 : vector<64x1xf32>
    %250 = arith.mulf %249, %234 : vector<64x1xf32>
    %cst_47 = arith.constant 0.000000e+00 : f32
    %251 = vector.shape_cast %250 : vector<64x1xf32> to vector<64x1xf32>
    %252 = vector.broadcast %251 : vector<64x1xf32> to vector<64x128xf32>
    %253 = vector.broadcast %cst_47 : f32 to vector<64x128xf32>
    %254 = arith.select %247, %252, %253 : vector<64x128xi1>, vector<64x128xf32>
    %c1_i32_48 = arith.constant 1 : i32
    %255 = vector.broadcast %c1_i32_48 : i32 to vector<64x1xi32>
    %256 = arith.addi %245, %255 : vector<64x1xi32>
    %257 = vector.broadcast %256 : vector<64x1xi32> to vector<64x128xi32>
    %258 = arith.cmpi eq, %25, %257 : vector<64x128xi32>
    %259 = arith.mulf %244, %234 : vector<64x1xf32>
    %cst_49 = arith.constant 0.000000e+00 : f32
    %260 = vector.shape_cast %259 : vector<64x1xf32> to vector<64x1xf32>
    %261 = vector.broadcast %260 : vector<64x1xf32> to vector<64x128xf32>
    %262 = vector.broadcast %cst_49 : f32 to vector<64x128xf32>
    %263 = arith.select %258, %261, %262 : vector<64x128xi1>, vector<64x128xf32>
    %264 = arith.addf %254, %263 : vector<64x128xf32>
    %265 = vector.extract_strided_slice %0 {offsets = [0, 2, 0], sizes = [1, 1, 128], strides = [1, 1, 1]} : vector<2x4x128xf32> to vector<1x1x128xf32>
    %266 = vector.shape_cast %265 : vector<1x1x128xf32> to vector<1x128xf32>
    %267 = tpu.concatenate %266, %26 in 1 : vector<1x128xf32>, vector<1x32xf32> -> vector<1x160xf32>
    %268 = vector.extract_strided_slice %267 {offsets = [0, 0], sizes = [1, 128], strides = [1, 1]} : vector<1x160xf32> to vector<1x128xf32>
    %269 = vector.extract_strided_slice %267 {offsets = [0, 1], sizes = [1, 128], strides = [1, 1]} : vector<1x160xf32> to vector<1x128xf32>
    %270 = vector.extract_strided_slice %267 {offsets = [0, 2], sizes = [1, 128], strides = [1, 1]} : vector<1x160xf32> to vector<1x128xf32>
    %271 = vector.extract_strided_slice %267 {offsets = [0, 3], sizes = [1, 128], strides = [1, 1]} : vector<1x160xf32> to vector<1x128xf32>
    %272 = vector.extract_strided_slice %267 {offsets = [0, 4], sizes = [1, 128], strides = [1, 1]} : vector<1x160xf32> to vector<1x128xf32>
    %273 = vector.extract_strided_slice %267 {offsets = [0, 5], sizes = [1, 128], strides = [1, 1]} : vector<1x160xf32> to vector<1x128xf32>
    %274 = vector.extract_strided_slice %267 {offsets = [0, 6], sizes = [1, 128], strides = [1, 1]} : vector<1x160xf32> to vector<1x128xf32>
    %275 = vector.extract_strided_slice %267 {offsets = [0, 7], sizes = [1, 128], strides = [1, 1]} : vector<1x160xf32> to vector<1x128xf32>
    %276 = vector.extract_strided_slice %267 {offsets = [0, 8], sizes = [1, 128], strides = [1, 1]} : vector<1x160xf32> to vector<1x128xf32>
    %277 = vector.extract_strided_slice %267 {offsets = [0, 9], sizes = [1, 128], strides = [1, 1]} : vector<1x160xf32> to vector<1x128xf32>
    %278 = vector.extract_strided_slice %267 {offsets = [0, 10], sizes = [1, 128], strides = [1, 1]} : vector<1x160xf32> to vector<1x128xf32>
    %279 = vector.extract_strided_slice %267 {offsets = [0, 11], sizes = [1, 128], strides = [1, 1]} : vector<1x160xf32> to vector<1x128xf32>
    %280 = vector.extract_strided_slice %267 {offsets = [0, 12], sizes = [1, 128], strides = [1, 1]} : vector<1x160xf32> to vector<1x128xf32>
    %281 = vector.extract_strided_slice %267 {offsets = [0, 13], sizes = [1, 128], strides = [1, 1]} : vector<1x160xf32> to vector<1x128xf32>
    %282 = vector.extract_strided_slice %267 {offsets = [0, 14], sizes = [1, 128], strides = [1, 1]} : vector<1x160xf32> to vector<1x128xf32>
    %283 = vector.extract_strided_slice %267 {offsets = [0, 15], sizes = [1, 128], strides = [1, 1]} : vector<1x160xf32> to vector<1x128xf32>
    %284 = vector.extract_strided_slice %267 {offsets = [0, 16], sizes = [1, 128], strides = [1, 1]} : vector<1x160xf32> to vector<1x128xf32>
    %285 = vector.extract_strided_slice %267 {offsets = [0, 17], sizes = [1, 128], strides = [1, 1]} : vector<1x160xf32> to vector<1x128xf32>
    %286 = vector.extract_strided_slice %267 {offsets = [0, 18], sizes = [1, 128], strides = [1, 1]} : vector<1x160xf32> to vector<1x128xf32>
    %287 = vector.extract_strided_slice %267 {offsets = [0, 19], sizes = [1, 128], strides = [1, 1]} : vector<1x160xf32> to vector<1x128xf32>
    %288 = vector.extract_strided_slice %267 {offsets = [0, 20], sizes = [1, 128], strides = [1, 1]} : vector<1x160xf32> to vector<1x128xf32>
    %289 = vector.extract_strided_slice %267 {offsets = [0, 21], sizes = [1, 128], strides = [1, 1]} : vector<1x160xf32> to vector<1x128xf32>
    %290 = vector.extract_strided_slice %267 {offsets = [0, 22], sizes = [1, 128], strides = [1, 1]} : vector<1x160xf32> to vector<1x128xf32>
    %291 = vector.extract_strided_slice %267 {offsets = [0, 23], sizes = [1, 128], strides = [1, 1]} : vector<1x160xf32> to vector<1x128xf32>
    %292 = vector.extract_strided_slice %267 {offsets = [0, 24], sizes = [1, 128], strides = [1, 1]} : vector<1x160xf32> to vector<1x128xf32>
    %293 = vector.extract_strided_slice %267 {offsets = [0, 25], sizes = [1, 128], strides = [1, 1]} : vector<1x160xf32> to vector<1x128xf32>
    %294 = vector.extract_strided_slice %267 {offsets = [0, 26], sizes = [1, 128], strides = [1, 1]} : vector<1x160xf32> to vector<1x128xf32>
    %295 = vector.extract_strided_slice %267 {offsets = [0, 27], sizes = [1, 128], strides = [1, 1]} : vector<1x160xf32> to vector<1x128xf32>
    %296 = vector.extract_strided_slice %267 {offsets = [0, 28], sizes = [1, 128], strides = [1, 1]} : vector<1x160xf32> to vector<1x128xf32>
    %297 = vector.extract_strided_slice %267 {offsets = [0, 29], sizes = [1, 128], strides = [1, 1]} : vector<1x160xf32> to vector<1x128xf32>
    %298 = vector.extract_strided_slice %267 {offsets = [0, 30], sizes = [1, 128], strides = [1, 1]} : vector<1x160xf32> to vector<1x128xf32>
    %299 = vector.extract_strided_slice %267 {offsets = [0, 31], sizes = [1, 128], strides = [1, 1]} : vector<1x160xf32> to vector<1x128xf32>
    %300 = tpu.concatenate %268, %269, %270, %271, %272, %273, %274, %275, %276, %277, %278, %279, %280, %281, %282, %283 in 0 : vector<1x128xf32>, vector<1x128xf32>, vector<1x128xf32>, vector<1x128xf32>, vector<1x128xf32>, vector<1x128xf32>, vector<1x128xf32>, vector<1x128xf32>, vector<1x128xf32>, vector<1x128xf32>, vector<1x128xf32>, vector<1x128xf32>, vector<1x128xf32>, vector<1x128xf32>, vector<1x128xf32>, vector<1x128xf32> -> vector<16x128xf32>
    %301 = tpu.concatenate %284, %285, %286, %287, %288, %289, %290, %291, %292, %293, %294, %295, %296, %297, %298, %299 in 0 : vector<1x128xf32>, vector<1x128xf32>, vector<1x128xf32>, vector<1x128xf32>, vector<1x128xf32>, vector<1x128xf32>, vector<1x128xf32>, vector<1x128xf32>, vector<1x128xf32>, vector<1x128xf32>, vector<1x128xf32>, vector<1x128xf32>, vector<1x128xf32>, vector<1x128xf32>, vector<1x128xf32>, vector<1x128xf32> -> vector<16x128xf32>
    %302 = tpu.concatenate %300, %301 in 0 : vector<16x128xf32>, vector<16x128xf32> -> vector<32x128xf32>
    %cst_50 = arith.constant dense<0.000000e+00> : vector<32x64xf32>
    %303 = tpu.matmul %302, %264, %cst_50 {dimension_numbers = #tpu.dot_dimension_numbers<[1], [1], [0], [0], [0, 0, 1, 0], [], []>} : vector<32x128xf32>, vector<64x128xf32>, vector<32x64xf32> -> vector<32x64xf32>
    %cst_51 = arith.constant dense<0.000000e+00> : vector<32x64xf32>
    %304 = tpu.matmul %7, %303, %cst_51 {dimension_numbers = #tpu.dot_dimension_numbers<[0], [0], [1], [1], [0, 1, 1, 1], [], []>} : vector<32x32xf32>, vector<32x64xf32>, vector<32x64xf32> -> vector<32x64xf32>
    %305 = arith.addf %218, %304 : vector<32x64xf32>
    %306 = vector.broadcast %21 : f32 to vector<64x1xf32>
    %307 = arith.subf %29, %306 : vector<64x1xf32>
    %308 = arith.mulf %307, %307 : vector<64x1xf32>
    %309 = vector.broadcast %22 : f32 to vector<64x1xf32>
    %310 = arith.subf %30, %309 : vector<64x1xf32>
    %311 = arith.mulf %310, %310 : vector<64x1xf32>
    %312 = arith.addf %308, %311 : vector<64x1xf32>
    %313 = vector.broadcast %23 : f32 to vector<64x1xf32>
    %314 = arith.subf %31, %313 : vector<64x1xf32>
    %315 = arith.mulf %314, %314 : vector<64x1xf32>
    %316 = arith.addf %312, %315 : vector<64x1xf32>
    %317 = math.sqrt %316 : vector<64x1xf32>
    %318 = arith.addf %43, %317 : vector<64x1xf32>
    %cst_52 = arith.constant 34.985424 : f32
    %319 = vector.broadcast %cst_52 : f32 to vector<64x1xf32>
    %320 = arith.mulf %318, %319 : vector<64x1xf32>
    %321 = arith.mulf %43, %317 : vector<64x1xf32>
    %322 = math.floor %320 : vector<64x1xf32>
    %cst_53 = arith.constant 0.000000e+00 : f32
    %cst_54 = arith.constant 9.500000e+01 : f32
    %323 = vector.broadcast %cst_53 : f32 to vector<64x1xf32>
    %324 = arith.maximumf %323, %322 : vector<64x1xf32>
    %325 = vector.broadcast %cst_54 : f32 to vector<64x1xf32>
    %326 = arith.minimumf %325, %324 : vector<64x1xf32>
    %327 = arith.subf %320, %326 : vector<64x1xf32>
    %cst_55 = arith.constant 0.000000e+00 : f32
    %cst_56 = arith.constant 1.000000e+00 : f32
    %328 = vector.broadcast %cst_55 : f32 to vector<64x1xf32>
    %329 = arith.maximumf %328, %327 : vector<64x1xf32>
    %330 = vector.broadcast %cst_56 : f32 to vector<64x1xf32>
    %331 = arith.minimumf %330, %329 : vector<64x1xf32>
    %332 = arith.fptosi %326 : vector<64x1xf32> to vector<64x1xi32>
    %333 = vector.broadcast %332 : vector<64x1xi32> to vector<64x128xi32>
    %334 = arith.cmpi eq, %25, %333 : vector<64x128xi32>
    %cst_57 = arith.constant 1.000000e+00 : f32
    %335 = vector.broadcast %cst_57 : f32 to vector<64x1xf32>
    %336 = arith.subf %335, %331 : vector<64x1xf32>
    %337 = arith.mulf %336, %321 : vector<64x1xf32>
    %cst_58 = arith.constant 0.000000e+00 : f32
    %338 = vector.shape_cast %337 : vector<64x1xf32> to vector<64x1xf32>
    %339 = vector.broadcast %338 : vector<64x1xf32> to vector<64x128xf32>
    %340 = vector.broadcast %cst_58 : f32 to vector<64x128xf32>
    %341 = arith.select %334, %339, %340 : vector<64x128xi1>, vector<64x128xf32>
    %c1_i32_59 = arith.constant 1 : i32
    %342 = vector.broadcast %c1_i32_59 : i32 to vector<64x1xi32>
    %343 = arith.addi %332, %342 : vector<64x1xi32>
    %344 = vector.broadcast %343 : vector<64x1xi32> to vector<64x128xi32>
    %345 = arith.cmpi eq, %25, %344 : vector<64x128xi32>
    %346 = arith.mulf %331, %321 : vector<64x1xf32>
    %cst_60 = arith.constant 0.000000e+00 : f32
    %347 = vector.shape_cast %346 : vector<64x1xf32> to vector<64x1xf32>
    %348 = vector.broadcast %347 : vector<64x1xf32> to vector<64x128xf32>
    %349 = vector.broadcast %cst_60 : f32 to vector<64x128xf32>
    %350 = arith.select %345, %348, %349 : vector<64x128xi1>, vector<64x128xf32>
    %351 = arith.addf %341, %350 : vector<64x128xf32>
    %352 = vector.extract_strided_slice %0 {offsets = [0, 3, 0], sizes = [1, 1, 128], strides = [1, 1, 1]} : vector<2x4x128xf32> to vector<1x1x128xf32>
    %353 = vector.shape_cast %352 : vector<1x1x128xf32> to vector<1x128xf32>
    %354 = tpu.concatenate %353, %26 in 1 : vector<1x128xf32>, vector<1x32xf32> -> vector<1x160xf32>
    %355 = vector.extract_strided_slice %354 {offsets = [0, 0], sizes = [1, 128], strides = [1, 1]} : vector<1x160xf32> to vector<1x128xf32>
    %356 = vector.extract_strided_slice %354 {offsets = [0, 1], sizes = [1, 128], strides = [1, 1]} : vector<1x160xf32> to vector<1x128xf32>
    %357 = vector.extract_strided_slice %354 {offsets = [0, 2], sizes = [1, 128], strides = [1, 1]} : vector<1x160xf32> to vector<1x128xf32>
    %358 = vector.extract_strided_slice %354 {offsets = [0, 3], sizes = [1, 128], strides = [1, 1]} : vector<1x160xf32> to vector<1x128xf32>
    %359 = vector.extract_strided_slice %354 {offsets = [0, 4], sizes = [1, 128], strides = [1, 1]} : vector<1x160xf32> to vector<1x128xf32>
    %360 = vector.extract_strided_slice %354 {offsets = [0, 5], sizes = [1, 128], strides = [1, 1]} : vector<1x160xf32> to vector<1x128xf32>
    %361 = vector.extract_strided_slice %354 {offsets = [0, 6], sizes = [1, 128], strides = [1, 1]} : vector<1x160xf32> to vector<1x128xf32>
    %362 = vector.extract_strided_slice %354 {offsets = [0, 7], sizes = [1, 128], strides = [1, 1]} : vector<1x160xf32> to vector<1x128xf32>
    %363 = vector.extract_strided_slice %354 {offsets = [0, 8], sizes = [1, 128], strides = [1, 1]} : vector<1x160xf32> to vector<1x128xf32>
    %364 = vector.extract_strided_slice %354 {offsets = [0, 9], sizes = [1, 128], strides = [1, 1]} : vector<1x160xf32> to vector<1x128xf32>
    %365 = vector.extract_strided_slice %354 {offsets = [0, 10], sizes = [1, 128], strides = [1, 1]} : vector<1x160xf32> to vector<1x128xf32>
    %366 = vector.extract_strided_slice %354 {offsets = [0, 11], sizes = [1, 128], strides = [1, 1]} : vector<1x160xf32> to vector<1x128xf32>
    %367 = vector.extract_strided_slice %354 {offsets = [0, 12], sizes = [1, 128], strides = [1, 1]} : vector<1x160xf32> to vector<1x128xf32>
    %368 = vector.extract_strided_slice %354 {offsets = [0, 13], sizes = [1, 128], strides = [1, 1]} : vector<1x160xf32> to vector<1x128xf32>
    %369 = vector.extract_strided_slice %354 {offsets = [0, 14], sizes = [1, 128], strides = [1, 1]} : vector<1x160xf32> to vector<1x128xf32>
    %370 = vector.extract_strided_slice %354 {offsets = [0, 15], sizes = [1, 128], strides = [1, 1]} : vector<1x160xf32> to vector<1x128xf32>
    %371 = vector.extract_strided_slice %354 {offsets = [0, 16], sizes = [1, 128], strides = [1, 1]} : vector<1x160xf32> to vector<1x128xf32>
    %372 = vector.extract_strided_slice %354 {offsets = [0, 17], sizes = [1, 128], strides = [1, 1]} : vector<1x160xf32> to vector<1x128xf32>
    %373 = vector.extract_strided_slice %354 {offsets = [0, 18], sizes = [1, 128], strides = [1, 1]} : vector<1x160xf32> to vector<1x128xf32>
    %374 = vector.extract_strided_slice %354 {offsets = [0, 19], sizes = [1, 128], strides = [1, 1]} : vector<1x160xf32> to vector<1x128xf32>
    %375 = vector.extract_strided_slice %354 {offsets = [0, 20], sizes = [1, 128], strides = [1, 1]} : vector<1x160xf32> to vector<1x128xf32>
    %376 = vector.extract_strided_slice %354 {offsets = [0, 21], sizes = [1, 128], strides = [1, 1]} : vector<1x160xf32> to vector<1x128xf32>
    %377 = vector.extract_strided_slice %354 {offsets = [0, 22], sizes = [1, 128], strides = [1, 1]} : vector<1x160xf32> to vector<1x128xf32>
    %378 = vector.extract_strided_slice %354 {offsets = [0, 23], sizes = [1, 128], strides = [1, 1]} : vector<1x160xf32> to vector<1x128xf32>
    %379 = vector.extract_strided_slice %354 {offsets = [0, 24], sizes = [1, 128], strides = [1, 1]} : vector<1x160xf32> to vector<1x128xf32>
    %380 = vector.extract_strided_slice %354 {offsets = [0, 25], sizes = [1, 128], strides = [1, 1]} : vector<1x160xf32> to vector<1x128xf32>
    %381 = vector.extract_strided_slice %354 {offsets = [0, 26], sizes = [1, 128], strides = [1, 1]} : vector<1x160xf32> to vector<1x128xf32>
    %382 = vector.extract_strided_slice %354 {offsets = [0, 27], sizes = [1, 128], strides = [1, 1]} : vector<1x160xf32> to vector<1x128xf32>
    %383 = vector.extract_strided_slice %354 {offsets = [0, 28], sizes = [1, 128], strides = [1, 1]} : vector<1x160xf32> to vector<1x128xf32>
    %384 = vector.extract_strided_slice %354 {offsets = [0, 29], sizes = [1, 128], strides = [1, 1]} : vector<1x160xf32> to vector<1x128xf32>
    %385 = vector.extract_strided_slice %354 {offsets = [0, 30], sizes = [1, 128], strides = [1, 1]} : vector<1x160xf32> to vector<1x128xf32>
    %386 = vector.extract_strided_slice %354 {offsets = [0, 31], sizes = [1, 128], strides = [1, 1]} : vector<1x160xf32> to vector<1x128xf32>
    %387 = tpu.concatenate %355, %356, %357, %358, %359, %360, %361, %362, %363, %364, %365, %366, %367, %368, %369, %370 in 0 : vector<1x128xf32>, vector<1x128xf32>, vector<1x128xf32>, vector<1x128xf32>, vector<1x128xf32>, vector<1x128xf32>, vector<1x128xf32>, vector<1x128xf32>, vector<1x128xf32>, vector<1x128xf32>, vector<1x128xf32>, vector<1x128xf32>, vector<1x128xf32>, vector<1x128xf32>, vector<1x128xf32>, vector<1x128xf32> -> vector<16x128xf32>
    %388 = tpu.concatenate %371, %372, %373, %374, %375, %376, %377, %378, %379, %380, %381, %382, %383, %384, %385, %386 in 0 : vector<1x128xf32>, vector<1x128xf32>, vector<1x128xf32>, vector<1x128xf32>, vector<1x128xf32>, vector<1x128xf32>, vector<1x128xf32>, vector<1x128xf32>, vector<1x128xf32>, vector<1x128xf32>, vector<1x128xf32>, vector<1x128xf32>, vector<1x128xf32>, vector<1x128xf32>, vector<1x128xf32>, vector<1x128xf32> -> vector<16x128xf32>
    %389 = tpu.concatenate %387, %388 in 0 : vector<16x128xf32>, vector<16x128xf32> -> vector<32x128xf32>
    %cst_61 = arith.constant dense<0.000000e+00> : vector<32x64xf32>
    %390 = tpu.matmul %389, %351, %cst_61 {dimension_numbers = #tpu.dot_dimension_numbers<[1], [1], [0], [0], [0, 0, 1, 0], [], []>} : vector<32x128xf32>, vector<64x128xf32>, vector<32x64xf32> -> vector<32x64xf32>
    %cst_62 = arith.constant dense<0.000000e+00> : vector<32x64xf32>
    %391 = tpu.matmul %8, %390, %cst_62 {dimension_numbers = #tpu.dot_dimension_numbers<[0], [0], [1], [1], [0, 1, 1, 1], [], []>} : vector<32x32xf32>, vector<32x64xf32>, vector<32x64xf32> -> vector<32x64xf32>
    %392 = arith.addf %305, %391 : vector<32x64xf32>
    %393 = vector.broadcast %2 : vector<32x1xf32> to vector<32x64xf32>
    %394 = arith.addf %392, %393 : vector<32x64xf32>
    %cst_63 = arith.constant 0.000000e+00 : f32
    %395 = vector.broadcast %cst_63 : f32 to vector<32x64xf32>
    %396 = arith.cmpf oge, %394, %395 : vector<32x64xf32>
    %cst_64 = arith.constant 1.000000e-01 : f32
    %397 = vector.broadcast %cst_64 : f32 to vector<32x64xf32>
    %398 = arith.mulf %397, %394 : vector<32x64xf32>
    %399 = arith.select %396, %394, %398 : vector<32x64xi1>, vector<32x64xf32>
    %cst_65 = arith.constant dense<0.000000e+00> : vector<32x64xf32>
    %400 = tpu.matmul %1, %399, %cst_65 {dimension_numbers = #tpu.dot_dimension_numbers<[0], [0], [1], [1], [0, 1, 1, 1], [], []>} : vector<32x32xf32>, vector<32x64xf32>, vector<32x64xf32> -> vector<32x64xf32>
    %401 = vector.broadcast %3 : vector<32x1xf32> to vector<32x64xf32>
    %402 = arith.addf %400, %401 : vector<32x64xf32>
    %cst_66 = arith.constant 0.000000e+00 : f32
    %403 = vector.broadcast %cst_66 : f32 to vector<32x64xf32>
    %404 = arith.cmpf oge, %402, %403 : vector<32x64xf32>
    %cst_67 = arith.constant 1.000000e-01 : f32
    %405 = vector.broadcast %cst_67 : f32 to vector<32x64xf32>
    %406 = arith.mulf %405, %402 : vector<32x64xf32>
    %407 = arith.select %404, %402, %406 : vector<32x64xi1>, vector<32x64xf32>
    %408 = vector.broadcast %4 : vector<32x1xf32> to vector<32x64xf32>
    %409 = arith.mulf %408, %407 : vector<32x64xf32>
    %cst_68 = arith.constant dense<0.000000e+00> : vector<64xf32>
    %410 = vector.multi_reduction <add>, %409, %cst_68 [0] : vector<32x64xf32> to vector<64xf32>
    %411 = vector.broadcast %24 : f32 to vector<64xf32>
    %412 = arith.addf %410, %411 : vector<64xf32>
    %c0_69 = arith.constant 0 : index
    %c0_70 = arith.constant 0 : index
    %413 = vector.load %arg7[%c0_69, %c0_70] : memref<2x64xf32, #tpu.memory_space<vmem>>, vector<1x64xf32>
    %414 = vector.shape_cast %413 : vector<1x64xf32> to vector<64xf32>
    %415 = vector.shape_cast %412 : vector<64xf32> to vector<1x64xf32>
    tpu.vector_store %arg7[%c0_69, %c0_70], %415 {strides = array<i32>} : memref<2x64xf32, #tpu.memory_space<vmem>>, vector<1x64xf32>,
    %c1_71 = arith.constant 1 : index
    %c0_72 = arith.constant 0 : index
    %c0_73 = arith.constant 0 : index
    %416 = vector.load %arg2[%c1_71, %c0_72, %c0_73] : memref<2x64x3xf32, #tpu.memory_space<vmem>>, vector<1x64x3xf32>
    %417 = vector.shape_cast %416 : vector<1x64x3xf32> to vector<64x3xf32>
    %418 = vector.extract_strided_slice %417 {offsets = [0, 0], sizes = [64, 1], strides = [1, 1]} : vector<64x3xf32> to vector<64x1xf32>
    %419 = vector.extract_strided_slice %417 {offsets = [0, 1], sizes = [64, 1], strides = [1, 1]} : vector<64x3xf32> to vector<64x1xf32>
    %420 = vector.extract_strided_slice %417 {offsets = [0, 2], sizes = [64, 1], strides = [1, 1]} : vector<64x3xf32> to vector<64x1xf32>
    %421 = vector.broadcast %9 : f32 to vector<64x1xf32>
    %422 = arith.subf %418, %421 : vector<64x1xf32>
    %423 = arith.mulf %422, %422 : vector<64x1xf32>
    %424 = vector.broadcast %10 : f32 to vector<64x1xf32>
    %425 = arith.subf %419, %424 : vector<64x1xf32>
    %426 = arith.mulf %425, %425 : vector<64x1xf32>
    %427 = arith.addf %423, %426 : vector<64x1xf32>
    %428 = vector.broadcast %11 : f32 to vector<64x1xf32>
    %429 = arith.subf %420, %428 : vector<64x1xf32>
    %430 = arith.mulf %429, %429 : vector<64x1xf32>
    %431 = arith.addf %427, %430 : vector<64x1xf32>
    %432 = math.sqrt %431 : vector<64x1xf32>
    %cst_74 = arith.constant 0.000000e+00 : f32
    %433 = vector.broadcast %cst_74 : f32 to vector<32x64xf32>
    %434 = vector.broadcast %12 : f32 to vector<64x1xf32>
    %435 = arith.subf %418, %434 : vector<64x1xf32>
    %436 = arith.mulf %435, %435 : vector<64x1xf32>
    %437 = vector.broadcast %13 : f32 to vector<64x1xf32>
    %438 = arith.subf %419, %437 : vector<64x1xf32>
    %439 = arith.mulf %438, %438 : vector<64x1xf32>
    %440 = arith.addf %436, %439 : vector<64x1xf32>
    %441 = vector.broadcast %14 : f32 to vector<64x1xf32>
    %442 = arith.subf %420, %441 : vector<64x1xf32>
    %443 = arith.mulf %442, %442 : vector<64x1xf32>
    %444 = arith.addf %440, %443 : vector<64x1xf32>
    %445 = math.sqrt %444 : vector<64x1xf32>
    %446 = arith.addf %432, %445 : vector<64x1xf32>
    %cst_75 = arith.constant 34.985424 : f32
    %447 = vector.broadcast %cst_75 : f32 to vector<64x1xf32>
    %448 = arith.mulf %446, %447 : vector<64x1xf32>
    %449 = arith.mulf %432, %445 : vector<64x1xf32>
    %450 = math.floor %448 : vector<64x1xf32>
    %cst_76 = arith.constant 0.000000e+00 : f32
    %cst_77 = arith.constant 9.500000e+01 : f32
    %451 = vector.broadcast %cst_76 : f32 to vector<64x1xf32>
    %452 = arith.maximumf %451, %450 : vector<64x1xf32>
    %453 = vector.broadcast %cst_77 : f32 to vector<64x1xf32>
    %454 = arith.minimumf %453, %452 : vector<64x1xf32>
    %455 = arith.subf %448, %454 : vector<64x1xf32>
    %cst_78 = arith.constant 0.000000e+00 : f32
    %cst_79 = arith.constant 1.000000e+00 : f32
    %456 = vector.broadcast %cst_78 : f32 to vector<64x1xf32>
    %457 = arith.maximumf %456, %455 : vector<64x1xf32>
    %458 = vector.broadcast %cst_79 : f32 to vector<64x1xf32>
    %459 = arith.minimumf %458, %457 : vector<64x1xf32>
    %460 = arith.fptosi %454 : vector<64x1xf32> to vector<64x1xi32>
    %461 = vector.broadcast %460 : vector<64x1xi32> to vector<64x128xi32>
    %462 = arith.cmpi eq, %25, %461 : vector<64x128xi32>
    %cst_80 = arith.constant 1.000000e+00 : f32
    %463 = vector.broadcast %cst_80 : f32 to vector<64x1xf32>
    %464 = arith.subf %463, %459 : vector<64x1xf32>
    %465 = arith.mulf %464, %449 : vector<64x1xf32>
    %cst_81 = arith.constant 0.000000e+00 : f32
    %466 = vector.shape_cast %465 : vector<64x1xf32> to vector<64x1xf32>
    %467 = vector.broadcast %466 : vector<64x1xf32> to vector<64x128xf32>
    %468 = vector.broadcast %cst_81 : f32 to vector<64x128xf32>
    %469 = arith.select %462, %467, %468 : vector<64x128xi1>, vector<64x128xf32>
    %c1_i32_82 = arith.constant 1 : i32
    %470 = vector.broadcast %c1_i32_82 : i32 to vector<64x1xi32>
    %471 = arith.addi %460, %470 : vector<64x1xi32>
    %472 = vector.broadcast %471 : vector<64x1xi32> to vector<64x128xi32>
    %473 = arith.cmpi eq, %25, %472 : vector<64x128xi32>
    %474 = arith.mulf %459, %449 : vector<64x1xf32>
    %cst_83 = arith.constant 0.000000e+00 : f32
    %475 = vector.shape_cast %474 : vector<64x1xf32> to vector<64x1xf32>
    %476 = vector.broadcast %475 : vector<64x1xf32> to vector<64x128xf32>
    %477 = vector.broadcast %cst_83 : f32 to vector<64x128xf32>
    %478 = arith.select %473, %476, %477 : vector<64x128xi1>, vector<64x128xf32>
    %479 = arith.addf %469, %478 : vector<64x128xf32>
    %480 = vector.extract_strided_slice %0 {offsets = [1, 0, 0], sizes = [1, 1, 128], strides = [1, 1, 1]} : vector<2x4x128xf32> to vector<1x1x128xf32>
    %481 = vector.shape_cast %480 : vector<1x1x128xf32> to vector<1x128xf32>
    %482 = tpu.concatenate %481, %26 in 1 : vector<1x128xf32>, vector<1x32xf32> -> vector<1x160xf32>
    %483 = vector.extract_strided_slice %482 {offsets = [0, 0], sizes = [1, 128], strides = [1, 1]} : vector<1x160xf32> to vector<1x128xf32>
    %484 = vector.extract_strided_slice %482 {offsets = [0, 1], sizes = [1, 128], strides = [1, 1]} : vector<1x160xf32> to vector<1x128xf32>
    %485 = vector.extract_strided_slice %482 {offsets = [0, 2], sizes = [1, 128], strides = [1, 1]} : vector<1x160xf32> to vector<1x128xf32>
    %486 = vector.extract_strided_slice %482 {offsets = [0, 3], sizes = [1, 128], strides = [1, 1]} : vector<1x160xf32> to vector<1x128xf32>
    %487 = vector.extract_strided_slice %482 {offsets = [0, 4], sizes = [1, 128], strides = [1, 1]} : vector<1x160xf32> to vector<1x128xf32>
    %488 = vector.extract_strided_slice %482 {offsets = [0, 5], sizes = [1, 128], strides = [1, 1]} : vector<1x160xf32> to vector<1x128xf32>
    %489 = vector.extract_strided_slice %482 {offsets = [0, 6], sizes = [1, 128], strides = [1, 1]} : vector<1x160xf32> to vector<1x128xf32>
    %490 = vector.extract_strided_slice %482 {offsets = [0, 7], sizes = [1, 128], strides = [1, 1]} : vector<1x160xf32> to vector<1x128xf32>
    %491 = vector.extract_strided_slice %482 {offsets = [0, 8], sizes = [1, 128], strides = [1, 1]} : vector<1x160xf32> to vector<1x128xf32>
    %492 = vector.extract_strided_slice %482 {offsets = [0, 9], sizes = [1, 128], strides = [1, 1]} : vector<1x160xf32> to vector<1x128xf32>
    %493 = vector.extract_strided_slice %482 {offsets = [0, 10], sizes = [1, 128], strides = [1, 1]} : vector<1x160xf32> to vector<1x128xf32>
    %494 = vector.extract_strided_slice %482 {offsets = [0, 11], sizes = [1, 128], strides = [1, 1]} : vector<1x160xf32> to vector<1x128xf32>
    %495 = vector.extract_strided_slice %482 {offsets = [0, 12], sizes = [1, 128], strides = [1, 1]} : vector<1x160xf32> to vector<1x128xf32>
    %496 = vector.extract_strided_slice %482 {offsets = [0, 13], sizes = [1, 128], strides = [1, 1]} : vector<1x160xf32> to vector<1x128xf32>
    %497 = vector.extract_strided_slice %482 {offsets = [0, 14], sizes = [1, 128], strides = [1, 1]} : vector<1x160xf32> to vector<1x128xf32>
    %498 = vector.extract_strided_slice %482 {offsets = [0, 15], sizes = [1, 128], strides = [1, 1]} : vector<1x160xf32> to vector<1x128xf32>
    %499 = vector.extract_strided_slice %482 {offsets = [0, 16], sizes = [1, 128], strides = [1, 1]} : vector<1x160xf32> to vector<1x128xf32>
    %500 = vector.extract_strided_slice %482 {offsets = [0, 17], sizes = [1, 128], strides = [1, 1]} : vector<1x160xf32> to vector<1x128xf32>
    %501 = vector.extract_strided_slice %482 {offsets = [0, 18], sizes = [1, 128], strides = [1, 1]} : vector<1x160xf32> to vector<1x128xf32>
    %502 = vector.extract_strided_slice %482 {offsets = [0, 19], sizes = [1, 128], strides = [1, 1]} : vector<1x160xf32> to vector<1x128xf32>
    %503 = vector.extract_strided_slice %482 {offsets = [0, 20], sizes = [1, 128], strides = [1, 1]} : vector<1x160xf32> to vector<1x128xf32>
    %504 = vector.extract_strided_slice %482 {offsets = [0, 21], sizes = [1, 128], strides = [1, 1]} : vector<1x160xf32> to vector<1x128xf32>
    %505 = vector.extract_strided_slice %482 {offsets = [0, 22], sizes = [1, 128], strides = [1, 1]} : vector<1x160xf32> to vector<1x128xf32>
    %506 = vector.extract_strided_slice %482 {offsets = [0, 23], sizes = [1, 128], strides = [1, 1]} : vector<1x160xf32> to vector<1x128xf32>
    %507 = vector.extract_strided_slice %482 {offsets = [0, 24], sizes = [1, 128], strides = [1, 1]} : vector<1x160xf32> to vector<1x128xf32>
    %508 = vector.extract_strided_slice %482 {offsets = [0, 25], sizes = [1, 128], strides = [1, 1]} : vector<1x160xf32> to vector<1x128xf32>
    %509 = vector.extract_strided_slice %482 {offsets = [0, 26], sizes = [1, 128], strides = [1, 1]} : vector<1x160xf32> to vector<1x128xf32>
    %510 = vector.extract_strided_slice %482 {offsets = [0, 27], sizes = [1, 128], strides = [1, 1]} : vector<1x160xf32> to vector<1x128xf32>
    %511 = vector.extract_strided_slice %482 {offsets = [0, 28], sizes = [1, 128], strides = [1, 1]} : vector<1x160xf32> to vector<1x128xf32>
    %512 = vector.extract_strided_slice %482 {offsets = [0, 29], sizes = [1, 128], strides = [1, 1]} : vector<1x160xf32> to vector<1x128xf32>
    %513 = vector.extract_strided_slice %482 {offsets = [0, 30], sizes = [1, 128], strides = [1, 1]} : vector<1x160xf32> to vector<1x128xf32>
    %514 = vector.extract_strided_slice %482 {offsets = [0, 31], sizes = [1, 128], strides = [1, 1]} : vector<1x160xf32> to vector<1x128xf32>
    %515 = tpu.concatenate %483, %484, %485, %486, %487, %488, %489, %490, %491, %492, %493, %494, %495, %496, %497, %498 in 0 : vector<1x128xf32>, vector<1x128xf32>, vector<1x128xf32>, vector<1x128xf32>, vector<1x128xf32>, vector<1x128xf32>, vector<1x128xf32>, vector<1x128xf32>, vector<1x128xf32>, vector<1x128xf32>, vector<1x128xf32>, vector<1x128xf32>, vector<1x128xf32>, vector<1x128xf32>, vector<1x128xf32>, vector<1x128xf32> -> vector<16x128xf32>
    %516 = tpu.concatenate %499, %500, %501, %502, %503, %504, %505, %506, %507, %508, %509, %510, %511, %512, %513, %514 in 0 : vector<1x128xf32>, vector<1x128xf32>, vector<1x128xf32>, vector<1x128xf32>, vector<1x128xf32>, vector<1x128xf32>, vector<1x128xf32>, vector<1x128xf32>, vector<1x128xf32>, vector<1x128xf32>, vector<1x128xf32>, vector<1x128xf32>, vector<1x128xf32>, vector<1x128xf32>, vector<1x128xf32>, vector<1x128xf32> -> vector<16x128xf32>
    %517 = tpu.concatenate %515, %516 in 0 : vector<16x128xf32>, vector<16x128xf32> -> vector<32x128xf32>
    %cst_84 = arith.constant dense<0.000000e+00> : vector<32x64xf32>
    %518 = tpu.matmul %517, %479, %cst_84 {dimension_numbers = #tpu.dot_dimension_numbers<[1], [1], [0], [0], [0, 0, 1, 0], [], []>} : vector<32x128xf32>, vector<64x128xf32>, vector<32x64xf32> -> vector<32x64xf32>
    %cst_85 = arith.constant dense<0.000000e+00> : vector<32x64xf32>
    %519 = tpu.matmul %5, %518, %cst_85 {dimension_numbers = #tpu.dot_dimension_numbers<[0], [0], [1], [1], [0, 1, 1, 1], [], []>} : vector<32x32xf32>, vector<32x64xf32>, vector<32x64xf32> -> vector<32x64xf32>
    %520 = arith.addf %433, %519 : vector<32x64xf32>
    %521 = vector.broadcast %15 : f32 to vector<64x1xf32>
    %522 = arith.subf %418, %521 : vector<64x1xf32>
    %523 = arith.mulf %522, %522 : vector<64x1xf32>
    %524 = vector.broadcast %16 : f32 to vector<64x1xf32>
    %525 = arith.subf %419, %524 : vector<64x1xf32>
    %526 = arith.mulf %525, %525 : vector<64x1xf32>
    %527 = arith.addf %523, %526 : vector<64x1xf32>
    %528 = vector.broadcast %17 : f32 to vector<64x1xf32>
    %529 = arith.subf %420, %528 : vector<64x1xf32>
    %530 = arith.mulf %529, %529 : vector<64x1xf32>
    %531 = arith.addf %527, %530 : vector<64x1xf32>
    %532 = math.sqrt %531 : vector<64x1xf32>
    %533 = arith.addf %432, %532 : vector<64x1xf32>
    %cst_86 = arith.constant 34.985424 : f32
    %534 = vector.broadcast %cst_86 : f32 to vector<64x1xf32>
    %535 = arith.mulf %533, %534 : vector<64x1xf32>
    %536 = arith.mulf %432, %532 : vector<64x1xf32>
    %537 = math.floor %535 : vector<64x1xf32>
    %cst_87 = arith.constant 0.000000e+00 : f32
    %cst_88 = arith.constant 9.500000e+01 : f32
    %538 = vector.broadcast %cst_87 : f32 to vector<64x1xf32>
    %539 = arith.maximumf %538, %537 : vector<64x1xf32>
    %540 = vector.broadcast %cst_88 : f32 to vector<64x1xf32>
    %541 = arith.minimumf %540, %539 : vector<64x1xf32>
    %542 = arith.subf %535, %541 : vector<64x1xf32>
    %cst_89 = arith.constant 0.000000e+00 : f32
    %cst_90 = arith.constant 1.000000e+00 : f32
    %543 = vector.broadcast %cst_89 : f32 to vector<64x1xf32>
    %544 = arith.maximumf %543, %542 : vector<64x1xf32>
    %545 = vector.broadcast %cst_90 : f32 to vector<64x1xf32>
    %546 = arith.minimumf %545, %544 : vector<64x1xf32>
    %547 = arith.fptosi %541 : vector<64x1xf32> to vector<64x1xi32>
    %548 = vector.broadcast %547 : vector<64x1xi32> to vector<64x128xi32>
    %549 = arith.cmpi eq, %25, %548 : vector<64x128xi32>
    %cst_91 = arith.constant 1.000000e+00 : f32
    %550 = vector.broadcast %cst_91 : f32 to vector<64x1xf32>
    %551 = arith.subf %550, %546 : vector<64x1xf32>
    %552 = arith.mulf %551, %536 : vector<64x1xf32>
    %cst_92 = arith.constant 0.000000e+00 : f32
    %553 = vector.shape_cast %552 : vector<64x1xf32> to vector<64x1xf32>
    %554 = vector.broadcast %553 : vector<64x1xf32> to vector<64x128xf32>
    %555 = vector.broadcast %cst_92 : f32 to vector<64x128xf32>
    %556 = arith.select %549, %554, %555 : vector<64x128xi1>, vector<64x128xf32>
    %c1_i32_93 = arith.constant 1 : i32
    %557 = vector.broadcast %c1_i32_93 : i32 to vector<64x1xi32>
    %558 = arith.addi %547, %557 : vector<64x1xi32>
    %559 = vector.broadcast %558 : vector<64x1xi32> to vector<64x128xi32>
    %560 = arith.cmpi eq, %25, %559 : vector<64x128xi32>
    %561 = arith.mulf %546, %536 : vector<64x1xf32>
    %cst_94 = arith.constant 0.000000e+00 : f32
    %562 = vector.shape_cast %561 : vector<64x1xf32> to vector<64x1xf32>
    %563 = vector.broadcast %562 : vector<64x1xf32> to vector<64x128xf32>
    %564 = vector.broadcast %cst_94 : f32 to vector<64x128xf32>
    %565 = arith.select %560, %563, %564 : vector<64x128xi1>, vector<64x128xf32>
    %566 = arith.addf %556, %565 : vector<64x128xf32>
    %567 = vector.extract_strided_slice %0 {offsets = [1, 1, 0], sizes = [1, 1, 128], strides = [1, 1, 1]} : vector<2x4x128xf32> to vector<1x1x128xf32>
    %568 = vector.shape_cast %567 : vector<1x1x128xf32> to vector<1x128xf32>
    %569 = tpu.concatenate %568, %26 in 1 : vector<1x128xf32>, vector<1x32xf32> -> vector<1x160xf32>
    %570 = vector.extract_strided_slice %569 {offsets = [0, 0], sizes = [1, 128], strides = [1, 1]} : vector<1x160xf32> to vector<1x128xf32>
    %571 = vector.extract_strided_slice %569 {offsets = [0, 1], sizes = [1, 128], strides = [1, 1]} : vector<1x160xf32> to vector<1x128xf32>
    %572 = vector.extract_strided_slice %569 {offsets = [0, 2], sizes = [1, 128], strides = [1, 1]} : vector<1x160xf32> to vector<1x128xf32>
    %573 = vector.extract_strided_slice %569 {offsets = [0, 3], sizes = [1, 128], strides = [1, 1]} : vector<1x160xf32> to vector<1x128xf32>
    %574 = vector.extract_strided_slice %569 {offsets = [0, 4], sizes = [1, 128], strides = [1, 1]} : vector<1x160xf32> to vector<1x128xf32>
    %575 = vector.extract_strided_slice %569 {offsets = [0, 5], sizes = [1, 128], strides = [1, 1]} : vector<1x160xf32> to vector<1x128xf32>
    %576 = vector.extract_strided_slice %569 {offsets = [0, 6], sizes = [1, 128], strides = [1, 1]} : vector<1x160xf32> to vector<1x128xf32>
    %577 = vector.extract_strided_slice %569 {offsets = [0, 7], sizes = [1, 128], strides = [1, 1]} : vector<1x160xf32> to vector<1x128xf32>
    %578 = vector.extract_strided_slice %569 {offsets = [0, 8], sizes = [1, 128], strides = [1, 1]} : vector<1x160xf32> to vector<1x128xf32>
    %579 = vector.extract_strided_slice %569 {offsets = [0, 9], sizes = [1, 128], strides = [1, 1]} : vector<1x160xf32> to vector<1x128xf32>
    %580 = vector.extract_strided_slice %569 {offsets = [0, 10], sizes = [1, 128], strides = [1, 1]} : vector<1x160xf32> to vector<1x128xf32>
    %581 = vector.extract_strided_slice %569 {offsets = [0, 11], sizes = [1, 128], strides = [1, 1]} : vector<1x160xf32> to vector<1x128xf32>
    %582 = vector.extract_strided_slice %569 {offsets = [0, 12], sizes = [1, 128], strides = [1, 1]} : vector<1x160xf32> to vector<1x128xf32>
    %583 = vector.extract_strided_slice %569 {offsets = [0, 13], sizes = [1, 128], strides = [1, 1]} : vector<1x160xf32> to vector<1x128xf32>
    %584 = vector.extract_strided_slice %569 {offsets = [0, 14], sizes = [1, 128], strides = [1, 1]} : vector<1x160xf32> to vector<1x128xf32>
    %585 = vector.extract_strided_slice %569 {offsets = [0, 15], sizes = [1, 128], strides = [1, 1]} : vector<1x160xf32> to vector<1x128xf32>
    %586 = vector.extract_strided_slice %569 {offsets = [0, 16], sizes = [1, 128], strides = [1, 1]} : vector<1x160xf32> to vector<1x128xf32>
    %587 = vector.extract_strided_slice %569 {offsets = [0, 17], sizes = [1, 128], strides = [1, 1]} : vector<1x160xf32> to vector<1x128xf32>
    %588 = vector.extract_strided_slice %569 {offsets = [0, 18], sizes = [1, 128], strides = [1, 1]} : vector<1x160xf32> to vector<1x128xf32>
    %589 = vector.extract_strided_slice %569 {offsets = [0, 19], sizes = [1, 128], strides = [1, 1]} : vector<1x160xf32> to vector<1x128xf32>
    %590 = vector.extract_strided_slice %569 {offsets = [0, 20], sizes = [1, 128], strides = [1, 1]} : vector<1x160xf32> to vector<1x128xf32>
    %591 = vector.extract_strided_slice %569 {offsets = [0, 21], sizes = [1, 128], strides = [1, 1]} : vector<1x160xf32> to vector<1x128xf32>
    %592 = vector.extract_strided_slice %569 {offsets = [0, 22], sizes = [1, 128], strides = [1, 1]} : vector<1x160xf32> to vector<1x128xf32>
    %593 = vector.extract_strided_slice %569 {offsets = [0, 23], sizes = [1, 128], strides = [1, 1]} : vector<1x160xf32> to vector<1x128xf32>
    %594 = vector.extract_strided_slice %569 {offsets = [0, 24], sizes = [1, 128], strides = [1, 1]} : vector<1x160xf32> to vector<1x128xf32>
    %595 = vector.extract_strided_slice %569 {offsets = [0, 25], sizes = [1, 128], strides = [1, 1]} : vector<1x160xf32> to vector<1x128xf32>
    %596 = vector.extract_strided_slice %569 {offsets = [0, 26], sizes = [1, 128], strides = [1, 1]} : vector<1x160xf32> to vector<1x128xf32>
    %597 = vector.extract_strided_slice %569 {offsets = [0, 27], sizes = [1, 128], strides = [1, 1]} : vector<1x160xf32> to vector<1x128xf32>
    %598 = vector.extract_strided_slice %569 {offsets = [0, 28], sizes = [1, 128], strides = [1, 1]} : vector<1x160xf32> to vector<1x128xf32>
    %599 = vector.extract_strided_slice %569 {offsets = [0, 29], sizes = [1, 128], strides = [1, 1]} : vector<1x160xf32> to vector<1x128xf32>
    %600 = vector.extract_strided_slice %569 {offsets = [0, 30], sizes = [1, 128], strides = [1, 1]} : vector<1x160xf32> to vector<1x128xf32>
    %601 = vector.extract_strided_slice %569 {offsets = [0, 31], sizes = [1, 128], strides = [1, 1]} : vector<1x160xf32> to vector<1x128xf32>
    %602 = tpu.concatenate %570, %571, %572, %573, %574, %575, %576, %577, %578, %579, %580, %581, %582, %583, %584, %585 in 0 : vector<1x128xf32>, vector<1x128xf32>, vector<1x128xf32>, vector<1x128xf32>, vector<1x128xf32>, vector<1x128xf32>, vector<1x128xf32>, vector<1x128xf32>, vector<1x128xf32>, vector<1x128xf32>, vector<1x128xf32>, vector<1x128xf32>, vector<1x128xf32>, vector<1x128xf32>, vector<1x128xf32>, vector<1x128xf32> -> vector<16x128xf32>
    %603 = tpu.concatenate %586, %587, %588, %589, %590, %591, %592, %593, %594, %595, %596, %597, %598, %599, %600, %601 in 0 : vector<1x128xf32>, vector<1x128xf32>, vector<1x128xf32>, vector<1x128xf32>, vector<1x128xf32>, vector<1x128xf32>, vector<1x128xf32>, vector<1x128xf32>, vector<1x128xf32>, vector<1x128xf32>, vector<1x128xf32>, vector<1x128xf32>, vector<1x128xf32>, vector<1x128xf32>, vector<1x128xf32>, vector<1x128xf32> -> vector<16x128xf32>
    %604 = tpu.concatenate %602, %603 in 0 : vector<16x128xf32>, vector<16x128xf32> -> vector<32x128xf32>
    %cst_95 = arith.constant dense<0.000000e+00> : vector<32x64xf32>
    %605 = tpu.matmul %604, %566, %cst_95 {dimension_numbers = #tpu.dot_dimension_numbers<[1], [1], [0], [0], [0, 0, 1, 0], [], []>} : vector<32x128xf32>, vector<64x128xf32>, vector<32x64xf32> -> vector<32x64xf32>
    %cst_96 = arith.constant dense<0.000000e+00> : vector<32x64xf32>
    %606 = tpu.matmul %6, %605, %cst_96 {dimension_numbers = #tpu.dot_dimension_numbers<[0], [0], [1], [1], [0, 1, 1, 1], [], []>} : vector<32x32xf32>, vector<32x64xf32>, vector<32x64xf32> -> vector<32x64xf32>
    %607 = arith.addf %520, %606 : vector<32x64xf32>
    %608 = vector.broadcast %18 : f32 to vector<64x1xf32>
    %609 = arith.subf %418, %608 : vector<64x1xf32>
    %610 = arith.mulf %609, %609 : vector<64x1xf32>
    %611 = vector.broadcast %19 : f32 to vector<64x1xf32>
    %612 = arith.subf %419, %611 : vector<64x1xf32>
    %613 = arith.mulf %612, %612 : vector<64x1xf32>
    %614 = arith.addf %610, %613 : vector<64x1xf32>
    %615 = vector.broadcast %20 : f32 to vector<64x1xf32>
    %616 = arith.subf %420, %615 : vector<64x1xf32>
    %617 = arith.mulf %616, %616 : vector<64x1xf32>
    %618 = arith.addf %614, %617 : vector<64x1xf32>
    %619 = math.sqrt %618 : vector<64x1xf32>
    %620 = arith.addf %432, %619 : vector<64x1xf32>
    %cst_97 = arith.constant 34.985424 : f32
    %621 = vector.broadcast %cst_97 : f32 to vector<64x1xf32>
    %622 = arith.mulf %620, %621 : vector<64x1xf32>
    %623 = arith.mulf %432, %619 : vector<64x1xf32>
    %624 = math.floor %622 : vector<64x1xf32>
    %cst_98 = arith.constant 0.000000e+00 : f32
    %cst_99 = arith.constant 9.500000e+01 : f32
    %625 = vector.broadcast %cst_98 : f32 to vector<64x1xf32>
    %626 = arith.maximumf %625, %624 : vector<64x1xf32>
    %627 = vector.broadcast %cst_99 : f32 to vector<64x1xf32>
    %628 = arith.minimumf %627, %626 : vector<64x1xf32>
    %629 = arith.subf %622, %628 : vector<64x1xf32>
    %cst_100 = arith.constant 0.000000e+00 : f32
    %cst_101 = arith.constant 1.000000e+00 : f32
    %630 = vector.broadcast %cst_100 : f32 to vector<64x1xf32>
    %631 = arith.maximumf %630, %629 : vector<64x1xf32>
    %632 = vector.broadcast %cst_101 : f32 to vector<64x1xf32>
    %633 = arith.minimumf %632, %631 : vector<64x1xf32>
    %634 = arith.fptosi %628 : vector<64x1xf32> to vector<64x1xi32>
    %635 = vector.broadcast %634 : vector<64x1xi32> to vector<64x128xi32>
    %636 = arith.cmpi eq, %25, %635 : vector<64x128xi32>
    %cst_102 = arith.constant 1.000000e+00 : f32
    %637 = vector.broadcast %cst_102 : f32 to vector<64x1xf32>
    %638 = arith.subf %637, %633 : vector<64x1xf32>
    %639 = arith.mulf %638, %623 : vector<64x1xf32>
    %cst_103 = arith.constant 0.000000e+00 : f32
    %640 = vector.shape_cast %639 : vector<64x1xf32> to vector<64x1xf32>
    %641 = vector.broadcast %640 : vector<64x1xf32> to vector<64x128xf32>
    %642 = vector.broadcast %cst_103 : f32 to vector<64x128xf32>
    %643 = arith.select %636, %641, %642 : vector<64x128xi1>, vector<64x128xf32>
    %c1_i32_104 = arith.constant 1 : i32
    %644 = vector.broadcast %c1_i32_104 : i32 to vector<64x1xi32>
    %645 = arith.addi %634, %644 : vector<64x1xi32>
    %646 = vector.broadcast %645 : vector<64x1xi32> to vector<64x128xi32>
    %647 = arith.cmpi eq, %25, %646 : vector<64x128xi32>
    %648 = arith.mulf %633, %623 : vector<64x1xf32>
    %cst_105 = arith.constant 0.000000e+00 : f32
    %649 = vector.shape_cast %648 : vector<64x1xf32> to vector<64x1xf32>
    %650 = vector.broadcast %649 : vector<64x1xf32> to vector<64x128xf32>
    %651 = vector.broadcast %cst_105 : f32 to vector<64x128xf32>
    %652 = arith.select %647, %650, %651 : vector<64x128xi1>, vector<64x128xf32>
    %653 = arith.addf %643, %652 : vector<64x128xf32>
    %654 = vector.extract_strided_slice %0 {offsets = [1, 2, 0], sizes = [1, 1, 128], strides = [1, 1, 1]} : vector<2x4x128xf32> to vector<1x1x128xf32>
    %655 = vector.shape_cast %654 : vector<1x1x128xf32> to vector<1x128xf32>
    %656 = tpu.concatenate %655, %26 in 1 : vector<1x128xf32>, vector<1x32xf32> -> vector<1x160xf32>
    %657 = vector.extract_strided_slice %656 {offsets = [0, 0], sizes = [1, 128], strides = [1, 1]} : vector<1x160xf32> to vector<1x128xf32>
    %658 = vector.extract_strided_slice %656 {offsets = [0, 1], sizes = [1, 128], strides = [1, 1]} : vector<1x160xf32> to vector<1x128xf32>
    %659 = vector.extract_strided_slice %656 {offsets = [0, 2], sizes = [1, 128], strides = [1, 1]} : vector<1x160xf32> to vector<1x128xf32>
    %660 = vector.extract_strided_slice %656 {offsets = [0, 3], sizes = [1, 128], strides = [1, 1]} : vector<1x160xf32> to vector<1x128xf32>
    %661 = vector.extract_strided_slice %656 {offsets = [0, 4], sizes = [1, 128], strides = [1, 1]} : vector<1x160xf32> to vector<1x128xf32>
    %662 = vector.extract_strided_slice %656 {offsets = [0, 5], sizes = [1, 128], strides = [1, 1]} : vector<1x160xf32> to vector<1x128xf32>
    %663 = vector.extract_strided_slice %656 {offsets = [0, 6], sizes = [1, 128], strides = [1, 1]} : vector<1x160xf32> to vector<1x128xf32>
    %664 = vector.extract_strided_slice %656 {offsets = [0, 7], sizes = [1, 128], strides = [1, 1]} : vector<1x160xf32> to vector<1x128xf32>
    %665 = vector.extract_strided_slice %656 {offsets = [0, 8], sizes = [1, 128], strides = [1, 1]} : vector<1x160xf32> to vector<1x128xf32>
    %666 = vector.extract_strided_slice %656 {offsets = [0, 9], sizes = [1, 128], strides = [1, 1]} : vector<1x160xf32> to vector<1x128xf32>
    %667 = vector.extract_strided_slice %656 {offsets = [0, 10], sizes = [1, 128], strides = [1, 1]} : vector<1x160xf32> to vector<1x128xf32>
    %668 = vector.extract_strided_slice %656 {offsets = [0, 11], sizes = [1, 128], strides = [1, 1]} : vector<1x160xf32> to vector<1x128xf32>
    %669 = vector.extract_strided_slice %656 {offsets = [0, 12], sizes = [1, 128], strides = [1, 1]} : vector<1x160xf32> to vector<1x128xf32>
    %670 = vector.extract_strided_slice %656 {offsets = [0, 13], sizes = [1, 128], strides = [1, 1]} : vector<1x160xf32> to vector<1x128xf32>
    %671 = vector.extract_strided_slice %656 {offsets = [0, 14], sizes = [1, 128], strides = [1, 1]} : vector<1x160xf32> to vector<1x128xf32>
    %672 = vector.extract_strided_slice %656 {offsets = [0, 15], sizes = [1, 128], strides = [1, 1]} : vector<1x160xf32> to vector<1x128xf32>
    %673 = vector.extract_strided_slice %656 {offsets = [0, 16], sizes = [1, 128], strides = [1, 1]} : vector<1x160xf32> to vector<1x128xf32>
    %674 = vector.extract_strided_slice %656 {offsets = [0, 17], sizes = [1, 128], strides = [1, 1]} : vector<1x160xf32> to vector<1x128xf32>
    %675 = vector.extract_strided_slice %656 {offsets = [0, 18], sizes = [1, 128], strides = [1, 1]} : vector<1x160xf32> to vector<1x128xf32>
    %676 = vector.extract_strided_slice %656 {offsets = [0, 19], sizes = [1, 128], strides = [1, 1]} : vector<1x160xf32> to vector<1x128xf32>
    %677 = vector.extract_strided_slice %656 {offsets = [0, 20], sizes = [1, 128], strides = [1, 1]} : vector<1x160xf32> to vector<1x128xf32>
    %678 = vector.extract_strided_slice %656 {offsets = [0, 21], sizes = [1, 128], strides = [1, 1]} : vector<1x160xf32> to vector<1x128xf32>
    %679 = vector.extract_strided_slice %656 {offsets = [0, 22], sizes = [1, 128], strides = [1, 1]} : vector<1x160xf32> to vector<1x128xf32>
    %680 = vector.extract_strided_slice %656 {offsets = [0, 23], sizes = [1, 128], strides = [1, 1]} : vector<1x160xf32> to vector<1x128xf32>
    %681 = vector.extract_strided_slice %656 {offsets = [0, 24], sizes = [1, 128], strides = [1, 1]} : vector<1x160xf32> to vector<1x128xf32>
    %682 = vector.extract_strided_slice %656 {offsets = [0, 25], sizes = [1, 128], strides = [1, 1]} : vector<1x160xf32> to vector<1x128xf32>
    %683 = vector.extract_strided_slice %656 {offsets = [0, 26], sizes = [1, 128], strides = [1, 1]} : vector<1x160xf32> to vector<1x128xf32>
    %684 = vector.extract_strided_slice %656 {offsets = [0, 27], sizes = [1, 128], strides = [1, 1]} : vector<1x160xf32> to vector<1x128xf32>
    %685 = vector.extract_strided_slice %656 {offsets = [0, 28], sizes = [1, 128], strides = [1, 1]} : vector<1x160xf32> to vector<1x128xf32>
    %686 = vector.extract_strided_slice %656 {offsets = [0, 29], sizes = [1, 128], strides = [1, 1]} : vector<1x160xf32> to vector<1x128xf32>
    %687 = vector.extract_strided_slice %656 {offsets = [0, 30], sizes = [1, 128], strides = [1, 1]} : vector<1x160xf32> to vector<1x128xf32>
    %688 = vector.extract_strided_slice %656 {offsets = [0, 31], sizes = [1, 128], strides = [1, 1]} : vector<1x160xf32> to vector<1x128xf32>
    %689 = tpu.concatenate %657, %658, %659, %660, %661, %662, %663, %664, %665, %666, %667, %668, %669, %670, %671, %672 in 0 : vector<1x128xf32>, vector<1x128xf32>, vector<1x128xf32>, vector<1x128xf32>, vector<1x128xf32>, vector<1x128xf32>, vector<1x128xf32>, vector<1x128xf32>, vector<1x128xf32>, vector<1x128xf32>, vector<1x128xf32>, vector<1x128xf32>, vector<1x128xf32>, vector<1x128xf32>, vector<1x128xf32>, vector<1x128xf32> -> vector<16x128xf32>
    %690 = tpu.concatenate %673, %674, %675, %676, %677, %678, %679, %680, %681, %682, %683, %684, %685, %686, %687, %688 in 0 : vector<1x128xf32>, vector<1x128xf32>, vector<1x128xf32>, vector<1x128xf32>, vector<1x128xf32>, vector<1x128xf32>, vector<1x128xf32>, vector<1x128xf32>, vector<1x128xf32>, vector<1x128xf32>, vector<1x128xf32>, vector<1x128xf32>, vector<1x128xf32>, vector<1x128xf32>, vector<1x128xf32>, vector<1x128xf32> -> vector<16x128xf32>
    %691 = tpu.concatenate %689, %690 in 0 : vector<16x128xf32>, vector<16x128xf32> -> vector<32x128xf32>
    %cst_106 = arith.constant dense<0.000000e+00> : vector<32x64xf32>
    %692 = tpu.matmul %691, %653, %cst_106 {dimension_numbers = #tpu.dot_dimension_numbers<[1], [1], [0], [0], [0, 0, 1, 0], [], []>} : vector<32x128xf32>, vector<64x128xf32>, vector<32x64xf32> -> vector<32x64xf32>
    %cst_107 = arith.constant dense<0.000000e+00> : vector<32x64xf32>
    %693 = tpu.matmul %7, %692, %cst_107 {dimension_numbers = #tpu.dot_dimension_numbers<[0], [0], [1], [1], [0, 1, 1, 1], [], []>} : vector<32x32xf32>, vector<32x64xf32>, vector<32x64xf32> -> vector<32x64xf32>
    %694 = arith.addf %607, %693 : vector<32x64xf32>
    %695 = vector.broadcast %21 : f32 to vector<64x1xf32>
    %696 = arith.subf %418, %695 : vector<64x1xf32>
    %697 = arith.mulf %696, %696 : vector<64x1xf32>
    %698 = vector.broadcast %22 : f32 to vector<64x1xf32>
    %699 = arith.subf %419, %698 : vector<64x1xf32>
    %700 = arith.mulf %699, %699 : vector<64x1xf32>
    %701 = arith.addf %697, %700 : vector<64x1xf32>
    %702 = vector.broadcast %23 : f32 to vector<64x1xf32>
    %703 = arith.subf %420, %702 : vector<64x1xf32>
    %704 = arith.mulf %703, %703 : vector<64x1xf32>
    %705 = arith.addf %701, %704 : vector<64x1xf32>
    %706 = math.sqrt %705 : vector<64x1xf32>
    %707 = arith.addf %432, %706 : vector<64x1xf32>
    %cst_108 = arith.constant 34.985424 : f32
    %708 = vector.broadcast %cst_108 : f32 to vector<64x1xf32>
    %709 = arith.mulf %707, %708 : vector<64x1xf32>
    %710 = arith.mulf %432, %706 : vector<64x1xf32>
    %711 = math.floor %709 : vector<64x1xf32>
    %cst_109 = arith.constant 0.000000e+00 : f32
    %cst_110 = arith.constant 9.500000e+01 : f32
    %712 = vector.broadcast %cst_109 : f32 to vector<64x1xf32>
    %713 = arith.maximumf %712, %711 : vector<64x1xf32>
    %714 = vector.broadcast %cst_110 : f32 to vector<64x1xf32>
    %715 = arith.minimumf %714, %713 : vector<64x1xf32>
    %716 = arith.subf %709, %715 : vector<64x1xf32>
    %cst_111 = arith.constant 0.000000e+00 : f32
    %cst_112 = arith.constant 1.000000e+00 : f32
    %717 = vector.broadcast %cst_111 : f32 to vector<64x1xf32>
    %718 = arith.maximumf %717, %716 : vector<64x1xf32>
    %719 = vector.broadcast %cst_112 : f32 to vector<64x1xf32>
    %720 = arith.minimumf %719, %718 : vector<64x1xf32>
    %721 = arith.fptosi %715 : vector<64x1xf32> to vector<64x1xi32>
    %722 = vector.broadcast %721 : vector<64x1xi32> to vector<64x128xi32>
    %723 = arith.cmpi eq, %25, %722 : vector<64x128xi32>
    %cst_113 = arith.constant 1.000000e+00 : f32
    %724 = vector.broadcast %cst_113 : f32 to vector<64x1xf32>
    %725 = arith.subf %724, %720 : vector<64x1xf32>
    %726 = arith.mulf %725, %710 : vector<64x1xf32>
    %cst_114 = arith.constant 0.000000e+00 : f32
    %727 = vector.shape_cast %726 : vector<64x1xf32> to vector<64x1xf32>
    %728 = vector.broadcast %727 : vector<64x1xf32> to vector<64x128xf32>
    %729 = vector.broadcast %cst_114 : f32 to vector<64x128xf32>
    %730 = arith.select %723, %728, %729 : vector<64x128xi1>, vector<64x128xf32>
    %c1_i32_115 = arith.constant 1 : i32
    %731 = vector.broadcast %c1_i32_115 : i32 to vector<64x1xi32>
    %732 = arith.addi %721, %731 : vector<64x1xi32>
    %733 = vector.broadcast %732 : vector<64x1xi32> to vector<64x128xi32>
    %734 = arith.cmpi eq, %25, %733 : vector<64x128xi32>
    %735 = arith.mulf %720, %710 : vector<64x1xf32>
    %cst_116 = arith.constant 0.000000e+00 : f32
    %736 = vector.shape_cast %735 : vector<64x1xf32> to vector<64x1xf32>
    %737 = vector.broadcast %736 : vector<64x1xf32> to vector<64x128xf32>
    %738 = vector.broadcast %cst_116 : f32 to vector<64x128xf32>
    %739 = arith.select %734, %737, %738 : vector<64x128xi1>, vector<64x128xf32>
    %740 = arith.addf %730, %739 : vector<64x128xf32>
    %741 = vector.extract_strided_slice %0 {offsets = [1, 3, 0], sizes = [1, 1, 128], strides = [1, 1, 1]} : vector<2x4x128xf32> to vector<1x1x128xf32>
    %742 = vector.shape_cast %741 : vector<1x1x128xf32> to vector<1x128xf32>
    %743 = tpu.concatenate %742, %26 in 1 : vector<1x128xf32>, vector<1x32xf32> -> vector<1x160xf32>
    %744 = vector.extract_strided_slice %743 {offsets = [0, 0], sizes = [1, 128], strides = [1, 1]} : vector<1x160xf32> to vector<1x128xf32>
    %745 = vector.extract_strided_slice %743 {offsets = [0, 1], sizes = [1, 128], strides = [1, 1]} : vector<1x160xf32> to vector<1x128xf32>
    %746 = vector.extract_strided_slice %743 {offsets = [0, 2], sizes = [1, 128], strides = [1, 1]} : vector<1x160xf32> to vector<1x128xf32>
    %747 = vector.extract_strided_slice %743 {offsets = [0, 3], sizes = [1, 128], strides = [1, 1]} : vector<1x160xf32> to vector<1x128xf32>
    %748 = vector.extract_strided_slice %743 {offsets = [0, 4], sizes = [1, 128], strides = [1, 1]} : vector<1x160xf32> to vector<1x128xf32>
    %749 = vector.extract_strided_slice %743 {offsets = [0, 5], sizes = [1, 128], strides = [1, 1]} : vector<1x160xf32> to vector<1x128xf32>
    %750 = vector.extract_strided_slice %743 {offsets = [0, 6], sizes = [1, 128], strides = [1, 1]} : vector<1x160xf32> to vector<1x128xf32>
    %751 = vector.extract_strided_slice %743 {offsets = [0, 7], sizes = [1, 128], strides = [1, 1]} : vector<1x160xf32> to vector<1x128xf32>
    %752 = vector.extract_strided_slice %743 {offsets = [0, 8], sizes = [1, 128], strides = [1, 1]} : vector<1x160xf32> to vector<1x128xf32>
    %753 = vector.extract_strided_slice %743 {offsets = [0, 9], sizes = [1, 128], strides = [1, 1]} : vector<1x160xf32> to vector<1x128xf32>
    %754 = vector.extract_strided_slice %743 {offsets = [0, 10], sizes = [1, 128], strides = [1, 1]} : vector<1x160xf32> to vector<1x128xf32>
    %755 = vector.extract_strided_slice %743 {offsets = [0, 11], sizes = [1, 128], strides = [1, 1]} : vector<1x160xf32> to vector<1x128xf32>
    %756 = vector.extract_strided_slice %743 {offsets = [0, 12], sizes = [1, 128], strides = [1, 1]} : vector<1x160xf32> to vector<1x128xf32>
    %757 = vector.extract_strided_slice %743 {offsets = [0, 13], sizes = [1, 128], strides = [1, 1]} : vector<1x160xf32> to vector<1x128xf32>
    %758 = vector.extract_strided_slice %743 {offsets = [0, 14], sizes = [1, 128], strides = [1, 1]} : vector<1x160xf32> to vector<1x128xf32>
    %759 = vector.extract_strided_slice %743 {offsets = [0, 15], sizes = [1, 128], strides = [1, 1]} : vector<1x160xf32> to vector<1x128xf32>
    %760 = vector.extract_strided_slice %743 {offsets = [0, 16], sizes = [1, 128], strides = [1, 1]} : vector<1x160xf32> to vector<1x128xf32>
    %761 = vector.extract_strided_slice %743 {offsets = [0, 17], sizes = [1, 128], strides = [1, 1]} : vector<1x160xf32> to vector<1x128xf32>
    %762 = vector.extract_strided_slice %743 {offsets = [0, 18], sizes = [1, 128], strides = [1, 1]} : vector<1x160xf32> to vector<1x128xf32>
    %763 = vector.extract_strided_slice %743 {offsets = [0, 19], sizes = [1, 128], strides = [1, 1]} : vector<1x160xf32> to vector<1x128xf32>
    %764 = vector.extract_strided_slice %743 {offsets = [0, 20], sizes = [1, 128], strides = [1, 1]} : vector<1x160xf32> to vector<1x128xf32>
    %765 = vector.extract_strided_slice %743 {offsets = [0, 21], sizes = [1, 128], strides = [1, 1]} : vector<1x160xf32> to vector<1x128xf32>
    %766 = vector.extract_strided_slice %743 {offsets = [0, 22], sizes = [1, 128], strides = [1, 1]} : vector<1x160xf32> to vector<1x128xf32>
    %767 = vector.extract_strided_slice %743 {offsets = [0, 23], sizes = [1, 128], strides = [1, 1]} : vector<1x160xf32> to vector<1x128xf32>
    %768 = vector.extract_strided_slice %743 {offsets = [0, 24], sizes = [1, 128], strides = [1, 1]} : vector<1x160xf32> to vector<1x128xf32>
    %769 = vector.extract_strided_slice %743 {offsets = [0, 25], sizes = [1, 128], strides = [1, 1]} : vector<1x160xf32> to vector<1x128xf32>
    %770 = vector.extract_strided_slice %743 {offsets = [0, 26], sizes = [1, 128], strides = [1, 1]} : vector<1x160xf32> to vector<1x128xf32>
    %771 = vector.extract_strided_slice %743 {offsets = [0, 27], sizes = [1, 128], strides = [1, 1]} : vector<1x160xf32> to vector<1x128xf32>
    %772 = vector.extract_strided_slice %743 {offsets = [0, 28], sizes = [1, 128], strides = [1, 1]} : vector<1x160xf32> to vector<1x128xf32>
    %773 = vector.extract_strided_slice %743 {offsets = [0, 29], sizes = [1, 128], strides = [1, 1]} : vector<1x160xf32> to vector<1x128xf32>
    %774 = vector.extract_strided_slice %743 {offsets = [0, 30], sizes = [1, 128], strides = [1, 1]} : vector<1x160xf32> to vector<1x128xf32>
    %775 = vector.extract_strided_slice %743 {offsets = [0, 31], sizes = [1, 128], strides = [1, 1]} : vector<1x160xf32> to vector<1x128xf32>
    %776 = tpu.concatenate %744, %745, %746, %747, %748, %749, %750, %751, %752, %753, %754, %755, %756, %757, %758, %759 in 0 : vector<1x128xf32>, vector<1x128xf32>, vector<1x128xf32>, vector<1x128xf32>, vector<1x128xf32>, vector<1x128xf32>, vector<1x128xf32>, vector<1x128xf32>, vector<1x128xf32>, vector<1x128xf32>, vector<1x128xf32>, vector<1x128xf32>, vector<1x128xf32>, vector<1x128xf32>, vector<1x128xf32>, vector<1x128xf32> -> vector<16x128xf32>
    %777 = tpu.concatenate %760, %761, %762, %763, %764, %765, %766, %767, %768, %769, %770, %771, %772, %773, %774, %775 in 0 : vector<1x128xf32>, vector<1x128xf32>, vector<1x128xf32>, vector<1x128xf32>, vector<1x128xf32>, vector<1x128xf32>, vector<1x128xf32>, vector<1x128xf32>, vector<1x128xf32>, vector<1x128xf32>, vector<1x128xf32>, vector<1x128xf32>, vector<1x128xf32>, vector<1x128xf32>, vector<1x128xf32>, vector<1x128xf32> -> vector<16x128xf32>
    %778 = tpu.concatenate %776, %777 in 0 : vector<16x128xf32>, vector<16x128xf32> -> vector<32x128xf32>
    %cst_117 = arith.constant dense<0.000000e+00> : vector<32x64xf32>
    %779 = tpu.matmul %778, %740, %cst_117 {dimension_numbers = #tpu.dot_dimension_numbers<[1], [1], [0], [0], [0, 0, 1, 0], [], []>} : vector<32x128xf32>, vector<64x128xf32>, vector<32x64xf32> -> vector<32x64xf32>
    %cst_118 = arith.constant dense<0.000000e+00> : vector<32x64xf32>
    %780 = tpu.matmul %8, %779, %cst_118 {dimension_numbers = #tpu.dot_dimension_numbers<[0], [0], [1], [1], [0, 1, 1, 1], [], []>} : vector<32x32xf32>, vector<32x64xf32>, vector<32x64xf32> -> vector<32x64xf32>
    %781 = arith.addf %694, %780 : vector<32x64xf32>
    %782 = vector.broadcast %2 : vector<32x1xf32> to vector<32x64xf32>
    %783 = arith.addf %781, %782 : vector<32x64xf32>
    %cst_119 = arith.constant 0.000000e+00 : f32
    %784 = vector.broadcast %cst_119 : f32 to vector<32x64xf32>
    %785 = arith.cmpf oge, %783, %784 : vector<32x64xf32>
    %cst_120 = arith.constant 1.000000e-01 : f32
    %786 = vector.broadcast %cst_120 : f32 to vector<32x64xf32>
    %787 = arith.mulf %786, %783 : vector<32x64xf32>
    %788 = arith.select %785, %783, %787 : vector<32x64xi1>, vector<32x64xf32>
    %cst_121 = arith.constant dense<0.000000e+00> : vector<32x64xf32>
    %789 = tpu.matmul %1, %788, %cst_121 {dimension_numbers = #tpu.dot_dimension_numbers<[0], [0], [1], [1], [0, 1, 1, 1], [], []>} : vector<32x32xf32>, vector<32x64xf32>, vector<32x64xf32> -> vector<32x64xf32>
    %790 = vector.broadcast %3 : vector<32x1xf32> to vector<32x64xf32>
    %791 = arith.addf %789, %790 : vector<32x64xf32>
    %cst_122 = arith.constant 0.000000e+00 : f32
    %792 = vector.broadcast %cst_122 : f32 to vector<32x64xf32>
    %793 = arith.cmpf oge, %791, %792 : vector<32x64xf32>
    %cst_123 = arith.constant 1.000000e-01 : f32
    %794 = vector.broadcast %cst_123 : f32 to vector<32x64xf32>
    %795 = arith.mulf %794, %791 : vector<32x64xf32>
    %796 = arith.select %793, %791, %795 : vector<32x64xi1>, vector<32x64xf32>
    %797 = vector.broadcast %4 : vector<32x1xf32> to vector<32x64xf32>
    %798 = arith.mulf %797, %796 : vector<32x64xf32>
    %cst_124 = arith.constant dense<0.000000e+00> : vector<64xf32>
    %799 = vector.multi_reduction <add>, %798, %cst_124 [0] : vector<32x64xf32> to vector<64xf32>
    %800 = vector.broadcast %24 : f32 to vector<64xf32>
    %801 = arith.addf %799, %800 : vector<64xf32>
    %c1_125 = arith.constant 1 : index
    %c0_126 = arith.constant 0 : index
    %802 = vector.load %arg7[%c1_125, %c0_126] : memref<2x64xf32, #tpu.memory_space<vmem>>, vector<1x64xf32>
    %803 = vector.shape_cast %802 : vector<1x64xf32> to vector<64xf32>
    %804 = vector.shape_cast %801 : vector<64xf32> to vector<1x64xf32>
    tpu.vector_store %arg7[%c1_125, %c0_126], %804 {strides = array<i32>} : memref<2x64xf32, #tpu.memory_space<vmem>>, vector<1x64xf32>,
    return
  }
  func.func @transform_0(%arg0: i32) -> (i32, i32, i32) {
    %c0_i32 = arith.constant 0 : i32
    %c0_i32_0 = arith.constant 0 : i32
    %c0_i32_1 = arith.constant 0 : i32
    %c0_i32_2 = arith.constant 0 : i32
    return %c0_i32, %c0_i32_0, %c0_i32_1 : i32, i32, i32
  }
  func.func @transform_1(%arg0: i32) -> (i32, i32, i32) {
    %c0_i32 = arith.constant 0 : i32
    %c0_i32_0 = arith.constant 0 : i32
    %c0_i32_1 = arith.constant 0 : i32
    %c0_i32_2 = arith.constant 0 : i32
    return %c0_i32, %c0_i32_0, %c0_i32_1 : i32, i32, i32
  }
  func.func @transform_2(%arg0: i32) -> (i32, i32) {
    %c0_i32 = arith.constant 0 : i32
    %c0_i32_0 = arith.constant 0 : i32
    %c0_i32_1 = arith.constant 0 : i32
    return %c0_i32, %c0_i32_0 : i32, i32
  }
  func.func @transform_3(%arg0: i32) -> (i32, i32) {
    %c0_i32 = arith.constant 0 : i32
    %c0_i32_0 = arith.constant 0 : i32
    %c0_i32_1 = arith.constant 0 : i32
    return %c0_i32, %c0_i32_0 : i32, i32
  }
  func.func @transform_4(%arg0: i32) -> (i32, i32) {
    %c0_i32 = arith.constant 0 : i32
    %c0_i32_0 = arith.constant 0 : i32
    %c0_i32_1 = arith.constant 0 : i32
    return %c0_i32, %c0_i32_0 : i32, i32
  }
  func.func @transform_5(%arg0: i32) -> i32 {
    %c0_i32 = arith.constant 0 : i32
    %c0_i32_0 = arith.constant 0 : i32
    return %c0_i32 : i32
  }
  func.func @transform_6(%arg0: i32) -> (i32, i32) {
    %c0_i32 = arith.constant 0 : i32
    %c0_i32_0 = arith.constant 0 : i32
    %c0_i32_1 = arith.constant 0 : i32
    return %c0_i32, %c0_i32_0 : i32, i32
  }
}

</mosaic_0001>

<llo_original>
// kernel: tof_net_forward.1
$region0: #{tof_net_forward.1}
  #allocation0 [shape = 'u32[]', space=smem, size = 0x4, offset = 0x4, fixed_abs, tag = 'smem constant byte address 0x4 - core index']
  #allocation1 [shape = 'u32[144,128]{1,0:T(1,128)}', space=vmem, size = 0x12000, scoped, tag = 'internal scratch']
  %s0 = inlined_call_operand.vmem [shape: f32[2,4,128], index: 0, kind: input, shape index: {}]
  %s1 = inlined_call_operand.vmem [shape: f32[2,64,3], index: 1, kind: input, shape index: {}]
  %s2 = inlined_call_operand.vmem [shape: f32[128,32], index: 2, kind: input, shape index: {}]
  %s3 = inlined_call_operand.vmem [shape: f32[32,32], index: 3, kind: input, shape index: {}]
  %s4 = inlined_call_operand.vmem [shape: f32[32,3], index: 4, kind: input, shape index: {}]
  %s5 = inlined_call_operand.vmem [shape: f32[16], index: 5, kind: input, shape index: {}]
  %s6 = inlined_call_operand.hbm [shape: f32[2,64], index: 6, kind: output, shape index: {}]
  %s7 = sld [smem:[#allocation0]]
  $region38: #{tof_net_forward.1} parent=0
    _
  %s9 = ssub.s32 1, %s7
  %s10 = scalar_select 0, %s9, %s7
  $region1: #{tof_net_forward.1} parent=0
    #allocation2 [shape = 'u8[512]{0}', space=smem, size = 0x200, scoped, tag = 'input window, operand 5, single buffered']
    #allocation3 [shape = 's32[1]{0}', space=sflag, size = 0x4, scoped, tag = 'scoped memory for tof_net_forward.1']
    #allocation4 [shape = 's32[1]{0}', space=sflag, size = 0x4, scoped, tag = 'scoped memory for tof_net_forward.1']
    #allocation5 [shape = 'u8[1024]{0}', space=vmem, size = 0x400, scoped, tag = 'output window, operand 0, single buffered']
    %11 = vsyncpa [#allocation4], 0
    %12 = vsyncpa [#allocation3], 0
    // Predicated region
    $region2: #{tof_net_forward.1} parent=1 // pred_check
      _
    $region3: #{tof_net_forward.1} parent=1 // pred_check_branch
      %14 = sbr.rel (0) target = $region5
    $region4: #{tof_net_forward.1} parent=1 // pred_region
      _
    $region5: #{tof_net_forward.1} parent=1 // pred_fallthru
      _
    // Predicated region
    $region6: #{tof_net_forward.1} parent=1 // pred_check
      _
    $region7: #{tof_net_forward.1} parent=1 // pred_check_branch
      %16 = sbr.rel (0) target = $region9
    $region8: #{tof_net_forward.1} parent=1 // pred_region
      _
    $region9: #{tof_net_forward.1} parent=1 // pred_fallthru
      _
    // Predicated region
    $region10: #{tof_net_forward.1} parent=1 // pred_check
      _
    $region11: #{tof_net_forward.1} parent=1 // pred_check_branch
      %18 = sbr.rel (0) target = $region13
    $region12: #{tof_net_forward.1} parent=1 // pred_region
      _
    $region13: #{tof_net_forward.1} parent=1 // pred_fallthru
      _
    // Predicated region
    $region14: #{tof_net_forward.1} parent=1 // pred_check
      _
    $region15: #{tof_net_forward.1} parent=1 // pred_check_branch
      %20 = sbr.rel (0) target = $region17
    $region16: #{tof_net_forward.1} parent=1 // pred_region
      _
    $region17: #{tof_net_forward.1} parent=1 // pred_fallthru
      _
    // Predicated region
    $region18: #{tof_net_forward.1} parent=1 // pred_check
      _
    $region19: #{tof_net_forward.1} parent=1 // pred_check_branch
      %22 = sbr.rel (0) target = $region21
    $region20: #{tof_net_forward.1} parent=1 // pred_region
      _
    $region21: #{tof_net_forward.1} parent=1 // pred_fallthru
      _
    // Predicated region
    $region22: #{tof_net_forward.1} parent=1 // pred_check
      _
    $region23: #{tof_net_forward.1} parent=1 // pred_check_branch
      %24 = sbr.rel (0) target = $region25
    $region24: #{tof_net_forward.1} parent=1 // pred_region
      %s26 = ssub.s32 16, 16
      %27 = vsyncadd [#allocation4], %s26
      %s29 = sshll.u32 %s5, 4
      %s30 = int_to_ptr.vmem [resolvable:$true] %s29
      %32 = dma.vmem_to_smem %s30, 16, [#allocation2], [#allocation4]
    $region25: #{tof_net_forward.1} parent=1 // pred_fallthru
      _
    // Predicated region
    $region26: #{tof_net_forward.1} parent=1 // pred_check
      _
    $region27: #{tof_net_forward.1} parent=1 // pred_check_branch
      %34 = sbr.rel (0) target = $region29
    $region28: #{tof_net_forward.1} parent=1 // pred_region
      %35 = dma.done [#allocation4], 16
    $region29: #{tof_net_forward.1} parent=1 // pred_fallthru
      _
    %36 = sfence
    %v37 = vld [vmem:[%s0] sm:$0xf]
    %v38 = vld [vmem:[%s0 + $0x4] sm:$0xf]
    %v39 = vld [vmem:[%s3] sm:$0xff]
    %v40 = vld [vmem:[%s3 + $0x8] sm:$0xff]
    %v41 = vld [vmem:[%s3 + $0x10] sm:$0xff]
    %v42 = vld [vmem:[%s3 + $0x18] sm:$0xff]
    %v43 = vld [vmem:[%s4] sm:$0xff]
    %v44 = vld [vmem:[%s4 + $0x8] sm:$0xff]
    %v45 = vld [vmem:[%s4 + $0x10] sm:$0xff]
    %v46 = vld [vmem:[%s4 + $0x18] sm:$0xff]
    %v47 = vld [vmem:[%s2] sm:$0xff]
    %v48 = vld [vmem:[%s2 + $0x8] sm:$0xff]
    %v49 = vld [vmem:[%s2 + $0x10] sm:$0xff]
    %v50 = vld [vmem:[%s2 + $0x18] sm:$0xff]
    %v51 = vld [vmem:[%s2 + $0x20] sm:$0xff]
    %v52 = vld [vmem:[%s2 + $0x28] sm:$0xff]
    %v53 = vld [vmem:[%s2 + $0x30] sm:$0xff]
    %v54 = vld [vmem:[%s2 + $0x38] sm:$0xff]
    %v55 = vld [vmem:[%s2 + $0x40] sm:$0xff]
    %v56 = vld [vmem:[%s2 + $0x48] sm:$0xff]
    %v57 = vld [vmem:[%s2 + $0x50] sm:$0xff]
    %v58 = vld [vmem:[%s2 + $0x58] sm:$0xff]
    %v59 = vld [vmem:[%s2 + $0x60] sm:$0xff]
    %v60 = vld [vmem:[%s2 + $0x68] sm:$0xff]
    %v61 = vld [vmem:[%s2 + $0x70] sm:$0xff]
    %v62 = vld [vmem:[%s2 + $0x78] sm:$0xff]
    %s63 = sld [smem:[#allocation2]]
    %s64 = sld [smem:[#allocation2 + $0x1]]
    %s65 = sld [smem:[#allocation2 + $0x2]]
    %s66 = sld [smem:[#allocation2 + $0x3]]
    %s67 = sld [smem:[#allocation2 + $0x4]]
    %s68 = sld [smem:[#allocation2 + $0x5]]
    %s69 = sld [smem:[#allocation2 + $0x6]]
    %s70 = sld [smem:[#allocation2 + $0x7]]
    %s71 = sld [smem:[#allocation2 + $0x8]]
    %s72 = sld [smem:[#allocation2 + $0x9]]
    %s73 = sld [smem:[#allocation2 + $0xa]]
    %s74 = sld [smem:[#allocation2 + $0xb]]
    %s75 = sld [smem:[#allocation2 + $0xc]]
    %s76 = sld [smem:[#allocation2 + $0xd]]
    %s77 = sld [smem:[#allocation2 + $0xe]]
    %s78 = sld [smem:[#allocation2 + $0xf]]
    %v79 = vlaneseq
    %v80 = vand.u32 %v79, 127
    %v81 = vld [vmem:[%s1] sm:$0xff]
    %v82 = vld [vmem:[%s1 + $0x8] sm:$0xff]
    %v83 = vld [vmem:[%s1 + $0x10] sm:$0xff]
    %v84 = vld [vmem:[%s1 + $0x18] sm:$0xff]
    %v85 = vld [vmem:[%s1 + $0x20] sm:$0xff]
    %v86 = vld [vmem:[%s1 + $0x28] sm:$0xff]
    %v87 = vld [vmem:[%s1 + $0x30] sm:$0xff]
    %v88 = vld [vmem:[%s1 + $0x38] sm:$0xff]
    %v89 = vstv %s63
    %v90 = vsub.f32 %v81, %v89
    %v91 = vsub.f32 %v82, %v89
    %v92 = vsub.f32 %v83, %v89
    %v93 = vsub.f32 %v84, %v89
    %v94 = vsub.f32 %v85, %v89
    %v95 = vsub.f32 %v86, %v89
    %v96 = vsub.f32 %v87, %v89
    %v97 = vsub.f32 %v88, %v89
    %v98 = vmul.f32 %v90, %v90
    %v99 = vmul.f32 %v91, %v91
    %v100 = vmul.f32 %v92, %v92
    %v101 = vmul.f32 %v93, %v93
    %v102 = vmul.f32 %v94, %v94
    %v103 = vmul.f32 %v95, %v95
    %v104 = vmul.f32 %v96, %v96
    %v105 = vmul.f32 %v97, %v97
    %v106 = vstv %s64
    %v107 = vsub.f32 %v81, %v106
    %v108 = vsub.f32 %v82, %v106
    %v109 = vsub.f32 %v83, %v106
    %v110 = vsub.f32 %v84, %v106
    %v111 = vsub.f32 %v85, %v106
    %v112 = vsub.f32 %v86, %v106
    %v113 = vsub.f32 %v87, %v106
    %v114 = vsub.f32 %v88, %v106
    %v115 = vmul.f32 %v107, %v107
    %v116 = vmul.f32 %v108, %v108
    %v117 = vmul.f32 %v109, %v109
    %v118 = vmul.f32 %v110, %v110
    %v119 = vmul.f32 %v111, %v111
    %v120 = vmul.f32 %v112, %v112
    %v121 = vmul.f32 %v113, %v113
    %v122 = vmul.f32 %v114, %v114
    %131 = vrot.lane.b32.xlu0 %v115, 127
    %v132 = vpop.permute.xlu0 %131
    %133 = vrot.lane.b32.xlu0 %v116, 127
    %v134 = vpop.permute.xlu0 %133
    %135 = vrot.lane.b32.xlu0 %v117, 127
    %v136 = vpop.permute.xlu0 %135
    %137 = vrot.lane.b32.xlu0 %v118, 127
    %v138 = vpop.permute.xlu0 %137
    %139 = vrot.lane.b32.xlu0 %v119, 127
    %v140 = vpop.permute.xlu0 %139
    %141 = vrot.lane.b32.xlu0 %v120, 127
    %v142 = vpop.permute.xlu0 %141
    %143 = vrot.lane.b32.xlu0 %v121, 127
    %v144 = vpop.permute.xlu0 %143
    %145 = vrot.lane.b32.xlu0 %v122, 127
    %v146 = vpop.permute.xlu0 %145
    %v155 = vadd.f32 %v98, %v132
    %v156 = vadd.f32 %v99, %v134
    %v157 = vadd.f32 %v100, %v136
    %v158 = vadd.f32 %v101, %v138
    %v159 = vadd.f32 %v102, %v140
    %v160 = vadd.f32 %v103, %v142
    %v161 = vadd.f32 %v104, %v144
    %v162 = vadd.f32 %v105, %v146
    %v163 = vstv %s65
    %v164 = vsub.f32 %v81, %v163
    %v165 = vsub.f32 %v82, %v163
    %v166 = vsub.f32 %v83, %v163
    %v167 = vsub.f32 %v84, %v163
    %v168 = vsub.f32 %v85, %v163
    %v169 = vsub.f32 %v86, %v163
    %v170 = vsub.f32 %v87, %v163
    %v171 = vsub.f32 %v88, %v163
    %v172 = vmul.f32 %v164, %v164
    %v173 = vmul.f32 %v165, %v165
    %v174 = vmul.f32 %v166, %v166
    %v175 = vmul.f32 %v167, %v167
    %v176 = vmul.f32 %v168, %v168
    %v177 = vmul.f32 %v169, %v169
    %v178 = vmul.f32 %v170, %v170
    %v179 = vmul.f32 %v171, %v171
    %188 = vrot.lane.b32.xlu0 %v172, 126
    %v189 = vpop.permute.xlu0 %188
    %190 = vrot.lane.b32.xlu0 %v173, 126
    %v191 = vpop.permute.xlu0 %190
    %192 = vrot.lane.b32.xlu0 %v174, 126
    %v193 = vpop.permute.xlu0 %192
    %194 = vrot.lane.b32.xlu0 %v175, 126
    %v195 = vpop.permute.xlu0 %194
    %196 = vrot.lane.b32.xlu0 %v176, 126
    %v197 = vpop.permute.xlu0 %196
    %198 = vrot.lane.b32.xlu0 %v177, 126
    %v199 = vpop.permute.xlu0 %198
    %200 = vrot.lane.b32.xlu0 %v178, 126
    %v201 = vpop.permute.xlu0 %200
    %202 = vrot.lane.b32.xlu0 %v179, 126
    %v203 = vpop.permute.xlu0 %202
    %v212 = vadd.f32 %v155, %v189
    %v213 = vadd.f32 %v156, %v191
    %v214 = vadd.f32 %v157, %v193
    %v215 = vadd.f32 %v158, %v195
    %v216 = vadd.f32 %v159, %v197
    %v217 = vadd.f32 %v160, %v199
    %v218 = vadd.f32 %v161, %v201
    %v219 = vadd.f32 %v162, %v203
    %v220 = vrsqrt.pop %v212
    %v221 = vmul.f32 %v212, %v220
    %vm222 = vcmp.eq.f32.partialorder %v212, inf
    %v223 = vsel %vm222, %v212, %v221
    %vm224 = vcmp.eq.f32.partialorder %v212, 0.0
    %v225 = vand.u32 %v212, 2147483648
    %v226 = vsel %vm224, %v225, %v223
    %v227 = vrsqrt.pop %v213
    %v228 = vmul.f32 %v213, %v227
    %vm229 = vcmp.eq.f32.partialorder %v213, inf
    %v230 = vsel %vm229, %v213, %v228
    %vm231 = vcmp.eq.f32.partialorder %v213, 0.0
    %v232 = vand.u32 %v213, 2147483648
    %v233 = vsel %vm231, %v232, %v230
    %v234 = vrsqrt.pop %v214
    %v235 = vmul.f32 %v214, %v234
    %vm236 = vcmp.eq.f32.partialorder %v214, inf
    %v237 = vsel %vm236, %v214, %v235
    %vm238 = vcmp.eq.f32.partialorder %v214, 0.0
    %v239 = vand.u32 %v214, 2147483648
    %v240 = vsel %vm238, %v239, %v237
    %v241 = vrsqrt.pop %v215
    %v242 = vmul.f32 %v215, %v241
    %vm243 = vcmp.eq.f32.partialorder %v215, inf
    %v244 = vsel %vm243, %v215, %v242
    %vm245 = vcmp.eq.f32.partialorder %v215, 0.0
    %v246 = vand.u32 %v215, 2147483648
    %v247 = vsel %vm245, %v246, %v244
    %v248 = vrsqrt.pop %v216
    %v249 = vmul.f32 %v216, %v248
    %vm250 = vcmp.eq.f32.partialorder %v216, inf
    %v251 = vsel %vm250, %v216, %v249
    %vm252 = vcmp.eq.f32.partialorder %v216, 0.0
    %v253 = vand.u32 %v216, 2147483648
    %v254 = vsel %vm252, %v253, %v251
    %v255 = vrsqrt.pop %v217
    %v256 = vmul.f32 %v217, %v255
    %vm257 = vcmp.eq.f32.partialorder %v217, inf
    %v258 = vsel %vm257, %v217, %v256
    %vm259 = vcmp.eq.f32.partialorder %v217, 0.0
    %v260 = vand.u32 %v217, 2147483648
    %v261 = vsel %vm259, %v260, %v258
    %v262 = vrsqrt.pop %v218
    %v263 = vmul.f32 %v218, %v262
    %vm264 = vcmp.eq.f32.partialorder %v218, inf
    %v265 = vsel %vm264, %v218, %v263
    %vm266 = vcmp.eq.f32.partialorder %v218, 0.0
    %v267 = vand.u32 %v218, 2147483648
    %v268 = vsel %vm266, %v267, %v265
    %v269 = vrsqrt.pop %v219
    %v270 = vmul.f32 %v219, %v269
    %vm271 = vcmp.eq.f32.partialorder %v219, inf
    %v272 = vsel %vm271, %v219, %v270
    %vm273 = vcmp.eq.f32.partialorder %v219, 0.0
    %v274 = vand.u32 %v219, 2147483648
    %v275 = vsel %vm273, %v274, %v272
    %v276 = vstv %s66
    %v277 = vsub.f32 %v81, %v276
    %v278 = vsub.f32 %v82, %v276
    %v279 = vsub.f32 %v83, %v276
    %v280 = vsub.f32 %v84, %v276
    %v281 = vsub.f32 %v85, %v276
    %v282 = vsub.f32 %v86, %v276
    %v283 = vsub.f32 %v87, %v276
    %v284 = vsub.f32 %v88, %v276
    %v285 = vmul.f32 %v277, %v277
    %v286 = vmul.f32 %v278, %v278
    %v287 = vmul.f32 %v279, %v279
    %v288 = vmul.f32 %v280, %v280
    %v289 = vmul.f32 %v281, %v281
    %v290 = vmul.f32 %v282, %v282
    %v291 = vmul.f32 %v283, %v283
    %v292 = vmul.f32 %v284, %v284
    %v293 = vstv %s67
    %v294 = vsub.f32 %v81, %v293
    %v295 = vsub.f32 %v82, %v293
    %v296 = vsub.f32 %v83, %v293
    %v297 = vsub.f32 %v84, %v293
    %v298 = vsub.f32 %v85, %v293
    %v299 = vsub.f32 %v86, %v293
    %v300 = vsub.f32 %v87, %v293
    %v301 = vsub.f32 %v88, %v293
    %v302 = vmul.f32 %v294, %v294
    %v303 = vmul.f32 %v295, %v295
    %v304 = vmul.f32 %v296, %v296
    %v305 = vmul.f32 %v297, %v297
    %v306 = vmul.f32 %v298, %v298
    %v307 = vmul.f32 %v299, %v299
    %v308 = vmul.f32 %v300, %v300
    %v309 = vmul.f32 %v301, %v301
    %318 = vrot.lane.b32.xlu0 %v302, 127
    %v319 = vpop.permute.xlu0 %318
    %320 = vrot.lane.b32.xlu0 %v303, 127
    %v321 = vpop.permute.xlu0 %320
    %322 = vrot.lane.b32.xlu0 %v304, 127
    %v323 = vpop.permute.xlu0 %322
    %324 = vrot.lane.b32.xlu0 %v305, 127
    %v325 = vpop.permute.xlu0 %324
    %326 = vrot.lane.b32.xlu0 %v306, 127
    %v327 = vpop.permute.xlu0 %326
    %328 = vrot.lane.b32.xlu0 %v307, 127
    %v329 = vpop.permute.xlu0 %328
    %330 = vrot.lane.b32.xlu0 %v308, 127
    %v331 = vpop.permute.xlu0 %330
    %332 = vrot.lane.b32.xlu0 %v309, 127
    %v333 = vpop.permute.xlu0 %332
    %v342 = vadd.f32 %v285, %v319
    %v343 = vadd.f32 %v286, %v321
    %v344 = vadd.f32 %v287, %v323
    %v345 = vadd.f32 %v288, %v325
    %v346 = vadd.f32 %v289, %v327
    %v347 = vadd.f32 %v290, %v329
    %v348 = vadd.f32 %v291, %v331
    %v349 = vadd.f32 %v292, %v333
    %v350 = vstv %s68
    %v351 = vsub.f32 %v81, %v350
    %v352 = vsub.f32 %v82, %v350
    %v353 = vsub.f32 %v83, %v350
    %v354 = vsub.f32 %v84, %v350
    %v355 = vsub.f32 %v85, %v350
    %v356 = vsub.f32 %v86, %v350
    %v357 = vsub.f32 %v87, %v350
    %v358 = vsub.f32 %v88, %v350
    %v359 = vmul.f32 %v351, %v351
    %v360 = vmul.f32 %v352, %v352
    %v361 = vmul.f32 %v353, %v353
    %v362 = vmul.f32 %v354, %v354
    %v363 = vmul.f32 %v355, %v355
    %v364 = vmul.f32 %v356, %v356
    %v365 = vmul.f32 %v357, %v357
    %v366 = vmul.f32 %v358, %v358
    %375 = vrot.lane.b32.xlu0 %v359, 126
    %v376 = vpop.permute.xlu0 %375
    %377 = vrot.lane.b32.xlu0 %v360, 126
    %v378 = vpop.permute.xlu0 %377
    %379 = vrot.lane.b32.xlu0 %v361, 126
    %v380 = vpop.permute.xlu0 %379
    %381 = vrot.lane.b32.xlu0 %v362, 126
    %v382 = vpop.permute.xlu0 %381
    %383 = vrot.lane.b32.xlu0 %v363, 126
    %v384 = vpop.permute.xlu0 %383
    %385 = vrot.lane.b32.xlu0 %v364, 126
    %v386 = vpop.permute.xlu0 %385
    %387 = vrot.lane.b32.xlu0 %v365, 126
    %v388 = vpop.permute.xlu0 %387
    %389 = vrot.lane.b32.xlu0 %v366, 126
    %v390 = vpop.permute.xlu0 %389
    %v399 = vadd.f32 %v342, %v376
    %v400 = vadd.f32 %v343, %v378
    %v401 = vadd.f32 %v344, %v380
    %v402 = vadd.f32 %v345, %v382
    %v403 = vadd.f32 %v346, %v384
    %v404 = vadd.f32 %v347, %v386
    %v405 = vadd.f32 %v348, %v388
    %v406 = vadd.f32 %v349, %v390
    %v407 = vrsqrt.pop %v399
    %v408 = vmul.f32 %v399, %v407
    %vm409 = vcmp.eq.f32.partialorder %v399, inf
    %v410 = vsel %vm409, %v399, %v408
    %vm411 = vcmp.eq.f32.partialorder %v399, 0.0
    %v412 = vand.u32 %v399, 2147483648
    %v413 = vsel %vm411, %v412, %v410
    %v414 = vrsqrt.pop %v400
    %v415 = vmul.f32 %v400, %v414
    %vm416 = vcmp.eq.f32.partialorder %v400, inf
    %v417 = vsel %vm416, %v400, %v415
    %vm418 = vcmp.eq.f32.partialorder %v400, 0.0
    %v419 = vand.u32 %v400, 2147483648
    %v420 = vsel %vm418, %v419, %v417
    %v421 = vrsqrt.pop %v401
    %v422 = vmul.f32 %v401, %v421
    %vm423 = vcmp.eq.f32.partialorder %v401, inf
    %v424 = vsel %vm423, %v401, %v422
    %vm425 = vcmp.eq.f32.partialorder %v401, 0.0
    %v426 = vand.u32 %v401, 2147483648
    %v427 = vsel %vm425, %v426, %v424
    %v428 = vrsqrt.pop %v402
    %v429 = vmul.f32 %v402, %v428
    %vm430 = vcmp.eq.f32.partialorder %v402, inf
    %v431 = vsel %vm430, %v402, %v429
    %vm432 = vcmp.eq.f32.partialorder %v402, 0.0
    %v433 = vand.u32 %v402, 2147483648
    %v434 = vsel %vm432, %v433, %v431
    %v435 = vrsqrt.pop %v403
    %v436 = vmul.f32 %v403, %v435
    %vm437 = vcmp.eq.f32.partialorder %v403, inf
    %v438 = vsel %vm437, %v403, %v436
    %vm439 = vcmp.eq.f32.partialorder %v403, 0.0
    %v440 = vand.u32 %v403, 2147483648
    %v441 = vsel %vm439, %v440, %v438
    %v442 = vrsqrt.pop %v404
    %v443 = vmul.f32 %v404, %v442
    %vm444 = vcmp.eq.f32.partialorder %v404, inf
    %v445 = vsel %vm444, %v404, %v443
    %vm446 = vcmp.eq.f32.partialorder %v404, 0.0
    %v447 = vand.u32 %v404, 2147483648
    %v448 = vsel %vm446, %v447, %v445
    %v449 = vrsqrt.pop %v405
    %v450 = vmul.f32 %v405, %v449
    %vm451 = vcmp.eq.f32.partialorder %v405, inf
    %v452 = vsel %vm451, %v405, %v450
    %vm453 = vcmp.eq.f32.partialorder %v405, 0.0
    %v454 = vand.u32 %v405, 2147483648
    %v455 = vsel %vm453, %v454, %v452
    %v456 = vrsqrt.pop %v406
    %v457 = vmul.f32 %v406, %v456
    %vm458 = vcmp.eq.f32.partialorder %v406, inf
    %v459 = vsel %vm458, %v406, %v457
    %vm460 = vcmp.eq.f32.partialorder %v406, 0.0
    %v461 = vand.u32 %v406, 2147483648
    %v462 = vsel %vm460, %v461, %v459
    %v463 = vadd.f32 %v226, %v413
    %v464 = vadd.f32 %v233, %v420
    %v465 = vadd.f32 %v240, %v427
    %v466 = vadd.f32 %v247, %v434
    %v467 = vadd.f32 %v254, %v441
    %v468 = vadd.f32 %v261, %v448
    %v469 = vadd.f32 %v268, %v455
    %v470 = vadd.f32 %v275, %v462
    %v471 = vmul.f32 %v463, 34.985424
    %v472 = vmul.f32 %v464, 34.985424
    %v473 = vmul.f32 %v465, 34.985424
    %v474 = vmul.f32 %v466, 34.985424
    %v475 = vmul.f32 %v467, 34.985424
    %v476 = vmul.f32 %v468, 34.985424
    %v477 = vmul.f32 %v469, 34.985424
    %v478 = vmul.f32 %v470, 34.985424
    %v479 = vmul.f32 %v226, %v413
    %v480 = vmul.f32 %v233, %v420
    %v481 = vmul.f32 %v240, %v427
    %v482 = vmul.f32 %v247, %v434
    %v483 = vmul.f32 %v254, %v441
    %v484 = vmul.f32 %v261, %v448
    %v485 = vmul.f32 %v268, %v455
    %v486 = vmul.f32 %v275, %v462
    %v487 = vfloor.f32 %v471
    %v488 = vfloor.f32 %v472
    %v489 = vfloor.f32 %v473
    %v490 = vfloor.f32 %v474
    %v491 = vfloor.f32 %v475
    %v492 = vfloor.f32 %v476
    %v493 = vfloor.f32 %v477
    %v494 = vfloor.f32 %v478
    %v495 = vmax.f32 %v487, 0.0
    %v496 = vmax.f32 %v488, 0.0
    %v497 = vmax.f32 %v489, 0.0
    %v498 = vmax.f32 %v490, 0.0
    %v499 = vmax.f32 %v491, 0.0
    %v500 = vmax.f32 %v492, 0.0
    %v501 = vmax.f32 %v493, 0.0
    %v502 = vmax.f32 %v494, 0.0
    %v503 = vmin.f32 %v495, 95.0
    %v504 = vmin.f32 %v496, 95.0
    %v505 = vmin.f32 %v497, 95.0
    %v506 = vmin.f32 %v498, 95.0
    %v507 = vmin.f32 %v499, 95.0
    %v508 = vmin.f32 %v500, 95.0
    %v509 = vmin.f32 %v501, 95.0
    %v510 = vmin.f32 %v502, 95.0
    %v511 = vsub.f32 %v471, %v503
    %v512 = vsub.f32 %v472, %v504
    %v513 = vsub.f32 %v473, %v505
    %v514 = vsub.f32 %v474, %v506
    %v515 = vsub.f32 %v475, %v507
    %v516 = vsub.f32 %v476, %v508
    %v517 = vsub.f32 %v477, %v509
    %v518 = vsub.f32 %v478, %v510
    %v519 = vmax.f32 %v511, 0.0
    %v520 = vmax.f32 %v512, 0.0
    %v521 = vmax.f32 %v513, 0.0
    %v522 = vmax.f32 %v514, 0.0
    %v523 = vmax.f32 %v515, 0.0
    %v524 = vmax.f32 %v516, 0.0
    %v525 = vmax.f32 %v517, 0.0
    %v526 = vmax.f32 %v518, 0.0
    %v527 = vmin.f32 %v519, 1.0
    %v528 = vmin.f32 %v520, 1.0
    %v529 = vmin.f32 %v521, 1.0
    %v530 = vmin.f32 %v522, 1.0
    %v531 = vmin.f32 %v523, 1.0
    %v532 = vmin.f32 %v524, 1.0
    %v533 = vmin.f32 %v525, 1.0
    %v534 = vmin.f32 %v526, 1.0
    %v535 = vcvt.f32.s32.to.zero.pseudo %v503
    %v536 = vcvt.f32.s32.to.zero.pseudo %v504
    %v537 = vcvt.f32.s32.to.zero.pseudo %v505
    %v538 = vcvt.f32.s32.to.zero.pseudo %v506
    %v539 = vcvt.f32.s32.to.zero.pseudo %v507
    %v540 = vcvt.f32.s32.to.zero.pseudo %v508
    %v541 = vcvt.f32.s32.to.zero.pseudo %v509
    %v542 = vcvt.f32.s32.to.zero.pseudo %v510
    %543 = vset.pattern.permute.xlu0 0
    %544 = vperm.xlu0 %543, %v535
    %v545 = vpop.permute.xlu0 %544
    %546 = vset.pattern.permute.xlu0 0
    %547 = vperm.xlu0 %546, %v536
    %v548 = vpop.permute.xlu0 %547
    %549 = vset.pattern.permute.xlu0 0
    %550 = vperm.xlu0 %549, %v537
    %v551 = vpop.permute.xlu0 %550
    %552 = vset.pattern.permute.xlu0 0
    %553 = vperm.xlu0 %552, %v538
    %v554 = vpop.permute.xlu0 %553
    %555 = vset.pattern.permute.xlu0 0
    %556 = vperm.xlu0 %555, %v539
    %v557 = vpop.permute.xlu0 %556
    %558 = vset.pattern.permute.xlu0 0
    %559 = vperm.xlu0 %558, %v540
    %v560 = vpop.permute.xlu0 %559
    %561 = vset.pattern.permute.xlu0 0
    %562 = vperm.xlu0 %561, %v541
    %v563 = vpop.permute.xlu0 %562
    %564 = vset.pattern.permute.xlu0 0
    %565 = vperm.xlu0 %564, %v542
    %v566 = vpop.permute.xlu0 %565
    %vm567 = vcmp.eq.s32.totalorder %v80, %v545
    %vm568 = vcmp.eq.s32.totalorder %v80, %v548
    %vm569 = vcmp.eq.s32.totalorder %v80, %v551
    %vm570 = vcmp.eq.s32.totalorder %v80, %v554
    %vm571 = vcmp.eq.s32.totalorder %v80, %v557
    %vm572 = vcmp.eq.s32.totalorder %v80, %v560
    %vm573 = vcmp.eq.s32.totalorder %v80, %v563
    %vm574 = vcmp.eq.s32.totalorder %v80, %v566
    %v575 = vsub.f32 1.0, %v527
    %v576 = vsub.f32 1.0, %v528
    %v577 = vsub.f32 1.0, %v529
    %v578 = vsub.f32 1.0, %v530
    %v579 = vsub.f32 1.0, %v531
    %v580 = vsub.f32 1.0, %v532
    %v581 = vsub.f32 1.0, %v533
    %v582 = vsub.f32 1.0, %v534
    %v583 = vmul.f32 %v575, %v479
    %v584 = vmul.f32 %v576, %v480
    %v585 = vmul.f32 %v577, %v481
    %v586 = vmul.f32 %v578, %v482
    %v587 = vmul.f32 %v579, %v483
    %v588 = vmul.f32 %v580, %v484
    %v589 = vmul.f32 %v581, %v485
    %v590 = vmul.f32 %v582, %v486
    %592 = vset.pattern.permute.xlu0 0
    %593 = vperm.xlu0 %592, %v583
    %v594 = vpop.permute.xlu0 %593
    %597 = vset.pattern.permute.xlu0 0
    %598 = vperm.xlu0 %597, %v584
    %v599 = vpop.permute.xlu0 %598
    %602 = vset.pattern.permute.xlu0 0
    %603 = vperm.xlu0 %602, %v585
    %v604 = vpop.permute.xlu0 %603
    %607 = vset.pattern.permute.xlu0 0
    %608 = vperm.xlu0 %607, %v586
    %v609 = vpop.permute.xlu0 %608
    %612 = vset.pattern.permute.xlu0 0
    %613 = vperm.xlu0 %612, %v587
    %v614 = vpop.permute.xlu0 %613
    %617 = vset.pattern.permute.xlu0 0
    %618 = vperm.xlu0 %617, %v588
    %v619 = vpop.permute.xlu0 %618
    %622 = vset.pattern.permute.xlu0 0
    %623 = vperm.xlu0 %622, %v589
    %v624 = vpop.permute.xlu0 %623
    %627 = vset.pattern.permute.xlu0 0
    %628 = vperm.xlu0 %627, %v590
    %v629 = vpop.permute.xlu0 %628
    %v631 = vsel %vm567, %v594, 0.0
    %v632 = vsel %vm568, %v599, 0.0
    %v633 = vsel %vm569, %v604, 0.0
    %v634 = vsel %vm570, %v609, 0.0
    %v635 = vsel %vm571, %v614, 0.0
    %v636 = vsel %vm572, %v619, 0.0
    %v637 = vsel %vm573, %v624, 0.0
    %v638 = vsel %vm574, %v629, 0.0
    %v639 = vadd.s32 %v535, 1
    %v640 = vadd.s32 %v536, 1
    %v641 = vadd.s32 %v537, 1
    %v642 = vadd.s32 %v538, 1
    %v643 = vadd.s32 %v539, 1
    %v644 = vadd.s32 %v540, 1
    %v645 = vadd.s32 %v541, 1
    %v646 = vadd.s32 %v542, 1
    %647 = vset.pattern.permute.xlu0 0
    %648 = vperm.xlu0 %647, %v639
    %v649 = vpop.permute.xlu0 %648
    %650 = vset.pattern.permute.xlu0 0
    %651 = vperm.xlu0 %650, %v640
    %v652 = vpop.permute.xlu0 %651
    %653 = vset.pattern.permute.xlu0 0
    %654 = vperm.xlu0 %653, %v641
    %v655 = vpop.permute.xlu0 %654
    %656 = vset.pattern.permute.xlu0 0
    %657 = vperm.xlu0 %656, %v642
    %v658 = vpop.permute.xlu0 %657
    %659 = vset.pattern.permute.xlu0 0
    %660 = vperm.xlu0 %659, %v643
    %v661 = vpop.permute.xlu0 %660
    %662 = vset.pattern.permute.xlu0 0
    %663 = vperm.xlu0 %662, %v644
    %v664 = vpop.permute.xlu0 %663
    %665 = vset.pattern.permute.xlu0 0
    %666 = vperm.xlu0 %665, %v645
    %v667 = vpop.permute.xlu0 %666
    %668 = vset.pattern.permute.xlu0 0
    %669 = vperm.xlu0 %668, %v646
    %v670 = vpop.permute.xlu0 %669
    %vm671 = vcmp.eq.s32.totalorder %v80, %v649
    %vm672 = vcmp.eq.s32.totalorder %v80, %v652
    %vm673 = vcmp.eq.s32.totalorder %v80, %v655
    %vm674 = vcmp.eq.s32.totalorder %v80, %v658
    %vm675 = vcmp.eq.s32.totalorder %v80, %v661
    %vm676 = vcmp.eq.s32.totalorder %v80, %v664
    %vm677 = vcmp.eq.s32.totalorder %v80, %v667
    %vm678 = vcmp.eq.s32.totalorder %v80, %v670
    %v679 = vmul.f32 %v527, %v479
    %v680 = vmul.f32 %v528, %v480
    %v681 = vmul.f32 %v529, %v481
    %v682 = vmul.f32 %v530, %v482
    %v683 = vmul.f32 %v531, %v483
    %v684 = vmul.f32 %v532, %v484
    %v685 = vmul.f32 %v533, %v485
    %v686 = vmul.f32 %v534, %v486
    %688 = vset.pattern.permute.xlu0 0
    %689 = vperm.xlu0 %688, %v679
    %v690 = vpop.permute.xlu0 %689
    %693 = vset.pattern.permute.xlu0 0
    %694 = vperm.xlu0 %693, %v680
    %v695 = vpop.permute.xlu0 %694
    %698 = vset.pattern.permute.xlu0 0
    %699 = vperm.xlu0 %698, %v681
    %v700 = vpop.permute.xlu0 %699
    %703 = vset.pattern.permute.xlu0 0
    %704 = vperm.xlu0 %703, %v682
    %v705 = vpop.permute.xlu0 %704
    %708 = vset.pattern.permute.xlu0 0
    %709 = vperm.xlu0 %708, %v683
    %v710 = vpop.permute.xlu0 %709
    %713 = vset.pattern.permute.xlu0 0
    %714 = vperm.xlu0 %713, %v684
    %v715 = vpop.permute.xlu0 %714
    %718 = vset.pattern.permute.xlu0 0
    %719 = vperm.xlu0 %718, %v685
    %v720 = vpop.permute.xlu0 %719
    %723 = vset.pattern.permute.xlu0 0
    %724 = vperm.xlu0 %723, %v686
    %v725 = vpop.permute.xlu0 %724
    %v727 = vsel %vm671, %v690, 0.0
    %v728 = vsel %vm672, %v695, 0.0
    %v729 = vsel %vm673, %v700, 0.0
    %v730 = vsel %vm674, %v705, 0.0
    %v731 = vsel %vm675, %v710, 0.0
    %v732 = vsel %vm676, %v715, 0.0
    %v733 = vsel %vm677, %v720, 0.0
    %v734 = vsel %vm678, %v725, 0.0
    %v735 = vadd.f32 %v631, %v727
    %v736 = vadd.f32 %v632, %v728
    %v737 = vadd.f32 %v633, %v729
    %v738 = vadd.f32 %v634, %v730
    %v739 = vadd.f32 %v635, %v731
    %v740 = vadd.f32 %v636, %v732
    %v741 = vadd.f32 %v637, %v733
    %v742 = vadd.f32 %v638, %v734
    %v745 = vrot.slane %v37, 7
    %v746 = vrot.slane 0.0, 7
    %747 = vrot.lane.b32.xlu0 %v745, 127
    %v748 = vpop.permute.xlu0 %747
    %749 = vrot.lane.b32.xlu0 %v746, 127
    %v750 = vpop.permute.xlu0 %749
    %vm751 = vcmask 1039360
    %v752 = vsel %vm751, %v748, %v750
    %v754 = vrot.slane %v37, 6
    %v755 = vrot.slane 0.0, 6
    %756 = vrot.lane.b32.xlu0 %v754, 126
    %v757 = vpop.permute.xlu0 %756
    %758 = vrot.lane.b32.xlu0 %v755, 126
    %v759 = vpop.permute.xlu0 %758
    %vm760 = vcmask 1031168
    %v761 = vsel %vm760, %v757, %v759
    %v763 = vrot.slane %v37, 5
    %v764 = vrot.slane 0.0, 5
    %765 = vrot.lane.b32.xlu0 %v763, 125
    %v766 = vpop.permute.xlu0 %765
    %767 = vrot.lane.b32.xlu0 %v764, 125
    %v768 = vpop.permute.xlu0 %767
    %vm769 = vcmask 1022976
    %v770 = vsel %vm769, %v766, %v768
    %v772 = vrot.slane %v37, 4
    %v773 = vrot.slane 0.0, 4
    %774 = vrot.lane.b32.xlu0 %v772, 124
    %v775 = vpop.permute.xlu0 %774
    %776 = vrot.lane.b32.xlu0 %v773, 124
    %v777 = vpop.permute.xlu0 %776
    %vm778 = vcmask 1014784
    %v779 = vsel %vm778, %v775, %v777
    %v781 = vrot.slane %v37, 3
    %v782 = vrot.slane 0.0, 3
    %783 = vrot.lane.b32.xlu0 %v781, 123
    %v784 = vpop.permute.xlu0 %783
    %785 = vrot.lane.b32.xlu0 %v782, 123
    %v786 = vpop.permute.xlu0 %785
    %vm787 = vcmask 1006592
    %v788 = vsel %vm787, %v784, %v786
    %v790 = vrot.slane %v37, 2
    %v791 = vrot.slane 0.0, 2
    %792 = vrot.lane.b32.xlu0 %v790, 122
    %v793 = vpop.permute.xlu0 %792
    %794 = vrot.lane.b32.xlu0 %v791, 122
    %v795 = vpop.permute.xlu0 %794
    %vm796 = vcmask 998400
    %v797 = vsel %vm796, %v793, %v795
    %v799 = vrot.slane %v37, 1
    %v800 = vrot.slane 0.0, 1
    %801 = vrot.lane.b32.xlu0 %v799, 121
    %v802 = vpop.permute.xlu0 %801
    %803 = vrot.lane.b32.xlu0 %v800, 121
    %v804 = vpop.permute.xlu0 %803
    %vm805 = vcmask 990208
    %v806 = vsel %vm805, %v802, %v804
    %808 = vrot.lane.b32.xlu0 %v37, 120
    %v809 = vpop.permute.xlu0 %808
    %810 = vrot.lane.b32.xlu0 0.0, 120
    %v811 = vpop.permute.xlu0 %810
    %vm812 = vcmask 982016
    %v813 = vsel %vm812, %v809, %v811
    %815 = vrot.lane.b32.xlu0 %v745, 119
    %v816 = vpop.permute.xlu0 %815
    %817 = vrot.lane.b32.xlu0 %v746, 119
    %v818 = vpop.permute.xlu0 %817
    %vm819 = vcmask 973824
    %v820 = vsel %vm819, %v816, %v818
    %822 = vrot.lane.b32.xlu0 %v754, 118
    %v823 = vpop.permute.xlu0 %822
    %824 = vrot.lane.b32.xlu0 %v755, 118
    %v825 = vpop.permute.xlu0 %824
    %vm826 = vcmask 965632
    %v827 = vsel %vm826, %v823, %v825
    %829 = vrot.lane.b32.xlu0 %v763, 117
    %v830 = vpop.permute.xlu0 %829
    %831 = vrot.lane.b32.xlu0 %v764, 117
    %v832 = vpop.permute.xlu0 %831
    %vm833 = vcmask 957440
    %v834 = vsel %vm833, %v830, %v832
    %836 = vrot.lane.b32.xlu0 %v772, 116
    %v837 = vpop.permute.xlu0 %836
    %838 = vrot.lane.b32.xlu0 %v773, 116
    %v839 = vpop.permute.xlu0 %838
    %vm840 = vcmask 949248
    %v841 = vsel %vm840, %v837, %v839
    %843 = vrot.lane.b32.xlu0 %v781, 115
    %v844 = vpop.permute.xlu0 %843
    %845 = vrot.lane.b32.xlu0 %v782, 115
    %v846 = vpop.permute.xlu0 %845
    %vm847 = vcmask 941056
    %v848 = vsel %vm847, %v844, %v846
    %850 = vrot.lane.b32.xlu0 %v790, 114
    %v851 = vpop.permute.xlu0 %850
    %852 = vrot.lane.b32.xlu0 %v791, 114
    %v853 = vpop.permute.xlu0 %852
    %vm854 = vcmask 932864
    %v855 = vsel %vm854, %v851, %v853
    %857 = vrot.lane.b32.xlu0 %v799, 113
    %v858 = vpop.permute.xlu0 %857
    %859 = vrot.lane.b32.xlu0 %v800, 113
    %v860 = vpop.permute.xlu0 %859
    %vm861 = vcmask 924672
    %v862 = vsel %vm861, %v858, %v860
    %vm864 = vcmask 1040384
    %v865 = vsel %vm864, %v37, %v752
    %vm866 = vcmask 1041408
    %v867 = vsel %vm866, %v865, %v761
    %vm868 = vcmask 1042432
    %v869 = vsel %vm868, %v867, %v770
    %vm870 = vcmask 1043456
    %v871 = vsel %vm870, %v869, %v779
    %vm872 = vcmask 1044480
    %v873 = vsel %vm872, %v871, %v788
    %vm874 = vcmask 1045504
    %v875 = vsel %vm874, %v873, %v797
    %vm876 = vcmask 1046528
    %v877 = vsel %vm876, %v875, %v806
    %v878 = vsel %vm864, %v813, %v820
    %v879 = vsel %vm866, %v878, %v827
    %v880 = vsel %vm868, %v879, %v834
    %v881 = vsel %vm870, %v880, %v841
    %v882 = vsel %vm872, %v881, %v848
    %v883 = vsel %vm874, %v882, %v855
    %v884 = vsel %vm876, %v883, %v862
    %v900 = vsel %vm864, 0.0, %v750
    %v901 = vsel %vm866, %v900, %v759
    %v902 = vsel %vm868, %v901, %v768
    %v903 = vsel %vm870, %v902, %v777
    %v904 = vsel %vm872, %v903, %v786
    %v905 = vsel %vm874, %v904, %v795
    %v906 = vsel %vm876, %v905, %v804
    %v907 = vsel %vm864, %v811, %v818
    %v908 = vsel %vm866, %v907, %v825
    %v909 = vsel %vm868, %v908, %v832
    %v910 = vsel %vm870, %v909, %v839
    %v911 = vsel %vm872, %v910, %v846
    %v912 = vsel %vm874, %v911, %v853
    %v913 = vsel %vm876, %v912, %v860
    %918 = vrot.lane.b32.xlu0 %v877, 112
    %v919 = vpop.permute.xlu0 %918
    %920 = vrot.lane.b32.xlu0 %v906, 112
    %v921 = vpop.permute.xlu0 %920
    %922 = vrot.lane.b32.xlu0 %v884, 112
    %v923 = vpop.permute.xlu0 %922
    %924 = vrot.lane.b32.xlu0 %v913, 112
    %v925 = vpop.permute.xlu0 %924
    %vm926 = vcmask 916480
    %v927 = vsel %vm926, %v919, %v921
    %v928 = vsel %vm926, %v923, %v925
    %931 = vmatprep.subr.mxu0 0.0
    %932 = vmatpush1.xpose.msra.mxu0 0.0
    %933 = vmatprep.subr.mxu0 0.0
    %934 = vmatpush1.xpose.msra.mxu0 0.0
    %935 = vmatprep.subr.mxu0 0.0
    %936 = vmatpush1.xpose.msra.mxu0 0.0
    %937 = vmatprep.subr.mxu0 0.0
    %938 = vmatpush1.xpose.msra.mxu0 0.0
    %939 = vmatprep.subr.mxu0 0.0
    %940 = vmatpush1.xpose.msra.mxu0 0.0
    %941 = vmatprep.subr.mxu0 0.0
    %942 = vmatpush1.xpose.msra.mxu0 0.0
    %943 = vmatprep.subr.mxu0 0.0
    %944 = vmatpush1.xpose.msra.mxu0 0.0
    %945 = vmatprep.subr.mxu0 0.0
    %946 = vmatpush1.xpose.msra.mxu0 0.0
    %947 = vmatprep.subr.mxu0 0.0
    %948 = vmatpush1.xpose.msra.mxu0 %v742
    %949 = vmatprep.subr.mxu0 0.0
    %950 = vmatpush1.xpose.msra.mxu0 %v741
    %951 = vmatprep.subr.mxu0 0.0
    %952 = vmatpush1.xpose.msra.mxu0 %v740
    %953 = vmatprep.subr.mxu0 0.0
    %954 = vmatpush1.xpose.msra.mxu0 %v739
    %955 = vmatprep.subr.mxu0 0.0
    %956 = vmatpush1.xpose.msra.mxu0 %v738
    %957 = vmatprep.subr.mxu0 0.0
    %958 = vmatpush1.xpose.msra.mxu0 %v737
    %959 = vmatprep.subr.mxu0 0.0
    %960 = vmatpush1.xpose.msra.mxu0 %v736
    %961 = vmatprep.subr.mxu0 0.0
    %962 = vmatpush1.xpose.msra.mxu0 %v735
    %963 = vmatprep.subr.mxu0 0.0
    %964 = vmatpush2.xpose.msra.mxu0 0.0
    %965 = vmatprep.subr.mxu0 0.0
    %966 = vmatpush2.xpose.msra.mxu0 0.0
    %967 = vmatprep.subr.mxu0 0.0
    %968 = vmatpush2.xpose.msra.mxu0 0.0
    %969 = vmatprep.subr.mxu0 0.0
    %970 = vmatpush2.xpose.msra.mxu0 0.0
    %971 = vmatprep.subr.mxu0 0.0
    %972 = vmatpush2.xpose.msra.mxu0 0.0
    %973 = vmatprep.subr.mxu0 0.0
    %974 = vmatpush2.xpose.msra.mxu0 0.0
    %975 = vmatprep.subr.mxu0 0.0
    %976 = vmatpush2.xpose.msra.mxu0 0.0
    %977 = vmatprep.subr.mxu0 0.0
    %978 = vmatpush2.xpose.msra.mxu0 0.0
    %979 = vmatprep.subr.mxu0 0.0
    %980 = vmatpush2.xpose.msra.mxu0 0.0
    %981 = vmatprep.subr.mxu0 0.0
    %982 = vmatpush2.xpose.msra.mxu0 0.0
    %983 = vmatprep.subr.mxu0 0.0
    %984 = vmatpush2.xpose.msra.mxu0 0.0
    %985 = vmatprep.subr.mxu0 0.0
    %986 = vmatpush2.xpose.msra.mxu0 0.0
    %987 = vmatprep.subr.mxu0 0.0
    %988 = vmatpush2.xpose.msra.mxu0 0.0
    %989 = vmatprep.subr.mxu0 0.0
    %990 = vmatpush2.xpose.msra.mxu0 0.0
    %991 = vmatprep.subr.mxu0 0.0
    %992 = vmatpush2.xpose.msra.mxu0 0.0
    %993 = vmatprep.subr.mxu0 0.0
    %994 = vmatpush2.xpose.msra.mxu0 0.0
    %995 = vmatprep.mubr.f32.mxu0 0.0
    %996 = vmatmul.mubr.f32.gmra.mxu0 %v877
    %v997 = vpop.f32.mrf.mxu0
    %v998 = vadd.f32 0.0, %v997
    %v999 = vpop.f32.mrf.mxu0
    %1000 = vmatprep.mubr.f32.mxu0 0.0
    %1001 = vmatmul.mubr.f32.gmra.mxu0 %v884
    %v1002 = vpop.f32.mrf.mxu0
    %v1003 = vadd.f32 0.0, %v1002
    %v1004 = vpop.f32.mrf.mxu0
    %1005 = vmatprep.mubr.f32.mxu0 0.0
    %1006 = vmatmul.mubr.f32.gmra.mxu0 %v927
    %v1007 = vpop.f32.mrf.mxu0
    %v1008 = vadd.f32 0.0, %v1007
    %v1009 = vpop.f32.mrf.mxu0
    %1010 = vmatprep.mubr.f32.mxu0 0.0
    %1011 = vmatmul.mubr.f32.gmra.mxu0 %v928
    %v1012 = vpop.f32.mrf.mxu0
    %v1013 = vadd.f32 0.0, %v1012
    %v1014 = vpop.f32.mrf.mxu0
    %1015 = vdwg.mxu0
    %v1016 = vstv %s69
    %v1017 = vsub.f32 %v81, %v1016
    %v1018 = vsub.f32 %v82, %v1016
    %v1019 = vsub.f32 %v83, %v1016
    %v1020 = vsub.f32 %v84, %v1016
    %v1021 = vsub.f32 %v85, %v1016
    %v1022 = vsub.f32 %v86, %v1016
    %v1023 = vsub.f32 %v87, %v1016
    %v1024 = vsub.f32 %v88, %v1016
    %v1025 = vmul.f32 %v1017, %v1017
    %v1026 = vmul.f32 %v1018, %v1018
    %v1027 = vmul.f32 %v1019, %v1019
    %v1028 = vmul.f32 %v1020, %v1020
    %v1029 = vmul.f32 %v1021, %v1021
    %v1030 = vmul.f32 %v1022, %v1022
    %v1031 = vmul.f32 %v1023, %v1023
    %v1032 = vmul.f32 %v1024, %v1024
    %v1033 = vstv %s70
    %v1034 = vsub.f32 %v81, %v1033
    %v1035 = vsub.f32 %v82, %v1033
    %v1036 = vsub.f32 %v83, %v1033
    %v1037 = vsub.f32 %v84, %v1033
    %v1038 = vsub.f32 %v85, %v1033
    %v1039 = vsub.f32 %v86, %v1033
    %v1040 = vsub.f32 %v87, %v1033
    %v1041 = vsub.f32 %v88, %v1033
    %v1042 = vmul.f32 %v1034, %v1034
    %v1043 = vmul.f32 %v1035, %v1035
    %v1044 = vmul.f32 %v1036, %v1036
    %v1045 = vmul.f32 %v1037, %v1037
    %v1046 = vmul.f32 %v1038, %v1038
    %v1047 = vmul.f32 %v1039, %v1039
    %v1048 = vmul.f32 %v1040, %v1040
    %v1049 = vmul.f32 %v1041, %v1041
    %1058 = vrot.lane.b32.xlu0 %v1042, 127
    %v1059 = vpop.permute.xlu0 %1058
    %1060 = vrot.lane.b32.xlu0 %v1043, 127
    %v1061 = vpop.permute.xlu0 %1060
    %1062 = vrot.lane.b32.xlu0 %v1044, 127
    %v1063 = vpop.permute.xlu0 %1062
    %1064 = vrot.lane.b32.xlu0 %v1045, 127
    %v1065 = vpop.permute.xlu0 %1064
    %1066 = vrot.lane.b32.xlu0 %v1046, 127
    %v1067 = vpop.permute.xlu0 %1066
    %1068 = vrot.lane.b32.xlu0 %v1047, 127
    %v1069 = vpop.permute.xlu0 %1068
    %1070 = vrot.lane.b32.xlu0 %v1048, 127
    %v1071 = vpop.permute.xlu0 %1070
    %1072 = vrot.lane.b32.xlu0 %v1049, 127
    %v1073 = vpop.permute.xlu0 %1072
    %v1082 = vadd.f32 %v1025, %v1059
    %v1083 = vadd.f32 %v1026, %v1061
    %v1084 = vadd.f32 %v1027, %v1063
    %v1085 = vadd.f32 %v1028, %v1065
    %v1086 = vadd.f32 %v1029, %v1067
    %v1087 = vadd.f32 %v1030, %v1069
    %v1088 = vadd.f32 %v1031, %v1071
    %v1089 = vadd.f32 %v1032, %v1073
    %v1090 = vstv %s71
    %v1091 = vsub.f32 %v81, %v1090
    %v1092 = vsub.f32 %v82, %v1090
    %v1093 = vsub.f32 %v83, %v1090
    %v1094 = vsub.f32 %v84, %v1090
    %v1095 = vsub.f32 %v85, %v1090
    %v1096 = vsub.f32 %v86, %v1090
    %v1097 = vsub.f32 %v87, %v1090
    %v1098 = vsub.f32 %v88, %v1090
    %v1099 = vmul.f32 %v1091, %v1091
    %v1100 = vmul.f32 %v1092, %v1092
    %v1101 = vmul.f32 %v1093, %v1093
    %v1102 = vmul.f32 %v1094, %v1094
    %v1103 = vmul.f32 %v1095, %v1095
    %v1104 = vmul.f32 %v1096, %v1096
    %v1105 = vmul.f32 %v1097, %v1097
    %v1106 = vmul.f32 %v1098, %v1098
    %1115 = vrot.lane.b32.xlu0 %v1099, 126
    %v1116 = vpop.permute.xlu0 %1115
    %1117 = vrot.lane.b32.xlu0 %v1100, 126
    %v1118 = vpop.permute.xlu0 %1117
    %1119 = vrot.lane.b32.xlu0 %v1101, 126
    %v1120 = vpop.permute.xlu0 %1119
    %1121 = vrot.lane.b32.xlu0 %v1102, 126
    %v1122 = vpop.permute.xlu0 %1121
    %1123 = vrot.lane.b32.xlu0 %v1103, 126
    %v1124 = vpop.permute.xlu0 %1123
    %1125 = vrot.lane.b32.xlu0 %v1104, 126
    %v1126 = vpop.permute.xlu0 %1125
    %1127 = vrot.lane.b32.xlu0 %v1105, 126
    %v1128 = vpop.permute.xlu0 %1127
    %1129 = vrot.lane.b32.xlu0 %v1106, 126
    %v1130 = vpop.permute.xlu0 %1129
    %v1139 = vadd.f32 %v1082, %v1116
    %v1140 = vadd.f32 %v1083, %v1118
    %v1141 = vadd.f32 %v1084, %v1120
    %v1142 = vadd.f32 %v1085, %v1122
    %v1143 = vadd.f32 %v1086, %v1124
    %v1144 = vadd.f32 %v1087, %v1126
    %v1145 = vadd.f32 %v1088, %v1128
    %v1146 = vadd.f32 %v1089, %v1130
    %v1147 = vrsqrt.pop %v1139
    %v1148 = vmul.f32 %v1139, %v1147
    %vm1149 = vcmp.eq.f32.partialorder %v1139, inf
    %v1150 = vsel %vm1149, %v1139, %v1148
    %vm1151 = vcmp.eq.f32.partialorder %v1139, 0.0
    %v1152 = vand.u32 %v1139, 2147483648
    %v1153 = vsel %vm1151, %v1152, %v1150
    %v1154 = vrsqrt.pop %v1140
    %v1155 = vmul.f32 %v1140, %v1154
    %vm1156 = vcmp.eq.f32.partialorder %v1140, inf
    %v1157 = vsel %vm1156, %v1140, %v1155
    %vm1158 = vcmp.eq.f32.partialorder %v1140, 0.0
    %v1159 = vand.u32 %v1140, 2147483648
    %v1160 = vsel %vm1158, %v1159, %v1157
    %v1161 = vrsqrt.pop %v1141
    %v1162 = vmul.f32 %v1141, %v1161
    %vm1163 = vcmp.eq.f32.partialorder %v1141, inf
    %v1164 = vsel %vm1163, %v1141, %v1162
    %vm1165 = vcmp.eq.f32.partialorder %v1141, 0.0
    %v1166 = vand.u32 %v1141, 2147483648
    %v1167 = vsel %vm1165, %v1166, %v1164
    %v1168 = vrsqrt.pop %v1142
    %v1169 = vmul.f32 %v1142, %v1168
    %vm1170 = vcmp.eq.f32.partialorder %v1142, inf
    %v1171 = vsel %vm1170, %v1142, %v1169
    %vm1172 = vcmp.eq.f32.partialorder %v1142, 0.0
    %v1173 = vand.u32 %v1142, 2147483648
    %v1174 = vsel %vm1172, %v1173, %v1171
    %v1175 = vrsqrt.pop %v1143
    %v1176 = vmul.f32 %v1143, %v1175
    %vm1177 = vcmp.eq.f32.partialorder %v1143, inf
    %v1178 = vsel %vm1177, %v1143, %v1176
    %vm1179 = vcmp.eq.f32.partialorder %v1143, 0.0
    %v1180 = vand.u32 %v1143, 2147483648
    %v1181 = vsel %vm1179, %v1180, %v1178
    %v1182 = vrsqrt.pop %v1144
    %v1183 = vmul.f32 %v1144, %v1182
    %vm1184 = vcmp.eq.f32.partialorder %v1144, inf
    %v1185 = vsel %vm1184, %v1144, %v1183
    %vm1186 = vcmp.eq.f32.partialorder %v1144, 0.0
    %v1187 = vand.u32 %v1144, 2147483648
    %v1188 = vsel %vm1186, %v1187, %v1185
    %v1189 = vrsqrt.pop %v1145
    %v1190 = vmul.f32 %v1145, %v1189
    %vm1191 = vcmp.eq.f32.partialorder %v1145, inf
    %v1192 = vsel %vm1191, %v1145, %v1190
    %vm1193 = vcmp.eq.f32.partialorder %v1145, 0.0
    %v1194 = vand.u32 %v1145, 2147483648
    %v1195 = vsel %vm1193, %v1194, %v1192
    %v1196 = vrsqrt.pop %v1146
    %v1197 = vmul.f32 %v1146, %v1196
    %vm1198 = vcmp.eq.f32.partialorder %v1146, inf
    %v1199 = vsel %vm1198, %v1146, %v1197
    %vm1200 = vcmp.eq.f32.partialorder %v1146, 0.0
    %v1201 = vand.u32 %v1146, 2147483648
    %v1202 = vsel %vm1200, %v1201, %v1199
    %v1203 = vadd.f32 %v226, %v1153
    %v1204 = vadd.f32 %v233, %v1160
    %v1205 = vadd.f32 %v240, %v1167
    %v1206 = vadd.f32 %v247, %v1174
    %v1207 = vadd.f32 %v254, %v1181
    %v1208 = vadd.f32 %v261, %v1188
    %v1209 = vadd.f32 %v268, %v1195
    %v1210 = vadd.f32 %v275, %v1202
    %v1211 = vmul.f32 %v1203, 34.985424
    %v1212 = vmul.f32 %v1204, 34.985424
    %v1213 = vmul.f32 %v1205, 34.985424
    %v1214 = vmul.f32 %v1206, 34.985424
    %v1215 = vmul.f32 %v1207, 34.985424
    %v1216 = vmul.f32 %v1208, 34.985424
    %v1217 = vmul.f32 %v1209, 34.985424
    %v1218 = vmul.f32 %v1210, 34.985424
    %v1219 = vmul.f32 %v226, %v1153
    %v1220 = vmul.f32 %v233, %v1160
    %v1221 = vmul.f32 %v240, %v1167
    %v1222 = vmul.f32 %v247, %v1174
    %v1223 = vmul.f32 %v254, %v1181
    %v1224 = vmul.f32 %v261, %v1188
    %v1225 = vmul.f32 %v268, %v1195
    %v1226 = vmul.f32 %v275, %v1202
    %v1227 = vfloor.f32 %v1211
    %v1228 = vfloor.f32 %v1212
    %v1229 = vfloor.f32 %v1213
    %v1230 = vfloor.f32 %v1214
    %v1231 = vfloor.f32 %v1215
    %v1232 = vfloor.f32 %v1216
    %v1233 = vfloor.f32 %v1217
    %v1234 = vfloor.f32 %v1218
    %v1235 = vmax.f32 %v1227, 0.0
    %v1236 = vmax.f32 %v1228, 0.0
    %v1237 = vmax.f32 %v1229, 0.0
    %v1238 = vmax.f32 %v1230, 0.0
    %v1239 = vmax.f32 %v1231, 0.0
    %v1240 = vmax.f32 %v1232, 0.0
    %v1241 = vmax.f32 %v1233, 0.0
    %v1242 = vmax.f32 %v1234, 0.0
    %v1243 = vmin.f32 %v1235, 95.0
    %v1244 = vmin.f32 %v1236, 95.0
    %v1245 = vmin.f32 %v1237, 95.0
    %v1246 = vmin.f32 %v1238, 95.0
    %v1247 = vmin.f32 %v1239, 95.0
    %v1248 = vmin.f32 %v1240, 95.0
    %v1249 = vmin.f32 %v1241, 95.0
    %v1250 = vmin.f32 %v1242, 95.0
    %v1251 = vsub.f32 %v1211, %v1243
    %v1252 = vsub.f32 %v1212, %v1244
    %v1253 = vsub.f32 %v1213, %v1245
    %v1254 = vsub.f32 %v1214, %v1246
    %v1255 = vsub.f32 %v1215, %v1247
    %v1256 = vsub.f32 %v1216, %v1248
    %v1257 = vsub.f32 %v1217, %v1249
    %v1258 = vsub.f32 %v1218, %v1250
    %v1259 = vmax.f32 %v1251, 0.0
    %v1260 = vmax.f32 %v1252, 0.0
    %v1261 = vmax.f32 %v1253, 0.0
    %v1262 = vmax.f32 %v1254, 0.0
    %v1263 = vmax.f32 %v1255, 0.0
    %v1264 = vmax.f32 %v1256, 0.0
    %v1265 = vmax.f32 %v1257, 0.0
    %v1266 = vmax.f32 %v1258, 0.0
    %v1267 = vmin.f32 %v1259, 1.0
    %v1268 = vmin.f32 %v1260, 1.0
    %v1269 = vmin.f32 %v1261, 1.0
    %v1270 = vmin.f32 %v1262, 1.0
    %v1271 = vmin.f32 %v1263, 1.0
    %v1272 = vmin.f32 %v1264, 1.0
    %v1273 = vmin.f32 %v1265, 1.0
    %v1274 = vmin.f32 %v1266, 1.0
    %v1275 = vcvt.f32.s32.to.zero.pseudo %v1243
    %v1276 = vcvt.f32.s32.to.zero.pseudo %v1244
    %v1277 = vcvt.f32.s32.to.zero.pseudo %v1245
    %v1278 = vcvt.f32.s32.to.zero.pseudo %v1246
    %v1279 = vcvt.f32.s32.to.zero.pseudo %v1247
    %v1280 = vcvt.f32.s32.to.zero.pseudo %v1248
    %v1281 = vcvt.f32.s32.to.zero.pseudo %v1249
    %v1282 = vcvt.f32.s32.to.zero.pseudo %v1250
    %1283 = vset.pattern.permute.xlu0 0
    %1284 = vperm.xlu0 %1283, %v1275
    %v1285 = vpop.permute.xlu0 %1284
    %1286 = vset.pattern.permute.xlu0 0
    %1287 = vperm.xlu0 %1286, %v1276
    %v1288 = vpop.permute.xlu0 %1287
    %1289 = vset.pattern.permute.xlu0 0
    %1290 = vperm.xlu0 %1289, %v1277
    %v1291 = vpop.permute.xlu0 %1290
    %1292 = vset.pattern.permute.xlu0 0
    %1293 = vperm.xlu0 %1292, %v1278
    %v1294 = vpop.permute.xlu0 %1293
    %1295 = vset.pattern.permute.xlu0 0
    %1296 = vperm.xlu0 %1295, %v1279
    %v1297 = vpop.permute.xlu0 %1296
    %1298 = vset.pattern.permute.xlu0 0
    %1299 = vperm.xlu0 %1298, %v1280
    %v1300 = vpop.permute.xlu0 %1299
    %1301 = vset.pattern.permute.xlu0 0
    %1302 = vperm.xlu0 %1301, %v1281
    %v1303 = vpop.permute.xlu0 %1302
    %1304 = vset.pattern.permute.xlu0 0
    %1305 = vperm.xlu0 %1304, %v1282
    %v1306 = vpop.permute.xlu0 %1305
    %vm1307 = vcmp.eq.s32.totalorder %v80, %v1285
    %vm1308 = vcmp.eq.s32.totalorder %v80, %v1288
    %vm1309 = vcmp.eq.s32.totalorder %v80, %v1291
    %vm1310 = vcmp.eq.s32.totalorder %v80, %v1294
    %vm1311 = vcmp.eq.s32.totalorder %v80, %v1297
    %vm1312 = vcmp.eq.s32.totalorder %v80, %v1300
    %vm1313 = vcmp.eq.s32.totalorder %v80, %v1303
    %vm1314 = vcmp.eq.s32.totalorder %v80, %v1306
    %v1315 = vsub.f32 1.0, %v1267
    %v1316 = vsub.f32 1.0, %v1268
    %v1317 = vsub.f32 1.0, %v1269
    %v1318 = vsub.f32 1.0, %v1270
    %v1319 = vsub.f32 1.0, %v1271
    %v1320 = vsub.f32 1.0, %v1272
    %v1321 = vsub.f32 1.0, %v1273
    %v1322 = vsub.f32 1.0, %v1274
    %v1323 = vmul.f32 %v1315, %v1219
    %v1324 = vmul.f32 %v1316, %v1220
    %v1325 = vmul.f32 %v1317, %v1221
    %v1326 = vmul.f32 %v1318, %v1222
    %v1327 = vmul.f32 %v1319, %v1223
    %v1328 = vmul.f32 %v1320, %v1224
    %v1329 = vmul.f32 %v1321, %v1225
    %v1330 = vmul.f32 %v1322, %v1226
    %1332 = vset.pattern.permute.xlu0 0
    %1333 = vperm.xlu0 %1332, %v1323
    %v1334 = vpop.permute.xlu0 %1333
    %1337 = vset.pattern.permute.xlu0 0
    %1338 = vperm.xlu0 %1337, %v1324
    %v1339 = vpop.permute.xlu0 %1338
    %1342 = vset.pattern.permute.xlu0 0
    %1343 = vperm.xlu0 %1342, %v1325
    %v1344 = vpop.permute.xlu0 %1343
    %1347 = vset.pattern.permute.xlu0 0
    %1348 = vperm.xlu0 %1347, %v1326
    %v1349 = vpop.permute.xlu0 %1348
    %1352 = vset.pattern.permute.xlu0 0
    %1353 = vperm.xlu0 %1352, %v1327
    %v1354 = vpop.permute.xlu0 %1353
    %1357 = vset.pattern.permute.xlu0 0
    %1358 = vperm.xlu0 %1357, %v1328
    %v1359 = vpop.permute.xlu0 %1358
    %1362 = vset.pattern.permute.xlu0 0
    %1363 = vperm.xlu0 %1362, %v1329
    %v1364 = vpop.permute.xlu0 %1363
    %1367 = vset.pattern.permute.xlu0 0
    %1368 = vperm.xlu0 %1367, %v1330
    %v1369 = vpop.permute.xlu0 %1368
    %v1371 = vsel %vm1307, %v1334, 0.0
    %v1372 = vsel %vm1308, %v1339, 0.0
    %v1373 = vsel %vm1309, %v1344, 0.0
    %v1374 = vsel %vm1310, %v1349, 0.0
    %v1375 = vsel %vm1311, %v1354, 0.0
    %v1376 = vsel %vm1312, %v1359, 0.0
    %v1377 = vsel %vm1313, %v1364, 0.0
    %v1378 = vsel %vm1314, %v1369, 0.0
    %v1379 = vadd.s32 %v1275, 1
    %v1380 = vadd.s32 %v1276, 1
    %v1381 = vadd.s32 %v1277, 1
    %v1382 = vadd.s32 %v1278, 1
    %v1383 = vadd.s32 %v1279, 1
    %v1384 = vadd.s32 %v1280, 1
    %v1385 = vadd.s32 %v1281, 1
    %v1386 = vadd.s32 %v1282, 1
    %1387 = vset.pattern.permute.xlu0 0
    %1388 = vperm.xlu0 %1387, %v1379
    %v1389 = vpop.permute.xlu0 %1388
    %1390 = vset.pattern.permute.xlu0 0
    %1391 = vperm.xlu0 %1390, %v1380
    %v1392 = vpop.permute.xlu0 %1391
    %1393 = vset.pattern.permute.xlu0 0
    %1394 = vperm.xlu0 %1393, %v1381
    %v1395 = vpop.permute.xlu0 %1394
    %1396 = vset.pattern.permute.xlu0 0
    %1397 = vperm.xlu0 %1396, %v1382
    %v1398 = vpop.permute.xlu0 %1397
    %1399 = vset.pattern.permute.xlu0 0
    %1400 = vperm.xlu0 %1399, %v1383
    %v1401 = vpop.permute.xlu0 %1400
    %1402 = vset.pattern.permute.xlu0 0
    %1403 = vperm.xlu0 %1402, %v1384
    %v1404 = vpop.permute.xlu0 %1403
    %1405 = vset.pattern.permute.xlu0 0
    %1406 = vperm.xlu0 %1405, %v1385
    %v1407 = vpop.permute.xlu0 %1406
    %1408 = vset.pattern.permute.xlu0 0
    %1409 = vperm.xlu0 %1408, %v1386
    %v1410 = vpop.permute.xlu0 %1409
    %vm1411 = vcmp.eq.s32.totalorder %v80, %v1389
    %vm1412 = vcmp.eq.s32.totalorder %v80, %v1392
    %vm1413 = vcmp.eq.s32.totalorder %v80, %v1395
    %vm1414 = vcmp.eq.s32.totalorder %v80, %v1398
    %vm1415 = vcmp.eq.s32.totalorder %v80, %v1401
    %vm1416 = vcmp.eq.s32.totalorder %v80, %v1404
    %vm1417 = vcmp.eq.s32.totalorder %v80, %v1407
    %vm1418 = vcmp.eq.s32.totalorder %v80, %v1410
    %v1419 = vmul.f32 %v1267, %v1219
    %v1420 = vmul.f32 %v1268, %v1220
    %v1421 = vmul.f32 %v1269, %v1221
    %v1422 = vmul.f32 %v1270, %v1222
    %v1423 = vmul.f32 %v1271, %v1223
    %v1424 = vmul.f32 %v1272, %v1224
    %v1425 = vmul.f32 %v1273, %v1225
    %v1426 = vmul.f32 %v1274, %v1226
    %1428 = vset.pattern.permute.xlu0 0
    %1429 = vperm.xlu0 %1428, %v1419
    %v1430 = vpop.permute.xlu0 %1429
    %1433 = vset.pattern.permute.xlu0 0
    %1434 = vperm.xlu0 %1433, %v1420
    %v1435 = vpop.permute.xlu0 %1434
    %1438 = vset.pattern.permute.xlu0 0
    %1439 = vperm.xlu0 %1438, %v1421
    %v1440 = vpop.permute.xlu0 %1439
    %1443 = vset.pattern.permute.xlu0 0
    %1444 = vperm.xlu0 %1443, %v1422
    %v1445 = vpop.permute.xlu0 %1444
    %1448 = vset.pattern.permute.xlu0 0
    %1449 = vperm.xlu0 %1448, %v1423
    %v1450 = vpop.permute.xlu0 %1449
    %1453 = vset.pattern.permute.xlu0 0
    %1454 = vperm.xlu0 %1453, %v1424
    %v1455 = vpop.permute.xlu0 %1454
    %1458 = vset.pattern.permute.xlu0 0
    %1459 = vperm.xlu0 %1458, %v1425
    %v1460 = vpop.permute.xlu0 %1459
    %1463 = vset.pattern.permute.xlu0 0
    %1464 = vperm.xlu0 %1463, %v1426
    %v1465 = vpop.permute.xlu0 %1464
    %v1467 = vsel %vm1411, %v1430, 0.0
    %v1468 = vsel %vm1412, %v1435, 0.0
    %v1469 = vsel %vm1413, %v1440, 0.0
    %v1470 = vsel %vm1414, %v1445, 0.0
    %v1471 = vsel %vm1415, %v1450, 0.0
    %v1472 = vsel %vm1416, %v1455, 0.0
    %v1473 = vsel %vm1417, %v1460, 0.0
    %v1474 = vsel %vm1418, %v1465, 0.0
    %v1475 = vadd.f32 %v1371, %v1467
    %v1476 = vadd.f32 %v1372, %v1468
    %v1477 = vadd.f32 %v1373, %v1469
    %v1478 = vadd.f32 %v1374, %v1470
    %v1479 = vadd.f32 %v1375, %v1471
    %v1480 = vadd.f32 %v1376, %v1472
    %v1481 = vadd.f32 %v1377, %v1473
    %v1482 = vadd.f32 %v1378, %v1474
    %1484 = vrot.lane.b32.xlu0 %v37, 127
    %v1485 = vpop.permute.xlu0 %1484
    %1486 = vrot.lane.b32.xlu0 0.0, 127
    %v1487 = vpop.permute.xlu0 %1486
    %v1488 = vsel %vm751, %v1485, %v1487
    %1490 = vrot.lane.b32.xlu0 %v745, 126
    %v1491 = vpop.permute.xlu0 %1490
    %1492 = vrot.lane.b32.xlu0 %v746, 126
    %v1493 = vpop.permute.xlu0 %1492
    %v1494 = vsel %vm760, %v1491, %v1493
    %1496 = vrot.lane.b32.xlu0 %v754, 125
    %v1497 = vpop.permute.xlu0 %1496
    %1498 = vrot.lane.b32.xlu0 %v755, 125
    %v1499 = vpop.permute.xlu0 %1498
    %v1500 = vsel %vm769, %v1497, %v1499
    %1502 = vrot.lane.b32.xlu0 %v763, 124
    %v1503 = vpop.permute.xlu0 %1502
    %1504 = vrot.lane.b32.xlu0 %v764, 124
    %v1505 = vpop.permute.xlu0 %1504
    %v1506 = vsel %vm778, %v1503, %v1505
    %1508 = vrot.lane.b32.xlu0 %v772, 123
    %v1509 = vpop.permute.xlu0 %1508
    %1510 = vrot.lane.b32.xlu0 %v773, 123
    %v1511 = vpop.permute.xlu0 %1510
    %v1512 = vsel %vm787, %v1509, %v1511
    %1514 = vrot.lane.b32.xlu0 %v781, 122
    %v1515 = vpop.permute.xlu0 %1514
    %1516 = vrot.lane.b32.xlu0 %v782, 122
    %v1517 = vpop.permute.xlu0 %1516
    %v1518 = vsel %vm796, %v1515, %v1517
    %1520 = vrot.lane.b32.xlu0 %v790, 121
    %v1521 = vpop.permute.xlu0 %1520
    %1522 = vrot.lane.b32.xlu0 %v791, 121
    %v1523 = vpop.permute.xlu0 %1522
    %v1524 = vsel %vm805, %v1521, %v1523
    %1526 = vrot.lane.b32.xlu0 %v799, 120
    %v1527 = vpop.permute.xlu0 %1526
    %1528 = vrot.lane.b32.xlu0 %v800, 120
    %v1529 = vpop.permute.xlu0 %1528
    %v1530 = vsel %vm812, %v1527, %v1529
    %1532 = vrot.lane.b32.xlu0 %v37, 119
    %v1533 = vpop.permute.xlu0 %1532
    %1534 = vrot.lane.b32.xlu0 0.0, 119
    %v1535 = vpop.permute.xlu0 %1534
    %v1536 = vsel %vm819, %v1533, %v1535
    %1538 = vrot.lane.b32.xlu0 %v745, 118
    %v1539 = vpop.permute.xlu0 %1538
    %1540 = vrot.lane.b32.xlu0 %v746, 118
    %v1541 = vpop.permute.xlu0 %1540
    %v1542 = vsel %vm826, %v1539, %v1541
    %1544 = vrot.lane.b32.xlu0 %v754, 117
    %v1545 = vpop.permute.xlu0 %1544
    %1546 = vrot.lane.b32.xlu0 %v755, 117
    %v1547 = vpop.permute.xlu0 %1546
    %v1548 = vsel %vm833, %v1545, %v1547
    %1550 = vrot.lane.b32.xlu0 %v763, 116
    %v1551 = vpop.permute.xlu0 %1550
    %1552 = vrot.lane.b32.xlu0 %v764, 116
    %v1553 = vpop.permute.xlu0 %1552
    %v1554 = vsel %vm840, %v1551, %v1553
    %1556 = vrot.lane.b32.xlu0 %v772, 115
    %v1557 = vpop.permute.xlu0 %1556
    %1558 = vrot.lane.b32.xlu0 %v773, 115
    %v1559 = vpop.permute.xlu0 %1558
    %v1560 = vsel %vm847, %v1557, %v1559
    %1562 = vrot.lane.b32.xlu0 %v781, 114
    %v1563 = vpop.permute.xlu0 %1562
    %1564 = vrot.lane.b32.xlu0 %v782, 114
    %v1565 = vpop.permute.xlu0 %1564
    %v1566 = vsel %vm854, %v1563, %v1565
    %1568 = vrot.lane.b32.xlu0 %v790, 113
    %v1569 = vpop.permute.xlu0 %1568
    %1570 = vrot.lane.b32.xlu0 %v791, 113
    %v1571 = vpop.permute.xlu0 %1570
    %v1572 = vsel %vm861, %v1569, %v1571
    %v1574 = vsel %vm864, %v799, %v1488
    %v1575 = vsel %vm866, %v1574, %v1494
    %v1576 = vsel %vm868, %v1575, %v1500
    %v1577 = vsel %vm870, %v1576, %v1506
    %v1578 = vsel %vm872, %v1577, %v1512
    %v1579 = vsel %vm874, %v1578, %v1518
    %v1580 = vsel %vm876, %v1579, %v1524
    %v1581 = vsel %vm864, %v1530, %v1536
    %v1582 = vsel %vm866, %v1581, %v1542
    %v1583 = vsel %vm868, %v1582, %v1548
    %v1584 = vsel %vm870, %v1583, %v1554
    %v1585 = vsel %vm872, %v1584, %v1560
    %v1586 = vsel %vm874, %v1585, %v1566
    %v1587 = vsel %vm876, %v1586, %v1572
    %v1604 = vsel %vm864, %v800, %v1487
    %v1605 = vsel %vm866, %v1604, %v1493
    %v1606 = vsel %vm868, %v1605, %v1499
    %v1607 = vsel %vm870, %v1606, %v1505
    %v1608 = vsel %vm872, %v1607, %v1511
    %v1609 = vsel %vm874, %v1608, %v1517
    %v1610 = vsel %vm876, %v1609, %v1523
    %v1611 = vsel %vm864, %v1529, %v1535
    %v1612 = vsel %vm866, %v1611, %v1541
    %v1613 = vsel %vm868, %v1612, %v1547
    %v1614 = vsel %vm870, %v1613, %v1553
    %v1615 = vsel %vm872, %v1614, %v1559
    %v1616 = vsel %vm874, %v1615, %v1565
    %v1617 = vsel %vm876, %v1616, %v1571
    %1622 = vrot.lane.b32.xlu0 %v1580, 112
    %v1623 = vpop.permute.xlu0 %1622
    %1624 = vrot.lane.b32.xlu0 %v1610, 112
    %v1625 = vpop.permute.xlu0 %1624
    %1626 = vrot.lane.b32.xlu0 %v1587, 112
    %v1627 = vpop.permute.xlu0 %1626
    %1628 = vrot.lane.b32.xlu0 %v1617, 112
    %v1629 = vpop.permute.xlu0 %1628
    %v1630 = vsel %vm926, %v1623, %v1625
    %v1631 = vsel %vm926, %v1627, %v1629
    %1634 = vmatprep.subr.mxu0 0.0
    %1635 = vmatpush1.xpose.msra.mxu0 0.0
    %1636 = vmatprep.subr.mxu0 0.0
    %1637 = vmatpush1.xpose.msra.mxu0 0.0
    %1638 = vmatprep.subr.mxu0 0.0
    %1639 = vmatpush1.xpose.msra.mxu0 0.0
    %1640 = vmatprep.subr.mxu0 0.0
    %1641 = vmatpush1.xpose.msra.mxu0 0.0
    %1642 = vmatprep.subr.mxu0 0.0
    %1643 = vmatpush1.xpose.msra.mxu0 0.0
    %1644 = vmatprep.subr.mxu0 0.0
    %1645 = vmatpush1.xpose.msra.mxu0 0.0
    %1646 = vmatprep.subr.mxu0 0.0
    %1647 = vmatpush1.xpose.msra.mxu0 0.0
    %1648 = vmatprep.subr.mxu0 0.0
    %1649 = vmatpush1.xpose.msra.mxu0 0.0
    %1650 = vmatprep.subr.mxu0 0.0
    %1651 = vmatpush1.xpose.msra.mxu0 %v1482
    %1652 = vmatprep.subr.mxu0 0.0
    %1653 = vmatpush1.xpose.msra.mxu0 %v1481
    %1654 = vmatprep.subr.mxu0 0.0
    %1655 = vmatpush1.xpose.msra.mxu0 %v1480
    %1656 = vmatprep.subr.mxu0 0.0
    %1657 = vmatpush1.xpose.msra.mxu0 %v1479
    %1658 = vmatprep.subr.mxu0 0.0
    %1659 = vmatpush1.xpose.msra.mxu0 %v1478
    %1660 = vmatprep.subr.mxu0 0.0
    %1661 = vmatpush1.xpose.msra.mxu0 %v1477
    %1662 = vmatprep.subr.mxu0 0.0
    %1663 = vmatpush1.xpose.msra.mxu0 %v1476
    %1664 = vmatprep.subr.mxu0 0.0
    %1665 = vmatpush1.xpose.msra.mxu0 %v1475
    %1666 = vmatprep.subr.mxu0 0.0
    %1667 = vmatpush2.xpose.msra.mxu0 0.0
    %1668 = vmatprep.subr.mxu0 0.0
    %1669 = vmatpush2.xpose.msra.mxu0 0.0
    %1670 = vmatprep.subr.mxu0 0.0
    %1671 = vmatpush2.xpose.msra.mxu0 0.0
    %1672 = vmatprep.subr.mxu0 0.0
    %1673 = vmatpush2.xpose.msra.mxu0 0.0
    %1674 = vmatprep.subr.mxu0 0.0
    %1675 = vmatpush2.xpose.msra.mxu0 0.0
    %1676 = vmatprep.subr.mxu0 0.0
    %1677 = vmatpush2.xpose.msra.mxu0 0.0
    %1678 = vmatprep.subr.mxu0 0.0
    %1679 = vmatpush2.xpose.msra.mxu0 0.0
    %1680 = vmatprep.subr.mxu0 0.0
    %1681 = vmatpush2.xpose.msra.mxu0 0.0
    %1682 = vmatprep.subr.mxu0 0.0
    %1683 = vmatpush2.xpose.msra.mxu0 0.0
    %1684 = vmatprep.subr.mxu0 0.0
    %1685 = vmatpush2.xpose.msra.mxu0 0.0
    %1686 = vmatprep.subr.mxu0 0.0
    %1687 = vmatpush2.xpose.msra.mxu0 0.0
    %1688 = vmatprep.subr.mxu0 0.0
    %1689 = vmatpush2.xpose.msra.mxu0 0.0
    %1690 = vmatprep.subr.mxu0 0.0
    %1691 = vmatpush2.xpose.msra.mxu0 0.0
    %1692 = vmatprep.subr.mxu0 0.0
    %1693 = vmatpush2.xpose.msra.mxu0 0.0
    %1694 = vmatprep.subr.mxu0 0.0
    %1695 = vmatpush2.xpose.msra.mxu0 0.0
    %1696 = vmatprep.subr.mxu0 0.0
    %1697 = vmatpush2.xpose.msra.mxu0 0.0
    %1698 = vmatprep.mubr.f32.mxu0 0.0
    %1699 = vmatmul.mubr.f32.gmra.mxu0 %v1580
    %v1700 = vpop.f32.mrf.mxu0
    %v1701 = vadd.f32 0.0, %v1700
    %v1702 = vpop.f32.mrf.mxu0
    %1703 = vmatprep.mubr.f32.mxu0 0.0
    %1704 = vmatmul.mubr.f32.gmra.mxu0 %v1587
    %v1705 = vpop.f32.mrf.mxu0
    %v1706 = vadd.f32 0.0, %v1705
    %v1707 = vpop.f32.mrf.mxu0
    %1708 = vmatprep.mubr.f32.mxu0 0.0
    %1709 = vmatmul.mubr.f32.gmra.mxu0 %v1630
    %v1710 = vpop.f32.mrf.mxu0
    %v1711 = vadd.f32 0.0, %v1710
    %v1712 = vpop.f32.mrf.mxu0
    %1713 = vmatprep.mubr.f32.mxu0 0.0
    %1714 = vmatmul.mubr.f32.gmra.mxu0 %v1631
    %v1715 = vpop.f32.mrf.mxu0
    %v1716 = vadd.f32 0.0, %v1715
    %v1717 = vpop.f32.mrf.mxu0
    %1718 = vdwg.mxu0
    %1719 = vxpose.xlu0.b32.start [1/16] %v51, 128
    %1720 = vxpose.xlu0.b32.cont [2/16] %v52, 128
    %1721 = vxpose.xlu0.b32.cont [3/16] %v53, 128
    %1722 = vxpose.xlu0.b32.cont [4/16] %v54, 128
    %1723 = vxpose.xlu0.b32.cont [5/16] 0.0, 128
    %1724 = vxpose.xlu0.b32.cont [6/16] 0.0, 128
    %1725 = vxpose.xlu0.b32.cont [7/16] 0.0, 128
    %1726 = vxpose.xlu0.b32.cont [8/16] 0.0, 128
    %1727 = vxpose.xlu0.b32.cont [9/16] 0.0, 128
    %1728 = vxpose.xlu0.b32.cont [10/16] 0.0, 128
    %1729 = vxpose.xlu0.b32.cont [11/16] 0.0, 128
    %1730 = vxpose.xlu0.b32.cont [12/16] 0.0, 128
    %1731 = vxpose.xlu0.b32.cont [13/16] 0.0, 128
    %1732 = vxpose.xlu0.b32.cont [14/16] 0.0, 128
    %1733 = vxpose.xlu0.b32.cont [15/16] 0.0, 128
    %1734 = vxpose.xlu0.b32.end [16/16] 0.0, 128
    %v1735 = vpop.trf.xlu0
    %v1736 = vpop.trf.xlu0
    %v1737 = vpop.trf.xlu0
    %v1738 = vpop.trf.xlu0
    %v1739 = vpop.trf.xlu0
    %v1740 = vpop.trf.xlu0
    %v1741 = vpop.trf.xlu0
    %v1742 = vpop.trf.xlu0
    %v1743 = vpop.trf.xlu0
    %v1744 = vpop.trf.xlu0
    %v1745 = vpop.trf.xlu0
    %v1746 = vpop.trf.xlu0
    %v1747 = vpop.trf.xlu0
    %v1748 = vpop.trf.xlu0
    %v1749 = vpop.trf.xlu0
    %v1750 = vpop.trf.xlu0
    %vm1751 = vcmask 261120
    %v1753 = vsel %vm1751, %v1735, 0
    %v1756 = vsel %vm1751, %v1736, 0
    %v1759 = vsel %vm1751, %v1737, 0
    %v1762 = vsel %vm1751, %v1738, 0
    %1764 = vmatprep.subr.mxu0 0.0
    %1765 = vmatpush1.msra.mxu0 0.0
    %1766 = vmatprep.subr.mxu0 0.0
    %1767 = vmatpush1.msra.mxu0 0.0
    %1768 = vmatprep.subr.mxu0 0.0
    %1769 = vmatpush1.msra.mxu0 0.0
    %1770 = vmatprep.subr.mxu0 0.0
    %1771 = vmatpush1.msra.mxu0 0.0
    %1772 = vmatprep.subr.mxu0 0.0
    %1773 = vmatpush1.msra.mxu0 0.0
    %1774 = vmatprep.subr.mxu0 0.0
    %1775 = vmatpush1.msra.mxu0 0.0
    %1776 = vmatprep.subr.mxu0 0.0
    %1777 = vmatpush1.msra.mxu0 0.0
    %1778 = vmatprep.subr.mxu0 0.0
    %1779 = vmatpush1.msra.mxu0 0.0
    %1780 = vmatprep.subr.mxu0 0.0
    %1781 = vmatpush1.msra.mxu0 0.0
    %1782 = vmatprep.subr.mxu0 0.0
    %1783 = vmatpush1.msra.mxu0 0.0
    %1784 = vmatprep.subr.mxu0 0.0
    %1785 = vmatpush1.msra.mxu0 0.0
    %1786 = vmatprep.subr.mxu0 0.0
    %1787 = vmatpush1.msra.mxu0 0.0
    %1788 = vmatprep.subr.mxu0 0.0
    %1789 = vmatpush1.msra.mxu0 %v1716
    %1790 = vmatprep.subr.mxu0 0.0
    %1791 = vmatpush1.msra.mxu0 %v1711
    %1792 = vmatprep.subr.mxu0 0.0
    %1793 = vmatpush1.msra.mxu0 %v1706
    %1794 = vmatprep.subr.mxu0 0.0
    %1795 = vmatpush1.msra.mxu0 %v1701
    %1796 = vmatprep.subr.mxu0 0.0
    %1797 = vmatpush2.msra.mxu0 0.0
    %1798 = vmatprep.subr.mxu0 0.0
    %1799 = vmatpush2.msra.mxu0 0.0
    %1800 = vmatprep.subr.mxu0 0.0
    %1801 = vmatpush2.msra.mxu0 0.0
    %1802 = vmatprep.subr.mxu0 0.0
    %1803 = vmatpush2.msra.mxu0 0.0
    %1804 = vmatprep.subr.mxu0 0.0
    %1805 = vmatpush2.msra.mxu0 0.0
    %1806 = vmatprep.subr.mxu0 0.0
    %1807 = vmatpush2.msra.mxu0 0.0
    %1808 = vmatprep.subr.mxu0 0.0
    %1809 = vmatpush2.msra.mxu0 0.0
    %1810 = vmatprep.subr.mxu0 0.0
    %1811 = vmatpush2.msra.mxu0 0.0
    %1812 = vmatprep.subr.mxu0 0.0
    %1813 = vmatpush2.msra.mxu0 0.0
    %1814 = vmatprep.subr.mxu0 0.0
    %1815 = vmatpush2.msra.mxu0 0.0
    %1816 = vmatprep.subr.mxu0 0.0
    %1817 = vmatpush2.msra.mxu0 0.0
    %1818 = vmatprep.subr.mxu0 0.0
    %1819 = vmatpush2.msra.mxu0 0.0
    %1820 = vmatprep.subr.mxu0 0.0
    %1821 = vmatpush2.msra.mxu0 0.0
    %1822 = vmatprep.subr.mxu0 0.0
    %1823 = vmatpush2.msra.mxu0 0.0
    %1824 = vmatprep.subr.mxu0 0.0
    %1825 = vmatpush2.msra.mxu0 0.0
    %1826 = vmatprep.subr.mxu0 0.0
    %1827 = vmatpush2.msra.mxu0 0.0
    %1828 = vmatprep.mubr.f32.mxu0 0.0
    %1829 = vmatmul.mubr.f32.gmra.mxu0 %v1753
    %v1830 = vpop.f32.mrf.mxu0
    %v1831 = vadd.f32 0.0, %v1830
    %v1832 = vpop.f32.mrf.mxu0
    %1833 = vmatprep.mubr.f32.mxu0 0.0
    %1834 = vmatmul.mubr.f32.gmra.mxu0 %v1756
    %v1835 = vpop.f32.mrf.mxu0
    %v1836 = vadd.f32 0.0, %v1835
    %v1837 = vpop.f32.mrf.mxu0
    %1838 = vmatprep.mubr.f32.mxu0 0.0
    %1839 = vmatmul.mubr.f32.gmra.mxu0 %v1759
    %v1840 = vpop.f32.mrf.mxu0
    %v1841 = vadd.f32 0.0, %v1840
    %v1842 = vpop.f32.mrf.mxu0
    %1843 = vmatprep.mubr.f32.mxu0 0.0
    %1844 = vmatmul.mubr.f32.gmra.mxu0 %v1762
    %v1845 = vpop.f32.mrf.mxu0
    %v1846 = vadd.f32 0.0, %v1845
    %v1847 = vpop.f32.mrf.mxu0
    %1848 = vdwg.mxu0
    %1849 = vxpose.xlu0.b32.start [1/16] %v47, 128
    %1850 = vxpose.xlu0.b32.cont [2/16] %v48, 128
    %1851 = vxpose.xlu0.b32.cont [3/16] %v49, 128
    %1852 = vxpose.xlu0.b32.cont [4/16] %v50, 128
    %1853 = vxpose.xlu0.b32.cont [5/16] 0.0, 128
    %1854 = vxpose.xlu0.b32.cont [6/16] 0.0, 128
    %1855 = vxpose.xlu0.b32.cont [7/16] 0.0, 128
    %1856 = vxpose.xlu0.b32.cont [8/16] 0.0, 128
    %1857 = vxpose.xlu0.b32.cont [9/16] 0.0, 128
    %1858 = vxpose.xlu0.b32.cont [10/16] 0.0, 128
    %1859 = vxpose.xlu0.b32.cont [11/16] 0.0, 128
    %1860 = vxpose.xlu0.b32.cont [12/16] 0.0, 128
    %1861 = vxpose.xlu0.b32.cont [13/16] 0.0, 128
    %1862 = vxpose.xlu0.b32.cont [14/16] 0.0, 128
    %1863 = vxpose.xlu0.b32.cont [15/16] 0.0, 128
    %1864 = vxpose.xlu0.b32.end [16/16] 0.0, 128
    %v1865 = vpop.trf.xlu0
    %v1866 = vpop.trf.xlu0
    %v1867 = vpop.trf.xlu0
    %v1868 = vpop.trf.xlu0
    %v1869 = vpop.trf.xlu0
    %v1870 = vpop.trf.xlu0
    %v1871 = vpop.trf.xlu0
    %v1872 = vpop.trf.xlu0
    %v1873 = vpop.trf.xlu0
    %v1874 = vpop.trf.xlu0
    %v1875 = vpop.trf.xlu0
    %v1876 = vpop.trf.xlu0
    %v1877 = vpop.trf.xlu0
    %v1878 = vpop.trf.xlu0
    %v1879 = vpop.trf.xlu0
    %v1880 = vpop.trf.xlu0
    %v1882 = vsel %vm1751, %v1865, 0
    %v1885 = vsel %vm1751, %v1866, 0
    %v1888 = vsel %vm1751, %v1867, 0
    %v1891 = vsel %vm1751, %v1868, 0
    %1893 = vmatprep.subr.mxu0 0.0
    %1894 = vmatpush1.msra.mxu0 0.0
    %1895 = vmatprep.subr.mxu0 0.0
    %1896 = vmatpush1.msra.mxu0 0.0
    %1897 = vmatprep.subr.mxu0 0.0
    %1898 = vmatpush1.msra.mxu0 0.0
    %1899 = vmatprep.subr.mxu0 0.0
    %1900 = vmatpush1.msra.mxu0 0.0
    %1901 = vmatprep.subr.mxu0 0.0
    %1902 = vmatpush1.msra.mxu0 0.0
    %1903 = vmatprep.subr.mxu0 0.0
    %1904 = vmatpush1.msra.mxu0 0.0
    %1905 = vmatprep.subr.mxu0 0.0
    %1906 = vmatpush1.msra.mxu0 0.0
    %1907 = vmatprep.subr.mxu0 0.0
    %1908 = vmatpush1.msra.mxu0 0.0
    %1909 = vmatprep.subr.mxu0 0.0
    %1910 = vmatpush1.msra.mxu0 0.0
    %1911 = vmatprep.subr.mxu0 0.0
    %1912 = vmatpush1.msra.mxu0 0.0
    %1913 = vmatprep.subr.mxu0 0.0
    %1914 = vmatpush1.msra.mxu0 0.0
    %1915 = vmatprep.subr.mxu0 0.0
    %1916 = vmatpush1.msra.mxu0 0.0
    %1917 = vmatprep.subr.mxu0 0.0
    %1918 = vmatpush1.msra.mxu0 %v1013
    %1919 = vmatprep.subr.mxu0 0.0
    %1920 = vmatpush1.msra.mxu0 %v1008
    %1921 = vmatprep.subr.mxu0 0.0
    %1922 = vmatpush1.msra.mxu0 %v1003
    %1923 = vmatprep.subr.mxu0 0.0
    %1924 = vmatpush1.msra.mxu0 %v998
    %1925 = vmatprep.subr.mxu0 0.0
    %1926 = vmatpush2.msra.mxu0 0.0
    %1927 = vmatprep.subr.mxu0 0.0
    %1928 = vmatpush2.msra.mxu0 0.0
    %1929 = vmatprep.subr.mxu0 0.0
    %1930 = vmatpush2.msra.mxu0 0.0
    %1931 = vmatprep.subr.mxu0 0.0
    %1932 = vmatpush2.msra.mxu0 0.0
    %1933 = vmatprep.subr.mxu0 0.0
    %1934 = vmatpush2.msra.mxu0 0.0
    %1935 = vmatprep.subr.mxu0 0.0
    %1936 = vmatpush2.msra.mxu0 0.0
    %1937 = vmatprep.subr.mxu0 0.0
    %1938 = vmatpush2.msra.mxu0 0.0
    %1939 = vmatprep.subr.mxu0 0.0
    %1940 = vmatpush2.msra.mxu0 0.0
    %1941 = vmatprep.subr.mxu0 0.0
    %1942 = vmatpush2.msra.mxu0 0.0
    %1943 = vmatprep.subr.mxu0 0.0
    %1944 = vmatpush2.msra.mxu0 0.0
    %1945 = vmatprep.subr.mxu0 0.0
    %1946 = vmatpush2.msra.mxu0 0.0
    %1947 = vmatprep.subr.mxu0 0.0
    %1948 = vmatpush2.msra.mxu0 0.0
    %1949 = vmatprep.subr.mxu0 0.0
    %1950 = vmatpush2.msra.mxu0 0.0
    %1951 = vmatprep.subr.mxu0 0.0
    %1952 = vmatpush2.msra.mxu0 0.0
    %1953 = vmatprep.subr.mxu0 0.0
    %1954 = vmatpush2.msra.mxu0 0.0
    %1955 = vmatprep.subr.mxu0 0.0
    %1956 = vmatpush2.msra.mxu0 0.0
    %1957 = vmatprep.mubr.f32.mxu0 0.0
    %1958 = vmatmul.mubr.f32.gmra.mxu0 %v1882
    %v1959 = vpop.f32.mrf.mxu0
    %v1960 = vadd.f32 %v1831, %v1959
    %v1961 = vpop.f32.mrf.mxu0
    %1962 = vmatprep.mubr.f32.mxu0 0.0
    %1963 = vmatmul.mubr.f32.gmra.mxu0 %v1885
    %v1964 = vpop.f32.mrf.mxu0
    %v1965 = vadd.f32 %v1836, %v1964
    %v1966 = vpop.f32.mrf.mxu0
    %1967 = vmatprep.mubr.f32.mxu0 0.0
    %1968 = vmatmul.mubr.f32.gmra.mxu0 %v1888
    %v1969 = vpop.f32.mrf.mxu0
    %v1970 = vadd.f32 %v1841, %v1969
    %v1971 = vpop.f32.mrf.mxu0
    %1972 = vmatprep.mubr.f32.mxu0 0.0
    %1973 = vmatmul.mubr.f32.gmra.mxu0 %v1891
    %v1974 = vpop.f32.mrf.mxu0
    %v1975 = vadd.f32 %v1846, %v1974
    %v1976 = vpop.f32.mrf.mxu0
    %1977 = vdwg.mxu0
    %v1978 = vstv %s72
    %v1979 = vsub.f32 %v81, %v1978
    %v1980 = vsub.f32 %v82, %v1978
    %v1981 = vsub.f32 %v83, %v1978
    %v1982 = vsub.f32 %v84, %v1978
    %v1983 = vsub.f32 %v85, %v1978
    %v1984 = vsub.f32 %v86, %v1978
    %v1985 = vsub.f32 %v87, %v1978
    %v1986 = vsub.f32 %v88, %v1978
    %v1987 = vmul.f32 %v1979, %v1979
    %v1988 = vmul.f32 %v1980, %v1980
    %v1989 = vmul.f32 %v1981, %v1981
    %v1990 = vmul.f32 %v1982, %v1982
    %v1991 = vmul.f32 %v1983, %v1983
    %v1992 = vmul.f32 %v1984, %v1984
    %v1993 = vmul.f32 %v1985, %v1985
    %v1994 = vmul.f32 %v1986, %v1986
    %v1995 = vstv %s73
    %v1996 = vsub.f32 %v81, %v1995
    %v1997 = vsub.f32 %v82, %v1995
    %v1998 = vsub.f32 %v83, %v1995
    %v1999 = vsub.f32 %v84, %v1995
    %v2000 = vsub.f32 %v85, %v1995
    %v2001 = vsub.f32 %v86, %v1995
    %v2002 = vsub.f32 %v87, %v1995
    %v2003 = vsub.f32 %v88, %v1995
    %v2004 = vmul.f32 %v1996, %v1996
    %v2005 = vmul.f32 %v1997, %v1997
    %v2006 = vmul.f32 %v1998, %v1998
    %v2007 = vmul.f32 %v1999, %v1999
    %v2008 = vmul.f32 %v2000, %v2000
    %v2009 = vmul.f32 %v2001, %v2001
    %v2010 = vmul.f32 %v2002, %v2002
    %v2011 = vmul.f32 %v2003, %v2003
    %2020 = vrot.lane.b32.xlu0 %v2004, 127
    %v2021 = vpop.permute.xlu0 %2020
    %2022 = vrot.lane.b32.xlu0 %v2005, 127
    %v2023 = vpop.permute.xlu0 %2022
    %2024 = vrot.lane.b32.xlu0 %v2006, 127
    %v2025 = vpop.permute.xlu0 %2024
    %2026 = vrot.lane.b32.xlu0 %v2007, 127
    %v2027 = vpop.permute.xlu0 %2026
    %2028 = vrot.lane.b32.xlu0 %v2008, 127
    %v2029 = vpop.permute.xlu0 %2028
    %2030 = vrot.lane.b32.xlu0 %v2009, 127
    %v2031 = vpop.permute.xlu0 %2030
    %2032 = vrot.lane.b32.xlu0 %v2010, 127
    %v2033 = vpop.permute.xlu0 %2032
    %2034 = vrot.lane.b32.xlu0 %v2011, 127
    %v2035 = vpop.permute.xlu0 %2034
    %v2044 = vadd.f32 %v1987, %v2021
    %v2045 = vadd.f32 %v1988, %v2023
    %v2046 = vadd.f32 %v1989, %v2025
    %v2047 = vadd.f32 %v1990, %v2027
    %v2048 = vadd.f32 %v1991, %v2029
    %v2049 = vadd.f32 %v1992, %v2031
    %v2050 = vadd.f32 %v1993, %v2033
    %v2051 = vadd.f32 %v1994, %v2035
    %v2052 = vstv %s74
    %v2053 = vsub.f32 %v81, %v2052
    %v2054 = vsub.f32 %v82, %v2052
    %v2055 = vsub.f32 %v83, %v2052
    %v2056 = vsub.f32 %v84, %v2052
    %v2057 = vsub.f32 %v85, %v2052
    %v2058 = vsub.f32 %v86, %v2052
    %v2059 = vsub.f32 %v87, %v2052
    %v2060 = vsub.f32 %v88, %v2052
    %v2061 = vmul.f32 %v2053, %v2053
    %v2062 = vmul.f32 %v2054, %v2054
    %v2063 = vmul.f32 %v2055, %v2055
    %v2064 = vmul.f32 %v2056, %v2056
    %v2065 = vmul.f32 %v2057, %v2057
    %v2066 = vmul.f32 %v2058, %v2058
    %v2067 = vmul.f32 %v2059, %v2059
    %v2068 = vmul.f32 %v2060, %v2060
    %2077 = vrot.lane.b32.xlu0 %v2061, 126
    %v2078 = vpop.permute.xlu0 %2077
    %2079 = vrot.lane.b32.xlu0 %v2062, 126
    %v2080 = vpop.permute.xlu0 %2079
    %2081 = vrot.lane.b32.xlu0 %v2063, 126
    %v2082 = vpop.permute.xlu0 %2081
    %2083 = vrot.lane.b32.xlu0 %v2064, 126
    %v2084 = vpop.permute.xlu0 %2083
    %2085 = vrot.lane.b32.xlu0 %v2065, 126
    %v2086 = vpop.permute.xlu0 %2085
    %2087 = vrot.lane.b32.xlu0 %v2066, 126
    %v2088 = vpop.permute.xlu0 %2087
    %2089 = vrot.lane.b32.xlu0 %v2067, 126
    %v2090 = vpop.permute.xlu0 %2089
    %2091 = vrot.lane.b32.xlu0 %v2068, 126
    %v2092 = vpop.permute.xlu0 %2091
    %v2101 = vadd.f32 %v2044, %v2078
    %v2102 = vadd.f32 %v2045, %v2080
    %v2103 = vadd.f32 %v2046, %v2082
    %v2104 = vadd.f32 %v2047, %v2084
    %v2105 = vadd.f32 %v2048, %v2086
    %v2106 = vadd.f32 %v2049, %v2088
    %v2107 = vadd.f32 %v2050, %v2090
    %v2108 = vadd.f32 %v2051, %v2092
    %v2109 = vrsqrt.pop %v2101
    %v2110 = vmul.f32 %v2101, %v2109
    %vm2111 = vcmp.eq.f32.partialorder %v2101, inf
    %v2112 = vsel %vm2111, %v2101, %v2110
    %vm2113 = vcmp.eq.f32.partialorder %v2101, 0.0
    %v2114 = vand.u32 %v2101, 2147483648
    %v2115 = vsel %vm2113, %v2114, %v2112
    %v2116 = vrsqrt.pop %v2102
    %v2117 = vmul.f32 %v2102, %v2116
    %vm2118 = vcmp.eq.f32.partialorder %v2102, inf
    %v2119 = vsel %vm2118, %v2102, %v2117
    %vm2120 = vcmp.eq.f32.partialorder %v2102, 0.0
    %v2121 = vand.u32 %v2102, 2147483648
    %v2122 = vsel %vm2120, %v2121, %v2119
    %v2123 = vrsqrt.pop %v2103
    %v2124 = vmul.f32 %v2103, %v2123
    %vm2125 = vcmp.eq.f32.partialorder %v2103, inf
    %v2126 = vsel %vm2125, %v2103, %v2124
    %vm2127 = vcmp.eq.f32.partialorder %v2103, 0.0
    %v2128 = vand.u32 %v2103, 2147483648
    %v2129 = vsel %vm2127, %v2128, %v2126
    %v2130 = vrsqrt.pop %v2104
    %v2131 = vmul.f32 %v2104, %v2130
    %vm2132 = vcmp.eq.f32.partialorder %v2104, inf
    %v2133 = vsel %vm2132, %v2104, %v2131
    %vm2134 = vcmp.eq.f32.partialorder %v2104, 0.0
    %v2135 = vand.u32 %v2104, 2147483648
    %v2136 = vsel %vm2134, %v2135, %v2133
    %v2137 = vrsqrt.pop %v2105
    %v2138 = vmul.f32 %v2105, %v2137
    %vm2139 = vcmp.eq.f32.partialorder %v2105, inf
    %v2140 = vsel %vm2139, %v2105, %v2138
    %vm2141 = vcmp.eq.f32.partialorder %v2105, 0.0
    %v2142 = vand.u32 %v2105, 2147483648
    %v2143 = vsel %vm2141, %v2142, %v2140
    %v2144 = vrsqrt.pop %v2106
    %v2145 = vmul.f32 %v2106, %v2144
    %vm2146 = vcmp.eq.f32.partialorder %v2106, inf
    %v2147 = vsel %vm2146, %v2106, %v2145
    %vm2148 = vcmp.eq.f32.partialorder %v2106, 0.0
    %v2149 = vand.u32 %v2106, 2147483648
    %v2150 = vsel %vm2148, %v2149, %v2147
    %v2151 = vrsqrt.pop %v2107
    %v2152 = vmul.f32 %v2107, %v2151
    %vm2153 = vcmp.eq.f32.partialorder %v2107, inf
    %v2154 = vsel %vm2153, %v2107, %v2152
    %vm2155 = vcmp.eq.f32.partialorder %v2107, 0.0
    %v2156 = vand.u32 %v2107, 2147483648
    %v2157 = vsel %vm2155, %v2156, %v2154
    %v2158 = vrsqrt.pop %v2108
    %v2159 = vmul.f32 %v2108, %v2158
    %vm2160 = vcmp.eq.f32.partialorder %v2108, inf
    %v2161 = vsel %vm2160, %v2108, %v2159
    %vm2162 = vcmp.eq.f32.partialorder %v2108, 0.0
    %v2163 = vand.u32 %v2108, 2147483648
    %v2164 = vsel %vm2162, %v2163, %v2161
    %v2165 = vadd.f32 %v226, %v2115
    %v2166 = vadd.f32 %v233, %v2122
    %v2167 = vadd.f32 %v240, %v2129
    %v2168 = vadd.f32 %v247, %v2136
    %v2169 = vadd.f32 %v254, %v2143
    %v2170 = vadd.f32 %v261, %v2150
    %v2171 = vadd.f32 %v268, %v2157
    %v2172 = vadd.f32 %v275, %v2164
    %v2173 = vmul.f32 %v2165, 34.985424
    %v2174 = vmul.f32 %v2166, 34.985424
    %v2175 = vmul.f32 %v2167, 34.985424
    %v2176 = vmul.f32 %v2168, 34.985424
    %v2177 = vmul.f32 %v2169, 34.985424
    %v2178 = vmul.f32 %v2170, 34.985424
    %v2179 = vmul.f32 %v2171, 34.985424
    %v2180 = vmul.f32 %v2172, 34.985424
    %v2181 = vmul.f32 %v226, %v2115
    %v2182 = vmul.f32 %v233, %v2122
    %v2183 = vmul.f32 %v240, %v2129
    %v2184 = vmul.f32 %v247, %v2136
    %v2185 = vmul.f32 %v254, %v2143
    %v2186 = vmul.f32 %v261, %v2150
    %v2187 = vmul.f32 %v268, %v2157
    %v2188 = vmul.f32 %v275, %v2164
    %v2189 = vfloor.f32 %v2173
    %v2190 = vfloor.f32 %v2174
    %v2191 = vfloor.f32 %v2175
    %v2192 = vfloor.f32 %v2176
    %v2193 = vfloor.f32 %v2177
    %v2194 = vfloor.f32 %v2178
    %v2195 = vfloor.f32 %v2179
    %v2196 = vfloor.f32 %v2180
    %v2197 = vmax.f32 %v2189, 0.0
    %v2198 = vmax.f32 %v2190, 0.0
    %v2199 = vmax.f32 %v2191, 0.0
    %v2200 = vmax.f32 %v2192, 0.0
    %v2201 = vmax.f32 %v2193, 0.0
    %v2202 = vmax.f32 %v2194, 0.0
    %v2203 = vmax.f32 %v2195, 0.0
    %v2204 = vmax.f32 %v2196, 0.0
    %v2205 = vmin.f32 %v2197, 95.0
    %v2206 = vmin.f32 %v2198, 95.0
    %v2207 = vmin.f32 %v2199, 95.0
    %v2208 = vmin.f32 %v2200, 95.0
    %v2209 = vmin.f32 %v2201, 95.0
    %v2210 = vmin.f32 %v2202, 95.0
    %v2211 = vmin.f32 %v2203, 95.0
    %v2212 = vmin.f32 %v2204, 95.0
    %v2213 = vsub.f32 %v2173, %v2205
    %v2214 = vsub.f32 %v2174, %v2206
    %v2215 = vsub.f32 %v2175, %v2207
    %v2216 = vsub.f32 %v2176, %v2208
    %v2217 = vsub.f32 %v2177, %v2209
    %v2218 = vsub.f32 %v2178, %v2210
    %v2219 = vsub.f32 %v2179, %v2211
    %v2220 = vsub.f32 %v2180, %v2212
    %v2221 = vmax.f32 %v2213, 0.0
    %v2222 = vmax.f32 %v2214, 0.0
    %v2223 = vmax.f32 %v2215, 0.0
    %v2224 = vmax.f32 %v2216, 0.0
    %v2225 = vmax.f32 %v2217, 0.0
    %v2226 = vmax.f32 %v2218, 0.0
    %v2227 = vmax.f32 %v2219, 0.0
    %v2228 = vmax.f32 %v2220, 0.0
    %v2229 = vmin.f32 %v2221, 1.0
    %v2230 = vmin.f32 %v2222, 1.0
    %v2231 = vmin.f32 %v2223, 1.0
    %v2232 = vmin.f32 %v2224, 1.0
    %v2233 = vmin.f32 %v2225, 1.0
    %v2234 = vmin.f32 %v2226, 1.0
    %v2235 = vmin.f32 %v2227, 1.0
    %v2236 = vmin.f32 %v2228, 1.0
    %v2237 = vcvt.f32.s32.to.zero.pseudo %v2205
    %v2238 = vcvt.f32.s32.to.zero.pseudo %v2206
    %v2239 = vcvt.f32.s32.to.zero.pseudo %v2207
    %v2240 = vcvt.f32.s32.to.zero.pseudo %v2208
    %v2241 = vcvt.f32.s32.to.zero.pseudo %v2209
    %v2242 = vcvt.f32.s32.to.zero.pseudo %v2210
    %v2243 = vcvt.f32.s32.to.zero.pseudo %v2211
    %v2244 = vcvt.f32.s32.to.zero.pseudo %v2212
    %2245 = vset.pattern.permute.xlu0 0
    %2246 = vperm.xlu0 %2245, %v2237
    %v2247 = vpop.permute.xlu0 %2246
    %2248 = vset.pattern.permute.xlu0 0
    %2249 = vperm.xlu0 %2248, %v2238
    %v2250 = vpop.permute.xlu0 %2249
    %2251 = vset.pattern.permute.xlu0 0
    %2252 = vperm.xlu0 %2251, %v2239
    %v2253 = vpop.permute.xlu0 %2252
    %2254 = vset.pattern.permute.xlu0 0
    %2255 = vperm.xlu0 %2254, %v2240
    %v2256 = vpop.permute.xlu0 %2255
    %2257 = vset.pattern.permute.xlu0 0
    %2258 = vperm.xlu0 %2257, %v2241
    %v2259 = vpop.permute.xlu0 %2258
    %2260 = vset.pattern.permute.xlu0 0
    %2261 = vperm.xlu0 %2260, %v2242
    %v2262 = vpop.permute.xlu0 %2261
    %2263 = vset.pattern.permute.xlu0 0
    %2264 = vperm.xlu0 %2263, %v2243
    %v2265 = vpop.permute.xlu0 %2264
    %2266 = vset.pattern.permute.xlu0 0
    %2267 = vperm.xlu0 %2266, %v2244
    %v2268 = vpop.permute.xlu0 %2267
    %vm2269 = vcmp.eq.s32.totalorder %v80, %v2247
    %vm2270 = vcmp.eq.s32.totalorder %v80, %v2250
    %vm2271 = vcmp.eq.s32.totalorder %v80, %v2253
    %vm2272 = vcmp.eq.s32.totalorder %v80, %v2256
    %vm2273 = vcmp.eq.s32.totalorder %v80, %v2259
    %vm2274 = vcmp.eq.s32.totalorder %v80, %v2262
    %vm2275 = vcmp.eq.s32.totalorder %v80, %v2265
    %vm2276 = vcmp.eq.s32.totalorder %v80, %v2268
    %v2277 = vsub.f32 1.0, %v2229
    %v2278 = vsub.f32 1.0, %v2230
    %v2279 = vsub.f32 1.0, %v2231
    %v2280 = vsub.f32 1.0, %v2232
    %v2281 = vsub.f32 1.0, %v2233
    %v2282 = vsub.f32 1.0, %v2234
    %v2283 = vsub.f32 1.0, %v2235
    %v2284 = vsub.f32 1.0, %v2236
    %v2285 = vmul.f32 %v2277, %v2181
    %v2286 = vmul.f32 %v2278, %v2182
    %v2287 = vmul.f32 %v2279, %v2183
    %v2288 = vmul.f32 %v2280, %v2184
    %v2289 = vmul.f32 %v2281, %v2185
    %v2290 = vmul.f32 %v2282, %v2186
    %v2291 = vmul.f32 %v2283, %v2187
    %v2292 = vmul.f32 %v2284, %v2188
    %2294 = vset.pattern.permute.xlu0 0
    %2295 = vperm.xlu0 %2294, %v2285
    %v2296 = vpop.permute.xlu0 %2295
    %2299 = vset.pattern.permute.xlu0 0
    %2300 = vperm.xlu0 %2299, %v2286
    %v2301 = vpop.permute.xlu0 %2300
    %2304 = vset.pattern.permute.xlu0 0
    %2305 = vperm.xlu0 %2304, %v2287
    %v2306 = vpop.permute.xlu0 %2305
    %2309 = vset.pattern.permute.xlu0 0
    %2310 = vperm.xlu0 %2309, %v2288
    %v2311 = vpop.permute.xlu0 %2310
    %2314 = vset.pattern.permute.xlu0 0
    %2315 = vperm.xlu0 %2314, %v2289
    %v2316 = vpop.permute.xlu0 %2315
    %2319 = vset.pattern.permute.xlu0 0
    %2320 = vperm.xlu0 %2319, %v2290
    %v2321 = vpop.permute.xlu0 %2320
    %2324 = vset.pattern.permute.xlu0 0
    %2325 = vperm.xlu0 %2324, %v2291
    %v2326 = vpop.permute.xlu0 %2325
    %2329 = vset.pattern.permute.xlu0 0
    %2330 = vperm.xlu0 %2329, %v2292
    %v2331 = vpop.permute.xlu0 %2330
    %v2333 = vsel %vm2269, %v2296, 0.0
    %v2334 = vsel %vm2270, %v2301, 0.0
    %v2335 = vsel %vm2271, %v2306, 0.0
    %v2336 = vsel %vm2272, %v2311, 0.0
    %v2337 = vsel %vm2273, %v2316, 0.0
    %v2338 = vsel %vm2274, %v2321, 0.0
    %v2339 = vsel %vm2275, %v2326, 0.0
    %v2340 = vsel %vm2276, %v2331, 0.0
    %v2341 = vadd.s32 %v2237, 1
    %v2342 = vadd.s32 %v2238, 1
    %v2343 = vadd.s32 %v2239, 1
    %v2344 = vadd.s32 %v2240, 1
    %v2345 = vadd.s32 %v2241, 1
    %v2346 = vadd.s32 %v2242, 1
    %v2347 = vadd.s32 %v2243, 1
    %v2348 = vadd.s32 %v2244, 1
    %2349 = vset.pattern.permute.xlu0 0
    %2350 = vperm.xlu0 %2349, %v2341
    %v2351 = vpop.permute.xlu0 %2350
    %2352 = vset.pattern.permute.xlu0 0
    %2353 = vperm.xlu0 %2352, %v2342
    %v2354 = vpop.permute.xlu0 %2353
    %2355 = vset.pattern.permute.xlu0 0
    %2356 = vperm.xlu0 %2355, %v2343
    %v2357 = vpop.permute.xlu0 %2356
    %2358 = vset.pattern.permute.xlu0 0
    %2359 = vperm.xlu0 %2358, %v2344
    %v2360 = vpop.permute.xlu0 %2359
    %2361 = vset.pattern.permute.xlu0 0
    %2362 = vperm.xlu0 %2361, %v2345
    %v2363 = vpop.permute.xlu0 %2362
    %2364 = vset.pattern.permute.xlu0 0
    %2365 = vperm.xlu0 %2364, %v2346
    %v2366 = vpop.permute.xlu0 %2365
    %2367 = vset.pattern.permute.xlu0 0
    %2368 = vperm.xlu0 %2367, %v2347
    %v2369 = vpop.permute.xlu0 %2368
    %2370 = vset.pattern.permute.xlu0 0
    %2371 = vperm.xlu0 %2370, %v2348
    %v2372 = vpop.permute.xlu0 %2371
    %vm2373 = vcmp.eq.s32.totalorder %v80, %v2351
    %vm2374 = vcmp.eq.s32.totalorder %v80, %v2354
    %vm2375 = vcmp.eq.s32.totalorder %v80, %v2357
    %vm2376 = vcmp.eq.s32.totalorder %v80, %v2360
    %vm2377 = vcmp.eq.s32.totalorder %v80, %v2363
    %vm2378 = vcmp.eq.s32.totalorder %v80, %v2366
    %vm2379 = vcmp.eq.s32.totalorder %v80, %v2369
    %vm2380 = vcmp.eq.s32.totalorder %v80, %v2372
    %v2381 = vmul.f32 %v2229, %v2181
    %v2382 = vmul.f32 %v2230, %v2182
    %v2383 = vmul.f32 %v2231, %v2183
    %v2384 = vmul.f32 %v2232, %v2184
    %v2385 = vmul.f32 %v2233, %v2185
    %v2386 = vmul.f32 %v2234, %v2186
    %v2387 = vmul.f32 %v2235, %v2187
    %v2388 = vmul.f32 %v2236, %v2188
    %2390 = vset.pattern.permute.xlu0 0
    %2391 = vperm.xlu0 %2390, %v2381
    %v2392 = vpop.permute.xlu0 %2391
    %2395 = vset.pattern.permute.xlu0 0
    %2396 = vperm.xlu0 %2395, %v2382
    %v2397 = vpop.permute.xlu0 %2396
    %2400 = vset.pattern.permute.xlu0 0
    %2401 = vperm.xlu0 %2400, %v2383
    %v2402 = vpop.permute.xlu0 %2401
    %2405 = vset.pattern.permute.xlu0 0
    %2406 = vperm.xlu0 %2405, %v2384
    %v2407 = vpop.permute.xlu0 %2406
    %2410 = vset.pattern.permute.xlu0 0
    %2411 = vperm.xlu0 %2410, %v2385
    %v2412 = vpop.permute.xlu0 %2411
    %2415 = vset.pattern.permute.xlu0 0
    %2416 = vperm.xlu0 %2415, %v2386
    %v2417 = vpop.permute.xlu0 %2416
    %2420 = vset.pattern.permute.xlu0 0
    %2421 = vperm.xlu0 %2420, %v2387
    %v2422 = vpop.permute.xlu0 %2421
    %2425 = vset.pattern.permute.xlu0 0
    %2426 = vperm.xlu0 %2425, %v2388
    %v2427 = vpop.permute.xlu0 %2426
    %v2429 = vsel %vm2373, %v2392, 0.0
    %v2430 = vsel %vm2374, %v2397, 0.0
    %v2431 = vsel %vm2375, %v2402, 0.0
    %v2432 = vsel %vm2376, %v2407, 0.0
    %v2433 = vsel %vm2377, %v2412, 0.0
    %v2434 = vsel %vm2378, %v2417, 0.0
    %v2435 = vsel %vm2379, %v2422, 0.0
    %v2436 = vsel %vm2380, %v2427, 0.0
    %v2437 = vadd.f32 %v2333, %v2429
    %v2438 = vadd.f32 %v2334, %v2430
    %v2439 = vadd.f32 %v2335, %v2431
    %v2440 = vadd.f32 %v2336, %v2432
    %v2441 = vadd.f32 %v2337, %v2433
    %v2442 = vadd.f32 %v2338, %v2434
    %v2443 = vadd.f32 %v2339, %v2435
    %v2444 = vadd.f32 %v2340, %v2436
    %2446 = vrot.lane.b32.xlu0 %v799, 127
    %v2447 = vpop.permute.xlu0 %2446
    %2448 = vrot.lane.b32.xlu0 %v800, 127
    %v2449 = vpop.permute.xlu0 %2448
    %v2450 = vsel %vm751, %v2447, %v2449
    %2452 = vrot.lane.b32.xlu0 %v37, 126
    %v2453 = vpop.permute.xlu0 %2452
    %2454 = vrot.lane.b32.xlu0 0.0, 126
    %v2455 = vpop.permute.xlu0 %2454
    %v2456 = vsel %vm760, %v2453, %v2455
    %2458 = vrot.lane.b32.xlu0 %v745, 125
    %v2459 = vpop.permute.xlu0 %2458
    %2460 = vrot.lane.b32.xlu0 %v746, 125
    %v2461 = vpop.permute.xlu0 %2460
    %v2462 = vsel %vm769, %v2459, %v2461
    %2464 = vrot.lane.b32.xlu0 %v754, 124
    %v2465 = vpop.permute.xlu0 %2464
    %2466 = vrot.lane.b32.xlu0 %v755, 124
    %v2467 = vpop.permute.xlu0 %2466
    %v2468 = vsel %vm778, %v2465, %v2467
    %2470 = vrot.lane.b32.xlu0 %v763, 123
    %v2471 = vpop.permute.xlu0 %2470
    %2472 = vrot.lane.b32.xlu0 %v764, 123
    %v2473 = vpop.permute.xlu0 %2472
    %v2474 = vsel %vm787, %v2471, %v2473
    %2476 = vrot.lane.b32.xlu0 %v772, 122
    %v2477 = vpop.permute.xlu0 %2476
    %2478 = vrot.lane.b32.xlu0 %v773, 122
    %v2479 = vpop.permute.xlu0 %2478
    %v2480 = vsel %vm796, %v2477, %v2479
    %2482 = vrot.lane.b32.xlu0 %v781, 121
    %v2483 = vpop.permute.xlu0 %2482
    %2484 = vrot.lane.b32.xlu0 %v782, 121
    %v2485 = vpop.permute.xlu0 %2484
    %v2486 = vsel %vm805, %v2483, %v2485
    %2488 = vrot.lane.b32.xlu0 %v790, 120
    %v2489 = vpop.permute.xlu0 %2488
    %2490 = vrot.lane.b32.xlu0 %v791, 120
    %v2491 = vpop.permute.xlu0 %2490
    %v2492 = vsel %vm812, %v2489, %v2491
    %2494 = vrot.lane.b32.xlu0 %v799, 119
    %v2495 = vpop.permute.xlu0 %2494
    %2496 = vrot.lane.b32.xlu0 %v800, 119
    %v2497 = vpop.permute.xlu0 %2496
    %v2498 = vsel %vm819, %v2495, %v2497
    %2500 = vrot.lane.b32.xlu0 %v37, 118
    %v2501 = vpop.permute.xlu0 %2500
    %2502 = vrot.lane.b32.xlu0 0.0, 118
    %v2503 = vpop.permute.xlu0 %2502
    %v2504 = vsel %vm826, %v2501, %v2503
    %2506 = vrot.lane.b32.xlu0 %v745, 117
    %v2507 = vpop.permute.xlu0 %2506
    %2508 = vrot.lane.b32.xlu0 %v746, 117
    %v2509 = vpop.permute.xlu0 %2508
    %v2510 = vsel %vm833, %v2507, %v2509
    %2512 = vrot.lane.b32.xlu0 %v754, 116
    %v2513 = vpop.permute.xlu0 %2512
    %2514 = vrot.lane.b32.xlu0 %v755, 116
    %v2515 = vpop.permute.xlu0 %2514
    %v2516 = vsel %vm840, %v2513, %v2515
    %2518 = vrot.lane.b32.xlu0 %v763, 115
    %v2519 = vpop.permute.xlu0 %2518
    %2520 = vrot.lane.b32.xlu0 %v764, 115
    %v2521 = vpop.permute.xlu0 %2520
    %v2522 = vsel %vm847, %v2519, %v2521
    %2524 = vrot.lane.b32.xlu0 %v772, 114
    %v2525 = vpop.permute.xlu0 %2524
    %2526 = vrot.lane.b32.xlu0 %v773, 114
    %v2527 = vpop.permute.xlu0 %2526
    %v2528 = vsel %vm854, %v2525, %v2527
    %2530 = vrot.lane.b32.xlu0 %v781, 113
    %v2531 = vpop.permute.xlu0 %2530
    %2532 = vrot.lane.b32.xlu0 %v782, 113
    %v2533 = vpop.permute.xlu0 %2532
    %v2534 = vsel %vm861, %v2531, %v2533
    %v2536 = vsel %vm864, %v790, %v2450
    %v2537 = vsel %vm866, %v2536, %v2456
    %v2538 = vsel %vm868, %v2537, %v2462
    %v2539 = vsel %vm870, %v2538, %v2468
    %v2540 = vsel %vm872, %v2539, %v2474
    %v2541 = vsel %vm874, %v2540, %v2480
    %v2542 = vsel %vm876, %v2541, %v2486
    %v2543 = vsel %vm864, %v2492, %v2498
    %v2544 = vsel %vm866, %v2543, %v2504
    %v2545 = vsel %vm868, %v2544, %v2510
    %v2546 = vsel %vm870, %v2545, %v2516
    %v2547 = vsel %vm872, %v2546, %v2522
    %v2548 = vsel %vm874, %v2547, %v2528
    %v2549 = vsel %vm876, %v2548, %v2534
    %v2566 = vsel %vm864, %v791, %v2449
    %v2567 = vsel %vm866, %v2566, %v2455
    %v2568 = vsel %vm868, %v2567, %v2461
    %v2569 = vsel %vm870, %v2568, %v2467
    %v2570 = vsel %vm872, %v2569, %v2473
    %v2571 = vsel %vm874, %v2570, %v2479
    %v2572 = vsel %vm876, %v2571, %v2485
    %v2573 = vsel %vm864, %v2491, %v2497
    %v2574 = vsel %vm866, %v2573, %v2503
    %v2575 = vsel %vm868, %v2574, %v2509
    %v2576 = vsel %vm870, %v2575, %v2515
    %v2577 = vsel %vm872, %v2576, %v2521
    %v2578 = vsel %vm874, %v2577, %v2527
    %v2579 = vsel %vm876, %v2578, %v2533
    %2584 = vrot.lane.b32.xlu0 %v2542, 112
    %v2585 = vpop.permute.xlu0 %2584
    %2586 = vrot.lane.b32.xlu0 %v2572, 112
    %v2587 = vpop.permute.xlu0 %2586
    %2588 = vrot.lane.b32.xlu0 %v2549, 112
    %v2589 = vpop.permute.xlu0 %2588
    %2590 = vrot.lane.b32.xlu0 %v2579, 112
    %v2591 = vpop.permute.xlu0 %2590
    %v2592 = vsel %vm926, %v2585, %v2587
    %v2593 = vsel %vm926, %v2589, %v2591
    %2596 = vmatprep.subr.mxu0 0.0
    %2597 = vmatpush1.xpose.msra.mxu0 0.0
    %2598 = vmatprep.subr.mxu0 0.0
    %2599 = vmatpush1.xpose.msra.mxu0 0.0
    %2600 = vmatprep.subr.mxu0 0.0
    %2601 = vmatpush1.xpose.msra.mxu0 0.0
    %2602 = vmatprep.subr.mxu0 0.0
    %2603 = vmatpush1.xpose.msra.mxu0 0.0
    %2604 = vmatprep.subr.mxu0 0.0
    %2605 = vmatpush1.xpose.msra.mxu0 0.0
    %2606 = vmatprep.subr.mxu0 0.0
    %2607 = vmatpush1.xpose.msra.mxu0 0.0
    %2608 = vmatprep.subr.mxu0 0.0
    %2609 = vmatpush1.xpose.msra.mxu0 0.0
    %2610 = vmatprep.subr.mxu0 0.0
    %2611 = vmatpush1.xpose.msra.mxu0 0.0
    %2612 = vmatprep.subr.mxu0 0.0
    %2613 = vmatpush1.xpose.msra.mxu0 %v2444
    %2614 = vmatprep.subr.mxu0 0.0
    %2615 = vmatpush1.xpose.msra.mxu0 %v2443
    %2616 = vmatprep.subr.mxu0 0.0
    %2617 = vmatpush1.xpose.msra.mxu0 %v2442
    %2618 = vmatprep.subr.mxu0 0.0
    %2619 = vmatpush1.xpose.msra.mxu0 %v2441
    %2620 = vmatprep.subr.mxu0 0.0
    %2621 = vmatpush1.xpose.msra.mxu0 %v2440
    %2622 = vmatprep.subr.mxu0 0.0
    %2623 = vmatpush1.xpose.msra.mxu0 %v2439
    %2624 = vmatprep.subr.mxu0 0.0
    %2625 = vmatpush1.xpose.msra.mxu0 %v2438
    %2626 = vmatprep.subr.mxu0 0.0
    %2627 = vmatpush1.xpose.msra.mxu0 %v2437
    %2628 = vmatprep.subr.mxu0 0.0
    %2629 = vmatpush2.xpose.msra.mxu0 0.0
    %2630 = vmatprep.subr.mxu0 0.0
    %2631 = vmatpush2.xpose.msra.mxu0 0.0
    %2632 = vmatprep.subr.mxu0 0.0
    %2633 = vmatpush2.xpose.msra.mxu0 0.0
    %2634 = vmatprep.subr.mxu0 0.0
    %2635 = vmatpush2.xpose.msra.mxu0 0.0
    %2636 = vmatprep.subr.mxu0 0.0
    %2637 = vmatpush2.xpose.msra.mxu0 0.0
    %2638 = vmatprep.subr.mxu0 0.0
    %2639 = vmatpush2.xpose.msra.mxu0 0.0
    %2640 = vmatprep.subr.mxu0 0.0
    %2641 = vmatpush2.xpose.msra.mxu0 0.0
    %2642 = vmatprep.subr.mxu0 0.0
    %2643 = vmatpush2.xpose.msra.mxu0 0.0
    %2644 = vmatprep.subr.mxu0 0.0
    %2645 = vmatpush2.xpose.msra.mxu0 0.0
    %2646 = vmatprep.subr.mxu0 0.0
    %2647 = vmatpush2.xpose.msra.mxu0 0.0
    %2648 = vmatprep.subr.mxu0 0.0
    %2649 = vmatpush2.xpose.msra.mxu0 0.0
    %2650 = vmatprep.subr.mxu0 0.0
    %2651 = vmatpush2.xpose.msra.mxu0 0.0
    %2652 = vmatprep.subr.mxu0 0.0
    %2653 = vmatpush2.xpose.msra.mxu0 0.0
    %2654 = vmatprep.subr.mxu0 0.0
    %2655 = vmatpush2.xpose.msra.mxu0 0.0
    %2656 = vmatprep.subr.mxu0 0.0
    %2657 = vmatpush2.xpose.msra.mxu0 0.0
    %2658 = vmatprep.subr.mxu0 0.0
    %2659 = vmatpush2.xpose.msra.mxu0 0.0
    %2660 = vmatprep.mubr.f32.mxu0 0.0
    %2661 = vmatmul.mubr.f32.gmra.mxu0 %v2542
    %v2662 = vpop.f32.mrf.mxu0
    %v2663 = vadd.f32 0.0, %v2662
    %v2664 = vpop.f32.mrf.mxu0
    %2665 = vmatprep.mubr.f32.mxu0 0.0
    %2666 = vmatmul.mubr.f32.gmra.mxu0 %v2549
    %v2667 = vpop.f32.mrf.mxu0
    %v2668 = vadd.f32 0.0, %v2667
    %v2669 = vpop.f32.mrf.mxu0
    %2670 = vmatprep.mubr.f32.mxu0 0.0
    %2671 = vmatmul.mubr.f32.gmra.mxu0 %v2592
    %v2672 = vpop.f32.mrf.mxu0
    %v2673 = vadd.f32 0.0, %v2672
    %v2674 = vpop.f32.mrf.mxu0
    %2675 = vmatprep.mubr.f32.mxu0 0.0
    %2676 = vmatmul.mubr.f32.gmra.mxu0 %v2593
    %v2677 = vpop.f32.mrf.mxu0
    %v2678 = vadd.f32 0.0, %v2677
    %v2679 = vpop.f32.mrf.mxu0
    %2680 = vdwg.mxu0
    %2681 = vxpose.xlu0.b32.start [1/16] %v55, 128
    %2682 = vxpose.xlu0.b32.cont [2/16] %v56, 128
    %2683 = vxpose.xlu0.b32.cont [3/16] %v57, 128
    %2684 = vxpose.xlu0.b32.cont [4/16] %v58, 128
    %2685 = vxpose.xlu0.b32.cont [5/16] 0.0, 128
    %2686 = vxpose.xlu0.b32.cont [6/16] 0.0, 128
    %2687 = vxpose.xlu0.b32.cont [7/16] 0.0, 128
    %2688 = vxpose.xlu0.b32.cont [8/16] 0.0, 128
    %2689 = vxpose.xlu0.b32.cont [9/16] 0.0, 128
    %2690 = vxpose.xlu0.b32.cont [10/16] 0.0, 128
    %2691 = vxpose.xlu0.b32.cont [11/16] 0.0, 128
    %2692 = vxpose.xlu0.b32.cont [12/16] 0.0, 128
    %2693 = vxpose.xlu0.b32.cont [13/16] 0.0, 128
    %2694 = vxpose.xlu0.b32.cont [14/16] 0.0, 128
    %2695 = vxpose.xlu0.b32.cont [15/16] 0.0, 128
    %2696 = vxpose.xlu0.b32.end [16/16] 0.0, 128
    %v2697 = vpop.trf.xlu0
    %v2698 = vpop.trf.xlu0
    %v2699 = vpop.trf.xlu0
    %v2700 = vpop.trf.xlu0
    %v2701 = vpop.trf.xlu0
    %v2702 = vpop.trf.xlu0
    %v2703 = vpop.trf.xlu0
    %v2704 = vpop.trf.xlu0
    %v2705 = vpop.trf.xlu0
    %v2706 = vpop.trf.xlu0
    %v2707 = vpop.trf.xlu0
    %v2708 = vpop.trf.xlu0
    %v2709 = vpop.trf.xlu0
    %v2710 = vpop.trf.xlu0
    %v2711 = vpop.trf.xlu0
    %v2712 = vpop.trf.xlu0
    %v2714 = vsel %vm1751, %v2697, 0
    %v2717 = vsel %vm1751, %v2698, 0
    %v2720 = vsel %vm1751, %v2699, 0
    %v2723 = vsel %vm1751, %v2700, 0
    %2725 = vmatprep.subr.mxu0 0.0
    %2726 = vmatpush1.msra.mxu0 0.0
    %2727 = vmatprep.subr.mxu0 0.0
    %2728 = vmatpush1.msra.mxu0 0.0
    %2729 = vmatprep.subr.mxu0 0.0
    %2730 = vmatpush1.msra.mxu0 0.0
    %2731 = vmatprep.subr.mxu0 0.0
    %2732 = vmatpush1.msra.mxu0 0.0
    %2733 = vmatprep.subr.mxu0 0.0
    %2734 = vmatpush1.msra.mxu0 0.0
    %2735 = vmatprep.subr.mxu0 0.0
    %2736 = vmatpush1.msra.mxu0 0.0
    %2737 = vmatprep.subr.mxu0 0.0
    %2738 = vmatpush1.msra.mxu0 0.0
    %2739 = vmatprep.subr.mxu0 0.0
    %2740 = vmatpush1.msra.mxu0 0.0
    %2741 = vmatprep.subr.mxu0 0.0
    %2742 = vmatpush1.msra.mxu0 0.0
    %2743 = vmatprep.subr.mxu0 0.0
    %2744 = vmatpush1.msra.mxu0 0.0
    %2745 = vmatprep.subr.mxu0 0.0
    %2746 = vmatpush1.msra.mxu0 0.0
    %2747 = vmatprep.subr.mxu0 0.0
    %2748 = vmatpush1.msra.mxu0 0.0
    %2749 = vmatprep.subr.mxu0 0.0
    %2750 = vmatpush1.msra.mxu0 %v2678
    %2751 = vmatprep.subr.mxu0 0.0
    %2752 = vmatpush1.msra.mxu0 %v2673
    %2753 = vmatprep.subr.mxu0 0.0
    %2754 = vmatpush1.msra.mxu0 %v2668
    %2755 = vmatprep.subr.mxu0 0.0
    %2756 = vmatpush1.msra.mxu0 %v2663
    %2757 = vmatprep.subr.mxu0 0.0
    %2758 = vmatpush2.msra.mxu0 0.0
    %2759 = vmatprep.subr.mxu0 0.0
    %2760 = vmatpush2.msra.mxu0 0.0
    %2761 = vmatprep.subr.mxu0 0.0
    %2762 = vmatpush2.msra.mxu0 0.0
    %2763 = vmatprep.subr.mxu0 0.0
    %2764 = vmatpush2.msra.mxu0 0.0
    %2765 = vmatprep.subr.mxu0 0.0
    %2766 = vmatpush2.msra.mxu0 0.0
    %2767 = vmatprep.subr.mxu0 0.0
    %2768 = vmatpush2.msra.mxu0 0.0
    %2769 = vmatprep.subr.mxu0 0.0
    %2770 = vmatpush2.msra.mxu0 0.0
    %2771 = vmatprep.subr.mxu0 0.0
    %2772 = vmatpush2.msra.mxu0 0.0
    %2773 = vmatprep.subr.mxu0 0.0
    %2774 = vmatpush2.msra.mxu0 0.0
    %2775 = vmatprep.subr.mxu0 0.0
    %2776 = vmatpush2.msra.mxu0 0.0
    %2777 = vmatprep.subr.mxu0 0.0
    %2778 = vmatpush2.msra.mxu0 0.0
    %2779 = vmatprep.subr.mxu0 0.0
    %2780 = vmatpush2.msra.mxu0 0.0
    %2781 = vmatprep.subr.mxu0 0.0
    %2782 = vmatpush2.msra.mxu0 0.0
    %2783 = vmatprep.subr.mxu0 0.0
    %2784 = vmatpush2.msra.mxu0 0.0
    %2785 = vmatprep.subr.mxu0 0.0
    %2786 = vmatpush2.msra.mxu0 0.0
    %2787 = vmatprep.subr.mxu0 0.0
    %2788 = vmatpush2.msra.mxu0 0.0
    %2789 = vmatprep.mubr.f32.mxu0 0.0
    %2790 = vmatmul.mubr.f32.gmra.mxu0 %v2714
    %v2791 = vpop.f32.mrf.mxu0
    %v2792 = vadd.f32 0.0, %v2791
    %v2793 = vpop.f32.mrf.mxu0
    %2794 = vmatprep.mubr.f32.mxu0 0.0
    %2795 = vmatmul.mubr.f32.gmra.mxu0 %v2717
    %v2796 = vpop.f32.mrf.mxu0
    %v2797 = vadd.f32 0.0, %v2796
    %v2798 = vpop.f32.mrf.mxu0
    %2799 = vmatprep.mubr.f32.mxu0 0.0
    %2800 = vmatmul.mubr.f32.gmra.mxu0 %v2720
    %v2801 = vpop.f32.mrf.mxu0
    %v2802 = vadd.f32 0.0, %v2801
    %v2803 = vpop.f32.mrf.mxu0
    %2804 = vmatprep.mubr.f32.mxu0 0.0
    %2805 = vmatmul.mubr.f32.gmra.mxu0 %v2723
    %v2806 = vpop.f32.mrf.mxu0
    %v2807 = vadd.f32 0.0, %v2806
    %v2808 = vpop.f32.mrf.mxu0
    %2809 = vdwg.mxu0
    %v2810 = vadd.f32 %v1960, %v2792
    %v2811 = vadd.f32 %v1965, %v2797
    %v2812 = vadd.f32 %v1970, %v2802
    %v2813 = vadd.f32 %v1975, %v2807
    %v2814 = vstv %s75
    %v2815 = vsub.f32 %v81, %v2814
    %v2816 = vsub.f32 %v82, %v2814
    %v2817 = vsub.f32 %v83, %v2814
    %v2818 = vsub.f32 %v84, %v2814
    %v2819 = vsub.f32 %v85, %v2814
    %v2820 = vsub.f32 %v86, %v2814
    %v2821 = vsub.f32 %v87, %v2814
    %v2822 = vsub.f32 %v88, %v2814
    %v2823 = vmul.f32 %v2815, %v2815
    %v2824 = vmul.f32 %v2816, %v2816
    %v2825 = vmul.f32 %v2817, %v2817
    %v2826 = vmul.f32 %v2818, %v2818
    %v2827 = vmul.f32 %v2819, %v2819
    %v2828 = vmul.f32 %v2820, %v2820
    %v2829 = vmul.f32 %v2821, %v2821
    %v2830 = vmul.f32 %v2822, %v2822
    %v2831 = vstv %s76
    %v2832 = vsub.f32 %v81, %v2831
    %v2833 = vsub.f32 %v82, %v2831
    %v2834 = vsub.f32 %v83, %v2831
    %v2835 = vsub.f32 %v84, %v2831
    %v2836 = vsub.f32 %v85, %v2831
    %v2837 = vsub.f32 %v86, %v2831
    %v2838 = vsub.f32 %v87, %v2831
    %v2839 = vsub.f32 %v88, %v2831
    %v2840 = vmul.f32 %v2832, %v2832
    %v2841 = vmul.f32 %v2833, %v2833
    %v2842 = vmul.f32 %v2834, %v2834
    %v2843 = vmul.f32 %v2835, %v2835
    %v2844 = vmul.f32 %v2836, %v2836
    %v2845 = vmul.f32 %v2837, %v2837
    %v2846 = vmul.f32 %v2838, %v2838
    %v2847 = vmul.f32 %v2839, %v2839
    %2856 = vrot.lane.b32.xlu0 %v2840, 127
    %v2857 = vpop.permute.xlu0 %2856
    %2858 = vrot.lane.b32.xlu0 %v2841, 127
    %v2859 = vpop.permute.xlu0 %2858
    %2860 = vrot.lane.b32.xlu0 %v2842, 127
    %v2861 = vpop.permute.xlu0 %2860
    %2862 = vrot.lane.b32.xlu0 %v2843, 127
    %v2863 = vpop.permute.xlu0 %2862
    %2864 = vrot.lane.b32.xlu0 %v2844, 127
    %v2865 = vpop.permute.xlu0 %2864
    %2866 = vrot.lane.b32.xlu0 %v2845, 127
    %v2867 = vpop.permute.xlu0 %2866
    %2868 = vrot.lane.b32.xlu0 %v2846, 127
    %v2869 = vpop.permute.xlu0 %2868
    %2870 = vrot.lane.b32.xlu0 %v2847, 127
    %v2871 = vpop.permute.xlu0 %2870
    %v2880 = vadd.f32 %v2823, %v2857
    %v2881 = vadd.f32 %v2824, %v2859
    %v2882 = vadd.f32 %v2825, %v2861
    %v2883 = vadd.f32 %v2826, %v2863
    %v2884 = vadd.f32 %v2827, %v2865
    %v2885 = vadd.f32 %v2828, %v2867
    %v2886 = vadd.f32 %v2829, %v2869
    %v2887 = vadd.f32 %v2830, %v2871
    %v2888 = vstv %s77
    %v2889 = vsub.f32 %v81, %v2888
    %v2890 = vsub.f32 %v82, %v2888
    %v2891 = vsub.f32 %v83, %v2888
    %v2892 = vsub.f32 %v84, %v2888
    %v2893 = vsub.f32 %v85, %v2888
    %v2894 = vsub.f32 %v86, %v2888
    %v2895 = vsub.f32 %v87, %v2888
    %v2896 = vsub.f32 %v88, %v2888
    %v2897 = vmul.f32 %v2889, %v2889
    %v2898 = vmul.f32 %v2890, %v2890
    %v2899 = vmul.f32 %v2891, %v2891
    %v2900 = vmul.f32 %v2892, %v2892
    %v2901 = vmul.f32 %v2893, %v2893
    %v2902 = vmul.f32 %v2894, %v2894
    %v2903 = vmul.f32 %v2895, %v2895
    %v2904 = vmul.f32 %v2896, %v2896
    %2913 = vrot.lane.b32.xlu0 %v2897, 126
    %v2914 = vpop.permute.xlu0 %2913
    %2915 = vrot.lane.b32.xlu0 %v2898, 126
    %v2916 = vpop.permute.xlu0 %2915
    %2917 = vrot.lane.b32.xlu0 %v2899, 126
    %v2918 = vpop.permute.xlu0 %2917
    %2919 = vrot.lane.b32.xlu0 %v2900, 126
    %v2920 = vpop.permute.xlu0 %2919
    %2921 = vrot.lane.b32.xlu0 %v2901, 126
    %v2922 = vpop.permute.xlu0 %2921
    %2923 = vrot.lane.b32.xlu0 %v2902, 126
    %v2924 = vpop.permute.xlu0 %2923
    %2925 = vrot.lane.b32.xlu0 %v2903, 126
    %v2926 = vpop.permute.xlu0 %2925
    %2927 = vrot.lane.b32.xlu0 %v2904, 126
    %v2928 = vpop.permute.xlu0 %2927
    %v2937 = vadd.f32 %v2880, %v2914
    %v2938 = vadd.f32 %v2881, %v2916
    %v2939 = vadd.f32 %v2882, %v2918
    %v2940 = vadd.f32 %v2883, %v2920
    %v2941 = vadd.f32 %v2884, %v2922
    %v2942 = vadd.f32 %v2885, %v2924
    %v2943 = vadd.f32 %v2886, %v2926
    %v2944 = vadd.f32 %v2887, %v2928
    %v2945 = vrsqrt.pop %v2937
    %v2946 = vmul.f32 %v2937, %v2945
    %vm2947 = vcmp.eq.f32.partialorder %v2937, inf
    %v2948 = vsel %vm2947, %v2937, %v2946
    %vm2949 = vcmp.eq.f32.partialorder %v2937, 0.0
    %v2950 = vand.u32 %v2937, 2147483648
    %v2951 = vsel %vm2949, %v2950, %v2948
    %v2952 = vrsqrt.pop %v2938
    %v2953 = vmul.f32 %v2938, %v2952
    %vm2954 = vcmp.eq.f32.partialorder %v2938, inf
    %v2955 = vsel %vm2954, %v2938, %v2953
    %vm2956 = vcmp.eq.f32.partialorder %v2938, 0.0
    %v2957 = vand.u32 %v2938, 2147483648
    %v2958 = vsel %vm2956, %v2957, %v2955
    %v2959 = vrsqrt.pop %v2939
    %v2960 = vmul.f32 %v2939, %v2959
    %vm2961 = vcmp.eq.f32.partialorder %v2939, inf
    %v2962 = vsel %vm2961, %v2939, %v2960
    %vm2963 = vcmp.eq.f32.partialorder %v2939, 0.0
    %v2964 = vand.u32 %v2939, 2147483648
    %v2965 = vsel %vm2963, %v2964, %v2962
    %v2966 = vrsqrt.pop %v2940
    %v2967 = vmul.f32 %v2940, %v2966
    %vm2968 = vcmp.eq.f32.partialorder %v2940, inf
    %v2969 = vsel %vm2968, %v2940, %v2967
    %vm2970 = vcmp.eq.f32.partialorder %v2940, 0.0
    %v2971 = vand.u32 %v2940, 2147483648
    %v2972 = vsel %vm2970, %v2971, %v2969
    %v2973 = vrsqrt.pop %v2941
    %v2974 = vmul.f32 %v2941, %v2973
    %vm2975 = vcmp.eq.f32.partialorder %v2941, inf
    %v2976 = vsel %vm2975, %v2941, %v2974
    %vm2977 = vcmp.eq.f32.partialorder %v2941, 0.0
    %v2978 = vand.u32 %v2941, 2147483648
    %v2979 = vsel %vm2977, %v2978, %v2976
    %v2980 = vrsqrt.pop %v2942
    %v2981 = vmul.f32 %v2942, %v2980
    %vm2982 = vcmp.eq.f32.partialorder %v2942, inf
    %v2983 = vsel %vm2982, %v2942, %v2981
    %vm2984 = vcmp.eq.f32.partialorder %v2942, 0.0
    %v2985 = vand.u32 %v2942, 2147483648
    %v2986 = vsel %vm2984, %v2985, %v2983
    %v2987 = vrsqrt.pop %v2943
    %v2988 = vmul.f32 %v2943, %v2987
    %vm2989 = vcmp.eq.f32.partialorder %v2943, inf
    %v2990 = vsel %vm2989, %v2943, %v2988
    %vm2991 = vcmp.eq.f32.partialorder %v2943, 0.0
    %v2992 = vand.u32 %v2943, 2147483648
    %v2993 = vsel %vm2991, %v2992, %v2990
    %v2994 = vrsqrt.pop %v2944
    %v2995 = vmul.f32 %v2944, %v2994
    %vm2996 = vcmp.eq.f32.partialorder %v2944, inf
    %v2997 = vsel %vm2996, %v2944, %v2995
    %vm2998 = vcmp.eq.f32.partialorder %v2944, 0.0
    %v2999 = vand.u32 %v2944, 2147483648
    %v3000 = vsel %vm2998, %v2999, %v2997
    %v3001 = vadd.f32 %v226, %v2951
    %v3002 = vadd.f32 %v233, %v2958
    %v3003 = vadd.f32 %v240, %v2965
    %v3004 = vadd.f32 %v247, %v2972
    %v3005 = vadd.f32 %v254, %v2979
    %v3006 = vadd.f32 %v261, %v2986
    %v3007 = vadd.f32 %v268, %v2993
    %v3008 = vadd.f32 %v275, %v3000
    %v3009 = vmul.f32 %v3001, 34.985424
    %v3010 = vmul.f32 %v3002, 34.985424
    %v3011 = vmul.f32 %v3003, 34.985424
    %v3012 = vmul.f32 %v3004, 34.985424
    %v3013 = vmul.f32 %v3005, 34.985424
    %v3014 = vmul.f32 %v3006, 34.985424
    %v3015 = vmul.f32 %v3007, 34.985424
    %v3016 = vmul.f32 %v3008, 34.985424
    %v3017 = vmul.f32 %v226, %v2951
    %v3018 = vmul.f32 %v233, %v2958
    %v3019 = vmul.f32 %v240, %v2965
    %v3020 = vmul.f32 %v247, %v2972
    %v3021 = vmul.f32 %v254, %v2979
    %v3022 = vmul.f32 %v261, %v2986
    %v3023 = vmul.f32 %v268, %v2993
    %v3024 = vmul.f32 %v275, %v3000
    %v3025 = vfloor.f32 %v3009
    %v3026 = vfloor.f32 %v3010
    %v3027 = vfloor.f32 %v3011
    %v3028 = vfloor.f32 %v3012
    %v3029 = vfloor.f32 %v3013
    %v3030 = vfloor.f32 %v3014
    %v3031 = vfloor.f32 %v3015
    %v3032 = vfloor.f32 %v3016
    %v3033 = vmax.f32 %v3025, 0.0
    %v3034 = vmax.f32 %v3026, 0.0
    %v3035 = vmax.f32 %v3027, 0.0
    %v3036 = vmax.f32 %v3028, 0.0
    %v3037 = vmax.f32 %v3029, 0.0
    %v3038 = vmax.f32 %v3030, 0.0
    %v3039 = vmax.f32 %v3031, 0.0
    %v3040 = vmax.f32 %v3032, 0.0
    %v3041 = vmin.f32 %v3033, 95.0
    %v3042 = vmin.f32 %v3034, 95.0
    %v3043 = vmin.f32 %v3035, 95.0
    %v3044 = vmin.f32 %v3036, 95.0
    %v3045 = vmin.f32 %v3037, 95.0
    %v3046 = vmin.f32 %v3038, 95.0
    %v3047 = vmin.f32 %v3039, 95.0
    %v3048 = vmin.f32 %v3040, 95.0
    %v3049 = vsub.f32 %v3009, %v3041
    %v3050 = vsub.f32 %v3010, %v3042
    %v3051 = vsub.f32 %v3011, %v3043
    %v3052 = vsub.f32 %v3012, %v3044
    %v3053 = vsub.f32 %v3013, %v3045
    %v3054 = vsub.f32 %v3014, %v3046
    %v3055 = vsub.f32 %v3015, %v3047
    %v3056 = vsub.f32 %v3016, %v3048
    %v3057 = vmax.f32 %v3049, 0.0
    %v3058 = vmax.f32 %v3050, 0.0
    %v3059 = vmax.f32 %v3051, 0.0
    %v3060 = vmax.f32 %v3052, 0.0
    %v3061 = vmax.f32 %v3053, 0.0
    %v3062 = vmax.f32 %v3054, 0.0
    %v3063 = vmax.f32 %v3055, 0.0
    %v3064 = vmax.f32 %v3056, 0.0
    %v3065 = vmin.f32 %v3057, 1.0
    %v3066 = vmin.f32 %v3058, 1.0
    %v3067 = vmin.f32 %v3059, 1.0
    %v3068 = vmin.f32 %v3060, 1.0
    %v3069 = vmin.f32 %v3061, 1.0
    %v3070 = vmin.f32 %v3062, 1.0
    %v3071 = vmin.f32 %v3063, 1.0
    %v3072 = vmin.f32 %v3064, 1.0
    %v3073 = vcvt.f32.s32.to.zero.pseudo %v3041
    %v3074 = vcvt.f32.s32.to.zero.pseudo %v3042
    %v3075 = vcvt.f32.s32.to.zero.pseudo %v3043
    %v3076 = vcvt.f32.s32.to.zero.pseudo %v3044
    %v3077 = vcvt.f32.s32.to.zero.pseudo %v3045
    %v3078 = vcvt.f32.s32.to.zero.pseudo %v3046
    %v3079 = vcvt.f32.s32.to.zero.pseudo %v3047
    %v3080 = vcvt.f32.s32.to.zero.pseudo %v3048
    %3081 = vset.pattern.permute.xlu0 0
    %3082 = vperm.xlu0 %3081, %v3073
    %v3083 = vpop.permute.xlu0 %3082
    %3084 = vset.pattern.permute.xlu0 0
    %3085 = vperm.xlu0 %3084, %v3074
    %v3086 = vpop.permute.xlu0 %3085
    %3087 = vset.pattern.permute.xlu0 0
    %3088 = vperm.xlu0 %3087, %v3075
    %v3089 = vpop.permute.xlu0 %3088
    %3090 = vset.pattern.permute.xlu0 0
    %3091 = vperm.xlu0 %3090, %v3076
    %v3092 = vpop.permute.xlu0 %3091
    %3093 = vset.pattern.permute.xlu0 0
    %3094 = vperm.xlu0 %3093, %v3077
    %v3095 = vpop.permute.xlu0 %3094
    %3096 = vset.pattern.permute.xlu0 0
    %3097 = vperm.xlu0 %3096, %v3078
    %v3098 = vpop.permute.xlu0 %3097
    %3099 = vset.pattern.permute.xlu0 0
    %3100 = vperm.xlu0 %3099, %v3079
    %v3101 = vpop.permute.xlu0 %3100
    %3102 = vset.pattern.permute.xlu0 0
    %3103 = vperm.xlu0 %3102, %v3080
    %v3104 = vpop.permute.xlu0 %3103
    %vm3105 = vcmp.eq.s32.totalorder %v80, %v3083
    %vm3106 = vcmp.eq.s32.totalorder %v80, %v3086
    %vm3107 = vcmp.eq.s32.totalorder %v80, %v3089
    %vm3108 = vcmp.eq.s32.totalorder %v80, %v3092
    %vm3109 = vcmp.eq.s32.totalorder %v80, %v3095
    %vm3110 = vcmp.eq.s32.totalorder %v80, %v3098
    %vm3111 = vcmp.eq.s32.totalorder %v80, %v3101
    %vm3112 = vcmp.eq.s32.totalorder %v80, %v3104
    %v3113 = vsub.f32 1.0, %v3065
    %v3114 = vsub.f32 1.0, %v3066
    %v3115 = vsub.f32 1.0, %v3067
    %v3116 = vsub.f32 1.0, %v3068
    %v3117 = vsub.f32 1.0, %v3069
    %v3118 = vsub.f32 1.0, %v3070
    %v3119 = vsub.f32 1.0, %v3071
    %v3120 = vsub.f32 1.0, %v3072
    %v3121 = vmul.f32 %v3113, %v3017
    %v3122 = vmul.f32 %v3114, %v3018
    %v3123 = vmul.f32 %v3115, %v3019
    %v3124 = vmul.f32 %v3116, %v3020
    %v3125 = vmul.f32 %v3117, %v3021
    %v3126 = vmul.f32 %v3118, %v3022
    %v3127 = vmul.f32 %v3119, %v3023
    %v3128 = vmul.f32 %v3120, %v3024
    %3130 = vset.pattern.permute.xlu0 0
    %3131 = vperm.xlu0 %3130, %v3121
    %v3132 = vpop.permute.xlu0 %3131
    %3135 = vset.pattern.permute.xlu0 0
    %3136 = vperm.xlu0 %3135, %v3122
    %v3137 = vpop.permute.xlu0 %3136
    %3140 = vset.pattern.permute.xlu0 0
    %3141 = vperm.xlu0 %3140, %v3123
    %v3142 = vpop.permute.xlu0 %3141
    %3145 = vset.pattern.permute.xlu0 0
    %3146 = vperm.xlu0 %3145, %v3124
    %v3147 = vpop.permute.xlu0 %3146
    %3150 = vset.pattern.permute.xlu0 0
    %3151 = vperm.xlu0 %3150, %v3125
    %v3152 = vpop.permute.xlu0 %3151
    %3155 = vset.pattern.permute.xlu0 0
    %3156 = vperm.xlu0 %3155, %v3126
    %v3157 = vpop.permute.xlu0 %3156
    %3160 = vset.pattern.permute.xlu0 0
    %3161 = vperm.xlu0 %3160, %v3127
    %v3162 = vpop.permute.xlu0 %3161
    %3165 = vset.pattern.permute.xlu0 0
    %3166 = vperm.xlu0 %3165, %v3128
    %v3167 = vpop.permute.xlu0 %3166
    %v3169 = vsel %vm3105, %v3132, 0.0
    %v3170 = vsel %vm3106, %v3137, 0.0
    %v3171 = vsel %vm3107, %v3142, 0.0
    %v3172 = vsel %vm3108, %v3147, 0.0
    %v3173 = vsel %vm3109, %v3152, 0.0
    %v3174 = vsel %vm3110, %v3157, 0.0
    %v3175 = vsel %vm3111, %v3162, 0.0
    %v3176 = vsel %vm3112, %v3167, 0.0
    %v3177 = vadd.s32 %v3073, 1
    %v3178 = vadd.s32 %v3074, 1
    %v3179 = vadd.s32 %v3075, 1
    %v3180 = vadd.s32 %v3076, 1
    %v3181 = vadd.s32 %v3077, 1
    %v3182 = vadd.s32 %v3078, 1
    %v3183 = vadd.s32 %v3079, 1
    %v3184 = vadd.s32 %v3080, 1
    %3185 = vset.pattern.permute.xlu0 0
    %3186 = vperm.xlu0 %3185, %v3177
    %v3187 = vpop.permute.xlu0 %3186
    %3188 = vset.pattern.permute.xlu0 0
    %3189 = vperm.xlu0 %3188, %v3178
    %v3190 = vpop.permute.xlu0 %3189
    %3191 = vset.pattern.permute.xlu0 0
    %3192 = vperm.xlu0 %3191, %v3179
    %v3193 = vpop.permute.xlu0 %3192
    %3194 = vset.pattern.permute.xlu0 0
    %3195 = vperm.xlu0 %3194, %v3180
    %v3196 = vpop.permute.xlu0 %3195
    %3197 = vset.pattern.permute.xlu0 0
    %3198 = vperm.xlu0 %3197, %v3181
    %v3199 = vpop.permute.xlu0 %3198
    %3200 = vset.pattern.permute.xlu0 0
    %3201 = vperm.xlu0 %3200, %v3182
    %v3202 = vpop.permute.xlu0 %3201
    %3203 = vset.pattern.permute.xlu0 0
    %3204 = vperm.xlu0 %3203, %v3183
    %v3205 = vpop.permute.xlu0 %3204
    %3206 = vset.pattern.permute.xlu0 0
    %3207 = vperm.xlu0 %3206, %v3184
    %v3208 = vpop.permute.xlu0 %3207
    %vm3209 = vcmp.eq.s32.totalorder %v80, %v3187
    %vm3210 = vcmp.eq.s32.totalorder %v80, %v3190
    %vm3211 = vcmp.eq.s32.totalorder %v80, %v3193
    %vm3212 = vcmp.eq.s32.totalorder %v80, %v3196
    %vm3213 = vcmp.eq.s32.totalorder %v80, %v3199
    %vm3214 = vcmp.eq.s32.totalorder %v80, %v3202
    %vm3215 = vcmp.eq.s32.totalorder %v80, %v3205
    %vm3216 = vcmp.eq.s32.totalorder %v80, %v3208
    %v3217 = vmul.f32 %v3065, %v3017
    %v3218 = vmul.f32 %v3066, %v3018
    %v3219 = vmul.f32 %v3067, %v3019
    %v3220 = vmul.f32 %v3068, %v3020
    %v3221 = vmul.f32 %v3069, %v3021
    %v3222 = vmul.f32 %v3070, %v3022
    %v3223 = vmul.f32 %v3071, %v3023
    %v3224 = vmul.f32 %v3072, %v3024
    %3226 = vset.pattern.permute.xlu0 0
    %3227 = vperm.xlu0 %3226, %v3217
    %v3228 = vpop.permute.xlu0 %3227
    %3231 = vset.pattern.permute.xlu0 0
    %3232 = vperm.xlu0 %3231, %v3218
    %v3233 = vpop.permute.xlu0 %3232
    %3236 = vset.pattern.permute.xlu0 0
    %3237 = vperm.xlu0 %3236, %v3219
    %v3238 = vpop.permute.xlu0 %3237
    %3241 = vset.pattern.permute.xlu0 0
    %3242 = vperm.xlu0 %3241, %v3220
    %v3243 = vpop.permute.xlu0 %3242
    %3246 = vset.pattern.permute.xlu0 0
    %3247 = vperm.xlu0 %3246, %v3221
    %v3248 = vpop.permute.xlu0 %3247
    %3251 = vset.pattern.permute.xlu0 0
    %3252 = vperm.xlu0 %3251, %v3222
    %v3253 = vpop.permute.xlu0 %3252
    %3256 = vset.pattern.permute.xlu0 0
    %3257 = vperm.xlu0 %3256, %v3223
    %v3258 = vpop.permute.xlu0 %3257
    %3261 = vset.pattern.permute.xlu0 0
    %3262 = vperm.xlu0 %3261, %v3224
    %v3263 = vpop.permute.xlu0 %3262
    %v3265 = vsel %vm3209, %v3228, 0.0
    %v3266 = vsel %vm3210, %v3233, 0.0
    %v3267 = vsel %vm3211, %v3238, 0.0
    %v3268 = vsel %vm3212, %v3243, 0.0
    %v3269 = vsel %vm3213, %v3248, 0.0
    %v3270 = vsel %vm3214, %v3253, 0.0
    %v3271 = vsel %vm3215, %v3258, 0.0
    %v3272 = vsel %vm3216, %v3263, 0.0
    %v3273 = vadd.f32 %v3169, %v3265
    %v3274 = vadd.f32 %v3170, %v3266
    %v3275 = vadd.f32 %v3171, %v3267
    %v3276 = vadd.f32 %v3172, %v3268
    %v3277 = vadd.f32 %v3173, %v3269
    %v3278 = vadd.f32 %v3174, %v3270
    %v3279 = vadd.f32 %v3175, %v3271
    %v3280 = vadd.f32 %v3176, %v3272
    %3282 = vrot.lane.b32.xlu0 %v790, 127
    %v3283 = vpop.permute.xlu0 %3282
    %3284 = vrot.lane.b32.xlu0 %v791, 127
    %v3285 = vpop.permute.xlu0 %3284
    %v3286 = vsel %vm751, %v3283, %v3285
    %3288 = vrot.lane.b32.xlu0 %v799, 126
    %v3289 = vpop.permute.xlu0 %3288
    %3290 = vrot.lane.b32.xlu0 %v800, 126
    %v3291 = vpop.permute.xlu0 %3290
    %v3292 = vsel %vm760, %v3289, %v3291
    %3294 = vrot.lane.b32.xlu0 %v37, 125
    %v3295 = vpop.permute.xlu0 %3294
    %3296 = vrot.lane.b32.xlu0 0.0, 125
    %v3297 = vpop.permute.xlu0 %3296
    %v3298 = vsel %vm769, %v3295, %v3297
    %3300 = vrot.lane.b32.xlu0 %v745, 124
    %v3301 = vpop.permute.xlu0 %3300
    %3302 = vrot.lane.b32.xlu0 %v746, 124
    %v3303 = vpop.permute.xlu0 %3302
    %v3304 = vsel %vm778, %v3301, %v3303
    %3306 = vrot.lane.b32.xlu0 %v754, 123
    %v3307 = vpop.permute.xlu0 %3306
    %3308 = vrot.lane.b32.xlu0 %v755, 123
    %v3309 = vpop.permute.xlu0 %3308
    %v3310 = vsel %vm787, %v3307, %v3309
    %3312 = vrot.lane.b32.xlu0 %v763, 122
    %v3313 = vpop.permute.xlu0 %3312
    %3314 = vrot.lane.b32.xlu0 %v764, 122
    %v3315 = vpop.permute.xlu0 %3314
    %v3316 = vsel %vm796, %v3313, %v3315
    %3318 = vrot.lane.b32.xlu0 %v772, 121
    %v3319 = vpop.permute.xlu0 %3318
    %3320 = vrot.lane.b32.xlu0 %v773, 121
    %v3321 = vpop.permute.xlu0 %3320
    %v3322 = vsel %vm805, %v3319, %v3321
    %3324 = vrot.lane.b32.xlu0 %v781, 120
    %v3325 = vpop.permute.xlu0 %3324
    %3326 = vrot.lane.b32.xlu0 %v782, 120
    %v3327 = vpop.permute.xlu0 %3326
    %v3328 = vsel %vm812, %v3325, %v3327
    %3330 = vrot.lane.b32.xlu0 %v790, 119
    %v3331 = vpop.permute.xlu0 %3330
    %3332 = vrot.lane.b32.xlu0 %v791, 119
    %v3333 = vpop.permute.xlu0 %3332
    %v3334 = vsel %vm819, %v3331, %v3333
    %3336 = vrot.lane.b32.xlu0 %v799, 118
    %v3337 = vpop.permute.xlu0 %3336
    %3338 = vrot.lane.b32.xlu0 %v800, 118
    %v3339 = vpop.permute.xlu0 %3338
    %v3340 = vsel %vm826, %v3337, %v3339
    %3342 = vrot.lane.b32.xlu0 %v37, 117
    %v3343 = vpop.permute.xlu0 %3342
    %3344 = vrot.lane.b32.xlu0 0.0, 117
    %v3345 = vpop.permute.xlu0 %3344
    %v3346 = vsel %vm833, %v3343, %v3345
    %3348 = vrot.lane.b32.xlu0 %v745, 116
    %v3349 = vpop.permute.xlu0 %3348
    %3350 = vrot.lane.b32.xlu0 %v746, 116
    %v3351 = vpop.permute.xlu0 %3350
    %v3352 = vsel %vm840, %v3349, %v3351
    %3354 = vrot.lane.b32.xlu0 %v754, 115
    %v3355 = vpop.permute.xlu0 %3354
    %3356 = vrot.lane.b32.xlu0 %v755, 115
    %v3357 = vpop.permute.xlu0 %3356
    %v3358 = vsel %vm847, %v3355, %v3357
    %3360 = vrot.lane.b32.xlu0 %v763, 114
    %v3361 = vpop.permute.xlu0 %3360
    %3362 = vrot.lane.b32.xlu0 %v764, 114
    %v3363 = vpop.permute.xlu0 %3362
    %v3364 = vsel %vm854, %v3361, %v3363
    %3366 = vrot.lane.b32.xlu0 %v772, 113
    %v3367 = vpop.permute.xlu0 %3366
    %3368 = vrot.lane.b32.xlu0 %v773, 113
    %v3369 = vpop.permute.xlu0 %3368
    %v3370 = vsel %vm861, %v3367, %v3369
    %v3372 = vsel %vm864, %v781, %v3286
    %v3373 = vsel %vm866, %v3372, %v3292
    %v3374 = vsel %vm868, %v3373, %v3298
    %v3375 = vsel %vm870, %v3374, %v3304
    %v3376 = vsel %vm872, %v3375, %v3310
    %v3377 = vsel %vm874, %v3376, %v3316
    %v3378 = vsel %vm876, %v3377, %v3322
    %v3379 = vsel %vm864, %v3328, %v3334
    %v3380 = vsel %vm866, %v3379, %v3340
    %v3381 = vsel %vm868, %v3380, %v3346
    %v3382 = vsel %vm870, %v3381, %v3352
    %v3383 = vsel %vm872, %v3382, %v3358
    %v3384 = vsel %vm874, %v3383, %v3364
    %v3385 = vsel %vm876, %v3384, %v3370
    %v3402 = vsel %vm864, %v782, %v3285
    %v3403 = vsel %vm866, %v3402, %v3291
    %v3404 = vsel %vm868, %v3403, %v3297
    %v3405 = vsel %vm870, %v3404, %v3303
    %v3406 = vsel %vm872, %v3405, %v3309
    %v3407 = vsel %vm874, %v3406, %v3315
    %v3408 = vsel %vm876, %v3407, %v3321
    %v3409 = vsel %vm864, %v3327, %v3333
    %v3410 = vsel %vm866, %v3409, %v3339
    %v3411 = vsel %vm868, %v3410, %v3345
    %v3412 = vsel %vm870, %v3411, %v3351
    %v3413 = vsel %vm872, %v3412, %v3357
    %v3414 = vsel %vm874, %v3413, %v3363
    %v3415 = vsel %vm876, %v3414, %v3369
    %3420 = vrot.lane.b32.xlu0 %v3378, 112
    %v3421 = vpop.permute.xlu0 %3420
    %3422 = vrot.lane.b32.xlu0 %v3408, 112
    %v3423 = vpop.permute.xlu0 %3422
    %3424 = vrot.lane.b32.xlu0 %v3385, 112
    %v3425 = vpop.permute.xlu0 %3424
    %3426 = vrot.lane.b32.xlu0 %v3415, 112
    %v3427 = vpop.permute.xlu0 %3426
    %v3428 = vsel %vm926, %v3421, %v3423
    %v3429 = vsel %vm926, %v3425, %v3427
    %3432 = vmatprep.subr.mxu0 0.0
    %3433 = vmatpush1.xpose.msra.mxu0 0.0
    %3434 = vmatprep.subr.mxu0 0.0
    %3435 = vmatpush1.xpose.msra.mxu0 0.0
    %3436 = vmatprep.subr.mxu0 0.0
    %3437 = vmatpush1.xpose.msra.mxu0 0.0
    %3438 = vmatprep.subr.mxu0 0.0
    %3439 = vmatpush1.xpose.msra.mxu0 0.0
    %3440 = vmatprep.subr.mxu0 0.0
    %3441 = vmatpush1.xpose.msra.mxu0 0.0
    %3442 = vmatprep.subr.mxu0 0.0
    %3443 = vmatpush1.xpose.msra.mxu0 0.0
    %3444 = vmatprep.subr.mxu0 0.0
    %3445 = vmatpush1.xpose.msra.mxu0 0.0
    %3446 = vmatprep.subr.mxu0 0.0
    %3447 = vmatpush1.xpose.msra.mxu0 0.0
    %3448 = vmatprep.subr.mxu0 0.0
    %3449 = vmatpush1.xpose.msra.mxu0 %v3280
    %3450 = vmatprep.subr.mxu0 0.0
    %3451 = vmatpush1.xpose.msra.mxu0 %v3279
    %3452 = vmatprep.subr.mxu0 0.0
    %3453 = vmatpush1.xpose.msra.mxu0 %v3278
    %3454 = vmatprep.subr.mxu0 0.0
    %3455 = vmatpush1.xpose.msra.mxu0 %v3277
    %3456 = vmatprep.subr.mxu0 0.0
    %3457 = vmatpush1.xpose.msra.mxu0 %v3276
    %3458 = vmatprep.subr.mxu0 0.0
    %3459 = vmatpush1.xpose.msra.mxu0 %v3275
    %3460 = vmatprep.subr.mxu0 0.0
    %3461 = vmatpush1.xpose.msra.mxu0 %v3274
    %3462 = vmatprep.subr.mxu0 0.0
    %3463 = vmatpush1.xpose.msra.mxu0 %v3273
    %3464 = vmatprep.subr.mxu0 0.0
    %3465 = vmatpush2.xpose.msra.mxu0 0.0
    %3466 = vmatprep.subr.mxu0 0.0
    %3467 = vmatpush2.xpose.msra.mxu0 0.0
    %3468 = vmatprep.subr.mxu0 0.0
    %3469 = vmatpush2.xpose.msra.mxu0 0.0
    %3470 = vmatprep.subr.mxu0 0.0
    %3471 = vmatpush2.xpose.msra.mxu0 0.0
    %3472 = vmatprep.subr.mxu0 0.0
    %3473 = vmatpush2.xpose.msra.mxu0 0.0
    %3474 = vmatprep.subr.mxu0 0.0
    %3475 = vmatpush2.xpose.msra.mxu0 0.0
    %3476 = vmatprep.subr.mxu0 0.0
    %3477 = vmatpush2.xpose.msra.mxu0 0.0
    %3478 = vmatprep.subr.mxu0 0.0
    %3479 = vmatpush2.xpose.msra.mxu0 0.0
    %3480 = vmatprep.subr.mxu0 0.0
    %3481 = vmatpush2.xpose.msra.mxu0 0.0
    %3482 = vmatprep.subr.mxu0 0.0
    %3483 = vmatpush2.xpose.msra.mxu0 0.0
    %3484 = vmatprep.subr.mxu0 0.0
    %3485 = vmatpush2.xpose.msra.mxu0 0.0
    %3486 = vmatprep.subr.mxu0 0.0
    %3487 = vmatpush2.xpose.msra.mxu0 0.0
    %3488 = vmatprep.subr.mxu0 0.0
    %3489 = vmatpush2.xpose.msra.mxu0 0.0
    %3490 = vmatprep.subr.mxu0 0.0
    %3491 = vmatpush2.xpose.msra.mxu0 0.0
    %3492 = vmatprep.subr.mxu0 0.0
    %3493 = vmatpush2.xpose.msra.mxu0 0.0
    %3494 = vmatprep.subr.mxu0 0.0
    %3495 = vmatpush2.xpose.msra.mxu0 0.0
    %3496 = vmatprep.mubr.f32.mxu0 0.0
    %3497 = vmatmul.mubr.f32.gmra.mxu0 %v3378
    %v3498 = vpop.f32.mrf.mxu0
    %v3499 = vadd.f32 0.0, %v3498
    %v3500 = vpop.f32.mrf.mxu0
    %3501 = vmatprep.mubr.f32.mxu0 0.0
    %3502 = vmatmul.mubr.f32.gmra.mxu0 %v3385
    %v3503 = vpop.f32.mrf.mxu0
    %v3504 = vadd.f32 0.0, %v3503
    %v3505 = vpop.f32.mrf.mxu0
    %3506 = vmatprep.mubr.f32.mxu0 0.0
    %3507 = vmatmul.mubr.f32.gmra.mxu0 %v3428
    %v3508 = vpop.f32.mrf.mxu0
    %v3509 = vadd.f32 0.0, %v3508
    %v3510 = vpop.f32.mrf.mxu0
    %3511 = vmatprep.mubr.f32.mxu0 0.0
    %3512 = vmatmul.mubr.f32.gmra.mxu0 %v3429
    %v3513 = vpop.f32.mrf.mxu0
    %v3514 = vadd.f32 0.0, %v3513
    %v3515 = vpop.f32.mrf.mxu0
    %3516 = vdwg.mxu0
    %3517 = vxpose.xlu0.b32.start [1/16] %v59, 128
    %3518 = vxpose.xlu0.b32.cont [2/16] %v60, 128
    %3519 = vxpose.xlu0.b32.cont [3/16] %v61, 128
    %3520 = vxpose.xlu0.b32.cont [4/16] %v62, 128
    %3521 = vxpose.xlu0.b32.cont [5/16] 0.0, 128
    %3522 = vxpose.xlu0.b32.cont [6/16] 0.0, 128
    %3523 = vxpose.xlu0.b32.cont [7/16] 0.0, 128
    %3524 = vxpose.xlu0.b32.cont [8/16] 0.0, 128
    %3525 = vxpose.xlu0.b32.cont [9/16] 0.0, 128
    %3526 = vxpose.xlu0.b32.cont [10/16] 0.0, 128
    %3527 = vxpose.xlu0.b32.cont [11/16] 0.0, 128
    %3528 = vxpose.xlu0.b32.cont [12/16] 0.0, 128
    %3529 = vxpose.xlu0.b32.cont [13/16] 0.0, 128
    %3530 = vxpose.xlu0.b32.cont [14/16] 0.0, 128
    %3531 = vxpose.xlu0.b32.cont [15/16] 0.0, 128
    %3532 = vxpose.xlu0.b32.end [16/16] 0.0, 128
    %v3533 = vpop.trf.xlu0
    %v3534 = vpop.trf.xlu0
    %v3535 = vpop.trf.xlu0
    %v3536 = vpop.trf.xlu0
    %v3537 = vpop.trf.xlu0
    %v3538 = vpop.trf.xlu0
    %v3539 = vpop.trf.xlu0
    %v3540 = vpop.trf.xlu0
    %v3541 = vpop.trf.xlu0
    %v3542 = vpop.trf.xlu0
    %v3543 = vpop.trf.xlu0
    %v3544 = vpop.trf.xlu0
    %v3545 = vpop.trf.xlu0
    %v3546 = vpop.trf.xlu0
    %v3547 = vpop.trf.xlu0
    %v3548 = vpop.trf.xlu0
    %v3550 = vsel %vm1751, %v3533, 0
    %v3553 = vsel %vm1751, %v3534, 0
    %v3556 = vsel %vm1751, %v3535, 0
    %v3559 = vsel %vm1751, %v3536, 0
    %3561 = vmatprep.subr.mxu0 0.0
    %3562 = vmatpush1.msra.mxu0 0.0
    %3563 = vmatprep.subr.mxu0 0.0
    %3564 = vmatpush1.msra.mxu0 0.0
    %3565 = vmatprep.subr.mxu0 0.0
    %3566 = vmatpush1.msra.mxu0 0.0
    %3567 = vmatprep.subr.mxu0 0.0
    %3568 = vmatpush1.msra.mxu0 0.0
    %3569 = vmatprep.subr.mxu0 0.0
    %3570 = vmatpush1.msra.mxu0 0.0
    %3571 = vmatprep.subr.mxu0 0.0
    %3572 = vmatpush1.msra.mxu0 0.0
    %3573 = vmatprep.subr.mxu0 0.0
    %3574 = vmatpush1.msra.mxu0 0.0
    %3575 = vmatprep.subr.mxu0 0.0
    %3576 = vmatpush1.msra.mxu0 0.0
    %3577 = vmatprep.subr.mxu0 0.0
    %3578 = vmatpush1.msra.mxu0 0.0
    %3579 = vmatprep.subr.mxu0 0.0
    %3580 = vmatpush1.msra.mxu0 0.0
    %3581 = vmatprep.subr.mxu0 0.0
    %3582 = vmatpush1.msra.mxu0 0.0
    %3583 = vmatprep.subr.mxu0 0.0
    %3584 = vmatpush1.msra.mxu0 0.0
    %3585 = vmatprep.subr.mxu0 0.0
    %3586 = vmatpush1.msra.mxu0 %v3514
    %3587 = vmatprep.subr.mxu0 0.0
    %3588 = vmatpush1.msra.mxu0 %v3509
    %3589 = vmatprep.subr.mxu0 0.0
    %3590 = vmatpush1.msra.mxu0 %v3504
    %3591 = vmatprep.subr.mxu0 0.0
    %3592 = vmatpush1.msra.mxu0 %v3499
    %3593 = vmatprep.subr.mxu0 0.0
    %3594 = vmatpush2.msra.mxu0 0.0
    %3595 = vmatprep.subr.mxu0 0.0
    %3596 = vmatpush2.msra.mxu0 0.0
    %3597 = vmatprep.subr.mxu0 0.0
    %3598 = vmatpush2.msra.mxu0 0.0
    %3599 = vmatprep.subr.mxu0 0.0
    %3600 = vmatpush2.msra.mxu0 0.0
    %3601 = vmatprep.subr.mxu0 0.0
    %3602 = vmatpush2.msra.mxu0 0.0
    %3603 = vmatprep.subr.mxu0 0.0
    %3604 = vmatpush2.msra.mxu0 0.0
    %3605 = vmatprep.subr.mxu0 0.0
    %3606 = vmatpush2.msra.mxu0 0.0
    %3607 = vmatprep.subr.mxu0 0.0
    %3608 = vmatpush2.msra.mxu0 0.0
    %3609 = vmatprep.subr.mxu0 0.0
    %3610 = vmatpush2.msra.mxu0 0.0
    %3611 = vmatprep.subr.mxu0 0.0
    %3612 = vmatpush2.msra.mxu0 0.0
    %3613 = vmatprep.subr.mxu0 0.0
    %3614 = vmatpush2.msra.mxu0 0.0
    %3615 = vmatprep.subr.mxu0 0.0
    %3616 = vmatpush2.msra.mxu0 0.0
    %3617 = vmatprep.subr.mxu0 0.0
    %3618 = vmatpush2.msra.mxu0 0.0
    %3619 = vmatprep.subr.mxu0 0.0
    %3620 = vmatpush2.msra.mxu0 0.0
    %3621 = vmatprep.subr.mxu0 0.0
    %3622 = vmatpush2.msra.mxu0 0.0
    %3623 = vmatprep.subr.mxu0 0.0
    %3624 = vmatpush2.msra.mxu0 0.0
    %3625 = vmatprep.mubr.f32.mxu0 0.0
    %3626 = vmatmul.mubr.f32.gmra.mxu0 %v3550
    %v3627 = vpop.f32.mrf.mxu0
    %v3628 = vadd.f32 0.0, %v3627
    %v3629 = vpop.f32.mrf.mxu0
    %3630 = vmatprep.mubr.f32.mxu0 0.0
    %3631 = vmatmul.mubr.f32.gmra.mxu0 %v3553
    %v3632 = vpop.f32.mrf.mxu0
    %v3633 = vadd.f32 0.0, %v3632
    %v3634 = vpop.f32.mrf.mxu0
    %3635 = vmatprep.mubr.f32.mxu0 0.0
    %3636 = vmatmul.mubr.f32.gmra.mxu0 %v3556
    %v3637 = vpop.f32.mrf.mxu0
    %v3638 = vadd.f32 0.0, %v3637
    %v3639 = vpop.f32.mrf.mxu0
    %3640 = vmatprep.mubr.f32.mxu0 0.0
    %3641 = vmatmul.mubr.f32.gmra.mxu0 %v3559
    %v3642 = vpop.f32.mrf.mxu0
    %v3643 = vadd.f32 0.0, %v3642
    %v3644 = vpop.f32.mrf.mxu0
    %3645 = vdwg.mxu0
    %v3646 = vadd.f32 %v2810, %v3628
    %v3647 = vadd.f32 %v2811, %v3633
    %v3648 = vadd.f32 %v2812, %v3638
    %v3649 = vadd.f32 %v2813, %v3643
    %3651 = vset.pattern.permute.xlu0 0
    %3652 = vperm.xlu0 %3651, %v43
    %v3653 = vpop.permute.xlu0 %3652
    %3656 = vset.pattern.permute.xlu0 0
    %3657 = vperm.xlu0 %3656, %v44
    %v3658 = vpop.permute.xlu0 %3657
    %3661 = vset.pattern.permute.xlu0 0
    %3662 = vperm.xlu0 %3661, %v45
    %v3663 = vpop.permute.xlu0 %3662
    %3666 = vset.pattern.permute.xlu0 0
    %3667 = vperm.xlu0 %3666, %v46
    %v3668 = vpop.permute.xlu0 %3667
    %v3670 = vadd.f32 %v3646, %v3653
    %v3671 = vadd.f32 %v3647, %v3658
    %v3672 = vadd.f32 %v3648, %v3663
    %v3673 = vadd.f32 %v3649, %v3668
    %vm3674 = vcmp.ge.f32.partialorder %v3670, 0.0
    %vm3675 = vcmp.ge.f32.partialorder %v3671, 0.0
    %vm3676 = vcmp.ge.f32.partialorder %v3672, 0.0
    %vm3677 = vcmp.ge.f32.partialorder %v3673, 0.0
    %v3678 = vmul.f32 %v3670, 0.1
    %v3679 = vmul.f32 %v3671, 0.1
    %v3680 = vmul.f32 %v3672, 0.1
    %v3681 = vmul.f32 %v3673, 0.1
    %v3682 = vsel %vm3674, %v3670, %v3678
    %v3683 = vsel %vm3675, %v3671, %v3679
    %v3684 = vsel %vm3676, %v3672, %v3680
    %v3685 = vsel %vm3677, %v3673, %v3681
    %3686 = vset.pattern.permute.xlu0 1
    %3687 = vperm.xlu0 %3686, %v43
    %v3688 = vpop.permute.xlu0 %3687
    %3690 = vset.pattern.permute.xlu0 1
    %3691 = vperm.xlu0 %3690, %v44
    %v3692 = vpop.permute.xlu0 %3691
    %3694 = vset.pattern.permute.xlu0 1
    %3695 = vperm.xlu0 %3694, %v45
    %v3696 = vpop.permute.xlu0 %3695
    %3698 = vset.pattern.permute.xlu0 1
    %3699 = vperm.xlu0 %3698, %v46
    %v3700 = vpop.permute.xlu0 %3699
    %3702 = vxpose.xlu0.b32.start [1/16] %v39, 128
    %3703 = vxpose.xlu0.b32.cont [2/16] %v40, 128
    %3704 = vxpose.xlu0.b32.cont [3/16] %v41, 128
    %3705 = vxpose.xlu0.b32.cont [4/16] %v42, 128
    %3706 = vxpose.xlu0.b32.cont [5/16] 0.0, 128
    %3707 = vxpose.xlu0.b32.cont [6/16] 0.0, 128
    %3708 = vxpose.xlu0.b32.cont [7/16] 0.0, 128
    %3709 = vxpose.xlu0.b32.cont [8/16] 0.0, 128
    %3710 = vxpose.xlu0.b32.cont [9/16] 0.0, 128
    %3711 = vxpose.xlu0.b32.cont [10/16] 0.0, 128
    %3712 = vxpose.xlu0.b32.cont [11/16] 0.0, 128
    %3713 = vxpose.xlu0.b32.cont [12/16] 0.0, 128
    %3714 = vxpose.xlu0.b32.cont [13/16] 0.0, 128
    %3715 = vxpose.xlu0.b32.cont [14/16] 0.0, 128
    %3716 = vxpose.xlu0.b32.cont [15/16] 0.0, 128
    %3717 = vxpose.xlu0.b32.end [16/16] 0.0, 128
    %v3718 = vpop.trf.xlu0
    %v3719 = vpop.trf.xlu0
    %v3720 = vpop.trf.xlu0
    %v3721 = vpop.trf.xlu0
    %v3722 = vpop.trf.xlu0
    %v3723 = vpop.trf.xlu0
    %v3724 = vpop.trf.xlu0
    %v3725 = vpop.trf.xlu0
    %v3726 = vpop.trf.xlu0
    %v3727 = vpop.trf.xlu0
    %v3728 = vpop.trf.xlu0
    %v3729 = vpop.trf.xlu0
    %v3730 = vpop.trf.xlu0
    %v3731 = vpop.trf.xlu0
    %v3732 = vpop.trf.xlu0
    %v3733 = vpop.trf.xlu0
    %v3735 = vsel %vm1751, %v3718, 0
    %v3738 = vsel %vm1751, %v3719, 0
    %v3741 = vsel %vm1751, %v3720, 0
    %v3744 = vsel %vm1751, %v3721, 0
    %3746 = vmatprep.subr.mxu0 0.0
    %3747 = vmatpush1.msra.mxu0 0.0
    %3748 = vmatprep.subr.mxu0 0.0
    %3749 = vmatpush1.msra.mxu0 0.0
    %3750 = vmatprep.subr.mxu0 0.0
    %3751 = vmatpush1.msra.mxu0 0.0
    %3752 = vmatprep.subr.mxu0 0.0
    %3753 = vmatpush1.msra.mxu0 0.0
    %3754 = vmatprep.subr.mxu0 0.0
    %3755 = vmatpush1.msra.mxu0 0.0
    %3756 = vmatprep.subr.mxu0 0.0
    %3757 = vmatpush1.msra.mxu0 0.0
    %3758 = vmatprep.subr.mxu0 0.0
    %3759 = vmatpush1.msra.mxu0 0.0
    %3760 = vmatprep.subr.mxu0 0.0
    %3761 = vmatpush1.msra.mxu0 0.0
    %3762 = vmatprep.subr.mxu0 0.0
    %3763 = vmatpush1.msra.mxu0 0.0
    %3764 = vmatprep.subr.mxu0 0.0
    %3765 = vmatpush1.msra.mxu0 0.0
    %3766 = vmatprep.subr.mxu0 0.0
    %3767 = vmatpush1.msra.mxu0 0.0
    %3768 = vmatprep.subr.mxu0 0.0
    %3769 = vmatpush1.msra.mxu0 0.0
    %3770 = vmatprep.subr.mxu0 0.0
    %3771 = vmatpush1.msra.mxu0 %v3685
    %3772 = vmatprep.subr.mxu0 0.0
    %3773 = vmatpush1.msra.mxu0 %v3684
    %3774 = vmatprep.subr.mxu0 0.0
    %3775 = vmatpush1.msra.mxu0 %v3683
    %3776 = vmatprep.subr.mxu0 0.0
    %3777 = vmatpush1.msra.mxu0 %v3682
    %3778 = vmatprep.subr.mxu0 0.0
    %3779 = vmatpush2.msra.mxu0 0.0
    %3780 = vmatprep.subr.mxu0 0.0
    %3781 = vmatpush2.msra.mxu0 0.0
    %3782 = vmatprep.subr.mxu0 0.0
    %3783 = vmatpush2.msra.mxu0 0.0
    %3784 = vmatprep.subr.mxu0 0.0
    %3785 = vmatpush2.msra.mxu0 0.0
    %3786 = vmatprep.subr.mxu0 0.0
    %3787 = vmatpush2.msra.mxu0 0.0
    %3788 = vmatprep.subr.mxu0 0.0
    %3789 = vmatpush2.msra.mxu0 0.0
    %3790 = vmatprep.subr.mxu0 0.0
    %3791 = vmatpush2.msra.mxu0 0.0
    %3792 = vmatprep.subr.mxu0 0.0
    %3793 = vmatpush2.msra.mxu0 0.0
    %3794 = vmatprep.subr.mxu0 0.0
    %3795 = vmatpush2.msra.mxu0 0.0
    %3796 = vmatprep.subr.mxu0 0.0
    %3797 = vmatpush2.msra.mxu0 0.0
    %3798 = vmatprep.subr.mxu0 0.0
    %3799 = vmatpush2.msra.mxu0 0.0
    %3800 = vmatprep.subr.mxu0 0.0
    %3801 = vmatpush2.msra.mxu0 0.0
    %3802 = vmatprep.subr.mxu0 0.0
    %3803 = vmatpush2.msra.mxu0 0.0
    %3804 = vmatprep.subr.mxu0 0.0
    %3805 = vmatpush2.msra.mxu0 0.0
    %3806 = vmatprep.subr.mxu0 0.0
    %3807 = vmatpush2.msra.mxu0 0.0
    %3808 = vmatprep.subr.mxu0 0.0
    %3809 = vmatpush2.msra.mxu0 0.0
    %3810 = vmatprep.mubr.f32.mxu0 0.0
    %3811 = vmatmul.mubr.f32.gmra.mxu0 %v3735
    %v3812 = vpop.f32.mrf.mxu0
    %v3813 = vadd.f32 %v3688, %v3812
    %v3814 = vpop.f32.mrf.mxu0
    %3815 = vmatprep.mubr.f32.mxu0 0.0
    %3816 = vmatmul.mubr.f32.gmra.mxu0 %v3738
    %v3817 = vpop.f32.mrf.mxu0
    %v3818 = vadd.f32 %v3692, %v3817
    %v3819 = vpop.f32.mrf.mxu0
    %3820 = vmatprep.mubr.f32.mxu0 0.0
    %3821 = vmatmul.mubr.f32.gmra.mxu0 %v3741
    %v3822 = vpop.f32.mrf.mxu0
    %v3823 = vadd.f32 %v3696, %v3822
    %v3824 = vpop.f32.mrf.mxu0
    %3825 = vmatprep.mubr.f32.mxu0 0.0
    %3826 = vmatmul.mubr.f32.gmra.mxu0 %v3744
    %v3827 = vpop.f32.mrf.mxu0
    %v3828 = vadd.f32 %v3700, %v3827
    %v3829 = vpop.f32.mrf.mxu0
    %3830 = vdwg.mxu0
    %vm3831 = vcmp.ge.f32.partialorder %v3813, 0.0
    %vm3832 = vcmp.ge.f32.partialorder %v3818, 0.0
    %vm3833 = vcmp.ge.f32.partialorder %v3823, 0.0
    %vm3834 = vcmp.ge.f32.partialorder %v3828, 0.0
    %v3835 = vmul.f32 %v3813, 0.1
    %v3836 = vmul.f32 %v3818, 0.1
    %v3837 = vmul.f32 %v3823, 0.1
    %v3838 = vmul.f32 %v3828, 0.1
    %v3839 = vsel %vm3831, %v3813, %v3835
    %v3840 = vsel %vm3832, %v3818, %v3836
    %v3841 = vsel %vm3833, %v3823, %v3837
    %v3842 = vsel %vm3834, %v3828, %v3838
    %3843 = vset.pattern.permute.xlu0 2
    %3844 = vperm.xlu0 %3843, %v43
    %v3845 = vpop.permute.xlu0 %3844
    %3847 = vset.pattern.permute.xlu0 2
    %3848 = vperm.xlu0 %3847, %v44
    %v3849 = vpop.permute.xlu0 %3848
    %3851 = vset.pattern.permute.xlu0 2
    %3852 = vperm.xlu0 %3851, %v45
    %v3853 = vpop.permute.xlu0 %3852
    %3855 = vset.pattern.permute.xlu0 2
    %3856 = vperm.xlu0 %3855, %v46
    %v3857 = vpop.permute.xlu0 %3856
    %v3859 = vmul.f32 %v3845, %v3839
    %v3860 = vmul.f32 %v3849, %v3840
    %v3861 = vmul.f32 %v3853, %v3841
    %v3862 = vmul.f32 %v3857, %v3842
    %vm3863 = vcmask 523264
    %v3864 = vsel %vm3863, %v3859, 0.0
    %v3865 = vsel %vm3863, %v3860, 0.0
    %v3866 = vadd.f32 %v3864, %v3865
    %v3867 = vsel %vm3863, %v3861, 0.0
    %v3868 = vadd.f32 %v3866, %v3867
    %v3869 = vsel %vm3863, %v3862, 0.0
    %v3870 = vadd.f32 %v3868, %v3869
    %v3871 = vrot.slane %v3870, 4
    %v3872 = vadd.f32 %v3870, %v3871
    %v3873 = vrot.slane %v3872, 2
    %v3874 = vadd.f32 %v3872, %v3873
    %v3875 = vrot.slane %v3874, 1
    %v3876 = vadd.f32 %v3874, %v3875
    %v3877 = vstv %s78
    %v3878 = vadd.f32 %v3876, %v3877
    %vm3879 = vcmask 516096
    %3880 = vst.msk [vmem:[#allocation5] sm:$0x1] %vm3879, %v3878
    %s3881 = scalar_lea.vmem %s1, 64
    %v3882 = vld [vmem:[%s3881] sm:$0xff]
    %v3883 = vld [vmem:[%s3881 + $0x8] sm:$0xff]
    %v3884 = vld [vmem:[%s3881 + $0x10] sm:$0xff]
    %v3885 = vld [vmem:[%s3881 + $0x18] sm:$0xff]
    %v3886 = vld [vmem:[%s3881 + $0x20] sm:$0xff]
    %v3887 = vld [vmem:[%s3881 + $0x28] sm:$0xff]
    %v3888 = vld [vmem:[%s3881 + $0x30] sm:$0xff]
    %v3889 = vld [vmem:[%s3881 + $0x38] sm:$0xff]
    %v3890 = vsub.f32 %v3882, %v89
    %v3891 = vsub.f32 %v3883, %v89
    %v3892 = vsub.f32 %v3884, %v89
    %v3893 = vsub.f32 %v3885, %v89
    %v3894 = vsub.f32 %v3886, %v89
    %v3895 = vsub.f32 %v3887, %v89
    %v3896 = vsub.f32 %v3888, %v89
    %v3897 = vsub.f32 %v3889, %v89
    %v3898 = vmul.f32 %v3890, %v3890
    %v3899 = vmul.f32 %v3891, %v3891
    %v3900 = vmul.f32 %v3892, %v3892
    %v3901 = vmul.f32 %v3893, %v3893
    %v3902 = vmul.f32 %v3894, %v3894
    %v3903 = vmul.f32 %v3895, %v3895
    %v3904 = vmul.f32 %v3896, %v3896
    %v3905 = vmul.f32 %v3897, %v3897
    %v3906 = vsub.f32 %v3882, %v106
    %v3907 = vsub.f32 %v3883, %v106
    %v3908 = vsub.f32 %v3884, %v106
    %v3909 = vsub.f32 %v3885, %v106
    %v3910 = vsub.f32 %v3886, %v106
    %v3911 = vsub.f32 %v3887, %v106
    %v3912 = vsub.f32 %v3888, %v106
    %v3913 = vsub.f32 %v3889, %v106
    %v3914 = vmul.f32 %v3906, %v3906
    %v3915 = vmul.f32 %v3907, %v3907
    %v3916 = vmul.f32 %v3908, %v3908
    %v3917 = vmul.f32 %v3909, %v3909
    %v3918 = vmul.f32 %v3910, %v3910
    %v3919 = vmul.f32 %v3911, %v3911
    %v3920 = vmul.f32 %v3912, %v3912
    %v3921 = vmul.f32 %v3913, %v3913
    %3930 = vrot.lane.b32.xlu0 %v3914, 127
    %v3931 = vpop.permute.xlu0 %3930
    %3932 = vrot.lane.b32.xlu0 %v3915, 127
    %v3933 = vpop.permute.xlu0 %3932
    %3934 = vrot.lane.b32.xlu0 %v3916, 127
    %v3935 = vpop.permute.xlu0 %3934
    %3936 = vrot.lane.b32.xlu0 %v3917, 127
    %v3937 = vpop.permute.xlu0 %3936
    %3938 = vrot.lane.b32.xlu0 %v3918, 127
    %v3939 = vpop.permute.xlu0 %3938
    %3940 = vrot.lane.b32.xlu0 %v3919, 127
    %v3941 = vpop.permute.xlu0 %3940
    %3942 = vrot.lane.b32.xlu0 %v3920, 127
    %v3943 = vpop.permute.xlu0 %3942
    %3944 = vrot.lane.b32.xlu0 %v3921, 127
    %v3945 = vpop.permute.xlu0 %3944
    %v3954 = vadd.f32 %v3898, %v3931
    %v3955 = vadd.f32 %v3899, %v3933
    %v3956 = vadd.f32 %v3900, %v3935
    %v3957 = vadd.f32 %v3901, %v3937
    %v3958 = vadd.f32 %v3902, %v3939
    %v3959 = vadd.f32 %v3903, %v3941
    %v3960 = vadd.f32 %v3904, %v3943
    %v3961 = vadd.f32 %v3905, %v3945
    %v3962 = vsub.f32 %v3882, %v163
    %v3963 = vsub.f32 %v3883, %v163
    %v3964 = vsub.f32 %v3884, %v163
    %v3965 = vsub.f32 %v3885, %v163
    %v3966 = vsub.f32 %v3886, %v163
    %v3967 = vsub.f32 %v3887, %v163
    %v3968 = vsub.f32 %v3888, %v163
    %v3969 = vsub.f32 %v3889, %v163
    %v3970 = vmul.f32 %v3962, %v3962
    %v3971 = vmul.f32 %v3963, %v3963
    %v3972 = vmul.f32 %v3964, %v3964
    %v3973 = vmul.f32 %v3965, %v3965
    %v3974 = vmul.f32 %v3966, %v3966
    %v3975 = vmul.f32 %v3967, %v3967
    %v3976 = vmul.f32 %v3968, %v3968
    %v3977 = vmul.f32 %v3969, %v3969
    %3986 = vrot.lane.b32.xlu0 %v3970, 126
    %v3987 = vpop.permute.xlu0 %3986
    %3988 = vrot.lane.b32.xlu0 %v3971, 126
    %v3989 = vpop.permute.xlu0 %3988
    %3990 = vrot.lane.b32.xlu0 %v3972, 126
    %v3991 = vpop.permute.xlu0 %3990
    %3992 = vrot.lane.b32.xlu0 %v3973, 126
    %v3993 = vpop.permute.xlu0 %3992
    %3994 = vrot.lane.b32.xlu0 %v3974, 126
    %v3995 = vpop.permute.xlu0 %3994
    %3996 = vrot.lane.b32.xlu0 %v3975, 126
    %v3997 = vpop.permute.xlu0 %3996
    %3998 = vrot.lane.b32.xlu0 %v3976, 126
    %v3999 = vpop.permute.xlu0 %3998
    %4000 = vrot.lane.b32.xlu0 %v3977, 126
    %v4001 = vpop.permute.xlu0 %4000
    %v4010 = vadd.f32 %v3954, %v3987
    %v4011 = vadd.f32 %v3955, %v3989
    %v4012 = vadd.f32 %v3956, %v3991
    %v4013 = vadd.f32 %v3957, %v3993
    %v4014 = vadd.f32 %v3958, %v3995
    %v4015 = vadd.f32 %v3959, %v3997
    %v4016 = vadd.f32 %v3960, %v3999
    %v4017 = vadd.f32 %v3961, %v4001
    %v4018 = vrsqrt.pop %v4010
    %v4019 = vmul.f32 %v4010, %v4018
    %vm4020 = vcmp.eq.f32.partialorder %v4010, inf
    %v4021 = vsel %vm4020, %v4010, %v4019
    %vm4022 = vcmp.eq.f32.partialorder %v4010, 0.0
    %v4023 = vand.u32 %v4010, 2147483648
    %v4024 = vsel %vm4022, %v4023, %v4021
    %v4025 = vrsqrt.pop %v4011
    %v4026 = vmul.f32 %v4011, %v4025
    %vm4027 = vcmp.eq.f32.partialorder %v4011, inf
    %v4028 = vsel %vm4027, %v4011, %v4026
    %vm4029 = vcmp.eq.f32.partialorder %v4011, 0.0
    %v4030 = vand.u32 %v4011, 2147483648
    %v4031 = vsel %vm4029, %v4030, %v4028
    %v4032 = vrsqrt.pop %v4012
    %v4033 = vmul.f32 %v4012, %v4032
    %vm4034 = vcmp.eq.f32.partialorder %v4012, inf
    %v4035 = vsel %vm4034, %v4012, %v4033
    %vm4036 = vcmp.eq.f32.partialorder %v4012, 0.0
    %v4037 = vand.u32 %v4012, 2147483648
    %v4038 = vsel %vm4036, %v4037, %v4035
    %v4039 = vrsqrt.pop %v4013
    %v4040 = vmul.f32 %v4013, %v4039
    %vm4041 = vcmp.eq.f32.partialorder %v4013, inf
    %v4042 = vsel %vm4041, %v4013, %v4040
    %vm4043 = vcmp.eq.f32.partialorder %v4013, 0.0
    %v4044 = vand.u32 %v4013, 2147483648
    %v4045 = vsel %vm4043, %v4044, %v4042
    %v4046 = vrsqrt.pop %v4014
    %v4047 = vmul.f32 %v4014, %v4046
    %vm4048 = vcmp.eq.f32.partialorder %v4014, inf
    %v4049 = vsel %vm4048, %v4014, %v4047
    %vm4050 = vcmp.eq.f32.partialorder %v4014, 0.0
    %v4051 = vand.u32 %v4014, 2147483648
    %v4052 = vsel %vm4050, %v4051, %v4049
    %v4053 = vrsqrt.pop %v4015
    %v4054 = vmul.f32 %v4015, %v4053
    %vm4055 = vcmp.eq.f32.partialorder %v4015, inf
    %v4056 = vsel %vm4055, %v4015, %v4054
    %vm4057 = vcmp.eq.f32.partialorder %v4015, 0.0
    %v4058 = vand.u32 %v4015, 2147483648
    %v4059 = vsel %vm4057, %v4058, %v4056
    %v4060 = vrsqrt.pop %v4016
    %v4061 = vmul.f32 %v4016, %v4060
    %vm4062 = vcmp.eq.f32.partialorder %v4016, inf
    %v4063 = vsel %vm4062, %v4016, %v4061
    %vm4064 = vcmp.eq.f32.partialorder %v4016, 0.0
    %v4065 = vand.u32 %v4016, 2147483648
    %v4066 = vsel %vm4064, %v4065, %v4063
    %v4067 = vrsqrt.pop %v4017
    %v4068 = vmul.f32 %v4017, %v4067
    %vm4069 = vcmp.eq.f32.partialorder %v4017, inf
    %v4070 = vsel %vm4069, %v4017, %v4068
    %vm4071 = vcmp.eq.f32.partialorder %v4017, 0.0
    %v4072 = vand.u32 %v4017, 2147483648
    %v4073 = vsel %vm4071, %v4072, %v4070
    %v4074 = vsub.f32 %v3882, %v276
    %v4075 = vsub.f32 %v3883, %v276
    %v4076 = vsub.f32 %v3884, %v276
    %v4077 = vsub.f32 %v3885, %v276
    %v4078 = vsub.f32 %v3886, %v276
    %v4079 = vsub.f32 %v3887, %v276
    %v4080 = vsub.f32 %v3888, %v276
    %v4081 = vsub.f32 %v3889, %v276
    %v4082 = vmul.f32 %v4074, %v4074
    %v4083 = vmul.f32 %v4075, %v4075
    %v4084 = vmul.f32 %v4076, %v4076
    %v4085 = vmul.f32 %v4077, %v4077
    %v4086 = vmul.f32 %v4078, %v4078
    %v4087 = vmul.f32 %v4079, %v4079
    %v4088 = vmul.f32 %v4080, %v4080
    %v4089 = vmul.f32 %v4081, %v4081
    %v4090 = vsub.f32 %v3882, %v293
    %v4091 = vsub.f32 %v3883, %v293
    %v4092 = vsub.f32 %v3884, %v293
    %v4093 = vsub.f32 %v3885, %v293
    %v4094 = vsub.f32 %v3886, %v293
    %v4095 = vsub.f32 %v3887, %v293
    %v4096 = vsub.f32 %v3888, %v293
    %v4097 = vsub.f32 %v3889, %v293
    %v4098 = vmul.f32 %v4090, %v4090
    %v4099 = vmul.f32 %v4091, %v4091
    %v4100 = vmul.f32 %v4092, %v4092
    %v4101 = vmul.f32 %v4093, %v4093
    %v4102 = vmul.f32 %v4094, %v4094
    %v4103 = vmul.f32 %v4095, %v4095
    %v4104 = vmul.f32 %v4096, %v4096
    %v4105 = vmul.f32 %v4097, %v4097
    %4114 = vrot.lane.b32.xlu0 %v4098, 127
    %v4115 = vpop.permute.xlu0 %4114
    %4116 = vrot.lane.b32.xlu0 %v4099, 127
    %v4117 = vpop.permute.xlu0 %4116
    %4118 = vrot.lane.b32.xlu0 %v4100, 127
    %v4119 = vpop.permute.xlu0 %4118
    %4120 = vrot.lane.b32.xlu0 %v4101, 127
    %v4121 = vpop.permute.xlu0 %4120
    %4122 = vrot.lane.b32.xlu0 %v4102, 127
    %v4123 = vpop.permute.xlu0 %4122
    %4124 = vrot.lane.b32.xlu0 %v4103, 127
    %v4125 = vpop.permute.xlu0 %4124
    %4126 = vrot.lane.b32.xlu0 %v4104, 127
    %v4127 = vpop.permute.xlu0 %4126
    %4128 = vrot.lane.b32.xlu0 %v4105, 127
    %v4129 = vpop.permute.xlu0 %4128
    %v4138 = vadd.f32 %v4082, %v4115
    %v4139 = vadd.f32 %v4083, %v4117
    %v4140 = vadd.f32 %v4084, %v4119
    %v4141 = vadd.f32 %v4085, %v4121
    %v4142 = vadd.f32 %v4086, %v4123
    %v4143 = vadd.f32 %v4087, %v4125
    %v4144 = vadd.f32 %v4088, %v4127
    %v4145 = vadd.f32 %v4089, %v4129
    %v4146 = vsub.f32 %v3882, %v350
    %v4147 = vsub.f32 %v3883, %v350
    %v4148 = vsub.f32 %v3884, %v350
    %v4149 = vsub.f32 %v3885, %v350
    %v4150 = vsub.f32 %v3886, %v350
    %v4151 = vsub.f32 %v3887, %v350
    %v4152 = vsub.f32 %v3888, %v350
    %v4153 = vsub.f32 %v3889, %v350
    %v4154 = vmul.f32 %v4146, %v4146
    %v4155 = vmul.f32 %v4147, %v4147
    %v4156 = vmul.f32 %v4148, %v4148
    %v4157 = vmul.f32 %v4149, %v4149
    %v4158 = vmul.f32 %v4150, %v4150
    %v4159 = vmul.f32 %v4151, %v4151
    %v4160 = vmul.f32 %v4152, %v4152
    %v4161 = vmul.f32 %v4153, %v4153
    %4170 = vrot.lane.b32.xlu0 %v4154, 126
    %v4171 = vpop.permute.xlu0 %4170
    %4172 = vrot.lane.b32.xlu0 %v4155, 126
    %v4173 = vpop.permute.xlu0 %4172
    %4174 = vrot.lane.b32.xlu0 %v4156, 126
    %v4175 = vpop.permute.xlu0 %4174
    %4176 = vrot.lane.b32.xlu0 %v4157, 126
    %v4177 = vpop.permute.xlu0 %4176
    %4178 = vrot.lane.b32.xlu0 %v4158, 126
    %v4179 = vpop.permute.xlu0 %4178
    %4180 = vrot.lane.b32.xlu0 %v4159, 126
    %v4181 = vpop.permute.xlu0 %4180
    %4182 = vrot.lane.b32.xlu0 %v4160, 126
    %v4183 = vpop.permute.xlu0 %4182
    %4184 = vrot.lane.b32.xlu0 %v4161, 126
    %v4185 = vpop.permute.xlu0 %4184
    %v4194 = vadd.f32 %v4138, %v4171
    %v4195 = vadd.f32 %v4139, %v4173
    %v4196 = vadd.f32 %v4140, %v4175
    %v4197 = vadd.f32 %v4141, %v4177
    %v4198 = vadd.f32 %v4142, %v4179
    %v4199 = vadd.f32 %v4143, %v4181
    %v4200 = vadd.f32 %v4144, %v4183
    %v4201 = vadd.f32 %v4145, %v4185
    %v4202 = vrsqrt.pop %v4194
    %v4203 = vmul.f32 %v4194, %v4202
    %vm4204 = vcmp.eq.f32.partialorder %v4194, inf
    %v4205 = vsel %vm4204, %v4194, %v4203
    %vm4206 = vcmp.eq.f32.partialorder %v4194, 0.0
    %v4207 = vand.u32 %v4194, 2147483648
    %v4208 = vsel %vm4206, %v4207, %v4205
    %v4209 = vrsqrt.pop %v4195
    %v4210 = vmul.f32 %v4195, %v4209
    %vm4211 = vcmp.eq.f32.partialorder %v4195, inf
    %v4212 = vsel %vm4211, %v4195, %v4210
    %vm4213 = vcmp.eq.f32.partialorder %v4195, 0.0
    %v4214 = vand.u32 %v4195, 2147483648
    %v4215 = vsel %vm4213, %v4214, %v4212
    %v4216 = vrsqrt.pop %v4196
    %v4217 = vmul.f32 %v4196, %v4216
    %vm4218 = vcmp.eq.f32.partialorder %v4196, inf
    %v4219 = vsel %vm4218, %v4196, %v4217
    %vm4220 = vcmp.eq.f32.partialorder %v4196, 0.0
    %v4221 = vand.u32 %v4196, 2147483648
    %v4222 = vsel %vm4220, %v4221, %v4219
    %v4223 = vrsqrt.pop %v4197
    %v4224 = vmul.f32 %v4197, %v4223
    %vm4225 = vcmp.eq.f32.partialorder %v4197, inf
    %v4226 = vsel %vm4225, %v4197, %v4224
    %vm4227 = vcmp.eq.f32.partialorder %v4197, 0.0
    %v4228 = vand.u32 %v4197, 2147483648
    %v4229 = vsel %vm4227, %v4228, %v4226
    %v4230 = vrsqrt.pop %v4198
    %v4231 = vmul.f32 %v4198, %v4230
    %vm4232 = vcmp.eq.f32.partialorder %v4198, inf
    %v4233 = vsel %vm4232, %v4198, %v4231
    %vm4234 = vcmp.eq.f32.partialorder %v4198, 0.0
    %v4235 = vand.u32 %v4198, 2147483648
    %v4236 = vsel %vm4234, %v4235, %v4233
    %v4237 = vrsqrt.pop %v4199
    %v4238 = vmul.f32 %v4199, %v4237
    %vm4239 = vcmp.eq.f32.partialorder %v4199, inf
    %v4240 = vsel %vm4239, %v4199, %v4238
    %vm4241 = vcmp.eq.f32.partialorder %v4199, 0.0
    %v4242 = vand.u32 %v4199, 2147483648
    %v4243 = vsel %vm4241, %v4242, %v4240
    %v4244 = vrsqrt.pop %v4200
    %v4245 = vmul.f32 %v4200, %v4244
    %vm4246 = vcmp.eq.f32.partialorder %v4200, inf
    %v4247 = vsel %vm4246, %v4200, %v4245
    %vm4248 = vcmp.eq.f32.partialorder %v4200, 0.0
    %v4249 = vand.u32 %v4200, 2147483648
    %v4250 = vsel %vm4248, %v4249, %v4247
    %v4251 = vrsqrt.pop %v4201
    %v4252 = vmul.f32 %v4201, %v4251
    %vm4253 = vcmp.eq.f32.partialorder %v4201, inf
    %v4254 = vsel %vm4253, %v4201, %v4252
    %vm4255 = vcmp.eq.f32.partialorder %v4201, 0.0
    %v4256 = vand.u32 %v4201, 2147483648
    %v4257 = vsel %vm4255, %v4256, %v4254
    %v4258 = vadd.f32 %v4024, %v4208
    %v4259 = vadd.f32 %v4031, %v4215
    %v4260 = vadd.f32 %v4038, %v4222
    %v4261 = vadd.f32 %v4045, %v4229
    %v4262 = vadd.f32 %v4052, %v4236
    %v4263 = vadd.f32 %v4059, %v4243
    %v4264 = vadd.f32 %v4066, %v4250
    %v4265 = vadd.f32 %v4073, %v4257
    %v4266 = vmul.f32 %v4258, 34.985424
    %v4267 = vmul.f32 %v4259, 34.985424
    %v4268 = vmul.f32 %v4260, 34.985424
    %v4269 = vmul.f32 %v4261, 34.985424
    %v4270 = vmul.f32 %v4262, 34.985424
    %v4271 = vmul.f32 %v4263, 34.985424
    %v4272 = vmul.f32 %v4264, 34.985424
    %v4273 = vmul.f32 %v4265, 34.985424
    %v4274 = vmul.f32 %v4024, %v4208
    %v4275 = vmul.f32 %v4031, %v4215
    %v4276 = vmul.f32 %v4038, %v4222
    %v4277 = vmul.f32 %v4045, %v4229
    %v4278 = vmul.f32 %v4052, %v4236
    %v4279 = vmul.f32 %v4059, %v4243
    %v4280 = vmul.f32 %v4066, %v4250
    %v4281 = vmul.f32 %v4073, %v4257
    %v4282 = vfloor.f32 %v4266
    %v4283 = vfloor.f32 %v4267
    %v4284 = vfloor.f32 %v4268
    %v4285 = vfloor.f32 %v4269
    %v4286 = vfloor.f32 %v4270
    %v4287 = vfloor.f32 %v4271
    %v4288 = vfloor.f32 %v4272
    %v4289 = vfloor.f32 %v4273
    %v4290 = vmax.f32 %v4282, 0.0
    %v4291 = vmax.f32 %v4283, 0.0
    %v4292 = vmax.f32 %v4284, 0.0
    %v4293 = vmax.f32 %v4285, 0.0
    %v4294 = vmax.f32 %v4286, 0.0
    %v4295 = vmax.f32 %v4287, 0.0
    %v4296 = vmax.f32 %v4288, 0.0
    %v4297 = vmax.f32 %v4289, 0.0
    %v4298 = vmin.f32 %v4290, 95.0
    %v4299 = vmin.f32 %v4291, 95.0
    %v4300 = vmin.f32 %v4292, 95.0
    %v4301 = vmin.f32 %v4293, 95.0
    %v4302 = vmin.f32 %v4294, 95.0
    %v4303 = vmin.f32 %v4295, 95.0
    %v4304 = vmin.f32 %v4296, 95.0
    %v4305 = vmin.f32 %v4297, 95.0
    %v4306 = vsub.f32 %v4266, %v4298
    %v4307 = vsub.f32 %v4267, %v4299
    %v4308 = vsub.f32 %v4268, %v4300
    %v4309 = vsub.f32 %v4269, %v4301
    %v4310 = vsub.f32 %v4270, %v4302
    %v4311 = vsub.f32 %v4271, %v4303
    %v4312 = vsub.f32 %v4272, %v4304
    %v4313 = vsub.f32 %v4273, %v4305
    %v4314 = vmax.f32 %v4306, 0.0
    %v4315 = vmax.f32 %v4307, 0.0
    %v4316 = vmax.f32 %v4308, 0.0
    %v4317 = vmax.f32 %v4309, 0.0
    %v4318 = vmax.f32 %v4310, 0.0
    %v4319 = vmax.f32 %v4311, 0.0
    %v4320 = vmax.f32 %v4312, 0.0
    %v4321 = vmax.f32 %v4313, 0.0
    %v4322 = vmin.f32 %v4314, 1.0
    %v4323 = vmin.f32 %v4315, 1.0
    %v4324 = vmin.f32 %v4316, 1.0
    %v4325 = vmin.f32 %v4317, 1.0
    %v4326 = vmin.f32 %v4318, 1.0
    %v4327 = vmin.f32 %v4319, 1.0
    %v4328 = vmin.f32 %v4320, 1.0
    %v4329 = vmin.f32 %v4321, 1.0
    %v4330 = vcvt.f32.s32.to.zero.pseudo %v4298
    %v4331 = vcvt.f32.s32.to.zero.pseudo %v4299
    %v4332 = vcvt.f32.s32.to.zero.pseudo %v4300
    %v4333 = vcvt.f32.s32.to.zero.pseudo %v4301
    %v4334 = vcvt.f32.s32.to.zero.pseudo %v4302
    %v4335 = vcvt.f32.s32.to.zero.pseudo %v4303
    %v4336 = vcvt.f32.s32.to.zero.pseudo %v4304
    %v4337 = vcvt.f32.s32.to.zero.pseudo %v4305
    %4338 = vset.pattern.permute.xlu0 0
    %4339 = vperm.xlu0 %4338, %v4330
    %v4340 = vpop.permute.xlu0 %4339
    %4341 = vset.pattern.permute.xlu0 0
    %4342 = vperm.xlu0 %4341, %v4331
    %v4343 = vpop.permute.xlu0 %4342
    %4344 = vset.pattern.permute.xlu0 0
    %4345 = vperm.xlu0 %4344, %v4332
    %v4346 = vpop.permute.xlu0 %4345
    %4347 = vset.pattern.permute.xlu0 0
    %4348 = vperm.xlu0 %4347, %v4333
    %v4349 = vpop.permute.xlu0 %4348
    %4350 = vset.pattern.permute.xlu0 0
    %4351 = vperm.xlu0 %4350, %v4334
    %v4352 = vpop.permute.xlu0 %4351
    %4353 = vset.pattern.permute.xlu0 0
    %4354 = vperm.xlu0 %4353, %v4335
    %v4355 = vpop.permute.xlu0 %4354
    %4356 = vset.pattern.permute.xlu0 0
    %4357 = vperm.xlu0 %4356, %v4336
    %v4358 = vpop.permute.xlu0 %4357
    %4359 = vset.pattern.permute.xlu0 0
    %4360 = vperm.xlu0 %4359, %v4337
    %v4361 = vpop.permute.xlu0 %4360
    %vm4362 = vcmp.eq.s32.totalorder %v80, %v4340
    %vm4363 = vcmp.eq.s32.totalorder %v80, %v4343
    %vm4364 = vcmp.eq.s32.totalorder %v80, %v4346
    %vm4365 = vcmp.eq.s32.totalorder %v80, %v4349
    %vm4366 = vcmp.eq.s32.totalorder %v80, %v4352
    %vm4367 = vcmp.eq.s32.totalorder %v80, %v4355
    %vm4368 = vcmp.eq.s32.totalorder %v80, %v4358
    %vm4369 = vcmp.eq.s32.totalorder %v80, %v4361
    %v4370 = vsub.f32 1.0, %v4322
    %v4371 = vsub.f32 1.0, %v4323
    %v4372 = vsub.f32 1.0, %v4324
    %v4373 = vsub.f32 1.0, %v4325
    %v4374 = vsub.f32 1.0, %v4326
    %v4375 = vsub.f32 1.0, %v4327
    %v4376 = vsub.f32 1.0, %v4328
    %v4377 = vsub.f32 1.0, %v4329
    %v4378 = vmul.f32 %v4370, %v4274
    %v4379 = vmul.f32 %v4371, %v4275
    %v4380 = vmul.f32 %v4372, %v4276
    %v4381 = vmul.f32 %v4373, %v4277
    %v4382 = vmul.f32 %v4374, %v4278
    %v4383 = vmul.f32 %v4375, %v4279
    %v4384 = vmul.f32 %v4376, %v4280
    %v4385 = vmul.f32 %v4377, %v4281
    %4387 = vset.pattern.permute.xlu0 0
    %4388 = vperm.xlu0 %4387, %v4378
    %v4389 = vpop.permute.xlu0 %4388
    %4392 = vset.pattern.permute.xlu0 0
    %4393 = vperm.xlu0 %4392, %v4379
    %v4394 = vpop.permute.xlu0 %4393
    %4397 = vset.pattern.permute.xlu0 0
    %4398 = vperm.xlu0 %4397, %v4380
    %v4399 = vpop.permute.xlu0 %4398
    %4402 = vset.pattern.permute.xlu0 0
    %4403 = vperm.xlu0 %4402, %v4381
    %v4404 = vpop.permute.xlu0 %4403
    %4407 = vset.pattern.permute.xlu0 0
    %4408 = vperm.xlu0 %4407, %v4382
    %v4409 = vpop.permute.xlu0 %4408
    %4412 = vset.pattern.permute.xlu0 0
    %4413 = vperm.xlu0 %4412, %v4383
    %v4414 = vpop.permute.xlu0 %4413
    %4417 = vset.pattern.permute.xlu0 0
    %4418 = vperm.xlu0 %4417, %v4384
    %v4419 = vpop.permute.xlu0 %4418
    %4422 = vset.pattern.permute.xlu0 0
    %4423 = vperm.xlu0 %4422, %v4385
    %v4424 = vpop.permute.xlu0 %4423
    %v4426 = vsel %vm4362, %v4389, 0.0
    %v4427 = vsel %vm4363, %v4394, 0.0
    %v4428 = vsel %vm4364, %v4399, 0.0
    %v4429 = vsel %vm4365, %v4404, 0.0
    %v4430 = vsel %vm4366, %v4409, 0.0
    %v4431 = vsel %vm4367, %v4414, 0.0
    %v4432 = vsel %vm4368, %v4419, 0.0
    %v4433 = vsel %vm4369, %v4424, 0.0
    %v4434 = vadd.s32 %v4330, 1
    %v4435 = vadd.s32 %v4331, 1
    %v4436 = vadd.s32 %v4332, 1
    %v4437 = vadd.s32 %v4333, 1
    %v4438 = vadd.s32 %v4334, 1
    %v4439 = vadd.s32 %v4335, 1
    %v4440 = vadd.s32 %v4336, 1
    %v4441 = vadd.s32 %v4337, 1
    %4442 = vset.pattern.permute.xlu0 0
    %4443 = vperm.xlu0 %4442, %v4434
    %v4444 = vpop.permute.xlu0 %4443
    %4445 = vset.pattern.permute.xlu0 0
    %4446 = vperm.xlu0 %4445, %v4435
    %v4447 = vpop.permute.xlu0 %4446
    %4448 = vset.pattern.permute.xlu0 0
    %4449 = vperm.xlu0 %4448, %v4436
    %v4450 = vpop.permute.xlu0 %4449
    %4451 = vset.pattern.permute.xlu0 0
    %4452 = vperm.xlu0 %4451, %v4437
    %v4453 = vpop.permute.xlu0 %4452
    %4454 = vset.pattern.permute.xlu0 0
    %4455 = vperm.xlu0 %4454, %v4438
    %v4456 = vpop.permute.xlu0 %4455
    %4457 = vset.pattern.permute.xlu0 0
    %4458 = vperm.xlu0 %4457, %v4439
    %v4459 = vpop.permute.xlu0 %4458
    %4460 = vset.pattern.permute.xlu0 0
    %4461 = vperm.xlu0 %4460, %v4440
    %v4462 = vpop.permute.xlu0 %4461
    %4463 = vset.pattern.permute.xlu0 0
    %4464 = vperm.xlu0 %4463, %v4441
    %v4465 = vpop.permute.xlu0 %4464
    %vm4466 = vcmp.eq.s32.totalorder %v80, %v4444
    %vm4467 = vcmp.eq.s32.totalorder %v80, %v4447
    %vm4468 = vcmp.eq.s32.totalorder %v80, %v4450
    %vm4469 = vcmp.eq.s32.totalorder %v80, %v4453
    %vm4470 = vcmp.eq.s32.totalorder %v80, %v4456
    %vm4471 = vcmp.eq.s32.totalorder %v80, %v4459
    %vm4472 = vcmp.eq.s32.totalorder %v80, %v4462
    %vm4473 = vcmp.eq.s32.totalorder %v80, %v4465
    %v4474 = vmul.f32 %v4322, %v4274
    %v4475 = vmul.f32 %v4323, %v4275
    %v4476 = vmul.f32 %v4324, %v4276
    %v4477 = vmul.f32 %v4325, %v4277
    %v4478 = vmul.f32 %v4326, %v4278
    %v4479 = vmul.f32 %v4327, %v4279
    %v4480 = vmul.f32 %v4328, %v4280
    %v4481 = vmul.f32 %v4329, %v4281
    %4483 = vset.pattern.permute.xlu0 0
    %4484 = vperm.xlu0 %4483, %v4474
    %v4485 = vpop.permute.xlu0 %4484
    %4488 = vset.pattern.permute.xlu0 0
    %4489 = vperm.xlu0 %4488, %v4475
    %v4490 = vpop.permute.xlu0 %4489
    %4493 = vset.pattern.permute.xlu0 0
    %4494 = vperm.xlu0 %4493, %v4476
    %v4495 = vpop.permute.xlu0 %4494
    %4498 = vset.pattern.permute.xlu0 0
    %4499 = vperm.xlu0 %4498, %v4477
    %v4500 = vpop.permute.xlu0 %4499
    %4503 = vset.pattern.permute.xlu0 0
    %4504 = vperm.xlu0 %4503, %v4478
    %v4505 = vpop.permute.xlu0 %4504
    %4508 = vset.pattern.permute.xlu0 0
    %4509 = vperm.xlu0 %4508, %v4479
    %v4510 = vpop.permute.xlu0 %4509
    %4513 = vset.pattern.permute.xlu0 0
    %4514 = vperm.xlu0 %4513, %v4480
    %v4515 = vpop.permute.xlu0 %4514
    %4518 = vset.pattern.permute.xlu0 0
    %4519 = vperm.xlu0 %4518, %v4481
    %v4520 = vpop.permute.xlu0 %4519
    %v4522 = vsel %vm4466, %v4485, 0.0
    %v4523 = vsel %vm4467, %v4490, 0.0
    %v4524 = vsel %vm4468, %v4495, 0.0
    %v4525 = vsel %vm4469, %v4500, 0.0
    %v4526 = vsel %vm4470, %v4505, 0.0
    %v4527 = vsel %vm4471, %v4510, 0.0
    %v4528 = vsel %vm4472, %v4515, 0.0
    %v4529 = vsel %vm4473, %v4520, 0.0
    %v4530 = vadd.f32 %v4426, %v4522
    %v4531 = vadd.f32 %v4427, %v4523
    %v4532 = vadd.f32 %v4428, %v4524
    %v4533 = vadd.f32 %v4429, %v4525
    %v4534 = vadd.f32 %v4430, %v4526
    %v4535 = vadd.f32 %v4431, %v4527
    %v4536 = vadd.f32 %v4432, %v4528
    %v4537 = vadd.f32 %v4433, %v4529
    %v4539 = vrot.slane %v38, 7
    %4540 = vrot.lane.b32.xlu0 %v4539, 127
    %v4541 = vpop.permute.xlu0 %4540
    %v4542 = vsel %vm751, %v4541, %v750
    %v4544 = vrot.slane %v38, 6
    %4545 = vrot.lane.b32.xlu0 %v4544, 126
    %v4546 = vpop.permute.xlu0 %4545
    %v4547 = vsel %vm760, %v4546, %v759
    %v4549 = vrot.slane %v38, 5
    %4550 = vrot.lane.b32.xlu0 %v4549, 125
    %v4551 = vpop.permute.xlu0 %4550
    %v4552 = vsel %vm769, %v4551, %v768
    %v4554 = vrot.slane %v38, 4
    %4555 = vrot.lane.b32.xlu0 %v4554, 124
    %v4556 = vpop.permute.xlu0 %4555
    %v4557 = vsel %vm778, %v4556, %v777
    %v4559 = vrot.slane %v38, 3
    %4560 = vrot.lane.b32.xlu0 %v4559, 123
    %v4561 = vpop.permute.xlu0 %4560
    %v4562 = vsel %vm787, %v4561, %v786
    %v4564 = vrot.slane %v38, 2
    %4565 = vrot.lane.b32.xlu0 %v4564, 122
    %v4566 = vpop.permute.xlu0 %4565
    %v4567 = vsel %vm796, %v4566, %v795
    %v4569 = vrot.slane %v38, 1
    %4570 = vrot.lane.b32.xlu0 %v4569, 121
    %v4571 = vpop.permute.xlu0 %4570
    %v4572 = vsel %vm805, %v4571, %v804
    %4574 = vrot.lane.b32.xlu0 %v38, 120
    %v4575 = vpop.permute.xlu0 %4574
    %v4576 = vsel %vm812, %v4575, %v811
    %4578 = vrot.lane.b32.xlu0 %v4539, 119
    %v4579 = vpop.permute.xlu0 %4578
    %v4580 = vsel %vm819, %v4579, %v818
    %4582 = vrot.lane.b32.xlu0 %v4544, 118
    %v4583 = vpop.permute.xlu0 %4582
    %v4584 = vsel %vm826, %v4583, %v825
    %4586 = vrot.lane.b32.xlu0 %v4549, 117
    %v4587 = vpop.permute.xlu0 %4586
    %v4588 = vsel %vm833, %v4587, %v832
    %4590 = vrot.lane.b32.xlu0 %v4554, 116
    %v4591 = vpop.permute.xlu0 %4590
    %v4592 = vsel %vm840, %v4591, %v839
    %4594 = vrot.lane.b32.xlu0 %v4559, 115
    %v4595 = vpop.permute.xlu0 %4594
    %v4596 = vsel %vm847, %v4595, %v846
    %4598 = vrot.lane.b32.xlu0 %v4564, 114
    %v4599 = vpop.permute.xlu0 %4598
    %v4600 = vsel %vm854, %v4599, %v853
    %4602 = vrot.lane.b32.xlu0 %v4569, 113
    %v4603 = vpop.permute.xlu0 %4602
    %v4604 = vsel %vm861, %v4603, %v860
    %v4606 = vsel %vm864, %v38, %v4542
    %v4607 = vsel %vm866, %v4606, %v4547
    %v4608 = vsel %vm868, %v4607, %v4552
    %v4609 = vsel %vm870, %v4608, %v4557
    %v4610 = vsel %vm872, %v4609, %v4562
    %v4611 = vsel %vm874, %v4610, %v4567
    %v4612 = vsel %vm876, %v4611, %v4572
    %v4613 = vsel %vm864, %v4576, %v4580
    %v4614 = vsel %vm866, %v4613, %v4584
    %v4615 = vsel %vm868, %v4614, %v4588
    %v4616 = vsel %vm870, %v4615, %v4592
    %v4617 = vsel %vm872, %v4616, %v4596
    %v4618 = vsel %vm874, %v4617, %v4600
    %v4619 = vsel %vm876, %v4618, %v4604
    %4622 = vrot.lane.b32.xlu0 %v4612, 112
    %v4623 = vpop.permute.xlu0 %4622
    %4624 = vrot.lane.b32.xlu0 %v4619, 112
    %v4625 = vpop.permute.xlu0 %4624
    %v4626 = vsel %vm926, %v4623, %v921
    %v4627 = vsel %vm926, %v4625, %v925
    %4630 = vmatprep.subr.mxu0 0.0
    %4631 = vmatpush1.xpose.msra.mxu0 0.0
    %4632 = vmatprep.subr.mxu0 0.0
    %4633 = vmatpush1.xpose.msra.mxu0 0.0
    %4634 = vmatprep.subr.mxu0 0.0
    %4635 = vmatpush1.xpose.msra.mxu0 0.0
    %4636 = vmatprep.subr.mxu0 0.0
    %4637 = vmatpush1.xpose.msra.mxu0 0.0
    %4638 = vmatprep.subr.mxu0 0.0
    %4639 = vmatpush1.xpose.msra.mxu0 0.0
    %4640 = vmatprep.subr.mxu0 0.0
    %4641 = vmatpush1.xpose.msra.mxu0 0.0
    %4642 = vmatprep.subr.mxu0 0.0
    %4643 = vmatpush1.xpose.msra.mxu0 0.0
    %4644 = vmatprep.subr.mxu0 0.0
    %4645 = vmatpush1.xpose.msra.mxu0 0.0
    %4646 = vmatprep.subr.mxu0 0.0
    %4647 = vmatpush1.xpose.msra.mxu0 %v4537
    %4648 = vmatprep.subr.mxu0 0.0
    %4649 = vmatpush1.xpose.msra.mxu0 %v4536
    %4650 = vmatprep.subr.mxu0 0.0
    %4651 = vmatpush1.xpose.msra.mxu0 %v4535
    %4652 = vmatprep.subr.mxu0 0.0
    %4653 = vmatpush1.xpose.msra.mxu0 %v4534
    %4654 = vmatprep.subr.mxu0 0.0
    %4655 = vmatpush1.xpose.msra.mxu0 %v4533
    %4656 = vmatprep.subr.mxu0 0.0
    %4657 = vmatpush1.xpose.msra.mxu0 %v4532
    %4658 = vmatprep.subr.mxu0 0.0
    %4659 = vmatpush1.xpose.msra.mxu0 %v4531
    %4660 = vmatprep.subr.mxu0 0.0
    %4661 = vmatpush1.xpose.msra.mxu0 %v4530
    %4662 = vmatprep.subr.mxu0 0.0
    %4663 = vmatpush2.xpose.msra.mxu0 0.0
    %4664 = vmatprep.subr.mxu0 0.0
    %4665 = vmatpush2.xpose.msra.mxu0 0.0
    %4666 = vmatprep.subr.mxu0 0.0
    %4667 = vmatpush2.xpose.msra.mxu0 0.0
    %4668 = vmatprep.subr.mxu0 0.0
    %4669 = vmatpush2.xpose.msra.mxu0 0.0
    %4670 = vmatprep.subr.mxu0 0.0
    %4671 = vmatpush2.xpose.msra.mxu0 0.0
    %4672 = vmatprep.subr.mxu0 0.0
    %4673 = vmatpush2.xpose.msra.mxu0 0.0
    %4674 = vmatprep.subr.mxu0 0.0
    %4675 = vmatpush2.xpose.msra.mxu0 0.0
    %4676 = vmatprep.subr.mxu0 0.0
    %4677 = vmatpush2.xpose.msra.mxu0 0.0
    %4678 = vmatprep.subr.mxu0 0.0
    %4679 = vmatpush2.xpose.msra.mxu0 0.0
    %4680 = vmatprep.subr.mxu0 0.0
    %4681 = vmatpush2.xpose.msra.mxu0 0.0
    %4682 = vmatprep.subr.mxu0 0.0
    %4683 = vmatpush2.xpose.msra.mxu0 0.0
    %4684 = vmatprep.subr.mxu0 0.0
    %4685 = vmatpush2.xpose.msra.mxu0 0.0
    %4686 = vmatprep.subr.mxu0 0.0
    %4687 = vmatpush2.xpose.msra.mxu0 0.0
    %4688 = vmatprep.subr.mxu0 0.0
    %4689 = vmatpush2.xpose.msra.mxu0 0.0
    %4690 = vmatprep.subr.mxu0 0.0
    %4691 = vmatpush2.xpose.msra.mxu0 0.0
    %4692 = vmatprep.subr.mxu0 0.0
    %4693 = vmatpush2.xpose.msra.mxu0 0.0
    %4694 = vmatprep.mubr.f32.mxu0 0.0
    %4695 = vmatmul.mubr.f32.gmra.mxu0 %v4612
    %v4696 = vpop.f32.mrf.mxu0
    %v4697 = vadd.f32 0.0, %v4696
    %v4698 = vpop.f32.mrf.mxu0
    %4699 = vmatprep.mubr.f32.mxu0 0.0
    %4700 = vmatmul.mubr.f32.gmra.mxu0 %v4619
    %v4701 = vpop.f32.mrf.mxu0
    %v4702 = vadd.f32 0.0, %v4701
    %v4703 = vpop.f32.mrf.mxu0
    %4704 = vmatprep.mubr.f32.mxu0 0.0
    %4705 = vmatmul.mubr.f32.gmra.mxu0 %v4626
    %v4706 = vpop.f32.mrf.mxu0
    %v4707 = vadd.f32 0.0, %v4706
    %v4708 = vpop.f32.mrf.mxu0
    %4709 = vmatprep.mubr.f32.mxu0 0.0
    %4710 = vmatmul.mubr.f32.gmra.mxu0 %v4627
    %v4711 = vpop.f32.mrf.mxu0
    %v4712 = vadd.f32 0.0, %v4711
    %v4713 = vpop.f32.mrf.mxu0
    %4714 = vdwg.mxu0
    %v4715 = vsub.f32 %v3882, %v1016
    %v4716 = vsub.f32 %v3883, %v1016
    %v4717 = vsub.f32 %v3884, %v1016
    %v4718 = vsub.f32 %v3885, %v1016
    %v4719 = vsub.f32 %v3886, %v1016
    %v4720 = vsub.f32 %v3887, %v1016
    %v4721 = vsub.f32 %v3888, %v1016
    %v4722 = vsub.f32 %v3889, %v1016
    %v4723 = vmul.f32 %v4715, %v4715
    %v4724 = vmul.f32 %v4716, %v4716
    %v4725 = vmul.f32 %v4717, %v4717
    %v4726 = vmul.f32 %v4718, %v4718
    %v4727 = vmul.f32 %v4719, %v4719
    %v4728 = vmul.f32 %v4720, %v4720
    %v4729 = vmul.f32 %v4721, %v4721
    %v4730 = vmul.f32 %v4722, %v4722
    %v4731 = vsub.f32 %v3882, %v1033
    %v4732 = vsub.f32 %v3883, %v1033
    %v4733 = vsub.f32 %v3884, %v1033
    %v4734 = vsub.f32 %v3885, %v1033
    %v4735 = vsub.f32 %v3886, %v1033
    %v4736 = vsub.f32 %v3887, %v1033
    %v4737 = vsub.f32 %v3888, %v1033
    %v4738 = vsub.f32 %v3889, %v1033
    %v4739 = vmul.f32 %v4731, %v4731
    %v4740 = vmul.f32 %v4732, %v4732
    %v4741 = vmul.f32 %v4733, %v4733
    %v4742 = vmul.f32 %v4734, %v4734
    %v4743 = vmul.f32 %v4735, %v4735
    %v4744 = vmul.f32 %v4736, %v4736
    %v4745 = vmul.f32 %v4737, %v4737
    %v4746 = vmul.f32 %v4738, %v4738
    %4755 = vrot.lane.b32.xlu0 %v4739, 127
    %v4756 = vpop.permute.xlu0 %4755
    %4757 = vrot.lane.b32.xlu0 %v4740, 127
    %v4758 = vpop.permute.xlu0 %4757
    %4759 = vrot.lane.b32.xlu0 %v4741, 127
    %v4760 = vpop.permute.xlu0 %4759
    %4761 = vrot.lane.b32.xlu0 %v4742, 127
    %v4762 = vpop.permute.xlu0 %4761
    %4763 = vrot.lane.b32.xlu0 %v4743, 127
    %v4764 = vpop.permute.xlu0 %4763
    %4765 = vrot.lane.b32.xlu0 %v4744, 127
    %v4766 = vpop.permute.xlu0 %4765
    %4767 = vrot.lane.b32.xlu0 %v4745, 127
    %v4768 = vpop.permute.xlu0 %4767
    %4769 = vrot.lane.b32.xlu0 %v4746, 127
    %v4770 = vpop.permute.xlu0 %4769
    %v4779 = vadd.f32 %v4723, %v4756
    %v4780 = vadd.f32 %v4724, %v4758
    %v4781 = vadd.f32 %v4725, %v4760
    %v4782 = vadd.f32 %v4726, %v4762
    %v4783 = vadd.f32 %v4727, %v4764
    %v4784 = vadd.f32 %v4728, %v4766
    %v4785 = vadd.f32 %v4729, %v4768
    %v4786 = vadd.f32 %v4730, %v4770
    %v4787 = vsub.f32 %v3882, %v1090
    %v4788 = vsub.f32 %v3883, %v1090
    %v4789 = vsub.f32 %v3884, %v1090
    %v4790 = vsub.f32 %v3885, %v1090
    %v4791 = vsub.f32 %v3886, %v1090
    %v4792 = vsub.f32 %v3887, %v1090
    %v4793 = vsub.f32 %v3888, %v1090
    %v4794 = vsub.f32 %v3889, %v1090
    %v4795 = vmul.f32 %v4787, %v4787
    %v4796 = vmul.f32 %v4788, %v4788
    %v4797 = vmul.f32 %v4789, %v4789
    %v4798 = vmul.f32 %v4790, %v4790
    %v4799 = vmul.f32 %v4791, %v4791
    %v4800 = vmul.f32 %v4792, %v4792
    %v4801 = vmul.f32 %v4793, %v4793
    %v4802 = vmul.f32 %v4794, %v4794
    %4811 = vrot.lane.b32.xlu0 %v4795, 126
    %v4812 = vpop.permute.xlu0 %4811
    %4813 = vrot.lane.b32.xlu0 %v4796, 126
    %v4814 = vpop.permute.xlu0 %4813
    %4815 = vrot.lane.b32.xlu0 %v4797, 126
    %v4816 = vpop.permute.xlu0 %4815
    %4817 = vrot.lane.b32.xlu0 %v4798, 126
    %v4818 = vpop.permute.xlu0 %4817
    %4819 = vrot.lane.b32.xlu0 %v4799, 126
    %v4820 = vpop.permute.xlu0 %4819
    %4821 = vrot.lane.b32.xlu0 %v4800, 126
    %v4822 = vpop.permute.xlu0 %4821
    %4823 = vrot.lane.b32.xlu0 %v4801, 126
    %v4824 = vpop.permute.xlu0 %4823
    %4825 = vrot.lane.b32.xlu0 %v4802, 126
    %v4826 = vpop.permute.xlu0 %4825
    %v4835 = vadd.f32 %v4779, %v4812
    %v4836 = vadd.f32 %v4780, %v4814
    %v4837 = vadd.f32 %v4781, %v4816
    %v4838 = vadd.f32 %v4782, %v4818
    %v4839 = vadd.f32 %v4783, %v4820
    %v4840 = vadd.f32 %v4784, %v4822
    %v4841 = vadd.f32 %v4785, %v4824
    %v4842 = vadd.f32 %v4786, %v4826
    %v4843 = vrsqrt.pop %v4835
    %v4844 = vmul.f32 %v4835, %v4843
    %vm4845 = vcmp.eq.f32.partialorder %v4835, inf
    %v4846 = vsel %vm4845, %v4835, %v4844
    %vm4847 = vcmp.eq.f32.partialorder %v4835, 0.0
    %v4848 = vand.u32 %v4835, 2147483648
    %v4849 = vsel %vm4847, %v4848, %v4846
    %v4850 = vrsqrt.pop %v4836
    %v4851 = vmul.f32 %v4836, %v4850
    %vm4852 = vcmp.eq.f32.partialorder %v4836, inf
    %v4853 = vsel %vm4852, %v4836, %v4851
    %vm4854 = vcmp.eq.f32.partialorder %v4836, 0.0
    %v4855 = vand.u32 %v4836, 2147483648
    %v4856 = vsel %vm4854, %v4855, %v4853
    %v4857 = vrsqrt.pop %v4837
    %v4858 = vmul.f32 %v4837, %v4857
    %vm4859 = vcmp.eq.f32.partialorder %v4837, inf
    %v4860 = vsel %vm4859, %v4837, %v4858
    %vm4861 = vcmp.eq.f32.partialorder %v4837, 0.0
    %v4862 = vand.u32 %v4837, 2147483648
    %v4863 = vsel %vm4861, %v4862, %v4860
    %v4864 = vrsqrt.pop %v4838
    %v4865 = vmul.f32 %v4838, %v4864
    %vm4866 = vcmp.eq.f32.partialorder %v4838, inf
    %v4867 = vsel %vm4866, %v4838, %v4865
    %vm4868 = vcmp.eq.f32.partialorder %v4838, 0.0
    %v4869 = vand.u32 %v4838, 2147483648
    %v4870 = vsel %vm4868, %v4869, %v4867
    %v4871 = vrsqrt.pop %v4839
    %v4872 = vmul.f32 %v4839, %v4871
    %vm4873 = vcmp.eq.f32.partialorder %v4839, inf
    %v4874 = vsel %vm4873, %v4839, %v4872
    %vm4875 = vcmp.eq.f32.partialorder %v4839, 0.0
    %v4876 = vand.u32 %v4839, 2147483648
    %v4877 = vsel %vm4875, %v4876, %v4874
    %v4878 = vrsqrt.pop %v4840
    %v4879 = vmul.f32 %v4840, %v4878
    %vm4880 = vcmp.eq.f32.partialorder %v4840, inf
    %v4881 = vsel %vm4880, %v4840, %v4879
    %vm4882 = vcmp.eq.f32.partialorder %v4840, 0.0
    %v4883 = vand.u32 %v4840, 2147483648
    %v4884 = vsel %vm4882, %v4883, %v4881
    %v4885 = vrsqrt.pop %v4841
    %v4886 = vmul.f32 %v4841, %v4885
    %vm4887 = vcmp.eq.f32.partialorder %v4841, inf
    %v4888 = vsel %vm4887, %v4841, %v4886
    %vm4889 = vcmp.eq.f32.partialorder %v4841, 0.0
    %v4890 = vand.u32 %v4841, 2147483648
    %v4891 = vsel %vm4889, %v4890, %v4888
    %v4892 = vrsqrt.pop %v4842
    %v4893 = vmul.f32 %v4842, %v4892
    %vm4894 = vcmp.eq.f32.partialorder %v4842, inf
    %v4895 = vsel %vm4894, %v4842, %v4893
    %vm4896 = vcmp.eq.f32.partialorder %v4842, 0.0
    %v4897 = vand.u32 %v4842, 2147483648
    %v4898 = vsel %vm4896, %v4897, %v4895
    %v4899 = vadd.f32 %v4024, %v4849
    %v4900 = vadd.f32 %v4031, %v4856
    %v4901 = vadd.f32 %v4038, %v4863
    %v4902 = vadd.f32 %v4045, %v4870
    %v4903 = vadd.f32 %v4052, %v4877
    %v4904 = vadd.f32 %v4059, %v4884
    %v4905 = vadd.f32 %v4066, %v4891
    %v4906 = vadd.f32 %v4073, %v4898
    %v4907 = vmul.f32 %v4899, 34.985424
    %v4908 = vmul.f32 %v4900, 34.985424
    %v4909 = vmul.f32 %v4901, 34.985424
    %v4910 = vmul.f32 %v4902, 34.985424
    %v4911 = vmul.f32 %v4903, 34.985424
    %v4912 = vmul.f32 %v4904, 34.985424
    %v4913 = vmul.f32 %v4905, 34.985424
    %v4914 = vmul.f32 %v4906, 34.985424
    %v4915 = vmul.f32 %v4024, %v4849
    %v4916 = vmul.f32 %v4031, %v4856
    %v4917 = vmul.f32 %v4038, %v4863
    %v4918 = vmul.f32 %v4045, %v4870
    %v4919 = vmul.f32 %v4052, %v4877
    %v4920 = vmul.f32 %v4059, %v4884
    %v4921 = vmul.f32 %v4066, %v4891
    %v4922 = vmul.f32 %v4073, %v4898
    %v4923 = vfloor.f32 %v4907
    %v4924 = vfloor.f32 %v4908
    %v4925 = vfloor.f32 %v4909
    %v4926 = vfloor.f32 %v4910
    %v4927 = vfloor.f32 %v4911
    %v4928 = vfloor.f32 %v4912
    %v4929 = vfloor.f32 %v4913
    %v4930 = vfloor.f32 %v4914
    %v4931 = vmax.f32 %v4923, 0.0
    %v4932 = vmax.f32 %v4924, 0.0
    %v4933 = vmax.f32 %v4925, 0.0
    %v4934 = vmax.f32 %v4926, 0.0
    %v4935 = vmax.f32 %v4927, 0.0
    %v4936 = vmax.f32 %v4928, 0.0
    %v4937 = vmax.f32 %v4929, 0.0
    %v4938 = vmax.f32 %v4930, 0.0
    %v4939 = vmin.f32 %v4931, 95.0
    %v4940 = vmin.f32 %v4932, 95.0
    %v4941 = vmin.f32 %v4933, 95.0
    %v4942 = vmin.f32 %v4934, 95.0
    %v4943 = vmin.f32 %v4935, 95.0
    %v4944 = vmin.f32 %v4936, 95.0
    %v4945 = vmin.f32 %v4937, 95.0
    %v4946 = vmin.f32 %v4938, 95.0
    %v4947 = vsub.f32 %v4907, %v4939
    %v4948 = vsub.f32 %v4908, %v4940
    %v4949 = vsub.f32 %v4909, %v4941
    %v4950 = vsub.f32 %v4910, %v4942
    %v4951 = vsub.f32 %v4911, %v4943
    %v4952 = vsub.f32 %v4912, %v4944
    %v4953 = vsub.f32 %v4913, %v4945
    %v4954 = vsub.f32 %v4914, %v4946
    %v4955 = vmax.f32 %v4947, 0.0
    %v4956 = vmax.f32 %v4948, 0.0
    %v4957 = vmax.f32 %v4949, 0.0
    %v4958 = vmax.f32 %v4950, 0.0
    %v4959 = vmax.f32 %v4951, 0.0
    %v4960 = vmax.f32 %v4952, 0.0
    %v4961 = vmax.f32 %v4953, 0.0
    %v4962 = vmax.f32 %v4954, 0.0
    %v4963 = vmin.f32 %v4955, 1.0
    %v4964 = vmin.f32 %v4956, 1.0
    %v4965 = vmin.f32 %v4957, 1.0
    %v4966 = vmin.f32 %v4958, 1.0
    %v4967 = vmin.f32 %v4959, 1.0
    %v4968 = vmin.f32 %v4960, 1.0
    %v4969 = vmin.f32 %v4961, 1.0
    %v4970 = vmin.f32 %v4962, 1.0
    %v4971 = vcvt.f32.s32.to.zero.pseudo %v4939
    %v4972 = vcvt.f32.s32.to.zero.pseudo %v4940
    %v4973 = vcvt.f32.s32.to.zero.pseudo %v4941
    %v4974 = vcvt.f32.s32.to.zero.pseudo %v4942
    %v4975 = vcvt.f32.s32.to.zero.pseudo %v4943
    %v4976 = vcvt.f32.s32.to.zero.pseudo %v4944
    %v4977 = vcvt.f32.s32.to.zero.pseudo %v4945
    %v4978 = vcvt.f32.s32.to.zero.pseudo %v4946
    %4979 = vset.pattern.permute.xlu0 0
    %4980 = vperm.xlu0 %4979, %v4971
    %v4981 = vpop.permute.xlu0 %4980
    %4982 = vset.pattern.permute.xlu0 0
    %4983 = vperm.xlu0 %4982, %v4972
    %v4984 = vpop.permute.xlu0 %4983
    %4985 = vset.pattern.permute.xlu0 0
    %4986 = vperm.xlu0 %4985, %v4973
    %v4987 = vpop.permute.xlu0 %4986
    %4988 = vset.pattern.permute.xlu0 0
    %4989 = vperm.xlu0 %4988, %v4974
    %v4990 = vpop.permute.xlu0 %4989
    %4991 = vset.pattern.permute.xlu0 0
    %4992 = vperm.xlu0 %4991, %v4975
    %v4993 = vpop.permute.xlu0 %4992
    %4994 = vset.pattern.permute.xlu0 0
    %4995 = vperm.xlu0 %4994, %v4976
    %v4996 = vpop.permute.xlu0 %4995
    %4997 = vset.pattern.permute.xlu0 0
    %4998 = vperm.xlu0 %4997, %v4977
    %v4999 = vpop.permute.xlu0 %4998
    %5000 = vset.pattern.permute.xlu0 0
    %5001 = vperm.xlu0 %5000, %v4978
    %v5002 = vpop.permute.xlu0 %5001
    %vm5003 = vcmp.eq.s32.totalorder %v80, %v4981
    %vm5004 = vcmp.eq.s32.totalorder %v80, %v4984
    %vm5005 = vcmp.eq.s32.totalorder %v80, %v4987
    %vm5006 = vcmp.eq.s32.totalorder %v80, %v4990
    %vm5007 = vcmp.eq.s32.totalorder %v80, %v4993
    %vm5008 = vcmp.eq.s32.totalorder %v80, %v4996
    %vm5009 = vcmp.eq.s32.totalorder %v80, %v4999
    %vm5010 = vcmp.eq.s32.totalorder %v80, %v5002
    %v5011 = vsub.f32 1.0, %v4963
    %v5012 = vsub.f32 1.0, %v4964
    %v5013 = vsub.f32 1.0, %v4965
    %v5014 = vsub.f32 1.0, %v4966
    %v5015 = vsub.f32 1.0, %v4967
    %v5016 = vsub.f32 1.0, %v4968
    %v5017 = vsub.f32 1.0, %v4969
    %v5018 = vsub.f32 1.0, %v4970
    %v5019 = vmul.f32 %v5011, %v4915
    %v5020 = vmul.f32 %v5012, %v4916
    %v5021 = vmul.f32 %v5013, %v4917
    %v5022 = vmul.f32 %v5014, %v4918
    %v5023 = vmul.f32 %v5015, %v4919
    %v5024 = vmul.f32 %v5016, %v4920
    %v5025 = vmul.f32 %v5017, %v4921
    %v5026 = vmul.f32 %v5018, %v4922
    %5028 = vset.pattern.permute.xlu0 0
    %5029 = vperm.xlu0 %5028, %v5019
    %v5030 = vpop.permute.xlu0 %5029
    %5033 = vset.pattern.permute.xlu0 0
    %5034 = vperm.xlu0 %5033, %v5020
    %v5035 = vpop.permute.xlu0 %5034
    %5038 = vset.pattern.permute.xlu0 0
    %5039 = vperm.xlu0 %5038, %v5021
    %v5040 = vpop.permute.xlu0 %5039
    %5043 = vset.pattern.permute.xlu0 0
    %5044 = vperm.xlu0 %5043, %v5022
    %v5045 = vpop.permute.xlu0 %5044
    %5048 = vset.pattern.permute.xlu0 0
    %5049 = vperm.xlu0 %5048, %v5023
    %v5050 = vpop.permute.xlu0 %5049
    %5053 = vset.pattern.permute.xlu0 0
    %5054 = vperm.xlu0 %5053, %v5024
    %v5055 = vpop.permute.xlu0 %5054
    %5058 = vset.pattern.permute.xlu0 0
    %5059 = vperm.xlu0 %5058, %v5025
    %v5060 = vpop.permute.xlu0 %5059
    %5063 = vset.pattern.permute.xlu0 0
    %5064 = vperm.xlu0 %5063, %v5026
    %v5065 = vpop.permute.xlu0 %5064
    %v5067 = vsel %vm5003, %v5030, 0.0
    %v5068 = vsel %vm5004, %v5035, 0.0
    %v5069 = vsel %vm5005, %v5040, 0.0
    %v5070 = vsel %vm5006, %v5045, 0.0
    %v5071 = vsel %vm5007, %v5050, 0.0
    %v5072 = vsel %vm5008, %v5055, 0.0
    %v5073 = vsel %vm5009, %v5060, 0.0
    %v5074 = vsel %vm5010, %v5065, 0.0
    %v5075 = vadd.s32 %v4971, 1
    %v5076 = vadd.s32 %v4972, 1
    %v5077 = vadd.s32 %v4973, 1
    %v5078 = vadd.s32 %v4974, 1
    %v5079 = vadd.s32 %v4975, 1
    %v5080 = vadd.s32 %v4976, 1
    %v5081 = vadd.s32 %v4977, 1
    %v5082 = vadd.s32 %v4978, 1
    %5083 = vset.pattern.permute.xlu0 0
    %5084 = vperm.xlu0 %5083, %v5075
    %v5085 = vpop.permute.xlu0 %5084
    %5086 = vset.pattern.permute.xlu0 0
    %5087 = vperm.xlu0 %5086, %v5076
    %v5088 = vpop.permute.xlu0 %5087
    %5089 = vset.pattern.permute.xlu0 0
    %5090 = vperm.xlu0 %5089, %v5077
    %v5091 = vpop.permute.xlu0 %5090
    %5092 = vset.pattern.permute.xlu0 0
    %5093 = vperm.xlu0 %5092, %v5078
    %v5094 = vpop.permute.xlu0 %5093
    %5095 = vset.pattern.permute.xlu0 0
    %5096 = vperm.xlu0 %5095, %v5079
    %v5097 = vpop.permute.xlu0 %5096
    %5098 = vset.pattern.permute.xlu0 0
    %5099 = vperm.xlu0 %5098, %v5080
    %v5100 = vpop.permute.xlu0 %5099
    %5101 = vset.pattern.permute.xlu0 0
    %5102 = vperm.xlu0 %5101, %v5081
    %v5103 = vpop.permute.xlu0 %5102
    %5104 = vset.pattern.permute.xlu0 0
    %5105 = vperm.xlu0 %5104, %v5082
    %v5106 = vpop.permute.xlu0 %5105
    %vm5107 = vcmp.eq.s32.totalorder %v80, %v5085
    %vm5108 = vcmp.eq.s32.totalorder %v80, %v5088
    %vm5109 = vcmp.eq.s32.totalorder %v80, %v5091
    %vm5110 = vcmp.eq.s32.totalorder %v80, %v5094
    %vm5111 = vcmp.eq.s32.totalorder %v80, %v5097
    %vm5112 = vcmp.eq.s32.totalorder %v80, %v5100
    %vm5113 = vcmp.eq.s32.totalorder %v80, %v5103
    %vm5114 = vcmp.eq.s32.totalorder %v80, %v5106
    %v5115 = vmul.f32 %v4963, %v4915
    %v5116 = vmul.f32 %v4964, %v4916
    %v5117 = vmul.f32 %v4965, %v4917
    %v5118 = vmul.f32 %v4966, %v4918
    %v5119 = vmul.f32 %v4967, %v4919
    %v5120 = vmul.f32 %v4968, %v4920
    %v5121 = vmul.f32 %v4969, %v4921
    %v5122 = vmul.f32 %v4970, %v4922
    %5124 = vset.pattern.permute.xlu0 0
    %5125 = vperm.xlu0 %5124, %v5115
    %v5126 = vpop.permute.xlu0 %5125
    %5129 = vset.pattern.permute.xlu0 0
    %5130 = vperm.xlu0 %5129, %v5116
    %v5131 = vpop.permute.xlu0 %5130
    %5134 = vset.pattern.permute.xlu0 0
    %5135 = vperm.xlu0 %5134, %v5117
    %v5136 = vpop.permute.xlu0 %5135
    %5139 = vset.pattern.permute.xlu0 0
    %5140 = vperm.xlu0 %5139, %v5118
    %v5141 = vpop.permute.xlu0 %5140
    %5144 = vset.pattern.permute.xlu0 0
    %5145 = vperm.xlu0 %5144, %v5119
    %v5146 = vpop.permute.xlu0 %5145
    %5149 = vset.pattern.permute.xlu0 0
    %5150 = vperm.xlu0 %5149, %v5120
    %v5151 = vpop.permute.xlu0 %5150
    %5154 = vset.pattern.permute.xlu0 0
    %5155 = vperm.xlu0 %5154, %v5121
    %v5156 = vpop.permute.xlu0 %5155
    %5159 = vset.pattern.permute.xlu0 0
    %5160 = vperm.xlu0 %5159, %v5122
    %v5161 = vpop.permute.xlu0 %5160
    %v5163 = vsel %vm5107, %v5126, 0.0
    %v5164 = vsel %vm5108, %v5131, 0.0
    %v5165 = vsel %vm5109, %v5136, 0.0
    %v5166 = vsel %vm5110, %v5141, 0.0
    %v5167 = vsel %vm5111, %v5146, 0.0
    %v5168 = vsel %vm5112, %v5151, 0.0
    %v5169 = vsel %vm5113, %v5156, 0.0
    %v5170 = vsel %vm5114, %v5161, 0.0
    %v5171 = vadd.f32 %v5067, %v5163
    %v5172 = vadd.f32 %v5068, %v5164
    %v5173 = vadd.f32 %v5069, %v5165
    %v5174 = vadd.f32 %v5070, %v5166
    %v5175 = vadd.f32 %v5071, %v5167
    %v5176 = vadd.f32 %v5072, %v5168
    %v5177 = vadd.f32 %v5073, %v5169
    %v5178 = vadd.f32 %v5074, %v5170
    %5180 = vrot.lane.b32.xlu0 %v38, 127
    %v5181 = vpop.permute.xlu0 %5180
    %v5182 = vsel %vm751, %v5181, %v1487
    %5184 = vrot.lane.b32.xlu0 %v4539, 126
    %v5185 = vpop.permute.xlu0 %5184
    %v5186 = vsel %vm760, %v5185, %v1493
    %5188 = vrot.lane.b32.xlu0 %v4544, 125
    %v5189 = vpop.permute.xlu0 %5188
    %v5190 = vsel %vm769, %v5189, %v1499
    %5192 = vrot.lane.b32.xlu0 %v4549, 124
    %v5193 = vpop.permute.xlu0 %5192
    %v5194 = vsel %vm778, %v5193, %v1505
    %5196 = vrot.lane.b32.xlu0 %v4554, 123
    %v5197 = vpop.permute.xlu0 %5196
    %v5198 = vsel %vm787, %v5197, %v1511
    %5200 = vrot.lane.b32.xlu0 %v4559, 122
    %v5201 = vpop.permute.xlu0 %5200
    %v5202 = vsel %vm796, %v5201, %v1517
    %5204 = vrot.lane.b32.xlu0 %v4564, 121
    %v5205 = vpop.permute.xlu0 %5204
    %v5206 = vsel %vm805, %v5205, %v1523
    %5208 = vrot.lane.b32.xlu0 %v4569, 120
    %v5209 = vpop.permute.xlu0 %5208
    %v5210 = vsel %vm812, %v5209, %v1529
    %5212 = vrot.lane.b32.xlu0 %v38, 119
    %v5213 = vpop.permute.xlu0 %5212
    %v5214 = vsel %vm819, %v5213, %v1535
    %5216 = vrot.lane.b32.xlu0 %v4539, 118
    %v5217 = vpop.permute.xlu0 %5216
    %v5218 = vsel %vm826, %v5217, %v1541
    %5220 = vrot.lane.b32.xlu0 %v4544, 117
    %v5221 = vpop.permute.xlu0 %5220
    %v5222 = vsel %vm833, %v5221, %v1547
    %5224 = vrot.lane.b32.xlu0 %v4549, 116
    %v5225 = vpop.permute.xlu0 %5224
    %v5226 = vsel %vm840, %v5225, %v1553
    %5228 = vrot.lane.b32.xlu0 %v4554, 115
    %v5229 = vpop.permute.xlu0 %5228
    %v5230 = vsel %vm847, %v5229, %v1559
    %5232 = vrot.lane.b32.xlu0 %v4559, 114
    %v5233 = vpop.permute.xlu0 %5232
    %v5234 = vsel %vm854, %v5233, %v1565
    %5236 = vrot.lane.b32.xlu0 %v4564, 113
    %v5237 = vpop.permute.xlu0 %5236
    %v5238 = vsel %vm861, %v5237, %v1571
    %v5240 = vsel %vm864, %v4569, %v5182
    %v5241 = vsel %vm866, %v5240, %v5186
    %v5242 = vsel %vm868, %v5241, %v5190
    %v5243 = vsel %vm870, %v5242, %v5194
    %v5244 = vsel %vm872, %v5243, %v5198
    %v5245 = vsel %vm874, %v5244, %v5202
    %v5246 = vsel %vm876, %v5245, %v5206
    %v5247 = vsel %vm864, %v5210, %v5214
    %v5248 = vsel %vm866, %v5247, %v5218
    %v5249 = vsel %vm868, %v5248, %v5222
    %v5250 = vsel %vm870, %v5249, %v5226
    %v5251 = vsel %vm872, %v5250, %v5230
    %v5252 = vsel %vm874, %v5251, %v5234
    %v5253 = vsel %vm876, %v5252, %v5238
    %5256 = vrot.lane.b32.xlu0 %v5246, 112
    %v5257 = vpop.permute.xlu0 %5256
    %5258 = vrot.lane.b32.xlu0 %v5253, 112
    %v5259 = vpop.permute.xlu0 %5258
    %v5260 = vsel %vm926, %v5257, %v1625
    %v5261 = vsel %vm926, %v5259, %v1629
    %5264 = vmatprep.subr.mxu0 0.0
    %5265 = vmatpush1.xpose.msra.mxu0 0.0
    %5266 = vmatprep.subr.mxu0 0.0
    %5267 = vmatpush1.xpose.msra.mxu0 0.0
    %5268 = vmatprep.subr.mxu0 0.0
    %5269 = vmatpush1.xpose.msra.mxu0 0.0
    %5270 = vmatprep.subr.mxu0 0.0
    %5271 = vmatpush1.xpose.msra.mxu0 0.0
    %5272 = vmatprep.subr.mxu0 0.0
    %5273 = vmatpush1.xpose.msra.mxu0 0.0
    %5274 = vmatprep.subr.mxu0 0.0
    %5275 = vmatpush1.xpose.msra.mxu0 0.0
    %5276 = vmatprep.subr.mxu0 0.0
    %5277 = vmatpush1.xpose.msra.mxu0 0.0
    %5278 = vmatprep.subr.mxu0 0.0
    %5279 = vmatpush1.xpose.msra.mxu0 0.0
    %5280 = vmatprep.subr.mxu0 0.0
    %5281 = vmatpush1.xpose.msra.mxu0 %v5178
    %5282 = vmatprep.subr.mxu0 0.0
    %5283 = vmatpush1.xpose.msra.mxu0 %v5177
    %5284 = vmatprep.subr.mxu0 0.0
    %5285 = vmatpush1.xpose.msra.mxu0 %v5176
    %5286 = vmatprep.subr.mxu0 0.0
    %5287 = vmatpush1.xpose.msra.mxu0 %v5175
    %5288 = vmatprep.subr.mxu0 0.0
    %5289 = vmatpush1.xpose.msra.mxu0 %v5174
    %5290 = vmatprep.subr.mxu0 0.0
    %5291 = vmatpush1.xpose.msra.mxu0 %v5173
    %5292 = vmatprep.subr.mxu0 0.0
    %5293 = vmatpush1.xpose.msra.mxu0 %v5172
    %5294 = vmatprep.subr.mxu0 0.0
    %5295 = vmatpush1.xpose.msra.mxu0 %v5171
    %5296 = vmatprep.subr.mxu0 0.0
    %5297 = vmatpush2.xpose.msra.mxu0 0.0
    %5298 = vmatprep.subr.mxu0 0.0
    %5299 = vmatpush2.xpose.msra.mxu0 0.0
    %5300 = vmatprep.subr.mxu0 0.0
    %5301 = vmatpush2.xpose.msra.mxu0 0.0
    %5302 = vmatprep.subr.mxu0 0.0
    %5303 = vmatpush2.xpose.msra.mxu0 0.0
    %5304 = vmatprep.subr.mxu0 0.0
    %5305 = vmatpush2.xpose.msra.mxu0 0.0
    %5306 = vmatprep.subr.mxu0 0.0
    %5307 = vmatpush2.xpose.msra.mxu0 0.0
    %5308 = vmatprep.subr.mxu0 0.0
    %5309 = vmatpush2.xpose.msra.mxu0 0.0
    %5310 = vmatprep.subr.mxu0 0.0
    %5311 = vmatpush2.xpose.msra.mxu0 0.0
    %5312 = vmatprep.subr.mxu0 0.0
    %5313 = vmatpush2.xpose.msra.mxu0 0.0
    %5314 = vmatprep.subr.mxu0 0.0
    %5315 = vmatpush2.xpose.msra.mxu0 0.0
    %5316 = vmatprep.subr.mxu0 0.0
    %5317 = vmatpush2.xpose.msra.mxu0 0.0
    %5318 = vmatprep.subr.mxu0 0.0
    %5319 = vmatpush2.xpose.msra.mxu0 0.0
    %5320 = vmatprep.subr.mxu0 0.0
    %5321 = vmatpush2.xpose.msra.mxu0 0.0
    %5322 = vmatprep.subr.mxu0 0.0
    %5323 = vmatpush2.xpose.msra.mxu0 0.0
    %5324 = vmatprep.subr.mxu0 0.0
    %5325 = vmatpush2.xpose.msra.mxu0 0.0
    %5326 = vmatprep.subr.mxu0 0.0
    %5327 = vmatpush2.xpose.msra.mxu0 0.0
    %5328 = vmatprep.mubr.f32.mxu0 0.0
    %5329 = vmatmul.mubr.f32.gmra.mxu0 %v5246
    %v5330 = vpop.f32.mrf.mxu0
    %v5331 = vadd.f32 0.0, %v5330
    %v5332 = vpop.f32.mrf.mxu0
    %5333 = vmatprep.mubr.f32.mxu0 0.0
    %5334 = vmatmul.mubr.f32.gmra.mxu0 %v5253
    %v5335 = vpop.f32.mrf.mxu0
    %v5336 = vadd.f32 0.0, %v5335
    %v5337 = vpop.f32.mrf.mxu0
    %5338 = vmatprep.mubr.f32.mxu0 0.0
    %5339 = vmatmul.mubr.f32.gmra.mxu0 %v5260
    %v5340 = vpop.f32.mrf.mxu0
    %v5341 = vadd.f32 0.0, %v5340
    %v5342 = vpop.f32.mrf.mxu0
    %5343 = vmatprep.mubr.f32.mxu0 0.0
    %5344 = vmatmul.mubr.f32.gmra.mxu0 %v5261
    %v5345 = vpop.f32.mrf.mxu0
    %v5346 = vadd.f32 0.0, %v5345
    %v5347 = vpop.f32.mrf.mxu0
    %5348 = vdwg.mxu0
    %5349 = vmatprep.subr.mxu0 0.0
    %5350 = vmatpush1.msra.mxu0 0.0
    %5351 = vmatprep.subr.mxu0 0.0
    %5352 = vmatpush1.msra.mxu0 0.0
    %5353 = vmatprep.subr.mxu0 0.0
    %5354 = vmatpush1.msra.mxu0 0.0
    %5355 = vmatprep.subr.mxu0 0.0
    %5356 = vmatpush1.msra.mxu0 0.0
    %5357 = vmatprep.subr.mxu0 0.0
    %5358 = vmatpush1.msra.mxu0 0.0
    %5359 = vmatprep.subr.mxu0 0.0
    %5360 = vmatpush1.msra.mxu0 0.0
    %5361 = vmatprep.subr.mxu0 0.0
    %5362 = vmatpush1.msra.mxu0 0.0
    %5363 = vmatprep.subr.mxu0 0.0
    %5364 = vmatpush1.msra.mxu0 0.0
    %5365 = vmatprep.subr.mxu0 0.0
    %5366 = vmatpush1.msra.mxu0 0.0
    %5367 = vmatprep.subr.mxu0 0.0
    %5368 = vmatpush1.msra.mxu0 0.0
    %5369 = vmatprep.subr.mxu0 0.0
    %5370 = vmatpush1.msra.mxu0 0.0
    %5371 = vmatprep.subr.mxu0 0.0
    %5372 = vmatpush1.msra.mxu0 0.0
    %5373 = vmatprep.subr.mxu0 0.0
    %5374 = vmatpush1.msra.mxu0 %v5346
    %5375 = vmatprep.subr.mxu0 0.0
    %5376 = vmatpush1.msra.mxu0 %v5341
    %5377 = vmatprep.subr.mxu0 0.0
    %5378 = vmatpush1.msra.mxu0 %v5336
    %5379 = vmatprep.subr.mxu0 0.0
    %5380 = vmatpush1.msra.mxu0 %v5331
    %5381 = vmatprep.subr.mxu0 0.0
    %5382 = vmatpush2.msra.mxu0 0.0
    %5383 = vmatprep.subr.mxu0 0.0
    %5384 = vmatpush2.msra.mxu0 0.0
    %5385 = vmatprep.subr.mxu0 0.0
    %5386 = vmatpush2.msra.mxu0 0.0
    %5387 = vmatprep.subr.mxu0 0.0
    %5388 = vmatpush2.msra.mxu0 0.0
    %5389 = vmatprep.subr.mxu0 0.0
    %5390 = vmatpush2.msra.mxu0 0.0
    %5391 = vmatprep.subr.mxu0 0.0
    %5392 = vmatpush2.msra.mxu0 0.0
    %5393 = vmatprep.subr.mxu0 0.0
    %5394 = vmatpush2.msra.mxu0 0.0
    %5395 = vmatprep.subr.mxu0 0.0
    %5396 = vmatpush2.msra.mxu0 0.0
    %5397 = vmatprep.subr.mxu0 0.0
    %5398 = vmatpush2.msra.mxu0 0.0
    %5399 = vmatprep.subr.mxu0 0.0
    %5400 = vmatpush2.msra.mxu0 0.0
    %5401 = vmatprep.subr.mxu0 0.0
    %5402 = vmatpush2.msra.mxu0 0.0
    %5403 = vmatprep.subr.mxu0 0.0
    %5404 = vmatpush2.msra.mxu0 0.0
    %5405 = vmatprep.subr.mxu0 0.0
    %5406 = vmatpush2.msra.mxu0 0.0
    %5407 = vmatprep.subr.mxu0 0.0
    %5408 = vmatpush2.msra.mxu0 0.0
    %5409 = vmatprep.subr.mxu0 0.0
    %5410 = vmatpush2.msra.mxu0 0.0
    %5411 = vmatprep.subr.mxu0 0.0
    %5412 = vmatpush2.msra.mxu0 0.0
    %5413 = vmatprep.mubr.f32.mxu0 0.0
    %5414 = vmatmul.mubr.f32.gmra.mxu0 %v1753
    %v5415 = vpop.f32.mrf.mxu0
    %v5416 = vadd.f32 0.0, %v5415
    %v5417 = vpop.f32.mrf.mxu0
    %5418 = vmatprep.mubr.f32.mxu0 0.0
    %5419 = vmatmul.mubr.f32.gmra.mxu0 %v1756
    %v5420 = vpop.f32.mrf.mxu0
    %v5421 = vadd.f32 0.0, %v5420
    %v5422 = vpop.f32.mrf.mxu0
    %5423 = vmatprep.mubr.f32.mxu0 0.0
    %5424 = vmatmul.mubr.f32.gmra.mxu0 %v1759
    %v5425 = vpop.f32.mrf.mxu0
    %v5426 = vadd.f32 0.0, %v5425
    %v5427 = vpop.f32.mrf.mxu0
    %5428 = vmatprep.mubr.f32.mxu0 0.0
    %5429 = vmatmul.mubr.f32.gmra.mxu0 %v1762
    %v5430 = vpop.f32.mrf.mxu0
    %v5431 = vadd.f32 0.0, %v5430
    %v5432 = vpop.f32.mrf.mxu0
    %5433 = vdwg.mxu0
    %5434 = vmatprep.subr.mxu0 0.0
    %5435 = vmatpush1.msra.mxu0 0.0
    %5436 = vmatprep.subr.mxu0 0.0
    %5437 = vmatpush1.msra.mxu0 0.0
    %5438 = vmatprep.subr.mxu0 0.0
    %5439 = vmatpush1.msra.mxu0 0.0
    %5440 = vmatprep.subr.mxu0 0.0
    %5441 = vmatpush1.msra.mxu0 0.0
    %5442 = vmatprep.subr.mxu0 0.0
    %5443 = vmatpush1.msra.mxu0 0.0
    %5444 = vmatprep.subr.mxu0 0.0
    %5445 = vmatpush1.msra.mxu0 0.0
    %5446 = vmatprep.subr.mxu0 0.0
    %5447 = vmatpush1.msra.mxu0 0.0
    %5448 = vmatprep.subr.mxu0 0.0
    %5449 = vmatpush1.msra.mxu0 0.0
    %5450 = vmatprep.subr.mxu0 0.0
    %5451 = vmatpush1.msra.mxu0 0.0
    %5452 = vmatprep.subr.mxu0 0.0
    %5453 = vmatpush1.msra.mxu0 0.0
    %5454 = vmatprep.subr.mxu0 0.0
    %5455 = vmatpush1.msra.mxu0 0.0
    %5456 = vmatprep.subr.mxu0 0.0
    %5457 = vmatpush1.msra.mxu0 0.0
    %5458 = vmatprep.subr.mxu0 0.0
    %5459 = vmatpush1.msra.mxu0 %v4712
    %5460 = vmatprep.subr.mxu0 0.0
    %5461 = vmatpush1.msra.mxu0 %v4707
    %5462 = vmatprep.subr.mxu0 0.0
    %5463 = vmatpush1.msra.mxu0 %v4702
    %5464 = vmatprep.subr.mxu0 0.0
    %5465 = vmatpush1.msra.mxu0 %v4697
    %5466 = vmatprep.subr.mxu0 0.0
    %5467 = vmatpush2.msra.mxu0 0.0
    %5468 = vmatprep.subr.mxu0 0.0
    %5469 = vmatpush2.msra.mxu0 0.0
    %5470 = vmatprep.subr.mxu0 0.0
    %5471 = vmatpush2.msra.mxu0 0.0
    %5472 = vmatprep.subr.mxu0 0.0
    %5473 = vmatpush2.msra.mxu0 0.0
    %5474 = vmatprep.subr.mxu0 0.0
    %5475 = vmatpush2.msra.mxu0 0.0
    %5476 = vmatprep.subr.mxu0 0.0
    %5477 = vmatpush2.msra.mxu0 0.0
    %5478 = vmatprep.subr.mxu0 0.0
    %5479 = vmatpush2.msra.mxu0 0.0
    %5480 = vmatprep.subr.mxu0 0.0
    %5481 = vmatpush2.msra.mxu0 0.0
    %5482 = vmatprep.subr.mxu0 0.0
    %5483 = vmatpush2.msra.mxu0 0.0
    %5484 = vmatprep.subr.mxu0 0.0
    %5485 = vmatpush2.msra.mxu0 0.0
    %5486 = vmatprep.subr.mxu0 0.0
    %5487 = vmatpush2.msra.mxu0 0.0
    %5488 = vmatprep.subr.mxu0 0.0
    %5489 = vmatpush2.msra.mxu0 0.0
    %5490 = vmatprep.subr.mxu0 0.0
    %5491 = vmatpush2.msra.mxu0 0.0
    %5492 = vmatprep.subr.mxu0 0.0
    %5493 = vmatpush2.msra.mxu0 0.0
    %5494 = vmatprep.subr.mxu0 0.0
    %5495 = vmatpush2.msra.mxu0 0.0
    %5496 = vmatprep.subr.mxu0 0.0
    %5497 = vmatpush2.msra.mxu0 0.0
    %5498 = vmatprep.mubr.f32.mxu0 0.0
    %5499 = vmatmul.mubr.f32.gmra.mxu0 %v1882
    %v5500 = vpop.f32.mrf.mxu0
    %v5501 = vadd.f32 %v5416, %v5500
    %v5502 = vpop.f32.mrf.mxu0
    %5503 = vmatprep.mubr.f32.mxu0 0.0
    %5504 = vmatmul.mubr.f32.gmra.mxu0 %v1885
    %v5505 = vpop.f32.mrf.mxu0
    %v5506 = vadd.f32 %v5421, %v5505
    %v5507 = vpop.f32.mrf.mxu0
    %5508 = vmatprep.mubr.f32.mxu0 0.0
    %5509 = vmatmul.mubr.f32.gmra.mxu0 %v1888
    %v5510 = vpop.f32.mrf.mxu0
    %v5511 = vadd.f32 %v5426, %v5510
    %v5512 = vpop.f32.mrf.mxu0
    %5513 = vmatprep.mubr.f32.mxu0 0.0
    %5514 = vmatmul.mubr.f32.gmra.mxu0 %v1891
    %v5515 = vpop.f32.mrf.mxu0
    %v5516 = vadd.f32 %v5431, %v5515
    %v5517 = vpop.f32.mrf.mxu0
    %5518 = vdwg.mxu0
    %v5519 = vsub.f32 %v3882, %v1978
    %v5520 = vsub.f32 %v3883, %v1978
    %v5521 = vsub.f32 %v3884, %v1978
    %v5522 = vsub.f32 %v3885, %v1978
    %v5523 = vsub.f32 %v3886, %v1978
    %v5524 = vsub.f32 %v3887, %v1978
    %v5525 = vsub.f32 %v3888, %v1978
    %v5526 = vsub.f32 %v3889, %v1978
    %v5527 = vmul.f32 %v5519, %v5519
    %v5528 = vmul.f32 %v5520, %v5520
    %v5529 = vmul.f32 %v5521, %v5521
    %v5530 = vmul.f32 %v5522, %v5522
    %v5531 = vmul.f32 %v5523, %v5523
    %v5532 = vmul.f32 %v5524, %v5524
    %v5533 = vmul.f32 %v5525, %v5525
    %v5534 = vmul.f32 %v5526, %v5526
    %v5535 = vsub.f32 %v3882, %v1995
    %v5536 = vsub.f32 %v3883, %v1995
    %v5537 = vsub.f32 %v3884, %v1995
    %v5538 = vsub.f32 %v3885, %v1995
    %v5539 = vsub.f32 %v3886, %v1995
    %v5540 = vsub.f32 %v3887, %v1995
    %v5541 = vsub.f32 %v3888, %v1995
    %v5542 = vsub.f32 %v3889, %v1995
    %v5543 = vmul.f32 %v5535, %v5535
    %v5544 = vmul.f32 %v5536, %v5536
    %v5545 = vmul.f32 %v5537, %v5537
    %v5546 = vmul.f32 %v5538, %v5538
    %v5547 = vmul.f32 %v5539, %v5539
    %v5548 = vmul.f32 %v5540, %v5540
    %v5549 = vmul.f32 %v5541, %v5541
    %v5550 = vmul.f32 %v5542, %v5542
    %5559 = vrot.lane.b32.xlu0 %v5543, 127
    %v5560 = vpop.permute.xlu0 %5559
    %5561 = vrot.lane.b32.xlu0 %v5544, 127
    %v5562 = vpop.permute.xlu0 %5561
    %5563 = vrot.lane.b32.xlu0 %v5545, 127
    %v5564 = vpop.permute.xlu0 %5563
    %5565 = vrot.lane.b32.xlu0 %v5546, 127
    %v5566 = vpop.permute.xlu0 %5565
    %5567 = vrot.lane.b32.xlu0 %v5547, 127
    %v5568 = vpop.permute.xlu0 %5567
    %5569 = vrot.lane.b32.xlu0 %v5548, 127
    %v5570 = vpop.permute.xlu0 %5569
    %5571 = vrot.lane.b32.xlu0 %v5549, 127
    %v5572 = vpop.permute.xlu0 %5571
    %5573 = vrot.lane.b32.xlu0 %v5550, 127
    %v5574 = vpop.permute.xlu0 %5573
    %v5583 = vadd.f32 %v5527, %v5560
    %v5584 = vadd.f32 %v5528, %v5562
    %v5585 = vadd.f32 %v5529, %v5564
    %v5586 = vadd.f32 %v5530, %v5566
    %v5587 = vadd.f32 %v5531, %v5568
    %v5588 = vadd.f32 %v5532, %v5570
    %v5589 = vadd.f32 %v5533, %v5572
    %v5590 = vadd.f32 %v5534, %v5574
    %v5591 = vsub.f32 %v3882, %v2052
    %v5592 = vsub.f32 %v3883, %v2052
    %v5593 = vsub.f32 %v3884, %v2052
    %v5594 = vsub.f32 %v3885, %v2052
    %v5595 = vsub.f32 %v3886, %v2052
    %v5596 = vsub.f32 %v3887, %v2052
    %v5597 = vsub.f32 %v3888, %v2052
    %v5598 = vsub.f32 %v3889, %v2052
    %v5599 = vmul.f32 %v5591, %v5591
    %v5600 = vmul.f32 %v5592, %v5592
    %v5601 = vmul.f32 %v5593, %v5593
    %v5602 = vmul.f32 %v5594, %v5594
    %v5603 = vmul.f32 %v5595, %v5595
    %v5604 = vmul.f32 %v5596, %v5596
    %v5605 = vmul.f32 %v5597, %v5597
    %v5606 = vmul.f32 %v5598, %v5598
    %5615 = vrot.lane.b32.xlu0 %v5599, 126
    %v5616 = vpop.permute.xlu0 %5615
    %5617 = vrot.lane.b32.xlu0 %v5600, 126
    %v5618 = vpop.permute.xlu0 %5617
    %5619 = vrot.lane.b32.xlu0 %v5601, 126
    %v5620 = vpop.permute.xlu0 %5619
    %5621 = vrot.lane.b32.xlu0 %v5602, 126
    %v5622 = vpop.permute.xlu0 %5621
    %5623 = vrot.lane.b32.xlu0 %v5603, 126
    %v5624 = vpop.permute.xlu0 %5623
    %5625 = vrot.lane.b32.xlu0 %v5604, 126
    %v5626 = vpop.permute.xlu0 %5625
    %5627 = vrot.lane.b32.xlu0 %v5605, 126
    %v5628 = vpop.permute.xlu0 %5627
    %5629 = vrot.lane.b32.xlu0 %v5606, 126
    %v5630 = vpop.permute.xlu0 %5629
    %v5639 = vadd.f32 %v5583, %v5616
    %v5640 = vadd.f32 %v5584, %v5618
    %v5641 = vadd.f32 %v5585, %v5620
    %v5642 = vadd.f32 %v5586, %v5622
    %v5643 = vadd.f32 %v5587, %v5624
    %v5644 = vadd.f32 %v5588, %v5626
    %v5645 = vadd.f32 %v5589, %v5628
    %v5646 = vadd.f32 %v5590, %v5630
    %v5647 = vrsqrt.pop %v5639
    %v5648 = vmul.f32 %v5639, %v5647
    %vm5649 = vcmp.eq.f32.partialorder %v5639, inf
    %v5650 = vsel %vm5649, %v5639, %v5648
    %vm5651 = vcmp.eq.f32.partialorder %v5639, 0.0
    %v5652 = vand.u32 %v5639, 2147483648
    %v5653 = vsel %vm5651, %v5652, %v5650
    %v5654 = vrsqrt.pop %v5640
    %v5655 = vmul.f32 %v5640, %v5654
    %vm5656 = vcmp.eq.f32.partialorder %v5640, inf
    %v5657 = vsel %vm5656, %v5640, %v5655
    %vm5658 = vcmp.eq.f32.partialorder %v5640, 0.0
    %v5659 = vand.u32 %v5640, 2147483648
    %v5660 = vsel %vm5658, %v5659, %v5657
    %v5661 = vrsqrt.pop %v5641
    %v5662 = vmul.f32 %v5641, %v5661
    %vm5663 = vcmp.eq.f32.partialorder %v5641, inf
    %v5664 = vsel %vm5663, %v5641, %v5662
    %vm5665 = vcmp.eq.f32.partialorder %v5641, 0.0
    %v5666 = vand.u32 %v5641, 2147483648
    %v5667 = vsel %vm5665, %v5666, %v5664
    %v5668 = vrsqrt.pop %v5642
    %v5669 = vmul.f32 %v5642, %v5668
    %vm5670 = vcmp.eq.f32.partialorder %v5642, inf
    %v5671 = vsel %vm5670, %v5642, %v5669
    %vm5672 = vcmp.eq.f32.partialorder %v5642, 0.0
    %v5673 = vand.u32 %v5642, 2147483648
    %v5674 = vsel %vm5672, %v5673, %v5671
    %v5675 = vrsqrt.pop %v5643
    %v5676 = vmul.f32 %v5643, %v5675
    %vm5677 = vcmp.eq.f32.partialorder %v5643, inf
    %v5678 = vsel %vm5677, %v5643, %v5676
    %vm5679 = vcmp.eq.f32.partialorder %v5643, 0.0
    %v5680 = vand.u32 %v5643, 2147483648
    %v5681 = vsel %vm5679, %v5680, %v5678
    %v5682 = vrsqrt.pop %v5644
    %v5683 = vmul.f32 %v5644, %v5682
    %vm5684 = vcmp.eq.f32.partialorder %v5644, inf
    %v5685 = vsel %vm5684, %v5644, %v5683
    %vm5686 = vcmp.eq.f32.partialorder %v5644, 0.0
    %v5687 = vand.u32 %v5644, 2147483648
    %v5688 = vsel %vm5686, %v5687, %v5685
    %v5689 = vrsqrt.pop %v5645
    %v5690 = vmul.f32 %v5645, %v5689
    %vm5691 = vcmp.eq.f32.partialorder %v5645, inf
    %v5692 = vsel %vm5691, %v5645, %v5690
    %vm5693 = vcmp.eq.f32.partialorder %v5645, 0.0
    %v5694 = vand.u32 %v5645, 2147483648
    %v5695 = vsel %vm5693, %v5694, %v5692
    %v5696 = vrsqrt.pop %v5646
    %v5697 = vmul.f32 %v5646, %v5696
    %vm5698 = vcmp.eq.f32.partialorder %v5646, inf
    %v5699 = vsel %vm5698, %v5646, %v5697
    %vm5700 = vcmp.eq.f32.partialorder %v5646, 0.0
    %v5701 = vand.u32 %v5646, 2147483648
    %v5702 = vsel %vm5700, %v5701, %v5699
    %v5703 = vadd.f32 %v4024, %v5653
    %v5704 = vadd.f32 %v4031, %v5660
    %v5705 = vadd.f32 %v4038, %v5667
    %v5706 = vadd.f32 %v4045, %v5674
    %v5707 = vadd.f32 %v4052, %v5681
    %v5708 = vadd.f32 %v4059, %v5688
    %v5709 = vadd.f32 %v4066, %v5695
    %v5710 = vadd.f32 %v4073, %v5702
    %v5711 = vmul.f32 %v5703, 34.985424
    %v5712 = vmul.f32 %v5704, 34.985424
    %v5713 = vmul.f32 %v5705, 34.985424
    %v5714 = vmul.f32 %v5706, 34.985424
    %v5715 = vmul.f32 %v5707, 34.985424
    %v5716 = vmul.f32 %v5708, 34.985424
    %v5717 = vmul.f32 %v5709, 34.985424
    %v5718 = vmul.f32 %v5710, 34.985424
    %v5719 = vmul.f32 %v4024, %v5653
    %v5720 = vmul.f32 %v4031, %v5660
    %v5721 = vmul.f32 %v4038, %v5667
    %v5722 = vmul.f32 %v4045, %v5674
    %v5723 = vmul.f32 %v4052, %v5681
    %v5724 = vmul.f32 %v4059, %v5688
    %v5725 = vmul.f32 %v4066, %v5695
    %v5726 = vmul.f32 %v4073, %v5702
    %v5727 = vfloor.f32 %v5711
    %v5728 = vfloor.f32 %v5712
    %v5729 = vfloor.f32 %v5713
    %v5730 = vfloor.f32 %v5714
    %v5731 = vfloor.f32 %v5715
    %v5732 = vfloor.f32 %v5716
    %v5733 = vfloor.f32 %v5717
    %v5734 = vfloor.f32 %v5718
    %v5735 = vmax.f32 %v5727, 0.0
    %v5736 = vmax.f32 %v5728, 0.0
    %v5737 = vmax.f32 %v5729, 0.0
    %v5738 = vmax.f32 %v5730, 0.0
    %v5739 = vmax.f32 %v5731, 0.0
    %v5740 = vmax.f32 %v5732, 0.0
    %v5741 = vmax.f32 %v5733, 0.0
    %v5742 = vmax.f32 %v5734, 0.0
    %v5743 = vmin.f32 %v5735, 95.0
    %v5744 = vmin.f32 %v5736, 95.0
    %v5745 = vmin.f32 %v5737, 95.0
    %v5746 = vmin.f32 %v5738, 95.0
    %v5747 = vmin.f32 %v5739, 95.0
    %v5748 = vmin.f32 %v5740, 95.0
    %v5749 = vmin.f32 %v5741, 95.0
    %v5750 = vmin.f32 %v5742, 95.0
    %v5751 = vsub.f32 %v5711, %v5743
    %v5752 = vsub.f32 %v5712, %v5744
    %v5753 = vsub.f32 %v5713, %v5745
    %v5754 = vsub.f32 %v5714, %v5746
    %v5755 = vsub.f32 %v5715, %v5747
    %v5756 = vsub.f32 %v5716, %v5748
    %v5757 = vsub.f32 %v5717, %v5749
    %v5758 = vsub.f32 %v5718, %v5750
    %v5759 = vmax.f32 %v5751, 0.0
    %v5760 = vmax.f32 %v5752, 0.0
    %v5761 = vmax.f32 %v5753, 0.0
    %v5762 = vmax.f32 %v5754, 0.0
    %v5763 = vmax.f32 %v5755, 0.0
    %v5764 = vmax.f32 %v5756, 0.0
    %v5765 = vmax.f32 %v5757, 0.0
    %v5766 = vmax.f32 %v5758, 0.0
    %v5767 = vmin.f32 %v5759, 1.0
    %v5768 = vmin.f32 %v5760, 1.0
    %v5769 = vmin.f32 %v5761, 1.0
    %v5770 = vmin.f32 %v5762, 1.0
    %v5771 = vmin.f32 %v5763, 1.0
    %v5772 = vmin.f32 %v5764, 1.0
    %v5773 = vmin.f32 %v5765, 1.0
    %v5774 = vmin.f32 %v5766, 1.0
    %v5775 = vcvt.f32.s32.to.zero.pseudo %v5743
    %v5776 = vcvt.f32.s32.to.zero.pseudo %v5744
    %v5777 = vcvt.f32.s32.to.zero.pseudo %v5745
    %v5778 = vcvt.f32.s32.to.zero.pseudo %v5746
    %v5779 = vcvt.f32.s32.to.zero.pseudo %v5747
    %v5780 = vcvt.f32.s32.to.zero.pseudo %v5748
    %v5781 = vcvt.f32.s32.to.zero.pseudo %v5749
    %v5782 = vcvt.f32.s32.to.zero.pseudo %v5750
    %5783 = vset.pattern.permute.xlu0 0
    %5784 = vperm.xlu0 %5783, %v5775
    %v5785 = vpop.permute.xlu0 %5784
    %5786 = vset.pattern.permute.xlu0 0
    %5787 = vperm.xlu0 %5786, %v5776
    %v5788 = vpop.permute.xlu0 %5787
    %5789 = vset.pattern.permute.xlu0 0
    %5790 = vperm.xlu0 %5789, %v5777
    %v5791 = vpop.permute.xlu0 %5790
    %5792 = vset.pattern.permute.xlu0 0
    %5793 = vperm.xlu0 %5792, %v5778
    %v5794 = vpop.permute.xlu0 %5793
    %5795 = vset.pattern.permute.xlu0 0
    %5796 = vperm.xlu0 %5795, %v5779
    %v5797 = vpop.permute.xlu0 %5796
    %5798 = vset.pattern.permute.xlu0 0
    %5799 = vperm.xlu0 %5798, %v5780
    %v5800 = vpop.permute.xlu0 %5799
    %5801 = vset.pattern.permute.xlu0 0
    %5802 = vperm.xlu0 %5801, %v5781
    %v5803 = vpop.permute.xlu0 %5802
    %5804 = vset.pattern.permute.xlu0 0
    %5805 = vperm.xlu0 %5804, %v5782
    %v5806 = vpop.permute.xlu0 %5805
    %vm5807 = vcmp.eq.s32.totalorder %v80, %v5785
    %vm5808 = vcmp.eq.s32.totalorder %v80, %v5788
    %vm5809 = vcmp.eq.s32.totalorder %v80, %v5791
    %vm5810 = vcmp.eq.s32.totalorder %v80, %v5794
    %vm5811 = vcmp.eq.s32.totalorder %v80, %v5797
    %vm5812 = vcmp.eq.s32.totalorder %v80, %v5800
    %vm5813 = vcmp.eq.s32.totalorder %v80, %v5803
    %vm5814 = vcmp.eq.s32.totalorder %v80, %v5806
    %v5815 = vsub.f32 1.0, %v5767
    %v5816 = vsub.f32 1.0, %v5768
    %v5817 = vsub.f32 1.0, %v5769
    %v5818 = vsub.f32 1.0, %v5770
    %v5819 = vsub.f32 1.0, %v5771
    %v5820 = vsub.f32 1.0, %v5772
    %v5821 = vsub.f32 1.0, %v5773
    %v5822 = vsub.f32 1.0, %v5774
    %v5823 = vmul.f32 %v5815, %v5719
    %v5824 = vmul.f32 %v5816, %v5720
    %v5825 = vmul.f32 %v5817, %v5721
    %v5826 = vmul.f32 %v5818, %v5722
    %v5827 = vmul.f32 %v5819, %v5723
    %v5828 = vmul.f32 %v5820, %v5724
    %v5829 = vmul.f32 %v5821, %v5725
    %v5830 = vmul.f32 %v5822, %v5726
    %5832 = vset.pattern.permute.xlu0 0
    %5833 = vperm.xlu0 %5832, %v5823
    %v5834 = vpop.permute.xlu0 %5833
    %5837 = vset.pattern.permute.xlu0 0
    %5838 = vperm.xlu0 %5837, %v5824
    %v5839 = vpop.permute.xlu0 %5838
    %5842 = vset.pattern.permute.xlu0 0
    %5843 = vperm.xlu0 %5842, %v5825
    %v5844 = vpop.permute.xlu0 %5843
    %5847 = vset.pattern.permute.xlu0 0
    %5848 = vperm.xlu0 %5847, %v5826
    %v5849 = vpop.permute.xlu0 %5848
    %5852 = vset.pattern.permute.xlu0 0
    %5853 = vperm.xlu0 %5852, %v5827
    %v5854 = vpop.permute.xlu0 %5853
    %5857 = vset.pattern.permute.xlu0 0
    %5858 = vperm.xlu0 %5857, %v5828
    %v5859 = vpop.permute.xlu0 %5858
    %5862 = vset.pattern.permute.xlu0 0
    %5863 = vperm.xlu0 %5862, %v5829
    %v5864 = vpop.permute.xlu0 %5863
    %5867 = vset.pattern.permute.xlu0 0
    %5868 = vperm.xlu0 %5867, %v5830
    %v5869 = vpop.permute.xlu0 %5868
    %v5871 = vsel %vm5807, %v5834, 0.0
    %v5872 = vsel %vm5808, %v5839, 0.0
    %v5873 = vsel %vm5809, %v5844, 0.0
    %v5874 = vsel %vm5810, %v5849, 0.0
    %v5875 = vsel %vm5811, %v5854, 0.0
    %v5876 = vsel %vm5812, %v5859, 0.0
    %v5877 = vsel %vm5813, %v5864, 0.0
    %v5878 = vsel %vm5814, %v5869, 0.0
    %v5879 = vadd.s32 %v5775, 1
    %v5880 = vadd.s32 %v5776, 1
    %v5881 = vadd.s32 %v5777, 1
    %v5882 = vadd.s32 %v5778, 1
    %v5883 = vadd.s32 %v5779, 1
    %v5884 = vadd.s32 %v5780, 1
    %v5885 = vadd.s32 %v5781, 1
    %v5886 = vadd.s32 %v5782, 1
    %5887 = vset.pattern.permute.xlu0 0
    %5888 = vperm.xlu0 %5887, %v5879
    %v5889 = vpop.permute.xlu0 %5888
    %5890 = vset.pattern.permute.xlu0 0
    %5891 = vperm.xlu0 %5890, %v5880
    %v5892 = vpop.permute.xlu0 %5891
    %5893 = vset.pattern.permute.xlu0 0
    %5894 = vperm.xlu0 %5893, %v5881
    %v5895 = vpop.permute.xlu0 %5894
    %5896 = vset.pattern.permute.xlu0 0
    %5897 = vperm.xlu0 %5896, %v5882
    %v5898 = vpop.permute.xlu0 %5897
    %5899 = vset.pattern.permute.xlu0 0
    %5900 = vperm.xlu0 %5899, %v5883
    %v5901 = vpop.permute.xlu0 %5900
    %5902 = vset.pattern.permute.xlu0 0
    %5903 = vperm.xlu0 %5902, %v5884
    %v5904 = vpop.permute.xlu0 %5903
    %5905 = vset.pattern.permute.xlu0 0
    %5906 = vperm.xlu0 %5905, %v5885
    %v5907 = vpop.permute.xlu0 %5906
    %5908 = vset.pattern.permute.xlu0 0
    %5909 = vperm.xlu0 %5908, %v5886
    %v5910 = vpop.permute.xlu0 %5909
    %vm5911 = vcmp.eq.s32.totalorder %v80, %v5889
    %vm5912 = vcmp.eq.s32.totalorder %v80, %v5892
    %vm5913 = vcmp.eq.s32.totalorder %v80, %v5895
    %vm5914 = vcmp.eq.s32.totalorder %v80, %v5898
    %vm5915 = vcmp.eq.s32.totalorder %v80, %v5901
    %vm5916 = vcmp.eq.s32.totalorder %v80, %v5904
    %vm5917 = vcmp.eq.s32.totalorder %v80, %v5907
    %vm5918 = vcmp.eq.s32.totalorder %v80, %v5910
    %v5919 = vmul.f32 %v5767, %v5719
    %v5920 = vmul.f32 %v5768, %v5720
    %v5921 = vmul.f32 %v5769, %v5721
    %v5922 = vmul.f32 %v5770, %v5722
    %v5923 = vmul.f32 %v5771, %v5723
    %v5924 = vmul.f32 %v5772, %v5724
    %v5925 = vmul.f32 %v5773, %v5725
    %v5926 = vmul.f32 %v5774, %v5726
    %5928 = vset.pattern.permute.xlu0 0
    %5929 = vperm.xlu0 %5928, %v5919
    %v5930 = vpop.permute.xlu0 %5929
    %5933 = vset.pattern.permute.xlu0 0
    %5934 = vperm.xlu0 %5933, %v5920
    %v5935 = vpop.permute.xlu0 %5934
    %5938 = vset.pattern.permute.xlu0 0
    %5939 = vperm.xlu0 %5938, %v5921
    %v5940 = vpop.permute.xlu0 %5939
    %5943 = vset.pattern.permute.xlu0 0
    %5944 = vperm.xlu0 %5943, %v5922
    %v5945 = vpop.permute.xlu0 %5944
    %5948 = vset.pattern.permute.xlu0 0
    %5949 = vperm.xlu0 %5948, %v5923
    %v5950 = vpop.permute.xlu0 %5949
    %5953 = vset.pattern.permute.xlu0 0
    %5954 = vperm.xlu0 %5953, %v5924
    %v5955 = vpop.permute.xlu0 %5954
    %5958 = vset.pattern.permute.xlu0 0
    %5959 = vperm.xlu0 %5958, %v5925
    %v5960 = vpop.permute.xlu0 %5959
    %5963 = vset.pattern.permute.xlu0 0
    %5964 = vperm.xlu0 %5963, %v5926
    %v5965 = vpop.permute.xlu0 %5964
    %v5967 = vsel %vm5911, %v5930, 0.0
    %v5968 = vsel %vm5912, %v5935, 0.0
    %v5969 = vsel %vm5913, %v5940, 0.0
    %v5970 = vsel %vm5914, %v5945, 0.0
    %v5971 = vsel %vm5915, %v5950, 0.0
    %v5972 = vsel %vm5916, %v5955, 0.0
    %v5973 = vsel %vm5917, %v5960, 0.0
    %v5974 = vsel %vm5918, %v5965, 0.0
    %v5975 = vadd.f32 %v5871, %v5967
    %v5976 = vadd.f32 %v5872, %v5968
    %v5977 = vadd.f32 %v5873, %v5969
    %v5978 = vadd.f32 %v5874, %v5970
    %v5979 = vadd.f32 %v5875, %v5971
    %v5980 = vadd.f32 %v5876, %v5972
    %v5981 = vadd.f32 %v5877, %v5973
    %v5982 = vadd.f32 %v5878, %v5974
    %5984 = vrot.lane.b32.xlu0 %v4569, 127
    %v5985 = vpop.permute.xlu0 %5984
    %v5986 = vsel %vm751, %v5985, %v2449
    %5988 = vrot.lane.b32.xlu0 %v38, 126
    %v5989 = vpop.permute.xlu0 %5988
    %v5990 = vsel %vm760, %v5989, %v2455
    %5992 = vrot.lane.b32.xlu0 %v4539, 125
    %v5993 = vpop.permute.xlu0 %5992
    %v5994 = vsel %vm769, %v5993, %v2461
    %5996 = vrot.lane.b32.xlu0 %v4544, 124
    %v5997 = vpop.permute.xlu0 %5996
    %v5998 = vsel %vm778, %v5997, %v2467
    %6000 = vrot.lane.b32.xlu0 %v4549, 123
    %v6001 = vpop.permute.xlu0 %6000
    %v6002 = vsel %vm787, %v6001, %v2473
    %6004 = vrot.lane.b32.xlu0 %v4554, 122
    %v6005 = vpop.permute.xlu0 %6004
    %v6006 = vsel %vm796, %v6005, %v2479
    %6008 = vrot.lane.b32.xlu0 %v4559, 121
    %v6009 = vpop.permute.xlu0 %6008
    %v6010 = vsel %vm805, %v6009, %v2485
    %6012 = vrot.lane.b32.xlu0 %v4564, 120
    %v6013 = vpop.permute.xlu0 %6012
    %v6014 = vsel %vm812, %v6013, %v2491
    %6016 = vrot.lane.b32.xlu0 %v4569, 119
    %v6017 = vpop.permute.xlu0 %6016
    %v6018 = vsel %vm819, %v6017, %v2497
    %6020 = vrot.lane.b32.xlu0 %v38, 118
    %v6021 = vpop.permute.xlu0 %6020
    %v6022 = vsel %vm826, %v6021, %v2503
    %6024 = vrot.lane.b32.xlu0 %v4539, 117
    %v6025 = vpop.permute.xlu0 %6024
    %v6026 = vsel %vm833, %v6025, %v2509
    %6028 = vrot.lane.b32.xlu0 %v4544, 116
    %v6029 = vpop.permute.xlu0 %6028
    %v6030 = vsel %vm840, %v6029, %v2515
    %6032 = vrot.lane.b32.xlu0 %v4549, 115
    %v6033 = vpop.permute.xlu0 %6032
    %v6034 = vsel %vm847, %v6033, %v2521
    %6036 = vrot.lane.b32.xlu0 %v4554, 114
    %v6037 = vpop.permute.xlu0 %6036
    %v6038 = vsel %vm854, %v6037, %v2527
    %6040 = vrot.lane.b32.xlu0 %v4559, 113
    %v6041 = vpop.permute.xlu0 %6040
    %v6042 = vsel %vm861, %v6041, %v2533
    %v6044 = vsel %vm864, %v4564, %v5986
    %v6045 = vsel %vm866, %v6044, %v5990
    %v6046 = vsel %vm868, %v6045, %v5994
    %v6047 = vsel %vm870, %v6046, %v5998
    %v6048 = vsel %vm872, %v6047, %v6002
    %v6049 = vsel %vm874, %v6048, %v6006
    %v6050 = vsel %vm876, %v6049, %v6010
    %v6051 = vsel %vm864, %v6014, %v6018
    %v6052 = vsel %vm866, %v6051, %v6022
    %v6053 = vsel %vm868, %v6052, %v6026
    %v6054 = vsel %vm870, %v6053, %v6030
    %v6055 = vsel %vm872, %v6054, %v6034
    %v6056 = vsel %vm874, %v6055, %v6038
    %v6057 = vsel %vm876, %v6056, %v6042
    %6060 = vrot.lane.b32.xlu0 %v6050, 112
    %v6061 = vpop.permute.xlu0 %6060
    %6062 = vrot.lane.b32.xlu0 %v6057, 112
    %v6063 = vpop.permute.xlu0 %6062
    %v6064 = vsel %vm926, %v6061, %v2587
    %v6065 = vsel %vm926, %v6063, %v2591
    %6068 = vmatprep.subr.mxu0 0.0
    %6069 = vmatpush1.xpose.msra.mxu0 0.0
    %6070 = vmatprep.subr.mxu0 0.0
    %6071 = vmatpush1.xpose.msra.mxu0 0.0
    %6072 = vmatprep.subr.mxu0 0.0
    %6073 = vmatpush1.xpose.msra.mxu0 0.0
    %6074 = vmatprep.subr.mxu0 0.0
    %6075 = vmatpush1.xpose.msra.mxu0 0.0
    %6076 = vmatprep.subr.mxu0 0.0
    %6077 = vmatpush1.xpose.msra.mxu0 0.0
    %6078 = vmatprep.subr.mxu0 0.0
    %6079 = vmatpush1.xpose.msra.mxu0 0.0
    %6080 = vmatprep.subr.mxu0 0.0
    %6081 = vmatpush1.xpose.msra.mxu0 0.0
    %6082 = vmatprep.subr.mxu0 0.0
    %6083 = vmatpush1.xpose.msra.mxu0 0.0
    %6084 = vmatprep.subr.mxu0 0.0
    %6085 = vmatpush1.xpose.msra.mxu0 %v5982
    %6086 = vmatprep.subr.mxu0 0.0
    %6087 = vmatpush1.xpose.msra.mxu0 %v5981
    %6088 = vmatprep.subr.mxu0 0.0
    %6089 = vmatpush1.xpose.msra.mxu0 %v5980
    %6090 = vmatprep.subr.mxu0 0.0
    %6091 = vmatpush1.xpose.msra.mxu0 %v5979
    %6092 = vmatprep.subr.mxu0 0.0
    %6093 = vmatpush1.xpose.msra.mxu0 %v5978
    %6094 = vmatprep.subr.mxu0 0.0
    %6095 = vmatpush1.xpose.msra.mxu0 %v5977
    %6096 = vmatprep.subr.mxu0 0.0
    %6097 = vmatpush1.xpose.msra.mxu0 %v5976
    %6098 = vmatprep.subr.mxu0 0.0
    %6099 = vmatpush1.xpose.msra.mxu0 %v5975
    %6100 = vmatprep.subr.mxu0 0.0
    %6101 = vmatpush2.xpose.msra.mxu0 0.0
    %6102 = vmatprep.subr.mxu0 0.0
    %6103 = vmatpush2.xpose.msra.mxu0 0.0
    %6104 = vmatprep.subr.mxu0 0.0
    %6105 = vmatpush2.xpose.msra.mxu0 0.0
    %6106 = vmatprep.subr.mxu0 0.0
    %6107 = vmatpush2.xpose.msra.mxu0 0.0
    %6108 = vmatprep.subr.mxu0 0.0
    %6109 = vmatpush2.xpose.msra.mxu0 0.0
    %6110 = vmatprep.subr.mxu0 0.0
    %6111 = vmatpush2.xpose.msra.mxu0 0.0
    %6112 = vmatprep.subr.mxu0 0.0
    %6113 = vmatpush2.xpose.msra.mxu0 0.0
    %6114 = vmatprep.subr.mxu0 0.0
    %6115 = vmatpush2.xpose.msra.mxu0 0.0
    %6116 = vmatprep.subr.mxu0 0.0
    %6117 = vmatpush2.xpose.msra.mxu0 0.0
    %6118 = vmatprep.subr.mxu0 0.0
    %6119 = vmatpush2.xpose.msra.mxu0 0.0
    %6120 = vmatprep.subr.mxu0 0.0
    %6121 = vmatpush2.xpose.msra.mxu0 0.0
    %6122 = vmatprep.subr.mxu0 0.0
    %6123 = vmatpush2.xpose.msra.mxu0 0.0
    %6124 = vmatprep.subr.mxu0 0.0
    %6125 = vmatpush2.xpose.msra.mxu0 0.0
    %6126 = vmatprep.subr.mxu0 0.0
    %6127 = vmatpush2.xpose.msra.mxu0 0.0
    %6128 = vmatprep.subr.mxu0 0.0
    %6129 = vmatpush2.xpose.msra.mxu0 0.0
    %6130 = vmatprep.subr.mxu0 0.0
    %6131 = vmatpush2.xpose.msra.mxu0 0.0
    %6132 = vmatprep.mubr.f32.mxu0 0.0
    %6133 = vmatmul.mubr.f32.gmra.mxu0 %v6050
    %v6134 = vpop.f32.mrf.mxu0
    %v6135 = vadd.f32 0.0, %v6134
    %v6136 = vpop.f32.mrf.mxu0
    %6137 = vmatprep.mubr.f32.mxu0 0.0
    %6138 = vmatmul.mubr.f32.gmra.mxu0 %v6057
    %v6139 = vpop.f32.mrf.mxu0
    %v6140 = vadd.f32 0.0, %v6139
    %v6141 = vpop.f32.mrf.mxu0
    %6142 = vmatprep.mubr.f32.mxu0 0.0
    %6143 = vmatmul.mubr.f32.gmra.mxu0 %v6064
    %v6144 = vpop.f32.mrf.mxu0
    %v6145 = vadd.f32 0.0, %v6144
    %v6146 = vpop.f32.mrf.mxu0
    %6147 = vmatprep.mubr.f32.mxu0 0.0
    %6148 = vmatmul.mubr.f32.gmra.mxu0 %v6065
    %v6149 = vpop.f32.mrf.mxu0
    %v6150 = vadd.f32 0.0, %v6149
    %v6151 = vpop.f32.mrf.mxu0
    %6152 = vdwg.mxu0
    %6153 = vmatprep.subr.mxu0 0.0
    %6154 = vmatpush1.msra.mxu0 0.0
    %6155 = vmatprep.subr.mxu0 0.0
    %6156 = vmatpush1.msra.mxu0 0.0
    %6157 = vmatprep.subr.mxu0 0.0
    %6158 = vmatpush1.msra.mxu0 0.0
    %6159 = vmatprep.subr.mxu0 0.0
    %6160 = vmatpush1.msra.mxu0 0.0
    %6161 = vmatprep.subr.mxu0 0.0
    %6162 = vmatpush1.msra.mxu0 0.0
    %6163 = vmatprep.subr.mxu0 0.0
    %6164 = vmatpush1.msra.mxu0 0.0
    %6165 = vmatprep.subr.mxu0 0.0
    %6166 = vmatpush1.msra.mxu0 0.0
    %6167 = vmatprep.subr.mxu0 0.0
    %6168 = vmatpush1.msra.mxu0 0.0
    %6169 = vmatprep.subr.mxu0 0.0
    %6170 = vmatpush1.msra.mxu0 0.0
    %6171 = vmatprep.subr.mxu0 0.0
    %6172 = vmatpush1.msra.mxu0 0.0
    %6173 = vmatprep.subr.mxu0 0.0
    %6174 = vmatpush1.msra.mxu0 0.0
    %6175 = vmatprep.subr.mxu0 0.0
    %6176 = vmatpush1.msra.mxu0 0.0
    %6177 = vmatprep.subr.mxu0 0.0
    %6178 = vmatpush1.msra.mxu0 %v6150
    %6179 = vmatprep.subr.mxu0 0.0
    %6180 = vmatpush1.msra.mxu0 %v6145
    %6181 = vmatprep.subr.mxu0 0.0
    %6182 = vmatpush1.msra.mxu0 %v6140
    %6183 = vmatprep.subr.mxu0 0.0
    %6184 = vmatpush1.msra.mxu0 %v6135
    %6185 = vmatprep.subr.mxu0 0.0
    %6186 = vmatpush2.msra.mxu0 0.0
    %6187 = vmatprep.subr.mxu0 0.0
    %6188 = vmatpush2.msra.mxu0 0.0
    %6189 = vmatprep.subr.mxu0 0.0
    %6190 = vmatpush2.msra.mxu0 0.0
    %6191 = vmatprep.subr.mxu0 0.0
    %6192 = vmatpush2.msra.mxu0 0.0
    %6193 = vmatprep.subr.mxu0 0.0
    %6194 = vmatpush2.msra.mxu0 0.0
    %6195 = vmatprep.subr.mxu0 0.0
    %6196 = vmatpush2.msra.mxu0 0.0
    %6197 = vmatprep.subr.mxu0 0.0
    %6198 = vmatpush2.msra.mxu0 0.0
    %6199 = vmatprep.subr.mxu0 0.0
    %6200 = vmatpush2.msra.mxu0 0.0
    %6201 = vmatprep.subr.mxu0 0.0
    %6202 = vmatpush2.msra.mxu0 0.0
    %6203 = vmatprep.subr.mxu0 0.0
    %6204 = vmatpush2.msra.mxu0 0.0
    %6205 = vmatprep.subr.mxu0 0.0
    %6206 = vmatpush2.msra.mxu0 0.0
    %6207 = vmatprep.subr.mxu0 0.0
    %6208 = vmatpush2.msra.mxu0 0.0
    %6209 = vmatprep.subr.mxu0 0.0
    %6210 = vmatpush2.msra.mxu0 0.0
    %6211 = vmatprep.subr.mxu0 0.0
    %6212 = vmatpush2.msra.mxu0 0.0
    %6213 = vmatprep.subr.mxu0 0.0
    %6214 = vmatpush2.msra.mxu0 0.0
    %6215 = vmatprep.subr.mxu0 0.0
    %6216 = vmatpush2.msra.mxu0 0.0
    %6217 = vmatprep.mubr.f32.mxu0 0.0
    %6218 = vmatmul.mubr.f32.gmra.mxu0 %v2714
    %v6219 = vpop.f32.mrf.mxu0
    %v6220 = vadd.f32 0.0, %v6219
    %v6221 = vpop.f32.mrf.mxu0
    %6222 = vmatprep.mubr.f32.mxu0 0.0
    %6223 = vmatmul.mubr.f32.gmra.mxu0 %v2717
    %v6224 = vpop.f32.mrf.mxu0
    %v6225 = vadd.f32 0.0, %v6224
    %v6226 = vpop.f32.mrf.mxu0
    %6227 = vmatprep.mubr.f32.mxu0 0.0
    %6228 = vmatmul.mubr.f32.gmra.mxu0 %v2720
    %v6229 = vpop.f32.mrf.mxu0
    %v6230 = vadd.f32 0.0, %v6229
    %v6231 = vpop.f32.mrf.mxu0
    %6232 = vmatprep.mubr.f32.mxu0 0.0
    %6233 = vmatmul.mubr.f32.gmra.mxu0 %v2723
    %v6234 = vpop.f32.mrf.mxu0
    %v6235 = vadd.f32 0.0, %v6234
    %v6236 = vpop.f32.mrf.mxu0
    %6237 = vdwg.mxu0
    %v6238 = vadd.f32 %v5501, %v6220
    %v6239 = vadd.f32 %v5506, %v6225
    %v6240 = vadd.f32 %v5511, %v6230
    %v6241 = vadd.f32 %v5516, %v6235
    %v6242 = vsub.f32 %v3882, %v2814
    %v6243 = vsub.f32 %v3883, %v2814
    %v6244 = vsub.f32 %v3884, %v2814
    %v6245 = vsub.f32 %v3885, %v2814
    %v6246 = vsub.f32 %v3886, %v2814
    %v6247 = vsub.f32 %v3887, %v2814
    %v6248 = vsub.f32 %v3888, %v2814
    %v6249 = vsub.f32 %v3889, %v2814
    %v6250 = vmul.f32 %v6242, %v6242
    %v6251 = vmul.f32 %v6243, %v6243
    %v6252 = vmul.f32 %v6244, %v6244
    %v6253 = vmul.f32 %v6245, %v6245
    %v6254 = vmul.f32 %v6246, %v6246
    %v6255 = vmul.f32 %v6247, %v6247
    %v6256 = vmul.f32 %v6248, %v6248
    %v6257 = vmul.f32 %v6249, %v6249
    %v6258 = vsub.f32 %v3882, %v2831
    %v6259 = vsub.f32 %v3883, %v2831
    %v6260 = vsub.f32 %v3884, %v2831
    %v6261 = vsub.f32 %v3885, %v2831
    %v6262 = vsub.f32 %v3886, %v2831
    %v6263 = vsub.f32 %v3887, %v2831
    %v6264 = vsub.f32 %v3888, %v2831
    %v6265 = vsub.f32 %v3889, %v2831
    %v6266 = vmul.f32 %v6258, %v6258
    %v6267 = vmul.f32 %v6259, %v6259
    %v6268 = vmul.f32 %v6260, %v6260
    %v6269 = vmul.f32 %v6261, %v6261
    %v6270 = vmul.f32 %v6262, %v6262
    %v6271 = vmul.f32 %v6263, %v6263
    %v6272 = vmul.f32 %v6264, %v6264
    %v6273 = vmul.f32 %v6265, %v6265
    %6282 = vrot.lane.b32.xlu0 %v6266, 127
    %v6283 = vpop.permute.xlu0 %6282
    %6284 = vrot.lane.b32.xlu0 %v6267, 127
    %v6285 = vpop.permute.xlu0 %6284
    %6286 = vrot.lane.b32.xlu0 %v6268, 127
    %v6287 = vpop.permute.xlu0 %6286
    %6288 = vrot.lane.b32.xlu0 %v6269, 127
    %v6289 = vpop.permute.xlu0 %6288
    %6290 = vrot.lane.b32.xlu0 %v6270, 127
    %v6291 = vpop.permute.xlu0 %6290
    %6292 = vrot.lane.b32.xlu0 %v6271, 127
    %v6293 = vpop.permute.xlu0 %6292
    %6294 = vrot.lane.b32.xlu0 %v6272, 127
    %v6295 = vpop.permute.xlu0 %6294
    %6296 = vrot.lane.b32.xlu0 %v6273, 127
    %v6297 = vpop.permute.xlu0 %6296
    %v6306 = vadd.f32 %v6250, %v6283
    %v6307 = vadd.f32 %v6251, %v6285
    %v6308 = vadd.f32 %v6252, %v6287
    %v6309 = vadd.f32 %v6253, %v6289
    %v6310 = vadd.f32 %v6254, %v6291
    %v6311 = vadd.f32 %v6255, %v6293
    %v6312 = vadd.f32 %v6256, %v6295
    %v6313 = vadd.f32 %v6257, %v6297
    %v6314 = vsub.f32 %v3882, %v2888
    %v6315 = vsub.f32 %v3883, %v2888
    %v6316 = vsub.f32 %v3884, %v2888
    %v6317 = vsub.f32 %v3885, %v2888
    %v6318 = vsub.f32 %v3886, %v2888
    %v6319 = vsub.f32 %v3887, %v2888
    %v6320 = vsub.f32 %v3888, %v2888
    %v6321 = vsub.f32 %v3889, %v2888
    %v6322 = vmul.f32 %v6314, %v6314
    %v6323 = vmul.f32 %v6315, %v6315
    %v6324 = vmul.f32 %v6316, %v6316
    %v6325 = vmul.f32 %v6317, %v6317
    %v6326 = vmul.f32 %v6318, %v6318
    %v6327 = vmul.f32 %v6319, %v6319
    %v6328 = vmul.f32 %v6320, %v6320
    %v6329 = vmul.f32 %v6321, %v6321
    %6338 = vrot.lane.b32.xlu0 %v6322, 126
    %v6339 = vpop.permute.xlu0 %6338
    %6340 = vrot.lane.b32.xlu0 %v6323, 126
    %v6341 = vpop.permute.xlu0 %6340
    %6342 = vrot.lane.b32.xlu0 %v6324, 126
    %v6343 = vpop.permute.xlu0 %6342
    %6344 = vrot.lane.b32.xlu0 %v6325, 126
    %v6345 = vpop.permute.xlu0 %6344
    %6346 = vrot.lane.b32.xlu0 %v6326, 126
    %v6347 = vpop.permute.xlu0 %6346
    %6348 = vrot.lane.b32.xlu0 %v6327, 126
    %v6349 = vpop.permute.xlu0 %6348
    %6350 = vrot.lane.b32.xlu0 %v6328, 126
    %v6351 = vpop.permute.xlu0 %6350
    %6352 = vrot.lane.b32.xlu0 %v6329, 126
    %v6353 = vpop.permute.xlu0 %6352
    %v6362 = vadd.f32 %v6306, %v6339
    %v6363 = vadd.f32 %v6307, %v6341
    %v6364 = vadd.f32 %v6308, %v6343
    %v6365 = vadd.f32 %v6309, %v6345
    %v6366 = vadd.f32 %v6310, %v6347
    %v6367 = vadd.f32 %v6311, %v6349
    %v6368 = vadd.f32 %v6312, %v6351
    %v6369 = vadd.f32 %v6313, %v6353
    %v6370 = vrsqrt.pop %v6362
    %v6371 = vmul.f32 %v6362, %v6370
    %vm6372 = vcmp.eq.f32.partialorder %v6362, inf
    %v6373 = vsel %vm6372, %v6362, %v6371
    %vm6374 = vcmp.eq.f32.partialorder %v6362, 0.0
    %v6375 = vand.u32 %v6362, 2147483648
    %v6376 = vsel %vm6374, %v6375, %v6373
    %v6377 = vrsqrt.pop %v6363
    %v6378 = vmul.f32 %v6363, %v6377
    %vm6379 = vcmp.eq.f32.partialorder %v6363, inf
    %v6380 = vsel %vm6379, %v6363, %v6378
    %vm6381 = vcmp.eq.f32.partialorder %v6363, 0.0
    %v6382 = vand.u32 %v6363, 2147483648
    %v6383 = vsel %vm6381, %v6382, %v6380
    %v6384 = vrsqrt.pop %v6364
    %v6385 = vmul.f32 %v6364, %v6384
    %vm6386 = vcmp.eq.f32.partialorder %v6364, inf
    %v6387 = vsel %vm6386, %v6364, %v6385
    %vm6388 = vcmp.eq.f32.partialorder %v6364, 0.0
    %v6389 = vand.u32 %v6364, 2147483648
    %v6390 = vsel %vm6388, %v6389, %v6387
    %v6391 = vrsqrt.pop %v6365
    %v6392 = vmul.f32 %v6365, %v6391
    %vm6393 = vcmp.eq.f32.partialorder %v6365, inf
    %v6394 = vsel %vm6393, %v6365, %v6392
    %vm6395 = vcmp.eq.f32.partialorder %v6365, 0.0
    %v6396 = vand.u32 %v6365, 2147483648
    %v6397 = vsel %vm6395, %v6396, %v6394
    %v6398 = vrsqrt.pop %v6366
    %v6399 = vmul.f32 %v6366, %v6398
    %vm6400 = vcmp.eq.f32.partialorder %v6366, inf
    %v6401 = vsel %vm6400, %v6366, %v6399
    %vm6402 = vcmp.eq.f32.partialorder %v6366, 0.0
    %v6403 = vand.u32 %v6366, 2147483648
    %v6404 = vsel %vm6402, %v6403, %v6401
    %v6405 = vrsqrt.pop %v6367
    %v6406 = vmul.f32 %v6367, %v6405
    %vm6407 = vcmp.eq.f32.partialorder %v6367, inf
    %v6408 = vsel %vm6407, %v6367, %v6406
    %vm6409 = vcmp.eq.f32.partialorder %v6367, 0.0
    %v6410 = vand.u32 %v6367, 2147483648
    %v6411 = vsel %vm6409, %v6410, %v6408
    %v6412 = vrsqrt.pop %v6368
    %v6413 = vmul.f32 %v6368, %v6412
    %vm6414 = vcmp.eq.f32.partialorder %v6368, inf
    %v6415 = vsel %vm6414, %v6368, %v6413
    %vm6416 = vcmp.eq.f32.partialorder %v6368, 0.0
    %v6417 = vand.u32 %v6368, 2147483648
    %v6418 = vsel %vm6416, %v6417, %v6415
    %v6419 = vrsqrt.pop %v6369
    %v6420 = vmul.f32 %v6369, %v6419
    %vm6421 = vcmp.eq.f32.partialorder %v6369, inf
    %v6422 = vsel %vm6421, %v6369, %v6420
    %vm6423 = vcmp.eq.f32.partialorder %v6369, 0.0
    %v6424 = vand.u32 %v6369, 2147483648
    %v6425 = vsel %vm6423, %v6424, %v6422
    %v6426 = vadd.f32 %v4024, %v6376
    %v6427 = vadd.f32 %v4031, %v6383
    %v6428 = vadd.f32 %v4038, %v6390
    %v6429 = vadd.f32 %v4045, %v6397
    %v6430 = vadd.f32 %v4052, %v6404
    %v6431 = vadd.f32 %v4059, %v6411
    %v6432 = vadd.f32 %v4066, %v6418
    %v6433 = vadd.f32 %v4073, %v6425
    %v6434 = vmul.f32 %v6426, 34.985424
    %v6435 = vmul.f32 %v6427, 34.985424
    %v6436 = vmul.f32 %v6428, 34.985424
    %v6437 = vmul.f32 %v6429, 34.985424
    %v6438 = vmul.f32 %v6430, 34.985424
    %v6439 = vmul.f32 %v6431, 34.985424
    %v6440 = vmul.f32 %v6432, 34.985424
    %v6441 = vmul.f32 %v6433, 34.985424
    %v6442 = vmul.f32 %v4024, %v6376
    %v6443 = vmul.f32 %v4031, %v6383
    %v6444 = vmul.f32 %v4038, %v6390
    %v6445 = vmul.f32 %v4045, %v6397
    %v6446 = vmul.f32 %v4052, %v6404
    %v6447 = vmul.f32 %v4059, %v6411
    %v6448 = vmul.f32 %v4066, %v6418
    %v6449 = vmul.f32 %v4073, %v6425
    %v6450 = vfloor.f32 %v6434
    %v6451 = vfloor.f32 %v6435
    %v6452 = vfloor.f32 %v6436
    %v6453 = vfloor.f32 %v6437
    %v6454 = vfloor.f32 %v6438
    %v6455 = vfloor.f32 %v6439
    %v6456 = vfloor.f32 %v6440
    %v6457 = vfloor.f32 %v6441
    %v6458 = vmax.f32 %v6450, 0.0
    %v6459 = vmax.f32 %v6451, 0.0
    %v6460 = vmax.f32 %v6452, 0.0
    %v6461 = vmax.f32 %v6453, 0.0
    %v6462 = vmax.f32 %v6454, 0.0
    %v6463 = vmax.f32 %v6455, 0.0
    %v6464 = vmax.f32 %v6456, 0.0
    %v6465 = vmax.f32 %v6457, 0.0
    %v6466 = vmin.f32 %v6458, 95.0
    %v6467 = vmin.f32 %v6459, 95.0
    %v6468 = vmin.f32 %v6460, 95.0
    %v6469 = vmin.f32 %v6461, 95.0
    %v6470 = vmin.f32 %v6462, 95.0
    %v6471 = vmin.f32 %v6463, 95.0
    %v6472 = vmin.f32 %v6464, 95.0
    %v6473 = vmin.f32 %v6465, 95.0
    %v6474 = vsub.f32 %v6434, %v6466
    %v6475 = vsub.f32 %v6435, %v6467
    %v6476 = vsub.f32 %v6436, %v6468
    %v6477 = vsub.f32 %v6437, %v6469
    %v6478 = vsub.f32 %v6438, %v6470
    %v6479 = vsub.f32 %v6439, %v6471
    %v6480 = vsub.f32 %v6440, %v6472
    %v6481 = vsub.f32 %v6441, %v6473
    %v6482 = vmax.f32 %v6474, 0.0
    %v6483 = vmax.f32 %v6475, 0.0
    %v6484 = vmax.f32 %v6476, 0.0
    %v6485 = vmax.f32 %v6477, 0.0
    %v6486 = vmax.f32 %v6478, 0.0
    %v6487 = vmax.f32 %v6479, 0.0
    %v6488 = vmax.f32 %v6480, 0.0
    %v6489 = vmax.f32 %v6481, 0.0
    %v6490 = vmin.f32 %v6482, 1.0
    %v6491 = vmin.f32 %v6483, 1.0
    %v6492 = vmin.f32 %v6484, 1.0
    %v6493 = vmin.f32 %v6485, 1.0
    %v6494 = vmin.f32 %v6486, 1.0
    %v6495 = vmin.f32 %v6487, 1.0
    %v6496 = vmin.f32 %v6488, 1.0
    %v6497 = vmin.f32 %v6489, 1.0
    %v6498 = vcvt.f32.s32.to.zero.pseudo %v6466
    %v6499 = vcvt.f32.s32.to.zero.pseudo %v6467
    %v6500 = vcvt.f32.s32.to.zero.pseudo %v6468
    %v6501 = vcvt.f32.s32.to.zero.pseudo %v6469
    %v6502 = vcvt.f32.s32.to.zero.pseudo %v6470
    %v6503 = vcvt.f32.s32.to.zero.pseudo %v6471
    %v6504 = vcvt.f32.s32.to.zero.pseudo %v6472
    %v6505 = vcvt.f32.s32.to.zero.pseudo %v6473
    %6506 = vset.pattern.permute.xlu0 0
    %6507 = vperm.xlu0 %6506, %v6498
    %v6508 = vpop.permute.xlu0 %6507
    %6509 = vset.pattern.permute.xlu0 0
    %6510 = vperm.xlu0 %6509, %v6499
    %v6511 = vpop.permute.xlu0 %6510
    %6512 = vset.pattern.permute.xlu0 0
    %6513 = vperm.xlu0 %6512, %v6500
    %v6514 = vpop.permute.xlu0 %6513
    %6515 = vset.pattern.permute.xlu0 0
    %6516 = vperm.xlu0 %6515, %v6501
    %v6517 = vpop.permute.xlu0 %6516
    %6518 = vset.pattern.permute.xlu0 0
    %6519 = vperm.xlu0 %6518, %v6502
    %v6520 = vpop.permute.xlu0 %6519
    %6521 = vset.pattern.permute.xlu0 0
    %6522 = vperm.xlu0 %6521, %v6503
    %v6523 = vpop.permute.xlu0 %6522
    %6524 = vset.pattern.permute.xlu0 0
    %6525 = vperm.xlu0 %6524, %v6504
    %v6526 = vpop.permute.xlu0 %6525
    %6527 = vset.pattern.permute.xlu0 0
    %6528 = vperm.xlu0 %6527, %v6505
    %v6529 = vpop.permute.xlu0 %6528
    %vm6530 = vcmp.eq.s32.totalorder %v80, %v6508
    %vm6531 = vcmp.eq.s32.totalorder %v80, %v6511
    %vm6532 = vcmp.eq.s32.totalorder %v80, %v6514
    %vm6533 = vcmp.eq.s32.totalorder %v80, %v6517
    %vm6534 = vcmp.eq.s32.totalorder %v80, %v6520
    %vm6535 = vcmp.eq.s32.totalorder %v80, %v6523
    %vm6536 = vcmp.eq.s32.totalorder %v80, %v6526
    %vm6537 = vcmp.eq.s32.totalorder %v80, %v6529
    %v6538 = vsub.f32 1.0, %v6490
    %v6539 = vsub.f32 1.0, %v6491
    %v6540 = vsub.f32 1.0, %v6492
    %v6541 = vsub.f32 1.0, %v6493
    %v6542 = vsub.f32 1.0, %v6494
    %v6543 = vsub.f32 1.0, %v6495
    %v6544 = vsub.f32 1.0, %v6496
    %v6545 = vsub.f32 1.0, %v6497
    %v6546 = vmul.f32 %v6538, %v6442
    %v6547 = vmul.f32 %v6539, %v6443
    %v6548 = vmul.f32 %v6540, %v6444
    %v6549 = vmul.f32 %v6541, %v6445
    %v6550 = vmul.f32 %v6542, %v6446
    %v6551 = vmul.f32 %v6543, %v6447
    %v6552 = vmul.f32 %v6544, %v6448
    %v6553 = vmul.f32 %v6545, %v6449
    %6555 = vset.pattern.permute.xlu0 0
    %6556 = vperm.xlu0 %6555, %v6546
    %v6557 = vpop.permute.xlu0 %6556
    %6560 = vset.pattern.permute.xlu0 0
    %6561 = vperm.xlu0 %6560, %v6547
    %v6562 = vpop.permute.xlu0 %6561
    %6565 = vset.pattern.permute.xlu0 0
    %6566 = vperm.xlu0 %6565, %v6548
    %v6567 = vpop.permute.xlu0 %6566
    %6570 = vset.pattern.permute.xlu0 0
    %6571 = vperm.xlu0 %6570, %v6549
    %v6572 = vpop.permute.xlu0 %6571
    %6575 = vset.pattern.permute.xlu0 0
    %6576 = vperm.xlu0 %6575, %v6550
    %v6577 = vpop.permute.xlu0 %6576
    %6580 = vset.pattern.permute.xlu0 0
    %6581 = vperm.xlu0 %6580, %v6551
    %v6582 = vpop.permute.xlu0 %6581
    %6585 = vset.pattern.permute.xlu0 0
    %6586 = vperm.xlu0 %6585, %v6552
    %v6587 = vpop.permute.xlu0 %6586
    %6590 = vset.pattern.permute.xlu0 0
    %6591 = vperm.xlu0 %6590, %v6553
    %v6592 = vpop.permute.xlu0 %6591
    %v6594 = vsel %vm6530, %v6557, 0.0
    %v6595 = vsel %vm6531, %v6562, 0.0
    %v6596 = vsel %vm6532, %v6567, 0.0
    %v6597 = vsel %vm6533, %v6572, 0.0
    %v6598 = vsel %vm6534, %v6577, 0.0
    %v6599 = vsel %vm6535, %v6582, 0.0
    %v6600 = vsel %vm6536, %v6587, 0.0
    %v6601 = vsel %vm6537, %v6592, 0.0
    %v6602 = vadd.s32 %v6498, 1
    %v6603 = vadd.s32 %v6499, 1
    %v6604 = vadd.s32 %v6500, 1
    %v6605 = vadd.s32 %v6501, 1
    %v6606 = vadd.s32 %v6502, 1
    %v6607 = vadd.s32 %v6503, 1
    %v6608 = vadd.s32 %v6504, 1
    %v6609 = vadd.s32 %v6505, 1
    %6610 = vset.pattern.permute.xlu0 0
    %6611 = vperm.xlu0 %6610, %v6602
    %v6612 = vpop.permute.xlu0 %6611
    %6613 = vset.pattern.permute.xlu0 0
    %6614 = vperm.xlu0 %6613, %v6603
    %v6615 = vpop.permute.xlu0 %6614
    %6616 = vset.pattern.permute.xlu0 0
    %6617 = vperm.xlu0 %6616, %v6604
    %v6618 = vpop.permute.xlu0 %6617
    %6619 = vset.pattern.permute.xlu0 0
    %6620 = vperm.xlu0 %6619, %v6605
    %v6621 = vpop.permute.xlu0 %6620
    %6622 = vset.pattern.permute.xlu0 0
    %6623 = vperm.xlu0 %6622, %v6606
    %v6624 = vpop.permute.xlu0 %6623
    %6625 = vset.pattern.permute.xlu0 0
    %6626 = vperm.xlu0 %6625, %v6607
    %v6627 = vpop.permute.xlu0 %6626
    %6628 = vset.pattern.permute.xlu0 0
    %6629 = vperm.xlu0 %6628, %v6608
    %v6630 = vpop.permute.xlu0 %6629
    %6631 = vset.pattern.permute.xlu0 0
    %6632 = vperm.xlu0 %6631, %v6609
    %v6633 = vpop.permute.xlu0 %6632
    %vm6634 = vcmp.eq.s32.totalorder %v80, %v6612
    %vm6635 = vcmp.eq.s32.totalorder %v80, %v6615
    %vm6636 = vcmp.eq.s32.totalorder %v80, %v6618
    %vm6637 = vcmp.eq.s32.totalorder %v80, %v6621
    %vm6638 = vcmp.eq.s32.totalorder %v80, %v6624
    %vm6639 = vcmp.eq.s32.totalorder %v80, %v6627
    %vm6640 = vcmp.eq.s32.totalorder %v80, %v6630
    %vm6641 = vcmp.eq.s32.totalorder %v80, %v6633
    %v6642 = vmul.f32 %v6490, %v6442
    %v6643 = vmul.f32 %v6491, %v6443
    %v6644 = vmul.f32 %v6492, %v6444
    %v6645 = vmul.f32 %v6493, %v6445
    %v6646 = vmul.f32 %v6494, %v6446
    %v6647 = vmul.f32 %v6495, %v6447
    %v6648 = vmul.f32 %v6496, %v6448
    %v6649 = vmul.f32 %v6497, %v6449
    %6651 = vset.pattern.permute.xlu0 0
    %6652 = vperm.xlu0 %6651, %v6642
    %v6653 = vpop.permute.xlu0 %6652
    %6656 = vset.pattern.permute.xlu0 0
    %6657 = vperm.xlu0 %6656, %v6643
    %v6658 = vpop.permute.xlu0 %6657
    %6661 = vset.pattern.permute.xlu0 0
    %6662 = vperm.xlu0 %6661, %v6644
    %v6663 = vpop.permute.xlu0 %6662
    %6666 = vset.pattern.permute.xlu0 0
    %6667 = vperm.xlu0 %6666, %v6645
    %v6668 = vpop.permute.xlu0 %6667
    %6671 = vset.pattern.permute.xlu0 0
    %6672 = vperm.xlu0 %6671, %v6646
    %v6673 = vpop.permute.xlu0 %6672
    %6676 = vset.pattern.permute.xlu0 0
    %6677 = vperm.xlu0 %6676, %v6647
    %v6678 = vpop.permute.xlu0 %6677
    %6681 = vset.pattern.permute.xlu0 0
    %6682 = vperm.xlu0 %6681, %v6648
    %v6683 = vpop.permute.xlu0 %6682
    %6686 = vset.pattern.permute.xlu0 0
    %6687 = vperm.xlu0 %6686, %v6649
    %v6688 = vpop.permute.xlu0 %6687
    %v6690 = vsel %vm6634, %v6653, 0.0
    %v6691 = vsel %vm6635, %v6658, 0.0
    %v6692 = vsel %vm6636, %v6663, 0.0
    %v6693 = vsel %vm6637, %v6668, 0.0
    %v6694 = vsel %vm6638, %v6673, 0.0
    %v6695 = vsel %vm6639, %v6678, 0.0
    %v6696 = vsel %vm6640, %v6683, 0.0
    %v6697 = vsel %vm6641, %v6688, 0.0
    %v6698 = vadd.f32 %v6594, %v6690
    %v6699 = vadd.f32 %v6595, %v6691
    %v6700 = vadd.f32 %v6596, %v6692
    %v6701 = vadd.f32 %v6597, %v6693
    %v6702 = vadd.f32 %v6598, %v6694
    %v6703 = vadd.f32 %v6599, %v6695
    %v6704 = vadd.f32 %v6600, %v6696
    %v6705 = vadd.f32 %v6601, %v6697
    %6707 = vrot.lane.b32.xlu0 %v4564, 127
    %v6708 = vpop.permute.xlu0 %6707
    %v6709 = vsel %vm751, %v6708, %v3285
    %6711 = vrot.lane.b32.xlu0 %v4569, 126
    %v6712 = vpop.permute.xlu0 %6711
    %v6713 = vsel %vm760, %v6712, %v3291
    %6715 = vrot.lane.b32.xlu0 %v38, 125
    %v6716 = vpop.permute.xlu0 %6715
    %v6717 = vsel %vm769, %v6716, %v3297
    %6719 = vrot.lane.b32.xlu0 %v4539, 124
    %v6720 = vpop.permute.xlu0 %6719
    %v6721 = vsel %vm778, %v6720, %v3303
    %6723 = vrot.lane.b32.xlu0 %v4544, 123
    %v6724 = vpop.permute.xlu0 %6723
    %v6725 = vsel %vm787, %v6724, %v3309
    %6727 = vrot.lane.b32.xlu0 %v4549, 122
    %v6728 = vpop.permute.xlu0 %6727
    %v6729 = vsel %vm796, %v6728, %v3315
    %6731 = vrot.lane.b32.xlu0 %v4554, 121
    %v6732 = vpop.permute.xlu0 %6731
    %v6733 = vsel %vm805, %v6732, %v3321
    %6735 = vrot.lane.b32.xlu0 %v4559, 120
    %v6736 = vpop.permute.xlu0 %6735
    %v6737 = vsel %vm812, %v6736, %v3327
    %6739 = vrot.lane.b32.xlu0 %v4564, 119
    %v6740 = vpop.permute.xlu0 %6739
    %v6741 = vsel %vm819, %v6740, %v3333
    %6743 = vrot.lane.b32.xlu0 %v4569, 118
    %v6744 = vpop.permute.xlu0 %6743
    %v6745 = vsel %vm826, %v6744, %v3339
    %6747 = vrot.lane.b32.xlu0 %v38, 117
    %v6748 = vpop.permute.xlu0 %6747
    %v6749 = vsel %vm833, %v6748, %v3345
    %6751 = vrot.lane.b32.xlu0 %v4539, 116
    %v6752 = vpop.permute.xlu0 %6751
    %v6753 = vsel %vm840, %v6752, %v3351
    %6755 = vrot.lane.b32.xlu0 %v4544, 115
    %v6756 = vpop.permute.xlu0 %6755
    %v6757 = vsel %vm847, %v6756, %v3357
    %6759 = vrot.lane.b32.xlu0 %v4549, 114
    %v6760 = vpop.permute.xlu0 %6759
    %v6761 = vsel %vm854, %v6760, %v3363
    %6763 = vrot.lane.b32.xlu0 %v4554, 113
    %v6764 = vpop.permute.xlu0 %6763
    %v6765 = vsel %vm861, %v6764, %v3369
    %v6767 = vsel %vm864, %v4559, %v6709
    %v6768 = vsel %vm866, %v6767, %v6713
    %v6769 = vsel %vm868, %v6768, %v6717
    %v6770 = vsel %vm870, %v6769, %v6721
    %v6771 = vsel %vm872, %v6770, %v6725
    %v6772 = vsel %vm874, %v6771, %v6729
    %v6773 = vsel %vm876, %v6772, %v6733
    %v6774 = vsel %vm864, %v6737, %v6741
    %v6775 = vsel %vm866, %v6774, %v6745
    %v6776 = vsel %vm868, %v6775, %v6749
    %v6777 = vsel %vm870, %v6776, %v6753
    %v6778 = vsel %vm872, %v6777, %v6757
    %v6779 = vsel %vm874, %v6778, %v6761
    %v6780 = vsel %vm876, %v6779, %v6765
    %6783 = vrot.lane.b32.xlu0 %v6773, 112
    %v6784 = vpop.permute.xlu0 %6783
    %6785 = vrot.lane.b32.xlu0 %v6780, 112
    %v6786 = vpop.permute.xlu0 %6785
    %v6787 = vsel %vm926, %v6784, %v3423
    %v6788 = vsel %vm926, %v6786, %v3427
    %6791 = vmatprep.subr.mxu0 0.0
    %6792 = vmatpush1.xpose.msra.mxu0 0.0
    %6793 = vmatprep.subr.mxu0 0.0
    %6794 = vmatpush1.xpose.msra.mxu0 0.0
    %6795 = vmatprep.subr.mxu0 0.0
    %6796 = vmatpush1.xpose.msra.mxu0 0.0
    %6797 = vmatprep.subr.mxu0 0.0
    %6798 = vmatpush1.xpose.msra.mxu0 0.0
    %6799 = vmatprep.subr.mxu0 0.0
    %6800 = vmatpush1.xpose.msra.mxu0 0.0
    %6801 = vmatprep.subr.mxu0 0.0
    %6802 = vmatpush1.xpose.msra.mxu0 0.0
    %6803 = vmatprep.subr.mxu0 0.0
    %6804 = vmatpush1.xpose.msra.mxu0 0.0
    %6805 = vmatprep.subr.mxu0 0.0
    %6806 = vmatpush1.xpose.msra.mxu0 0.0
    %6807 = vmatprep.subr.mxu0 0.0
    %6808 = vmatpush1.xpose.msra.mxu0 %v6705
    %6809 = vmatprep.subr.mxu0 0.0
    %6810 = vmatpush1.xpose.msra.mxu0 %v6704
    %6811 = vmatprep.subr.mxu0 0.0
    %6812 = vmatpush1.xpose.msra.mxu0 %v6703
    %6813 = vmatprep.subr.mxu0 0.0
    %6814 = vmatpush1.xpose.msra.mxu0 %v6702
    %6815 = vmatprep.subr.mxu0 0.0
    %6816 = vmatpush1.xpose.msra.mxu0 %v6701
    %6817 = vmatprep.subr.mxu0 0.0
    %6818 = vmatpush1.xpose.msra.mxu0 %v6700
    %6819 = vmatprep.subr.mxu0 0.0
    %6820 = vmatpush1.xpose.msra.mxu0 %v6699
    %6821 = vmatprep.subr.mxu0 0.0
    %6822 = vmatpush1.xpose.msra.mxu0 %v6698
    %6823 = vmatprep.subr.mxu0 0.0
    %6824 = vmatpush2.xpose.msra.mxu0 0.0
    %6825 = vmatprep.subr.mxu0 0.0
    %6826 = vmatpush2.xpose.msra.mxu0 0.0
    %6827 = vmatprep.subr.mxu0 0.0
    %6828 = vmatpush2.xpose.msra.mxu0 0.0
    %6829 = vmatprep.subr.mxu0 0.0
    %6830 = vmatpush2.xpose.msra.mxu0 0.0
    %6831 = vmatprep.subr.mxu0 0.0
    %6832 = vmatpush2.xpose.msra.mxu0 0.0
    %6833 = vmatprep.subr.mxu0 0.0
    %6834 = vmatpush2.xpose.msra.mxu0 0.0
    %6835 = vmatprep.subr.mxu0 0.0
    %6836 = vmatpush2.xpose.msra.mxu0 0.0
    %6837 = vmatprep.subr.mxu0 0.0
    %6838 = vmatpush2.xpose.msra.mxu0 0.0
    %6839 = vmatprep.subr.mxu0 0.0
    %6840 = vmatpush2.xpose.msra.mxu0 0.0
    %6841 = vmatprep.subr.mxu0 0.0
    %6842 = vmatpush2.xpose.msra.mxu0 0.0
    %6843 = vmatprep.subr.mxu0 0.0
    %6844 = vmatpush2.xpose.msra.mxu0 0.0
    %6845 = vmatprep.subr.mxu0 0.0
    %6846 = vmatpush2.xpose.msra.mxu0 0.0
    %6847 = vmatprep.subr.mxu0 0.0
    %6848 = vmatpush2.xpose.msra.mxu0 0.0
    %6849 = vmatprep.subr.mxu0 0.0
    %6850 = vmatpush2.xpose.msra.mxu0 0.0
    %6851 = vmatprep.subr.mxu0 0.0
    %6852 = vmatpush2.xpose.msra.mxu0 0.0
    %6853 = vmatprep.subr.mxu0 0.0
    %6854 = vmatpush2.xpose.msra.mxu0 0.0
    %6855 = vmatprep.mubr.f32.mxu0 0.0
    %6856 = vmatmul.mubr.f32.gmra.mxu0 %v6773
    %v6857 = vpop.f32.mrf.mxu0
    %v6858 = vadd.f32 0.0, %v6857
    %v6859 = vpop.f32.mrf.mxu0
    %6860 = vmatprep.mubr.f32.mxu0 0.0
    %6861 = vmatmul.mubr.f32.gmra.mxu0 %v6780
    %v6862 = vpop.f32.mrf.mxu0
    %v6863 = vadd.f32 0.0, %v6862
    %v6864 = vpop.f32.mrf.mxu0
    %6865 = vmatprep.mubr.f32.mxu0 0.0
    %6866 = vmatmul.mubr.f32.gmra.mxu0 %v6787
    %v6867 = vpop.f32.mrf.mxu0
    %v6868 = vadd.f32 0.0, %v6867
    %v6869 = vpop.f32.mrf.mxu0
    %6870 = vmatprep.mubr.f32.mxu0 0.0
    %6871 = vmatmul.mubr.f32.gmra.mxu0 %v6788
    %v6872 = vpop.f32.mrf.mxu0
    %v6873 = vadd.f32 0.0, %v6872
    %v6874 = vpop.f32.mrf.mxu0
    %6875 = vdwg.mxu0
    %6876 = vmatprep.subr.mxu0 0.0
    %6877 = vmatpush1.msra.mxu0 0.0
    %6878 = vmatprep.subr.mxu0 0.0
    %6879 = vmatpush1.msra.mxu0 0.0
    %6880 = vmatprep.subr.mxu0 0.0
    %6881 = vmatpush1.msra.mxu0 0.0
    %6882 = vmatprep.subr.mxu0 0.0
    %6883 = vmatpush1.msra.mxu0 0.0
    %6884 = vmatprep.subr.mxu0 0.0
    %6885 = vmatpush1.msra.mxu0 0.0
    %6886 = vmatprep.subr.mxu0 0.0
    %6887 = vmatpush1.msra.mxu0 0.0
    %6888 = vmatprep.subr.mxu0 0.0
    %6889 = vmatpush1.msra.mxu0 0.0
    %6890 = vmatprep.subr.mxu0 0.0
    %6891 = vmatpush1.msra.mxu0 0.0
    %6892 = vmatprep.subr.mxu0 0.0
    %6893 = vmatpush1.msra.mxu0 0.0
    %6894 = vmatprep.subr.mxu0 0.0
    %6895 = vmatpush1.msra.mxu0 0.0
    %6896 = vmatprep.subr.mxu0 0.0
    %6897 = vmatpush1.msra.mxu0 0.0
    %6898 = vmatprep.subr.mxu0 0.0
    %6899 = vmatpush1.msra.mxu0 0.0
    %6900 = vmatprep.subr.mxu0 0.0
    %6901 = vmatpush1.msra.mxu0 %v6873
    %6902 = vmatprep.subr.mxu0 0.0
    %6903 = vmatpush1.msra.mxu0 %v6868
    %6904 = vmatprep.subr.mxu0 0.0
    %6905 = vmatpush1.msra.mxu0 %v6863
    %6906 = vmatprep.subr.mxu0 0.0
    %6907 = vmatpush1.msra.mxu0 %v6858
    %6908 = vmatprep.subr.mxu0 0.0
    %6909 = vmatpush2.msra.mxu0 0.0
    %6910 = vmatprep.subr.mxu0 0.0
    %6911 = vmatpush2.msra.mxu0 0.0
    %6912 = vmatprep.subr.mxu0 0.0
    %6913 = vmatpush2.msra.mxu0 0.0
    %6914 = vmatprep.subr.mxu0 0.0
    %6915 = vmatpush2.msra.mxu0 0.0
    %6916 = vmatprep.subr.mxu0 0.0
    %6917 = vmatpush2.msra.mxu0 0.0
    %6918 = vmatprep.subr.mxu0 0.0
    %6919 = vmatpush2.msra.mxu0 0.0
    %6920 = vmatprep.subr.mxu0 0.0
    %6921 = vmatpush2.msra.mxu0 0.0
    %6922 = vmatprep.subr.mxu0 0.0
    %6923 = vmatpush2.msra.mxu0 0.0
    %6924 = vmatprep.subr.mxu0 0.0
    %6925 = vmatpush2.msra.mxu0 0.0
    %6926 = vmatprep.subr.mxu0 0.0
    %6927 = vmatpush2.msra.mxu0 0.0
    %6928 = vmatprep.subr.mxu0 0.0
    %6929 = vmatpush2.msra.mxu0 0.0
    %6930 = vmatprep.subr.mxu0 0.0
    %6931 = vmatpush2.msra.mxu0 0.0
    %6932 = vmatprep.subr.mxu0 0.0
    %6933 = vmatpush2.msra.mxu0 0.0
    %6934 = vmatprep.subr.mxu0 0.0
    %6935 = vmatpush2.msra.mxu0 0.0
    %6936 = vmatprep.subr.mxu0 0.0
    %6937 = vmatpush2.msra.mxu0 0.0
    %6938 = vmatprep.subr.mxu0 0.0
    %6939 = vmatpush2.msra.mxu0 0.0
    %6940 = vmatprep.mubr.f32.mxu0 0.0
    %6941 = vmatmul.mubr.f32.gmra.mxu0 %v3550
    %v6942 = vpop.f32.mrf.mxu0
    %v6943 = vadd.f32 0.0, %v6942
    %v6944 = vpop.f32.mrf.mxu0
    %6945 = vmatprep.mubr.f32.mxu0 0.0
    %6946 = vmatmul.mubr.f32.gmra.mxu0 %v3553
    %v6947 = vpop.f32.mrf.mxu0
    %v6948 = vadd.f32 0.0, %v6947
    %v6949 = vpop.f32.mrf.mxu0
    %6950 = vmatprep.mubr.f32.mxu0 0.0
    %6951 = vmatmul.mubr.f32.gmra.mxu0 %v3556
    %v6952 = vpop.f32.mrf.mxu0
    %v6953 = vadd.f32 0.0, %v6952
    %v6954 = vpop.f32.mrf.mxu0
    %6955 = vmatprep.mubr.f32.mxu0 0.0
    %6956 = vmatmul.mubr.f32.gmra.mxu0 %v3559
    %v6957 = vpop.f32.mrf.mxu0
    %v6958 = vadd.f32 0.0, %v6957
    %v6959 = vpop.f32.mrf.mxu0
    %6960 = vdwg.mxu0
    %v6961 = vadd.f32 %v6238, %v6943
    %v6962 = vadd.f32 %v6239, %v6948
    %v6963 = vadd.f32 %v6240, %v6953
    %v6964 = vadd.f32 %v6241, %v6958
    %v6965 = vadd.f32 %v6961, %v3653
    %v6966 = vadd.f32 %v6962, %v3658
    %v6967 = vadd.f32 %v6963, %v3663
    %v6968 = vadd.f32 %v6964, %v3668
    %vm6969 = vcmp.ge.f32.partialorder %v6965, 0.0
    %vm6970 = vcmp.ge.f32.partialorder %v6966, 0.0
    %vm6971 = vcmp.ge.f32.partialorder %v6967, 0.0
    %vm6972 = vcmp.ge.f32.partialorder %v6968, 0.0
    %v6973 = vmul.f32 %v6965, 0.1
    %v6974 = vmul.f32 %v6966, 0.1
    %v6975 = vmul.f32 %v6967, 0.1
    %v6976 = vmul.f32 %v6968, 0.1
    %v6977 = vsel %vm6969, %v6965, %v6973
    %v6978 = vsel %vm6970, %v6966, %v6974
    %v6979 = vsel %vm6971, %v6967, %v6975
    %v6980 = vsel %vm6972, %v6968, %v6976
    %6981 = vmatprep.subr.mxu0 0.0
    %6982 = vmatpush1.msra.mxu0 0.0
    %6983 = vmatprep.subr.mxu0 0.0
    %6984 = vmatpush1.msra.mxu0 0.0
    %6985 = vmatprep.subr.mxu0 0.0
    %6986 = vmatpush1.msra.mxu0 0.0
    %6987 = vmatprep.subr.mxu0 0.0
    %6988 = vmatpush1.msra.mxu0 0.0
    %6989 = vmatprep.subr.mxu0 0.0
    %6990 = vmatpush1.msra.mxu0 0.0
    %6991 = vmatprep.subr.mxu0 0.0
    %6992 = vmatpush1.msra.mxu0 0.0
    %6993 = vmatprep.subr.mxu0 0.0
    %6994 = vmatpush1.msra.mxu0 0.0
    %6995 = vmatprep.subr.mxu0 0.0
    %6996 = vmatpush1.msra.mxu0 0.0
    %6997 = vmatprep.subr.mxu0 0.0
    %6998 = vmatpush1.msra.mxu0 0.0
    %6999 = vmatprep.subr.mxu0 0.0
    %7000 = vmatpush1.msra.mxu0 0.0
    %7001 = vmatprep.subr.mxu0 0.0
    %7002 = vmatpush1.msra.mxu0 0.0
    %7003 = vmatprep.subr.mxu0 0.0
    %7004 = vmatpush1.msra.mxu0 0.0
    %7005 = vmatprep.subr.mxu0 0.0
    %7006 = vmatpush1.msra.mxu0 %v6980
    %7007 = vmatprep.subr.mxu0 0.0
    %7008 = vmatpush1.msra.mxu0 %v6979
    %7009 = vmatprep.subr.mxu0 0.0
    %7010 = vmatpush1.msra.mxu0 %v6978
    %7011 = vmatprep.subr.mxu0 0.0
    %7012 = vmatpush1.msra.mxu0 %v6977
    %7013 = vmatprep.subr.mxu0 0.0
    %7014 = vmatpush2.msra.mxu0 0.0
    %7015 = vmatprep.subr.mxu0 0.0
    %7016 = vmatpush2.msra.mxu0 0.0
    %7017 = vmatprep.subr.mxu0 0.0
    %7018 = vmatpush2.msra.mxu0 0.0
    %7019 = vmatprep.subr.mxu0 0.0
    %7020 = vmatpush2.msra.mxu0 0.0
    %7021 = vmatprep.subr.mxu0 0.0
    %7022 = vmatpush2.msra.mxu0 0.0
    %7023 = vmatprep.subr.mxu0 0.0
    %7024 = vmatpush2.msra.mxu0 0.0
    %7025 = vmatprep.subr.mxu0 0.0
    %7026 = vmatpush2.msra.mxu0 0.0
    %7027 = vmatprep.subr.mxu0 0.0
    %7028 = vmatpush2.msra.mxu0 0.0
    %7029 = vmatprep.subr.mxu0 0.0
    %7030 = vmatpush2.msra.mxu0 0.0
    %7031 = vmatprep.subr.mxu0 0.0
    %7032 = vmatpush2.msra.mxu0 0.0
    %7033 = vmatprep.subr.mxu0 0.0
    %7034 = vmatpush2.msra.mxu0 0.0
    %7035 = vmatprep.subr.mxu0 0.0
    %7036 = vmatpush2.msra.mxu0 0.0
    %7037 = vmatprep.subr.mxu0 0.0
    %7038 = vmatpush2.msra.mxu0 0.0
    %7039 = vmatprep.subr.mxu0 0.0
    %7040 = vmatpush2.msra.mxu0 0.0
    %7041 = vmatprep.subr.mxu0 0.0
    %7042 = vmatpush2.msra.mxu0 0.0
    %7043 = vmatprep.subr.mxu0 0.0
    %7044 = vmatpush2.msra.mxu0 0.0
    %7045 = vmatprep.mubr.f32.mxu0 0.0
    %7046 = vmatmul.mubr.f32.gmra.mxu0 %v3735
    %v7047 = vpop.f32.mrf.mxu0
    %v7048 = vadd.f32 %v3688, %v7047
    %v7049 = vpop.f32.mrf.mxu0
    %7050 = vmatprep.mubr.f32.mxu0 0.0
    %7051 = vmatmul.mubr.f32.gmra.mxu0 %v3738
    %v7052 = vpop.f32.mrf.mxu0
    %v7053 = vadd.f32 %v3692, %v7052
    %v7054 = vpop.f32.mrf.mxu0
    %7055 = vmatprep.mubr.f32.mxu0 0.0
    %7056 = vmatmul.mubr.f32.gmra.mxu0 %v3741
    %v7057 = vpop.f32.mrf.mxu0
    %v7058 = vadd.f32 %v3696, %v7057
    %v7059 = vpop.f32.mrf.mxu0
    %7060 = vmatprep.mubr.f32.mxu0 0.0
    %7061 = vmatmul.mubr.f32.gmra.mxu0 %v3744
    %v7062 = vpop.f32.mrf.mxu0
    %v7063 = vadd.f32 %v3700, %v7062
    %v7064 = vpop.f32.mrf.mxu0
    %7065 = vdwg.mxu0
    %vm7066 = vcmp.ge.f32.partialorder %v7048, 0.0
    %vm7067 = vcmp.ge.f32.partialorder %v7053, 0.0
    %vm7068 = vcmp.ge.f32.partialorder %v7058, 0.0
    %vm7069 = vcmp.ge.f32.partialorder %v7063, 0.0
    %v7070 = vmul.f32 %v7048, 0.1
    %v7071 = vmul.f32 %v7053, 0.1
    %v7072 = vmul.f32 %v7058, 0.1
    %v7073 = vmul.f32 %v7063, 0.1
    %v7074 = vsel %vm7066, %v7048, %v7070
    %v7075 = vsel %vm7067, %v7053, %v7071
    %v7076 = vsel %vm7068, %v7058, %v7072
    %v7077 = vsel %vm7069, %v7063, %v7073
    %v7078 = vmul.f32 %v3845, %v7074
    %v7079 = vmul.f32 %v3849, %v7075
    %v7080 = vmul.f32 %v3853, %v7076
    %v7081 = vmul.f32 %v3857, %v7077
    %v7082 = vsel %vm3863, %v7078, 0.0
    %v7083 = vsel %vm3863, %v7079, 0.0
    %v7084 = vadd.f32 %v7082, %v7083
    %v7085 = vsel %vm3863, %v7080, 0.0
    %v7086 = vadd.f32 %v7084, %v7085
    %v7087 = vsel %vm3863, %v7081, 0.0
    %v7088 = vadd.f32 %v7086, %v7087
    %v7089 = vrot.slane %v7088, 4
    %v7090 = vadd.f32 %v7088, %v7089
    %v7091 = vrot.slane %v7090, 2
    %v7092 = vadd.f32 %v7090, %v7091
    %v7093 = vrot.slane %v7092, 1
    %v7094 = vadd.f32 %v7092, %v7093
    %v7095 = vadd.f32 %v7094, %v3877
    %7096 = vst.msk [vmem:[#allocation5 + $0x1] sm:$0x1] %vm3879, %v7095
    // Predicated region
    $region30: #{tof_net_forward.1} parent=1 // pred_check
      _
    $region31: #{tof_net_forward.1} parent=1 // pred_check_branch
      %7098 = sbr.rel (0) target = $region33
    $region32: #{tof_net_forward.1} parent=1 // pred_region
      %s7100 = ssub.s32 32, 32
      %7101 = vsyncadd [#allocation3], %s7100
      %s7103 = sshll.u32 [#allocation5], 4
      %s7104 = int_to_ptr.vmem [resolvable:$true] %s7103
      %7106 = dma.vmem_to_hbm [thread:$0]  %s7104, 32, %s6, [#allocation3]
    $region33: #{tof_net_forward.1} parent=1 // pred_fallthru
      _
    // Predicated region
    $region34: #{tof_net_forward.1} parent=1 // pred_check
      _
    $region35: #{tof_net_forward.1} parent=1 // pred_check_branch
      %7108 = sbr.rel (0) target = $region37
    $region36: #{tof_net_forward.1} parent=1 // pred_region
      %7109 = dma.done [#allocation3], 32
    $region37: #{tof_net_forward.1} parent=1 // pred_fallthru
      _
    %7110 = vsyncpa [#allocation3], 1
    %7111 = vsyncpa [#allocation4], 1

</llo_original>
